<compile_context>
chip_gen: v7x
topology: tpu7x:2x2x1
jax: 0.10.0
libtpu: 0.0.40
codegen_flags: <defaults>
</compile_context>

<pallas_src>
import functools
import math

import jax
import jax.numpy as jnp
from jax.experimental import pallas as pl
from jax.experimental.pallas import tpu as pltpu

# ---- model hyper-params (small, consistent with the module's structure) ----
D_MODEL = 128          # torch default is 512; kept small for a quick synthetic run
H = 4                  # torch default is 8
NUM_LAYERS = 6
LN_EPS = 1e-5
_SCALE = 1.0 / math.sqrt(D_MODEL)   # torch divides by sqrt(d_model); head dim == d_model


# ----------------------------- in-kernel helpers -----------------------------

def _layernorm(x, g, b):
    """LayerNorm over the last dim (f32 math, eps matches torch)."""
    mu = jnp.mean(x, axis=-1, keepdims=True)
    var = jnp.mean((x - mu) ** 2, axis=-1, keepdims=True)
    return (x - mu) * jax.lax.rsqrt(var + LN_EPS) * g + b


def _causal_mask(s):
    """-inf strictly above the diagonal, 0 elsewhere (built in-kernel, no DMA)."""
    rows = jax.lax.broadcasted_iota(jnp.int32, (s, s), 0)
    cols = jax.lax.broadcasted_iota(jnp.int32, (s, s), 1)
    return jnp.where(cols > rows, -jnp.inf, 0.0).astype(jnp.float32)


def _mha_core(q, k, v, mask, B, Sq, Skv, D):
    """Scaled-dot-product attention, batched over B, unrolled over heads.

    q: (B*Sq, H*D) f32 (scale already folded into the Q weights),
    k/v: (B*Skv, H*D) f32.  Head tiles are contiguous lane slices
    (head-major weight layout).  mask: (Sq, Skv) additive bias or None.
    Returns the (B*Sq, H*D) bf16 attention output, ready for the wo matmul.
    """
    nheads = q.shape[1] // D
    q3 = q.reshape(B, Sq, nheads * D).astype(jnp.bfloat16)
    k3 = k.reshape(B, Skv, nheads * D).astype(jnp.bfloat16)
    v3 = v.reshape(B, Skv, nheads * D).astype(jnp.bfloat16)
    head_outs = []
    for h in range(nheads):
        qh = q3[:, :, h * D:(h + 1) * D]            # (B, Sq, D) bf16
        kh = k3[:, :, h * D:(h + 1) * D]            # (B, Skv, D) bf16
        vh = v3[:, :, h * D:(h + 1) * D]            # (B, Skv, D) bf16
        # batched q.k^T with contraction on the last dims -> no materialized k.T
        s = jax.lax.dot_general(qh, kh, (((2,), (2,)), ((0,), (0,))),
                                preferred_element_type=jnp.float32)   # (B, Sq, Skv)
        if mask is not None:
            s = s + mask
        m = jnp.max(s, axis=-1, keepdims=True)
        p = jnp.exp(s - m)
        p = p * pl.reciprocal(jnp.sum(p, axis=-1, keepdims=True), approx=True)
        oh = jax.lax.dot_general(p.astype(jnp.bfloat16), vh,
                                 (((2,), (1,)), ((0,), (0,))),
                                 preferred_element_type=jnp.float32)  # (B, Sq, D)
        head_outs.append(oh)
    out = jnp.concatenate(head_outs, axis=-1)        # (B, Sq, H*D) f32
    return out.reshape(B * Sq, nheads * D).astype(jnp.bfloat16)


# ------------------------------- stack kernels -------------------------------

def _encoder_stack_kernel(x_ref, wqkv_ref, bqkv_ref, wo_ref, bo_ref,
                          ln1g_ref, ln1b_ref,
                          w1_ref, b1_ref, w2_ref, b2_ref,
                          ln2g_ref, ln2b_ref,
                          o_ref, *, B, S):
    """One grid step == one encoder layer; o_ref carries the activations."""
    l = pl.program_id(0)

    @pl.when(l == 0)
    def _():
        o_ref[...] = x_ref[...]                     # seed the resident activation slab

    x = o_ref[...]                                  # (B*S, D) f32, previous layer output
    D = x.shape[1]
    HD = wo_ref.shape[0]                            # H*D

    # fused Q|K|V projection (scale folded into the Q columns at init)
    qkv = jnp.dot(x.astype(jnp.bfloat16), wqkv_ref[...],
                  preferred_element_type=jnp.float32) + bqkv_ref[...]
    q = qkv[:, :HD]
    k = qkv[:, HD:2 * HD]
    v = qkv[:, 2 * HD:3 * HD]

    # self-attention (no mask)
    attn_h = _mha_core(q, k, v, None, B, S, S, D)   # (B*S, H*D) bf16
    attn = jnp.dot(attn_h, wo_ref[...],
                   preferred_element_type=jnp.float32) + bo_ref[...]

    # Add & Norm 1
    an1 = _layernorm(x + attn, ln1g_ref[...], ln1b_ref[...])

    # feed-forward (w1 + ReLU + w2) fused
    f1 = jnp.maximum(
        jnp.dot(an1.astype(jnp.bfloat16), w1_ref[...],
                preferred_element_type=jnp.float32) + b1_ref[...], 0.0)
    f2 = jnp.dot(f1.astype(jnp.bfloat16), w2_ref[...],
                 preferred_element_type=jnp.float32) + b2_ref[...]

    # Add & Norm 2 -> next layer input
    o_ref[...] = _layernorm(an1 + f2, ln2g_ref[...], ln2b_ref[...])


def _decoder_stack_kernel(dec_ref, enc_ref,
                          wqkv1_ref, bqkv1_ref, wo1_ref, bo1_ref,
                          ln1g_ref, ln1b_ref,
                          wq2_ref, bq2_ref, wkv2_ref, bkv2_ref, wo2_ref, bo2_ref,
                          ln2g_ref, ln2b_ref,
                          w1_ref, b1_ref, w2_ref, b2_ref,
                          ln3g_ref, ln3b_ref,
                          outw_ref, outb_ref,
                          logits_ref, dec_state, *, B, Sd, Se):
    """One grid step == one decoder layer; the final logits projection is fused
    into the last grid step.  dec_state (VMEM scratch) carries the activations."""
    l = pl.program_id(0)

    @pl.when(l == 0)
    def _():
        dec_state[...] = dec_ref[...]               # seed the resident activation slab

    x = dec_state[...]                              # (B*Sd, D) f32
    enc = enc_ref[...]                              # (B*Se, D) f32, loaded once (resident)
    D = x.shape[1]
    HD = wo1_ref.shape[0]

    mask = _causal_mask(Sd)

    # --- masked self-attention ---
    qkv = jnp.dot(x.astype(jnp.bfloat16), wqkv1_ref[...],
                  preferred_element_type=jnp.float32) + bqkv1_ref[...]
    q = qkv[:, :HD]
    k = qkv[:, HD:2 * HD]
    v = qkv[:, 2 * HD:3 * HD]
    attn1_h = _mha_core(q, k, v, mask, B, Sd, Sd, D)
    masked = jnp.dot(attn1_h, wo1_ref[...],
                     preferred_element_type=jnp.float32) + bo1_ref[...]
    an1 = _layernorm(x + masked, ln1g_ref[...], ln1b_ref[...])

    # --- cross-attention ---
    # NOTE: faithful to the PyTorch module, the query is `masked`
    # (the pre-LayerNorm self-attention output), not an1.
    q2 = jnp.dot(masked.astype(jnp.bfloat16), wq2_ref[...],
                 preferred_element_type=jnp.float32) + bq2_ref[...]
    kv2 = jnp.dot(enc.astype(jnp.bfloat16), wkv2_ref[...],
                  preferred_element_type=jnp.float32) + bkv2_ref[...]
    k2 = kv2[:, :HD]
    v2 = kv2[:, HD:2 * HD]
    attn2_h = _mha_core(q2, k2, v2, None, B, Sd, Se, D)
    attended = jnp.dot(attn2_h, wo2_ref[...],
                       preferred_element_type=jnp.float32) + bo2_ref[...]
    an2 = _layernorm(an1 + attended, ln2g_ref[...], ln2b_ref[...])

    # --- feed-forward + Add & Norm 3 ---
    f1 = jnp.maximum(
        jnp.dot(an2.astype(jnp.bfloat16), w1_ref[...],
                preferred_element_type=jnp.float32) + b1_ref[...], 0.0)
    f2 = jnp.dot(f1.astype(jnp.bfloat16), w2_ref[...],
                 preferred_element_type=jnp.float32) + b2_ref[...]
    out = _layernorm(an2 + f2, ln3g_ref[...], ln3b_ref[...])
    dec_state[...] = out

    # fused final logits projection on the last layer (padded to 128 lanes)
    @pl.when(l == pl.num_programs(0) - 1)
    def _():
        logits_ref[...] = jnp.dot(out.astype(jnp.bfloat16), outw_ref[...],
                                  preferred_element_type=jnp.float32) + outb_ref[...]


# ------------------------------ pallas wrappers --------------------------------

def _wspec(r, c):
    """Per-layer weight: stacked (L, r, c), block = one layer, squeezed to (r, c)."""
    return pl.BlockSpec((None, r, c), lambda l: (l, 0, 0))


def _resident_spec(m, n):
    """Full-array block, same block for every layer -> VMEM-resident across the grid."""
    return pl.BlockSpec((m, n), lambda l: (0, 0))


_COMPILER_PARAMS = pltpu.CompilerParams(
    dimension_semantics=("arbitrary",),          # layers are sequentially dependent
    vmem_limit_bytes=32 * 1024 * 1024)           # raise v5e's 16 MiB default scoped limit


def encoder_stack(p, x2d, B, S):
    D = D_MODEL
    HD = H * D
    in_specs = [
        _resident_spec(B * S, D),                 # embedded input
        _wspec(D, 3 * HD), _wspec(1, 3 * HD),     # wqkv, bqkv
        _wspec(HD, D), _wspec(1, D),              # wo, bo
        _wspec(1, D), _wspec(1, D),               # ln1 g, b
        _wspec(D, 4 * D), _wspec(1, 4 * D),       # ff w1, b1
        _wspec(4 * D, D), _wspec(1, D),           # ff w2, b2
        _wspec(1, D), _wspec(1, D),               # ln2 g, b
    ]
    return pl.pallas_call(
        functools.partial(_encoder_stack_kernel, B=B, S=S),
        grid_spec=pltpu.PrefetchScalarGridSpec(
            num_scalar_prefetch=0,
            grid=(NUM_LAYERS,),
            in_specs=in_specs,
            out_specs=_resident_spec(B * S, D)),
        out_shape=jax.ShapeDtypeStruct((B * S, D), jnp.float32),
        compiler_params=_COMPILER_PARAMS,
    )(x2d,
      p["mha"]["wqkv"], p["mha"]["bqkv"], p["mha"]["wo"], p["mha"]["bo"],
      p["ln1_g"], p["ln1_b"],
      p["ff"]["w1"], p["ff"]["b1"], p["ff"]["w2"], p["ff"]["b2"],
      p["ln2_g"], p["ln2_b"])


def decoder_stack(p, enc2d, dec2d, out_w, out_b, B, Sd, Se):
    D = D_MODEL
    HD = H * D
    Npad = out_w.shape[1]
    in_specs = [
        _resident_spec(B * Sd, D),                # embedded decoder input
        _resident_spec(B * Se, D),                # encoder output (loaded once)
        _wspec(D, 3 * HD), _wspec(1, 3 * HD),     # wqkv1, bqkv1
        _wspec(HD, D), _wspec(1, D),              # wo1, bo1
        _wspec(1, D), _wspec(1, D),               # ln1 g, b
        _wspec(D, HD), _wspec(1, HD),             # wq2, bq2
        _wspec(D, 2 * HD), _wspec(1, 2 * HD),     # wkv2, bkv2
        _wspec(HD, D), _wspec(1, D),              # wo2, bo2
        _wspec(1, D), _wspec(1, D),               # ln2 g, b
        _wspec(D, 4 * D), _wspec(1, 4 * D),       # ff w1, b1
        _wspec(4 * D, D), _wspec(1, D),           # ff w2, b2
        _wspec(1, D), _wspec(1, D),               # ln3 g, b
        _resident_spec(D, Npad),                  # final projection weight
        _resident_spec(1, Npad),                  # final projection bias
    ]
    return pl.pallas_call(
        functools.partial(_decoder_stack_kernel, B=B, Sd=Sd, Se=Se),
        grid_spec=pltpu.PrefetchScalarGridSpec(
            num_scalar_prefetch=0,
            grid=(NUM_LAYERS,),
            in_specs=in_specs,
            out_specs=_resident_spec(B * Sd, Npad),
            scratch_shapes=[pltpu.VMEM((B * Sd, D), jnp.float32)]),
        out_shape=jax.ShapeDtypeStruct((B * Sd, Npad), jnp.float32),
        compiler_params=_COMPILER_PARAMS,
    )(dec2d, enc2d,
      p["mha1"]["wqkv"], p["mha1"]["bqkv"], p["mha1"]["wo"], p["mha1"]["bo"],
      p["ln1_g"], p["ln1_b"],
      p["mha2"]["wq"], p["mha2"]["bq"], p["mha2"]["wkv"], p["mha2"]["bkv"],
      p["mha2"]["wo"], p["mha2"]["bo"],
      p["ln2_g"], p["ln2_b"],
      p["ff"]["w1"], p["ff"]["b1"], p["ff"]["w2"], p["ff"]["b2"],
      p["ln3_g"], p["ln3_b"],
      out_w, out_b)


# ------------------------------ glue (plain JAX) ------------------------------

def positional_encoding(max_len, d_model):
    pos = jnp.arange(max_len, dtype=jnp.float32)[:, None]
    div_even = 10000.0 ** (jnp.arange(0, d_model, 2, dtype=jnp.float32) / d_model)
    div_odd = 10000.0 ** (jnp.arange(1, d_model, 2, dtype=jnp.float32) / d_model)
    pe = jnp.zeros((max_len, d_model), jnp.float32)
    pe = pe.at[:, 0::2].set(jnp.sin(pos / div_even))
    pe = pe.at[:, 1::2].set(jnp.cos(pos / div_odd))
    return pe


# ------------------------------ full forward ----------------------------------

def transformer_forward(params, encoder_input, decoder_input, *, n_out):
    # encoder_input: (B, Se) int32, decoder_input: (B, Sd) int32
    assert encoder_input.shape[0] == decoder_input.shape[0]
    B, Se = encoder_input.shape
    Sd = decoder_input.shape[1]
    pe = params["pe"]

    # embedding gather + positional encoding stay in plain JAX (dynamic gather)
    enc_x = jnp.take(params["input_emb"], encoder_input, axis=0) + pe[:Se]
    enc = encoder_stack(params["enc_stack"], enc_x.reshape(B * Se, D_MODEL), B, Se)

    dec_x = jnp.take(params["output_emb"], decoder_input, axis=0) + pe[:Sd]
    logits_pad = decoder_stack(params["dec_stack"], enc,
                               dec_x.reshape(B * Sd, D_MODEL),
                               params["out_w"], params["out_b"], B, Sd, Se)
    return logits_pad[:, :n_out].reshape(B, Sd, n_out)
    # TODO(synk): `evaluate()` autoregressive decode loop (dynamic seq growth /
    # argmax sampling) is host-side control flow, not translated to a kernel.


# ------------------------------ parameter init --------------------------------

def init_linear(key, fan_in, fan_out):
    k1, k2 = jax.random.split(key)
    bound = 1.0 / math.sqrt(fan_in)
    w = jax.random.uniform(k1, (fan_in, fan_out), jnp.float32, -bound, bound)
    b = jax.random.uniform(k2, (fan_out,), jnp.float32, -bound, bound)
    return w, b


def _reorder_head_cols(w, b, d, h):
    """torch column layout (col = dim*h + head) -> head-major (col = head*d + dim)."""
    fan_in = w.shape[0]
    w2 = w.reshape(fan_in, d, h).transpose(0, 2, 1).reshape(fan_in, h * d)
    b2 = b.reshape(d, h).T.reshape(h * d)
    return w2, b2


def _reorder_head_rows(w, d, h):
    """torch row layout (row = dim*h + head) -> head-major (row = head*d + dim)."""
    fan_out = w.shape[1]
    return w.reshape(d, h, fan_out).transpose(1, 0, 2).reshape(h * d, fan_out)


def init_mha(key, cross=False):
    ks = jax.random.split(key, 4)
    wq, bq = init_linear(ks[0], D_MODEL, D_MODEL * H)
    wk, bk = init_linear(ks[1], D_MODEL, D_MODEL * H)
    wv, bv = init_linear(ks[2], D_MODEL, D_MODEL * H)
    wo, bo = init_linear(ks[3], D_MODEL * H, D_MODEL)
    # permute to head-major once at init so the kernels need no runtime transposes
    wq, bq = _reorder_head_cols(wq, bq, D_MODEL, H)
    wk, bk = _reorder_head_cols(wk, bk, D_MODEL, H)
    wv, bv = _reorder_head_cols(wv, bv, D_MODEL, H)
    wo = _reorder_head_rows(wo, D_MODEL, H)
    # fold the 1/sqrt(d_model) attention scale into the Q projection
    wq = wq * _SCALE
    bq = bq * _SCALE
    if cross:
        # cross-attention: q projected from the query stream, k|v from encoder output
        return dict(
            wq=wq.astype(jnp.bfloat16), bq=bq.reshape(1, -1),
            wkv=jnp.concatenate([wk, wv], axis=1).astype(jnp.bfloat16),
            bkv=jnp.concatenate([bk, bv]).reshape(1, -1),
            wo=wo.astype(jnp.bfloat16), bo=bo.reshape(1, -1))
    return dict(
        wqkv=jnp.concatenate([wq, wk, wv], axis=1).astype(jnp.bfloat16),
        bqkv=jnp.concatenate([bq, bk, bv]).reshape(1, -1),
        wo=wo.astype(jnp.bfloat16), bo=bo.reshape(1, -1))


def init_ff(key):
    k1, k2 = jax.random.split(key)
    w1, b1 = init_linear(k1, D_MODEL, D_MODEL * 4)
    w2, b2 = init_linear(k2, D_MODEL * 4, D_MODEL)
    return dict(w1=w1.astype(jnp.bfloat16), b1=b1.reshape(1, -1),
                w2=w2.astype(jnp.bfloat16), b2=b2.reshape(1, -1))


def ln_params():
    return jnp.ones((1, D_MODEL), jnp.float32), jnp.zeros((1, D_MODEL), jnp.float32)


def init_encoder(key):
    k1, k2 = jax.random.split(key)
    g1, b1 = ln_params()
    g2, b2 = ln_params()
    return dict(mha=init_mha(k1), ff=init_ff(k2),
                ln1_g=g1, ln1_b=b1, ln2_g=g2, ln2_b=b2)


def init_decoder(key):
    k1, k2, k3 = jax.random.split(key, 3)
    g1, b1 = ln_params()
    g2, b2 = ln_params()
    g3, b3 = ln_params()
    return dict(mha1=init_mha(k1), mha2=init_mha(k2, cross=True), ff=init_ff(k3),
                ln1_g=g1, ln1_b=b1, ln2_g=g2, ln2_b=b2, ln3_g=g3, ln3_b=b3)


def init_transformer(key, num_input_embeddings, num_output_embeddings, max_len=512):
    keys = jax.random.split(key, 16)
    enc_layers = [init_encoder(keys[2 + i]) for i in range(NUM_LAYERS)]
    dec_layers = [init_decoder(keys[8 + i]) for i in range(NUM_LAYERS)]
    stack = lambda *xs: jnp.stack(xs, axis=0)

    ow, ob = init_linear(keys[14], D_MODEL, num_output_embeddings)
    # pad the logits projection to a multiple of 128 lanes (dense stores);
    # the padded columns are sliced off in JAX after the kernel.
    n_pad = (-num_output_embeddings) % 128
    ow = jnp.pad(ow, ((0, 0), (0, n_pad))).astype(jnp.bfloat16)
    ob = jnp.pad(ob, (0, n_pad)).reshape(1, -1)

    return {
        "input_emb": jax.random.normal(keys[0],
                                       (num_input_embeddings, D_MODEL), jnp.float32),
        "output_emb": jax.random.normal(keys[1],
                                        (num_output_embeddings, D_MODEL), jnp.float32),
        "pe": positional_encoding(max_len, D_MODEL),
        # per-layer weights stacked along a leading layer dim -> one pallas_call per stack
        "enc_stack": jax.tree_util.tree_map(stack, *enc_layers),
        "dec_stack": jax.tree_util.tree_map(stack, *dec_layers),
        "out_w": ow,
        "out_b": ob,
    }


# ---------------------------------- main ---------------------------------------

if __name__ == "__main__":
    B = 2
    SEQ_ENC = 8
    SEQ_DEC = 8
    NUM_INPUT_EMB = 48
    NUM_OUTPUT_EMB = 64

    key = jax.random.PRNGKey(0)
    kp, ke, kd = jax.random.split(key, 3)

    params = init_transformer(kp, NUM_INPUT_EMB, NUM_OUTPUT_EMB)

    encoder_input = jax.random.randint(ke, (B, SEQ_ENC), 0, NUM_INPUT_EMB,
                                       dtype=jnp.int32)
    decoder_input = jax.random.randint(kd, (B, SEQ_DEC), 0, NUM_OUTPUT_EMB,
                                       dtype=jnp.int32)

    fwd = jax.jit(functools.partial(transformer_forward, n_out=NUM_OUTPUT_EMB))
    out = fwd(params, encoder_input, decoder_input)
    out = jax.block_until_ready(out)

    assert out.shape == (B, SEQ_DEC, NUM_OUTPUT_EMB)
    assert bool(jnp.all(jnp.isfinite(out)))
    print("KERNEL_OK")
</pallas_src>

<mosaic_0001>
module attributes {stable_mosaic.version = 11 : i64} {
  func.func @_decoder_stack_kernel(%arg0: i32, %arg1: memref<16x128xf32, #tpu.memory_space<vmem>>, %arg2: memref<16x128xf32, #tpu.memory_space<vmem>>, %arg3: memref<1x128x1536xbf16, #tpu.memory_space<vmem>>, %arg4: memref<1x1x1536xf32, #tpu.memory_space<vmem>>, %arg5: memref<1x512x128xbf16, #tpu.memory_space<vmem>>, %arg6: memref<1x1x128xf32, #tpu.memory_space<vmem>>, %arg7: memref<1x1x128xf32, #tpu.memory_space<vmem>>, %arg8: memref<1x1x128xf32, #tpu.memory_space<vmem>>, %arg9: memref<1x128x512xbf16, #tpu.memory_space<vmem>>, %arg10: memref<1x1x512xf32, #tpu.memory_space<vmem>>, %arg11: memref<1x128x1024xbf16, #tpu.memory_space<vmem>>, %arg12: memref<1x1x1024xf32, #tpu.memory_space<vmem>>, %arg13: memref<1x512x128xbf16, #tpu.memory_space<vmem>>, %arg14: memref<1x1x128xf32, #tpu.memory_space<vmem>>, %arg15: memref<1x1x128xf32, #tpu.memory_space<vmem>>, %arg16: memref<1x1x128xf32, #tpu.memory_space<vmem>>, %arg17: memref<1x128x512xbf16, #tpu.memory_space<vmem>>, %arg18: memref<1x1x512xf32, #tpu.memory_space<vmem>>, %arg19: memref<1x512x128xbf16, #tpu.memory_space<vmem>>, %arg20: memref<1x1x128xf32, #tpu.memory_space<vmem>>, %arg21: memref<1x1x128xf32, #tpu.memory_space<vmem>>, %arg22: memref<1x1x128xf32, #tpu.memory_space<vmem>>, %arg23: memref<128x128xbf16, #tpu.memory_space<vmem>>, %arg24: memref<1x128xf32, #tpu.memory_space<vmem>>, %arg25: memref<16x128xf32, #tpu.memory_space<vmem>>, %arg26: memref<16x128xf32, #tpu.memory_space<vmem>>) attributes {dimension_semantics = [#tpu.dimension_semantics<arbitrary>], iteration_bounds = array<i64: 6>, scalar_prefetch = 0 : i64, scratch_operands = 1 : i64, tpu.core_type = #tpu.core_type<tc>, window_params = [{pipeline_mode = #tpu.pipeline_mode<synchronous>, transform_indices = @transform_0, window_bounds = array<i64: 16, 128>}, {pipeline_mode = #tpu.pipeline_mode<synchronous>, transform_indices = @transform_1, window_bounds = array<i64: 16, 128>}, {transform_indices = @transform_2, window_bounds = array<i64: 1, 128, 1536>}, {transform_indices = @transform_3, window_bounds = array<i64: 1, 1, 1536>}, {transform_indices = @transform_4, window_bounds = array<i64: 1, 512, 128>}, {transform_indices = @transform_5, window_bounds = array<i64: 1, 1, 128>}, {transform_indices = @transform_6, window_bounds = array<i64: 1, 1, 128>}, {transform_indices = @transform_7, window_bounds = array<i64: 1, 1, 128>}, {transform_indices = @transform_8, window_bounds = array<i64: 1, 128, 512>}, {transform_indices = @transform_9, window_bounds = array<i64: 1, 1, 512>}, {transform_indices = @transform_10, window_bounds = array<i64: 1, 128, 1024>}, {transform_indices = @transform_11, window_bounds = array<i64: 1, 1, 1024>}, {transform_indices = @transform_12, window_bounds = array<i64: 1, 512, 128>}, {transform_indices = @transform_13, window_bounds = array<i64: 1, 1, 128>}, {transform_indices = @transform_14, window_bounds = array<i64: 1, 1, 128>}, {transform_indices = @transform_15, window_bounds = array<i64: 1, 1, 128>}, {transform_indices = @transform_16, window_bounds = array<i64: 1, 128, 512>}, {transform_indices = @transform_17, window_bounds = array<i64: 1, 1, 512>}, {transform_indices = @transform_18, window_bounds = array<i64: 1, 512, 128>}, {transform_indices = @transform_19, window_bounds = array<i64: 1, 1, 128>}, {transform_indices = @transform_20, window_bounds = array<i64: 1, 1, 128>}, {transform_indices = @transform_21, window_bounds = array<i64: 1, 1, 128>}, {pipeline_mode = #tpu.pipeline_mode<synchronous>, transform_indices = @transform_22, window_bounds = array<i64: 128, 128>}, {pipeline_mode = #tpu.pipeline_mode<synchronous>, transform_indices = @transform_23, window_bounds = array<i64: 1, 128>}, {pipeline_mode = #tpu.pipeline_mode<synchronous>, transform_indices = @transform_24, window_bounds = array<i64: 16, 128>}]} {
    %c0_i32 = arith.constant 0 : i32
    %0 = arith.cmpi eq, %arg0, %c0_i32 : i32
    %1 = arith.extui %0 : i1 to i32
    %c0_i32_0 = arith.constant 0 : i32
    %2 = arith.cmpi ne, %1, %c0_i32_0 : i32
    scf.if %2 {
      %c0_123 = arith.constant 0 : index
      %c0_124 = arith.constant 0 : index
      %315 = vector.load %arg1[%c0_123, %c0_124] : memref<16x128xf32, #tpu.memory_space<vmem>>, vector<16x128xf32>
      %c0_125 = arith.constant 0 : index
      %c0_126 = arith.constant 0 : index
      %316 = vector.load %arg26[%c0_125, %c0_126] : memref<16x128xf32, #tpu.memory_space<vmem>>, vector<16x128xf32>
      tpu.vector_store %arg26[%c0_125, %c0_126], %315 {strides = array<i32>} : memref<16x128xf32, #tpu.memory_space<vmem>>, vector<16x128xf32>,
    } else {
    }
    %c0 = arith.constant 0 : index
    %c0_1 = arith.constant 0 : index
    %3 = vector.load %arg26[%c0, %c0_1] : memref<16x128xf32, #tpu.memory_space<vmem>>, vector<16x128xf32>
    %c0_2 = arith.constant 0 : index
    %c0_3 = arith.constant 0 : index
    %4 = vector.load %arg2[%c0_2, %c0_3] : memref<16x128xf32, #tpu.memory_space<vmem>>, vector<16x128xf32>
    %5 = tpu.iota {dimensions = array<i32: 0>} : vector<8x8xi32>
    %6 = tpu.iota {dimensions = array<i32: 1>} : vector<8x8xi32>
    %7 = arith.cmpi sgt, %6, %5 : vector<8x8xi32>
    %cst = arith.constant 0xFF800000 : f32
    %cst_4 = arith.constant 0.000000e+00 : f32
    %8 = vector.broadcast %cst : f32 to vector<8x8xf32>
    %9 = vector.broadcast %cst_4 : f32 to vector<8x8xf32>
    %10 = arith.select %7, %8, %9 : vector<8x8xi1>, vector<8x8xf32>
    %11 = arith.truncf %3 : vector<16x128xf32> to vector<16x128xbf16>
    %c0_5 = arith.constant 0 : index
    %c0_6 = arith.constant 0 : index
    %c0_7 = arith.constant 0 : index
    %12 = vector.load %arg3[%c0_5, %c0_6, %c0_7] : memref<1x128x1536xbf16, #tpu.memory_space<vmem>>, vector<1x128x1536xbf16>
    %13 = vector.shape_cast %12 : vector<1x128x1536xbf16> to vector<128x1536xbf16>
    %cst_8 = arith.constant dense<0.000000e+00> : vector<16x1536xf32>
    %14 = tpu.matmul %11, %13, %cst_8 {dimension_numbers = #tpu.dot_dimension_numbers<[1], [0], [0], [1], [0, 0, 1, 1], [], []>} : vector<16x128xbf16>, vector<128x1536xbf16>, vector<16x1536xf32> -> vector<16x1536xf32>
    %c0_9 = arith.constant 0 : index
    %c0_10 = arith.constant 0 : index
    %c0_11 = arith.constant 0 : index
    %15 = vector.load %arg4[%c0_9, %c0_10, %c0_11] : memref<1x1x1536xf32, #tpu.memory_space<vmem>>, vector<1x1x1536xf32>
    %16 = vector.shape_cast %15 : vector<1x1x1536xf32> to vector<1x1536xf32>
    %17 = vector.broadcast %16 : vector<1x1536xf32> to vector<16x1536xf32>
    %18 = arith.addf %14, %17 : vector<16x1536xf32>
    %19 = vector.extract_strided_slice %18 {offsets = [0, 0], sizes = [16, 512], strides = [1, 1]} : vector<16x1536xf32> to vector<16x512xf32>
    %20 = vector.extract_strided_slice %18 {offsets = [0, 512], sizes = [16, 512], strides = [1, 1]} : vector<16x1536xf32> to vector<16x512xf32>
    %21 = vector.extract_strided_slice %18 {offsets = [0, 1024], sizes = [16, 512], strides = [1, 1]} : vector<16x1536xf32> to vector<16x512xf32>
    %22 = vector.shape_cast %19 : vector<16x512xf32> to vector<2x8x512xf32>
    %23 = arith.truncf %22 : vector<2x8x512xf32> to vector<2x8x512xbf16>
    %24 = vector.shape_cast %20 : vector<16x512xf32> to vector<2x8x512xf32>
    %25 = arith.truncf %24 : vector<2x8x512xf32> to vector<2x8x512xbf16>
    %26 = vector.shape_cast %21 : vector<16x512xf32> to vector<2x8x512xf32>
    %27 = arith.truncf %26 : vector<2x8x512xf32> to vector<2x8x512xbf16>
    %28 = vector.extract_strided_slice %23 {offsets = [0, 0, 0], sizes = [2, 8, 128], strides = [1, 1, 1]} : vector<2x8x512xbf16> to vector<2x8x128xbf16>
    %29 = vector.extract_strided_slice %25 {offsets = [0, 0, 0], sizes = [2, 8, 128], strides = [1, 1, 1]} : vector<2x8x512xbf16> to vector<2x8x128xbf16>
    %30 = vector.extract_strided_slice %27 {offsets = [0, 0, 0], sizes = [2, 8, 128], strides = [1, 1, 1]} : vector<2x8x512xbf16> to vector<2x8x128xbf16>
    %cst_12 = arith.constant dense<0.000000e+00> : vector<2x8x8xf32>
    %31 = tpu.matmul %28, %29, %cst_12 {dimension_numbers = #tpu.dot_dimension_numbers<[2], [2], [1], [1], [0, 0, 0, 1, 1, 1], [0], [0]>} : vector<2x8x128xbf16>, vector<2x8x128xbf16>, vector<2x8x8xf32> -> vector<2x8x8xf32>
    %32 = vector.shape_cast %10 : vector<8x8xf32> to vector<1x8x8xf32>
    %33 = vector.broadcast %32 : vector<1x8x8xf32> to vector<2x8x8xf32>
    %34 = arith.addf %31, %33 : vector<2x8x8xf32>
    %cst_13 = arith.constant dense<0xFF800000> : vector<2x8xf32>
    %35 = vector.multi_reduction <maximumf>, %34, %cst_13 [2] : vector<2x8x8xf32> to vector<2x8xf32>
    %36 = vector.shape_cast %35 : vector<2x8xf32> to vector<2x8x1xf32>
    %37 = vector.broadcast %36 : vector<2x8x1xf32> to vector<2x8x8xf32>
    %38 = arith.subf %34, %37 : vector<2x8x8xf32>
    %39 = math.exp %38 : vector<2x8x8xf32>
    %cst_14 = arith.constant dense<0.000000e+00> : vector<2x8xf32>
    %40 = vector.multi_reduction <add>, %39, %cst_14 [2] : vector<2x8x8xf32> to vector<2x8xf32>
    %41 = vector.shape_cast %40 : vector<2x8xf32> to vector<2x8x1xf32>
    %42 = tpu.reciprocal %41 {approx = true} : vector<2x8x1xf32> -> vector<2x8x1xf32>
    %43 = vector.broadcast %42 : vector<2x8x1xf32> to vector<2x8x8xf32>
    %44 = arith.mulf %39, %43 : vector<2x8x8xf32>
    %45 = arith.truncf %44 : vector<2x8x8xf32> to vector<2x8x8xbf16>
    %cst_15 = arith.constant dense<0.000000e+00> : vector<2x8x128xf32>
    %46 = tpu.matmul %45, %30, %cst_15 {dimension_numbers = #tpu.dot_dimension_numbers<[2], [1], [1], [2], [0, 0, 0, 1, 1, 2], [0], [0]>} : vector<2x8x8xbf16>, vector<2x8x128xbf16>, vector<2x8x128xf32> -> vector<2x8x128xf32>
    %47 = vector.extract_strided_slice %23 {offsets = [0, 0, 128], sizes = [2, 8, 128], strides = [1, 1, 1]} : vector<2x8x512xbf16> to vector<2x8x128xbf16>
    %48 = vector.extract_strided_slice %25 {offsets = [0, 0, 128], sizes = [2, 8, 128], strides = [1, 1, 1]} : vector<2x8x512xbf16> to vector<2x8x128xbf16>
    %49 = vector.extract_strided_slice %27 {offsets = [0, 0, 128], sizes = [2, 8, 128], strides = [1, 1, 1]} : vector<2x8x512xbf16> to vector<2x8x128xbf16>
    %cst_16 = arith.constant dense<0.000000e+00> : vector<2x8x8xf32>
    %50 = tpu.matmul %47, %48, %cst_16 {dimension_numbers = #tpu.dot_dimension_numbers<[2], [2], [1], [1], [0, 0, 0, 1, 1, 1], [0], [0]>} : vector<2x8x128xbf16>, vector<2x8x128xbf16>, vector<2x8x8xf32> -> vector<2x8x8xf32>
    %51 = vector.shape_cast %10 : vector<8x8xf32> to vector<1x8x8xf32>
    %52 = vector.broadcast %51 : vector<1x8x8xf32> to vector<2x8x8xf32>
    %53 = arith.addf %50, %52 : vector<2x8x8xf32>
    %cst_17 = arith.constant dense<0xFF800000> : vector<2x8xf32>
    %54 = vector.multi_reduction <maximumf>, %53, %cst_17 [2] : vector<2x8x8xf32> to vector<2x8xf32>
    %55 = vector.shape_cast %54 : vector<2x8xf32> to vector<2x8x1xf32>
    %56 = vector.broadcast %55 : vector<2x8x1xf32> to vector<2x8x8xf32>
    %57 = arith.subf %53, %56 : vector<2x8x8xf32>
    %58 = math.exp %57 : vector<2x8x8xf32>
    %cst_18 = arith.constant dense<0.000000e+00> : vector<2x8xf32>
    %59 = vector.multi_reduction <add>, %58, %cst_18 [2] : vector<2x8x8xf32> to vector<2x8xf32>
    %60 = vector.shape_cast %59 : vector<2x8xf32> to vector<2x8x1xf32>
    %61 = tpu.reciprocal %60 {approx = true} : vector<2x8x1xf32> -> vector<2x8x1xf32>
    %62 = vector.broadcast %61 : vector<2x8x1xf32> to vector<2x8x8xf32>
    %63 = arith.mulf %58, %62 : vector<2x8x8xf32>
    %64 = arith.truncf %63 : vector<2x8x8xf32> to vector<2x8x8xbf16>
    %cst_19 = arith.constant dense<0.000000e+00> : vector<2x8x128xf32>
    %65 = tpu.matmul %64, %49, %cst_19 {dimension_numbers = #tpu.dot_dimension_numbers<[2], [1], [1], [2], [0, 0, 0, 1, 1, 2], [0], [0]>} : vector<2x8x8xbf16>, vector<2x8x128xbf16>, vector<2x8x128xf32> -> vector<2x8x128xf32>
    %66 = vector.extract_strided_slice %23 {offsets = [0, 0, 256], sizes = [2, 8, 128], strides = [1, 1, 1]} : vector<2x8x512xbf16> to vector<2x8x128xbf16>
    %67 = vector.extract_strided_slice %25 {offsets = [0, 0, 256], sizes = [2, 8, 128], strides = [1, 1, 1]} : vector<2x8x512xbf16> to vector<2x8x128xbf16>
    %68 = vector.extract_strided_slice %27 {offsets = [0, 0, 256], sizes = [2, 8, 128], strides = [1, 1, 1]} : vector<2x8x512xbf16> to vector<2x8x128xbf16>
    %cst_20 = arith.constant dense<0.000000e+00> : vector<2x8x8xf32>
    %69 = tpu.matmul %66, %67, %cst_20 {dimension_numbers = #tpu.dot_dimension_numbers<[2], [2], [1], [1], [0, 0, 0, 1, 1, 1], [0], [0]>} : vector<2x8x128xbf16>, vector<2x8x128xbf16>, vector<2x8x8xf32> -> vector<2x8x8xf32>
    %70 = vector.shape_cast %10 : vector<8x8xf32> to vector<1x8x8xf32>
    %71 = vector.broadcast %70 : vector<1x8x8xf32> to vector<2x8x8xf32>
    %72 = arith.addf %69, %71 : vector<2x8x8xf32>
    %cst_21 = arith.constant dense<0xFF800000> : vector<2x8xf32>
    %73 = vector.multi_reduction <maximumf>, %72, %cst_21 [2] : vector<2x8x8xf32> to vector<2x8xf32>
    %74 = vector.shape_cast %73 : vector<2x8xf32> to vector<2x8x1xf32>
    %75 = vector.broadcast %74 : vector<2x8x1xf32> to vector<2x8x8xf32>
    %76 = arith.subf %72, %75 : vector<2x8x8xf32>
    %77 = math.exp %76 : vector<2x8x8xf32>
    %cst_22 = arith.constant dense<0.000000e+00> : vector<2x8xf32>
    %78 = vector.multi_reduction <add>, %77, %cst_22 [2] : vector<2x8x8xf32> to vector<2x8xf32>
    %79 = vector.shape_cast %78 : vector<2x8xf32> to vector<2x8x1xf32>
    %80 = tpu.reciprocal %79 {approx = true} : vector<2x8x1xf32> -> vector<2x8x1xf32>
    %81 = vector.broadcast %80 : vector<2x8x1xf32> to vector<2x8x8xf32>
    %82 = arith.mulf %77, %81 : vector<2x8x8xf32>
    %83 = arith.truncf %82 : vector<2x8x8xf32> to vector<2x8x8xbf16>
    %cst_23 = arith.constant dense<0.000000e+00> : vector<2x8x128xf32>
    %84 = tpu.matmul %83, %68, %cst_23 {dimension_numbers = #tpu.dot_dimension_numbers<[2], [1], [1], [2], [0, 0, 0, 1, 1, 2], [0], [0]>} : vector<2x8x8xbf16>, vector<2x8x128xbf16>, vector<2x8x128xf32> -> vector<2x8x128xf32>
    %85 = vector.extract_strided_slice %23 {offsets = [0, 0, 384], sizes = [2, 8, 128], strides = [1, 1, 1]} : vector<2x8x512xbf16> to vector<2x8x128xbf16>
    %86 = vector.extract_strided_slice %25 {offsets = [0, 0, 384], sizes = [2, 8, 128], strides = [1, 1, 1]} : vector<2x8x512xbf16> to vector<2x8x128xbf16>
    %87 = vector.extract_strided_slice %27 {offsets = [0, 0, 384], sizes = [2, 8, 128], strides = [1, 1, 1]} : vector<2x8x512xbf16> to vector<2x8x128xbf16>
    %cst_24 = arith.constant dense<0.000000e+00> : vector<2x8x8xf32>
    %88 = tpu.matmul %85, %86, %cst_24 {dimension_numbers = #tpu.dot_dimension_numbers<[2], [2], [1], [1], [0, 0, 0, 1, 1, 1], [0], [0]>} : vector<2x8x128xbf16>, vector<2x8x128xbf16>, vector<2x8x8xf32> -> vector<2x8x8xf32>
    %89 = vector.shape_cast %10 : vector<8x8xf32> to vector<1x8x8xf32>
    %90 = vector.broadcast %89 : vector<1x8x8xf32> to vector<2x8x8xf32>
    %91 = arith.addf %88, %90 : vector<2x8x8xf32>
    %cst_25 = arith.constant dense<0xFF800000> : vector<2x8xf32>
    %92 = vector.multi_reduction <maximumf>, %91, %cst_25 [2] : vector<2x8x8xf32> to vector<2x8xf32>
    %93 = vector.shape_cast %92 : vector<2x8xf32> to vector<2x8x1xf32>
    %94 = vector.broadcast %93 : vector<2x8x1xf32> to vector<2x8x8xf32>
    %95 = arith.subf %91, %94 : vector<2x8x8xf32>
    %96 = math.exp %95 : vector<2x8x8xf32>
    %cst_26 = arith.constant dense<0.000000e+00> : vector<2x8xf32>
    %97 = vector.multi_reduction <add>, %96, %cst_26 [2] : vector<2x8x8xf32> to vector<2x8xf32>
    %98 = vector.shape_cast %97 : vector<2x8xf32> to vector<2x8x1xf32>
    %99 = tpu.reciprocal %98 {approx = true} : vector<2x8x1xf32> -> vector<2x8x1xf32>
    %100 = vector.broadcast %99 : vector<2x8x1xf32> to vector<2x8x8xf32>
    %101 = arith.mulf %96, %100 : vector<2x8x8xf32>
    %102 = arith.truncf %101 : vector<2x8x8xf32> to vector<2x8x8xbf16>
    %cst_27 = arith.constant dense<0.000000e+00> : vector<2x8x128xf32>
    %103 = tpu.matmul %102, %87, %cst_27 {dimension_numbers = #tpu.dot_dimension_numbers<[2], [1], [1], [2], [0, 0, 0, 1, 1, 2], [0], [0]>} : vector<2x8x8xbf16>, vector<2x8x128xbf16>, vector<2x8x128xf32> -> vector<2x8x128xf32>
    %104 = tpu.concatenate %46, %65, %84, %103 in 2 : vector<2x8x128xf32>, vector<2x8x128xf32>, vector<2x8x128xf32>, vector<2x8x128xf32> -> vector<2x8x512xf32>
    %105 = vector.shape_cast %104 : vector<2x8x512xf32> to vector<16x512xf32>
    %106 = arith.truncf %105 : vector<16x512xf32> to vector<16x512xbf16>
    %c0_28 = arith.constant 0 : index
    %c0_29 = arith.constant 0 : index
    %c0_30 = arith.constant 0 : index
    %107 = vector.load %arg5[%c0_28, %c0_29, %c0_30] : memref<1x512x128xbf16, #tpu.memory_space<vmem>>, vector<1x512x128xbf16>
    %108 = vector.shape_cast %107 : vector<1x512x128xbf16> to vector<512x128xbf16>
    %cst_31 = arith.constant dense<0.000000e+00> : vector<16x128xf32>
    %109 = tpu.matmul %106, %108, %cst_31 {dimension_numbers = #tpu.dot_dimension_numbers<[1], [0], [0], [1], [0, 0, 1, 1], [], []>} : vector<16x512xbf16>, vector<512x128xbf16>, vector<16x128xf32> -> vector<16x128xf32>
    %c0_32 = arith.constant 0 : index
    %c0_33 = arith.constant 0 : index
    %c0_34 = arith.constant 0 : index
    %110 = vector.load %arg6[%c0_32, %c0_33, %c0_34] : memref<1x1x128xf32, #tpu.memory_space<vmem>>, vector<1x1x128xf32>
    %111 = vector.shape_cast %110 : vector<1x1x128xf32> to vector<1x128xf32>
    %112 = vector.broadcast %111 : vector<1x128xf32> to vector<16x128xf32>
    %113 = arith.addf %109, %112 : vector<16x128xf32>
    %114 = arith.addf %3, %113 : vector<16x128xf32>
    %c0_35 = arith.constant 0 : index
    %c0_36 = arith.constant 0 : index
    %c0_37 = arith.constant 0 : index
    %115 = vector.load %arg7[%c0_35, %c0_36, %c0_37] : memref<1x1x128xf32, #tpu.memory_space<vmem>>, vector<1x1x128xf32>
    %116 = vector.shape_cast %115 : vector<1x1x128xf32> to vector<1x128xf32>
    %c0_38 = arith.constant 0 : index
    %c0_39 = arith.constant 0 : index
    %c0_40 = arith.constant 0 : index
    %117 = vector.load %arg8[%c0_38, %c0_39, %c0_40] : memref<1x1x128xf32, #tpu.memory_space<vmem>>, vector<1x1x128xf32>
    %118 = vector.shape_cast %117 : vector<1x1x128xf32> to vector<1x128xf32>
    %cst_41 = arith.constant dense<0.000000e+00> : vector<16xf32>
    %119 = vector.multi_reduction <add>, %114, %cst_41 [1] : vector<16x128xf32> to vector<16xf32>
    %120 = vector.shape_cast %119 : vector<16xf32> to vector<16x1xf32>
    %cst_42 = arith.constant 1.280000e+02 : f32
    %121 = vector.broadcast %cst_42 : f32 to vector<16x1xf32>
    %122 = arith.divf %120, %121 : vector<16x1xf32>
    %123 = vector.broadcast %122 : vector<16x1xf32> to vector<16x128xf32>
    %124 = arith.subf %114, %123 : vector<16x128xf32>
    %125 = arith.mulf %124, %124 : vector<16x128xf32>
    %cst_43 = arith.constant dense<0.000000e+00> : vector<16xf32>
    %126 = vector.multi_reduction <add>, %125, %cst_43 [1] : vector<16x128xf32> to vector<16xf32>
    %127 = vector.shape_cast %126 : vector<16xf32> to vector<16x1xf32>
    %cst_44 = arith.constant 1.280000e+02 : f32
    %128 = vector.broadcast %cst_44 : f32 to vector<16x1xf32>
    %129 = arith.divf %127, %128 : vector<16x1xf32>
    %130 = vector.broadcast %122 : vector<16x1xf32> to vector<16x128xf32>
    %131 = arith.subf %114, %130 : vector<16x128xf32>
    %cst_45 = arith.constant 9.99999974E-6 : f32
    %132 = vector.broadcast %cst_45 : f32 to vector<16x1xf32>
    %133 = arith.addf %129, %132 : vector<16x1xf32>
    %134 = math.rsqrt %133 : vector<16x1xf32>
    %135 = vector.broadcast %134 : vector<16x1xf32> to vector<16x128xf32>
    %136 = arith.mulf %131, %135 : vector<16x128xf32>
    %137 = vector.broadcast %116 : vector<1x128xf32> to vector<16x128xf32>
    %138 = arith.mulf %136, %137 : vector<16x128xf32>
    %139 = vector.broadcast %118 : vector<1x128xf32> to vector<16x128xf32>
    %140 = arith.addf %138, %139 : vector<16x128xf32>
    %141 = arith.truncf %113 : vector<16x128xf32> to vector<16x128xbf16>
    %c0_46 = arith.constant 0 : index
    %c0_47 = arith.constant 0 : index
    %c0_48 = arith.constant 0 : index
    %142 = vector.load %arg9[%c0_46, %c0_47, %c0_48] : memref<1x128x512xbf16, #tpu.memory_space<vmem>>, vector<1x128x512xbf16>
    %143 = vector.shape_cast %142 : vector<1x128x512xbf16> to vector<128x512xbf16>
    %cst_49 = arith.constant dense<0.000000e+00> : vector<16x512xf32>
    %144 = tpu.matmul %141, %143, %cst_49 {dimension_numbers = #tpu.dot_dimension_numbers<[1], [0], [0], [1], [0, 0, 1, 1], [], []>} : vector<16x128xbf16>, vector<128x512xbf16>, vector<16x512xf32> -> vector<16x512xf32>
    %c0_50 = arith.constant 0 : index
    %c0_51 = arith.constant 0 : index
    %c0_52 = arith.constant 0 : index
    %145 = vector.load %arg10[%c0_50, %c0_51, %c0_52] : memref<1x1x512xf32, #tpu.memory_space<vmem>>, vector<1x1x512xf32>
    %146 = vector.shape_cast %145 : vector<1x1x512xf32> to vector<1x512xf32>
    %147 = vector.broadcast %146 : vector<1x512xf32> to vector<16x512xf32>
    %148 = arith.addf %144, %147 : vector<16x512xf32>
    %149 = arith.truncf %4 : vector<16x128xf32> to vector<16x128xbf16>
    %c0_53 = arith.constant 0 : index
    %c0_54 = arith.constant 0 : index
    %c0_55 = arith.constant 0 : index
    %150 = vector.load %arg11[%c0_53, %c0_54, %c0_55] : memref<1x128x1024xbf16, #tpu.memory_space<vmem>>, vector<1x128x1024xbf16>
    %151 = vector.shape_cast %150 : vector<1x128x1024xbf16> to vector<128x1024xbf16>
    %cst_56 = arith.constant dense<0.000000e+00> : vector<16x1024xf32>
    %152 = tpu.matmul %149, %151, %cst_56 {dimension_numbers = #tpu.dot_dimension_numbers<[1], [0], [0], [1], [0, 0, 1, 1], [], []>} : vector<16x128xbf16>, vector<128x1024xbf16>, vector<16x1024xf32> -> vector<16x1024xf32>
    %c0_57 = arith.constant 0 : index
    %c0_58 = arith.constant 0 : index
    %c0_59 = arith.constant 0 : index
    %153 = vector.load %arg12[%c0_57, %c0_58, %c0_59] : memref<1x1x1024xf32, #tpu.memory_space<vmem>>, vector<1x1x1024xf32>
    %154 = vector.shape_cast %153 : vector<1x1x1024xf32> to vector<1x1024xf32>
    %155 = vector.broadcast %154 : vector<1x1024xf32> to vector<16x1024xf32>
    %156 = arith.addf %152, %155 : vector<16x1024xf32>
    %157 = vector.extract_strided_slice %156 {offsets = [0, 0], sizes = [16, 512], strides = [1, 1]} : vector<16x1024xf32> to vector<16x512xf32>
    %158 = vector.extract_strided_slice %156 {offsets = [0, 512], sizes = [16, 512], strides = [1, 1]} : vector<16x1024xf32> to vector<16x512xf32>
    %159 = vector.shape_cast %148 : vector<16x512xf32> to vector<2x8x512xf32>
    %160 = arith.truncf %159 : vector<2x8x512xf32> to vector<2x8x512xbf16>
    %161 = vector.shape_cast %157 : vector<16x512xf32> to vector<2x8x512xf32>
    %162 = arith.truncf %161 : vector<2x8x512xf32> to vector<2x8x512xbf16>
    %163 = vector.shape_cast %158 : vector<16x512xf32> to vector<2x8x512xf32>
    %164 = arith.truncf %163 : vector<2x8x512xf32> to vector<2x8x512xbf16>
    %165 = vector.extract_strided_slice %160 {offsets = [0, 0, 0], sizes = [2, 8, 128], strides = [1, 1, 1]} : vector<2x8x512xbf16> to vector<2x8x128xbf16>
    %166 = vector.extract_strided_slice %162 {offsets = [0, 0, 0], sizes = [2, 8, 128], strides = [1, 1, 1]} : vector<2x8x512xbf16> to vector<2x8x128xbf16>
    %167 = vector.extract_strided_slice %164 {offsets = [0, 0, 0], sizes = [2, 8, 128], strides = [1, 1, 1]} : vector<2x8x512xbf16> to vector<2x8x128xbf16>
    %cst_60 = arith.constant dense<0.000000e+00> : vector<2x8x8xf32>
    %168 = tpu.matmul %165, %166, %cst_60 {dimension_numbers = #tpu.dot_dimension_numbers<[2], [2], [1], [1], [0, 0, 0, 1, 1, 1], [0], [0]>} : vector<2x8x128xbf16>, vector<2x8x128xbf16>, vector<2x8x8xf32> -> vector<2x8x8xf32>
    %cst_61 = arith.constant dense<0xFF800000> : vector<2x8xf32>
    %169 = vector.multi_reduction <maximumf>, %168, %cst_61 [2] : vector<2x8x8xf32> to vector<2x8xf32>
    %170 = vector.shape_cast %169 : vector<2x8xf32> to vector<2x8x1xf32>
    %171 = vector.broadcast %170 : vector<2x8x1xf32> to vector<2x8x8xf32>
    %172 = arith.subf %168, %171 : vector<2x8x8xf32>
    %173 = math.exp %172 : vector<2x8x8xf32>
    %cst_62 = arith.constant dense<0.000000e+00> : vector<2x8xf32>
    %174 = vector.multi_reduction <add>, %173, %cst_62 [2] : vector<2x8x8xf32> to vector<2x8xf32>
    %175 = vector.shape_cast %174 : vector<2x8xf32> to vector<2x8x1xf32>
    %176 = tpu.reciprocal %175 {approx = true} : vector<2x8x1xf32> -> vector<2x8x1xf32>
    %177 = vector.broadcast %176 : vector<2x8x1xf32> to vector<2x8x8xf32>
    %178 = arith.mulf %173, %177 : vector<2x8x8xf32>
    %179 = arith.truncf %178 : vector<2x8x8xf32> to vector<2x8x8xbf16>
    %cst_63 = arith.constant dense<0.000000e+00> : vector<2x8x128xf32>
    %180 = tpu.matmul %179, %167, %cst_63 {dimension_numbers = #tpu.dot_dimension_numbers<[2], [1], [1], [2], [0, 0, 0, 1, 1, 2], [0], [0]>} : vector<2x8x8xbf16>, vector<2x8x128xbf16>, vector<2x8x128xf32> -> vector<2x8x128xf32>
    %181 = vector.extract_strided_slice %160 {offsets = [0, 0, 128], sizes = [2, 8, 128], strides = [1, 1, 1]} : vector<2x8x512xbf16> to vector<2x8x128xbf16>
    %182 = vector.extract_strided_slice %162 {offsets = [0, 0, 128], sizes = [2, 8, 128], strides = [1, 1, 1]} : vector<2x8x512xbf16> to vector<2x8x128xbf16>
    %183 = vector.extract_strided_slice %164 {offsets = [0, 0, 128], sizes = [2, 8, 128], strides = [1, 1, 1]} : vector<2x8x512xbf16> to vector<2x8x128xbf16>
    %cst_64 = arith.constant dense<0.000000e+00> : vector<2x8x8xf32>
    %184 = tpu.matmul %181, %182, %cst_64 {dimension_numbers = #tpu.dot_dimension_numbers<[2], [2], [1], [1], [0, 0, 0, 1, 1, 1], [0], [0]>} : vector<2x8x128xbf16>, vector<2x8x128xbf16>, vector<2x8x8xf32> -> vector<2x8x8xf32>
    %cst_65 = arith.constant dense<0xFF800000> : vector<2x8xf32>
    %185 = vector.multi_reduction <maximumf>, %184, %cst_65 [2] : vector<2x8x8xf32> to vector<2x8xf32>
    %186 = vector.shape_cast %185 : vector<2x8xf32> to vector<2x8x1xf32>
    %187 = vector.broadcast %186 : vector<2x8x1xf32> to vector<2x8x8xf32>
    %188 = arith.subf %184, %187 : vector<2x8x8xf32>
    %189 = math.exp %188 : vector<2x8x8xf32>
    %cst_66 = arith.constant dense<0.000000e+00> : vector<2x8xf32>
    %190 = vector.multi_reduction <add>, %189, %cst_66 [2] : vector<2x8x8xf32> to vector<2x8xf32>
    %191 = vector.shape_cast %190 : vector<2x8xf32> to vector<2x8x1xf32>
    %192 = tpu.reciprocal %191 {approx = true} : vector<2x8x1xf32> -> vector<2x8x1xf32>
    %193 = vector.broadcast %192 : vector<2x8x1xf32> to vector<2x8x8xf32>
    %194 = arith.mulf %189, %193 : vector<2x8x8xf32>
    %195 = arith.truncf %194 : vector<2x8x8xf32> to vector<2x8x8xbf16>
    %cst_67 = arith.constant dense<0.000000e+00> : vector<2x8x128xf32>
    %196 = tpu.matmul %195, %183, %cst_67 {dimension_numbers = #tpu.dot_dimension_numbers<[2], [1], [1], [2], [0, 0, 0, 1, 1, 2], [0], [0]>} : vector<2x8x8xbf16>, vector<2x8x128xbf16>, vector<2x8x128xf32> -> vector<2x8x128xf32>
    %197 = vector.extract_strided_slice %160 {offsets = [0, 0, 256], sizes = [2, 8, 128], strides = [1, 1, 1]} : vector<2x8x512xbf16> to vector<2x8x128xbf16>
    %198 = vector.extract_strided_slice %162 {offsets = [0, 0, 256], sizes = [2, 8, 128], strides = [1, 1, 1]} : vector<2x8x512xbf16> to vector<2x8x128xbf16>
    %199 = vector.extract_strided_slice %164 {offsets = [0, 0, 256], sizes = [2, 8, 128], strides = [1, 1, 1]} : vector<2x8x512xbf16> to vector<2x8x128xbf16>
    %cst_68 = arith.constant dense<0.000000e+00> : vector<2x8x8xf32>
    %200 = tpu.matmul %197, %198, %cst_68 {dimension_numbers = #tpu.dot_dimension_numbers<[2], [2], [1], [1], [0, 0, 0, 1, 1, 1], [0], [0]>} : vector<2x8x128xbf16>, vector<2x8x128xbf16>, vector<2x8x8xf32> -> vector<2x8x8xf32>
    %cst_69 = arith.constant dense<0xFF800000> : vector<2x8xf32>
    %201 = vector.multi_reduction <maximumf>, %200, %cst_69 [2] : vector<2x8x8xf32> to vector<2x8xf32>
    %202 = vector.shape_cast %201 : vector<2x8xf32> to vector<2x8x1xf32>
    %203 = vector.broadcast %202 : vector<2x8x1xf32> to vector<2x8x8xf32>
    %204 = arith.subf %200, %203 : vector<2x8x8xf32>
    %205 = math.exp %204 : vector<2x8x8xf32>
    %cst_70 = arith.constant dense<0.000000e+00> : vector<2x8xf32>
    %206 = vector.multi_reduction <add>, %205, %cst_70 [2] : vector<2x8x8xf32> to vector<2x8xf32>
    %207 = vector.shape_cast %206 : vector<2x8xf32> to vector<2x8x1xf32>
    %208 = tpu.reciprocal %207 {approx = true} : vector<2x8x1xf32> -> vector<2x8x1xf32>
    %209 = vector.broadcast %208 : vector<2x8x1xf32> to vector<2x8x8xf32>
    %210 = arith.mulf %205, %209 : vector<2x8x8xf32>
    %211 = arith.truncf %210 : vector<2x8x8xf32> to vector<2x8x8xbf16>
    %cst_71 = arith.constant dense<0.000000e+00> : vector<2x8x128xf32>
    %212 = tpu.matmul %211, %199, %cst_71 {dimension_numbers = #tpu.dot_dimension_numbers<[2], [1], [1], [2], [0, 0, 0, 1, 1, 2], [0], [0]>} : vector<2x8x8xbf16>, vector<2x8x128xbf16>, vector<2x8x128xf32> -> vector<2x8x128xf32>
    %213 = vector.extract_strided_slice %160 {offsets = [0, 0, 384], sizes = [2, 8, 128], strides = [1, 1, 1]} : vector<2x8x512xbf16> to vector<2x8x128xbf16>
    %214 = vector.extract_strided_slice %162 {offsets = [0, 0, 384], sizes = [2, 8, 128], strides = [1, 1, 1]} : vector<2x8x512xbf16> to vector<2x8x128xbf16>
    %215 = vector.extract_strided_slice %164 {offsets = [0, 0, 384], sizes = [2, 8, 128], strides = [1, 1, 1]} : vector<2x8x512xbf16> to vector<2x8x128xbf16>
    %cst_72 = arith.constant dense<0.000000e+00> : vector<2x8x8xf32>
    %216 = tpu.matmul %213, %214, %cst_72 {dimension_numbers = #tpu.dot_dimension_numbers<[2], [2], [1], [1], [0, 0, 0, 1, 1, 1], [0], [0]>} : vector<2x8x128xbf16>, vector<2x8x128xbf16>, vector<2x8x8xf32> -> vector<2x8x8xf32>
    %cst_73 = arith.constant dense<0xFF800000> : vector<2x8xf32>
    %217 = vector.multi_reduction <maximumf>, %216, %cst_73 [2] : vector<2x8x8xf32> to vector<2x8xf32>
    %218 = vector.shape_cast %217 : vector<2x8xf32> to vector<2x8x1xf32>
    %219 = vector.broadcast %218 : vector<2x8x1xf32> to vector<2x8x8xf32>
    %220 = arith.subf %216, %219 : vector<2x8x8xf32>
    %221 = math.exp %220 : vector<2x8x8xf32>
    %cst_74 = arith.constant dense<0.000000e+00> : vector<2x8xf32>
    %222 = vector.multi_reduction <add>, %221, %cst_74 [2] : vector<2x8x8xf32> to vector<2x8xf32>
    %223 = vector.shape_cast %222 : vector<2x8xf32> to vector<2x8x1xf32>
    %224 = tpu.reciprocal %223 {approx = true} : vector<2x8x1xf32> -> vector<2x8x1xf32>
    %225 = vector.broadcast %224 : vector<2x8x1xf32> to vector<2x8x8xf32>
    %226 = arith.mulf %221, %225 : vector<2x8x8xf32>
    %227 = arith.truncf %226 : vector<2x8x8xf32> to vector<2x8x8xbf16>
    %cst_75 = arith.constant dense<0.000000e+00> : vector<2x8x128xf32>
    %228 = tpu.matmul %227, %215, %cst_75 {dimension_numbers = #tpu.dot_dimension_numbers<[2], [1], [1], [2], [0, 0, 0, 1, 1, 2], [0], [0]>} : vector<2x8x8xbf16>, vector<2x8x128xbf16>, vector<2x8x128xf32> -> vector<2x8x128xf32>
    %229 = tpu.concatenate %180, %196, %212, %228 in 2 : vector<2x8x128xf32>, vector<2x8x128xf32>, vector<2x8x128xf32>, vector<2x8x128xf32> -> vector<2x8x512xf32>
    %230 = vector.shape_cast %229 : vector<2x8x512xf32> to vector<16x512xf32>
    %231 = arith.truncf %230 : vector<16x512xf32> to vector<16x512xbf16>
    %c0_76 = arith.constant 0 : index
    %c0_77 = arith.constant 0 : index
    %c0_78 = arith.constant 0 : index
    %232 = vector.load %arg13[%c0_76, %c0_77, %c0_78] : memref<1x512x128xbf16, #tpu.memory_space<vmem>>, vector<1x512x128xbf16>
    %233 = vector.shape_cast %232 : vector<1x512x128xbf16> to vector<512x128xbf16>
    %cst_79 = arith.constant dense<0.000000e+00> : vector<16x128xf32>
    %234 = tpu.matmul %231, %233, %cst_79 {dimension_numbers = #tpu.dot_dimension_numbers<[1], [0], [0], [1], [0, 0, 1, 1], [], []>} : vector<16x512xbf16>, vector<512x128xbf16>, vector<16x128xf32> -> vector<16x128xf32>
    %c0_80 = arith.constant 0 : index
    %c0_81 = arith.constant 0 : index
    %c0_82 = arith.constant 0 : index
    %235 = vector.load %arg14[%c0_80, %c0_81, %c0_82] : memref<1x1x128xf32, #tpu.memory_space<vmem>>, vector<1x1x128xf32>
    %236 = vector.shape_cast %235 : vector<1x1x128xf32> to vector<1x128xf32>
    %237 = vector.broadcast %236 : vector<1x128xf32> to vector<16x128xf32>
    %238 = arith.addf %234, %237 : vector<16x128xf32>
    %239 = arith.addf %140, %238 : vector<16x128xf32>
    %c0_83 = arith.constant 0 : index
    %c0_84 = arith.constant 0 : index
    %c0_85 = arith.constant 0 : index
    %240 = vector.load %arg15[%c0_83, %c0_84, %c0_85] : memref<1x1x128xf32, #tpu.memory_space<vmem>>, vector<1x1x128xf32>
    %241 = vector.shape_cast %240 : vector<1x1x128xf32> to vector<1x128xf32>
    %c0_86 = arith.constant 0 : index
    %c0_87 = arith.constant 0 : index
    %c0_88 = arith.constant 0 : index
    %242 = vector.load %arg16[%c0_86, %c0_87, %c0_88] : memref<1x1x128xf32, #tpu.memory_space<vmem>>, vector<1x1x128xf32>
    %243 = vector.shape_cast %242 : vector<1x1x128xf32> to vector<1x128xf32>
    %cst_89 = arith.constant dense<0.000000e+00> : vector<16xf32>
    %244 = vector.multi_reduction <add>, %239, %cst_89 [1] : vector<16x128xf32> to vector<16xf32>
    %245 = vector.shape_cast %244 : vector<16xf32> to vector<16x1xf32>
    %cst_90 = arith.constant 1.280000e+02 : f32
    %246 = vector.broadcast %cst_90 : f32 to vector<16x1xf32>
    %247 = arith.divf %245, %246 : vector<16x1xf32>
    %248 = vector.broadcast %247 : vector<16x1xf32> to vector<16x128xf32>
    %249 = arith.subf %239, %248 : vector<16x128xf32>
    %250 = arith.mulf %249, %249 : vector<16x128xf32>
    %cst_91 = arith.constant dense<0.000000e+00> : vector<16xf32>
    %251 = vector.multi_reduction <add>, %250, %cst_91 [1] : vector<16x128xf32> to vector<16xf32>
    %252 = vector.shape_cast %251 : vector<16xf32> to vector<16x1xf32>
    %cst_92 = arith.constant 1.280000e+02 : f32
    %253 = vector.broadcast %cst_92 : f32 to vector<16x1xf32>
    %254 = arith.divf %252, %253 : vector<16x1xf32>
    %255 = vector.broadcast %247 : vector<16x1xf32> to vector<16x128xf32>
    %256 = arith.subf %239, %255 : vector<16x128xf32>
    %cst_93 = arith.constant 9.99999974E-6 : f32
    %257 = vector.broadcast %cst_93 : f32 to vector<16x1xf32>
    %258 = arith.addf %254, %257 : vector<16x1xf32>
    %259 = math.rsqrt %258 : vector<16x1xf32>
    %260 = vector.broadcast %259 : vector<16x1xf32> to vector<16x128xf32>
    %261 = arith.mulf %256, %260 : vector<16x128xf32>
    %262 = vector.broadcast %241 : vector<1x128xf32> to vector<16x128xf32>
    %263 = arith.mulf %261, %262 : vector<16x128xf32>
    %264 = vector.broadcast %243 : vector<1x128xf32> to vector<16x128xf32>
    %265 = arith.addf %263, %264 : vector<16x128xf32>
    %266 = arith.truncf %265 : vector<16x128xf32> to vector<16x128xbf16>
    %c0_94 = arith.constant 0 : index
    %c0_95 = arith.constant 0 : index
    %c0_96 = arith.constant 0 : index
    %267 = vector.load %arg17[%c0_94, %c0_95, %c0_96] : memref<1x128x512xbf16, #tpu.memory_space<vmem>>, vector<1x128x512xbf16>
    %268 = vector.shape_cast %267 : vector<1x128x512xbf16> to vector<128x512xbf16>
    %cst_97 = arith.constant dense<0.000000e+00> : vector<16x512xf32>
    %269 = tpu.matmul %266, %268, %cst_97 {dimension_numbers = #tpu.dot_dimension_numbers<[1], [0], [0], [1], [0, 0, 1, 1], [], []>} : vector<16x128xbf16>, vector<128x512xbf16>, vector<16x512xf32> -> vector<16x512xf32>
    %c0_98 = arith.constant 0 : index
    %c0_99 = arith.constant 0 : index
    %c0_100 = arith.constant 0 : index
    %270 = vector.load %arg18[%c0_98, %c0_99, %c0_100] : memref<1x1x512xf32, #tpu.memory_space<vmem>>, vector<1x1x512xf32>
    %271 = vector.shape_cast %270 : vector<1x1x512xf32> to vector<1x512xf32>
    %272 = vector.broadcast %271 : vector<1x512xf32> to vector<16x512xf32>
    %273 = arith.addf %269, %272 : vector<16x512xf32>
    %cst_101 = arith.constant 0.000000e+00 : f32
    %274 = vector.broadcast %cst_101 : f32 to vector<16x512xf32>
    %275 = arith.maximumf %273, %274 : vector<16x512xf32>
    %276 = arith.truncf %275 : vector<16x512xf32> to vector<16x512xbf16>
    %c0_102 = arith.constant 0 : index
    %c0_103 = arith.constant 0 : index
    %c0_104 = arith.constant 0 : index
    %277 = vector.load %arg19[%c0_102, %c0_103, %c0_104] : memref<1x512x128xbf16, #tpu.memory_space<vmem>>, vector<1x512x128xbf16>
    %278 = vector.shape_cast %277 : vector<1x512x128xbf16> to vector<512x128xbf16>
    %cst_105 = arith.constant dense<0.000000e+00> : vector<16x128xf32>
    %279 = tpu.matmul %276, %278, %cst_105 {dimension_numbers = #tpu.dot_dimension_numbers<[1], [0], [0], [1], [0, 0, 1, 1], [], []>} : vector<16x512xbf16>, vector<512x128xbf16>, vector<16x128xf32> -> vector<16x128xf32>
    %c0_106 = arith.constant 0 : index
    %c0_107 = arith.constant 0 : index
    %c0_108 = arith.constant 0 : index
    %280 = vector.load %arg20[%c0_106, %c0_107, %c0_108] : memref<1x1x128xf32, #tpu.memory_space<vmem>>, vector<1x1x128xf32>
    %281 = vector.shape_cast %280 : vector<1x1x128xf32> to vector<1x128xf32>
    %282 = vector.broadcast %281 : vector<1x128xf32> to vector<16x128xf32>
    %283 = arith.addf %279, %282 : vector<16x128xf32>
    %284 = arith.addf %265, %283 : vector<16x128xf32>
    %c0_109 = arith.constant 0 : index
    %c0_110 = arith.constant 0 : index
    %c0_111 = arith.constant 0 : index
    %285 = vector.load %arg21[%c0_109, %c0_110, %c0_111] : memref<1x1x128xf32, #tpu.memory_space<vmem>>, vector<1x1x128xf32>
    %286 = vector.shape_cast %285 : vector<1x1x128xf32> to vector<1x128xf32>
    %c0_112 = arith.constant 0 : index
    %c0_113 = arith.constant 0 : index
    %c0_114 = arith.constant 0 : index
    %287 = vector.load %arg22[%c0_112, %c0_113, %c0_114] : memref<1x1x128xf32, #tpu.memory_space<vmem>>, vector<1x1x128xf32>
    %288 = vector.shape_cast %287 : vector<1x1x128xf32> to vector<1x128xf32>
    %cst_115 = arith.constant dense<0.000000e+00> : vector<16xf32>
    %289 = vector.multi_reduction <add>, %284, %cst_115 [1] : vector<16x128xf32> to vector<16xf32>
    %290 = vector.shape_cast %289 : vector<16xf32> to vector<16x1xf32>
    %cst_116 = arith.constant 1.280000e+02 : f32
    %291 = vector.broadcast %cst_116 : f32 to vector<16x1xf32>
    %292 = arith.divf %290, %291 : vector<16x1xf32>
    %293 = vector.broadcast %292 : vector<16x1xf32> to vector<16x128xf32>
    %294 = arith.subf %284, %293 : vector<16x128xf32>
    %295 = arith.mulf %294, %294 : vector<16x128xf32>
    %cst_117 = arith.constant dense<0.000000e+00> : vector<16xf32>
    %296 = vector.multi_reduction <add>, %295, %cst_117 [1] : vector<16x128xf32> to vector<16xf32>
    %297 = vector.shape_cast %296 : vector<16xf32> to vector<16x1xf32>
    %cst_118 = arith.constant 1.280000e+02 : f32
    %298 = vector.broadcast %cst_118 : f32 to vector<16x1xf32>
    %299 = arith.divf %297, %298 : vector<16x1xf32>
    %300 = vector.broadcast %292 : vector<16x1xf32> to vector<16x128xf32>
    %301 = arith.subf %284, %300 : vector<16x128xf32>
    %cst_119 = arith.constant 9.99999974E-6 : f32
    %302 = vector.broadcast %cst_119 : f32 to vector<16x1xf32>
    %303 = arith.addf %299, %302 : vector<16x1xf32>
    %304 = math.rsqrt %303 : vector<16x1xf32>
    %305 = vector.broadcast %304 : vector<16x1xf32> to vector<16x128xf32>
    %306 = arith.mulf %301, %305 : vector<16x128xf32>
    %307 = vector.broadcast %286 : vector<1x128xf32> to vector<16x128xf32>
    %308 = arith.mulf %306, %307 : vector<16x128xf32>
    %309 = vector.broadcast %288 : vector<1x128xf32> to vector<16x128xf32>
    %310 = arith.addf %308, %309 : vector<16x128xf32>
    %c0_120 = arith.constant 0 : index
    %c0_121 = arith.constant 0 : index
    %311 = vector.load %arg26[%c0_120, %c0_121] : memref<16x128xf32, #tpu.memory_space<vmem>>, vector<16x128xf32>
    tpu.vector_store %arg26[%c0_120, %c0_121], %310 {strides = array<i32>} : memref<16x128xf32, #tpu.memory_space<vmem>>, vector<16x128xf32>,
    %c5_i32 = arith.constant 5 : i32
    %312 = arith.cmpi eq, %arg0, %c5_i32 : i32
    %313 = arith.extui %312 : i1 to i32
    %c0_i32_122 = arith.constant 0 : i32
    %314 = arith.cmpi ne, %313, %c0_i32_122 : i32
    scf.if %314 {
      %315 = arith.truncf %310 : vector<16x128xf32> to vector<16x128xbf16>
      %c0_123 = arith.constant 0 : index
      %c0_124 = arith.constant 0 : index
      %316 = vector.load %arg23[%c0_123, %c0_124] : memref<128x128xbf16, #tpu.memory_space<vmem>>, vector<128x128xbf16>
      %cst_125 = arith.constant dense<0.000000e+00> : vector<16x128xf32>
      %317 = tpu.matmul %315, %316, %cst_125 {dimension_numbers = #tpu.dot_dimension_numbers<[1], [0], [0], [1], [0, 0, 1, 1], [], []>} : vector<16x128xbf16>, vector<128x128xbf16>, vector<16x128xf32> -> vector<16x128xf32>
      %c0_126 = arith.constant 0 : index
      %c0_127 = arith.constant 0 : index
      %318 = vector.load %arg24[%c0_126, %c0_127] : memref<1x128xf32, #tpu.memory_space<vmem>>, vector<1x128xf32>
      %319 = vector.broadcast %318 : vector<1x128xf32> to vector<16x128xf32>
      %320 = arith.addf %317, %319 : vector<16x128xf32>
      %c0_128 = arith.constant 0 : index
      %c0_129 = arith.constant 0 : index
      %321 = vector.load %arg25[%c0_128, %c0_129] : memref<16x128xf32, #tpu.memory_space<vmem>>, vector<16x128xf32>
      tpu.vector_store %arg25[%c0_128, %c0_129], %320 {strides = array<i32>} : memref<16x128xf32, #tpu.memory_space<vmem>>, vector<16x128xf32>,
    } else {
    }
    return
  }
  func.func @transform_0(%arg0: i32) -> (i32, i32) {
    %c0_i32 = arith.constant 0 : i32
    %c0_i32_0 = arith.constant 0 : i32
    %c0_i32_1 = arith.constant 0 : i32
    return %c0_i32, %c0_i32_0 : i32, i32
  }
  func.func @transform_1(%arg0: i32) -> (i32, i32) {
    %c0_i32 = arith.constant 0 : i32
    %c0_i32_0 = arith.constant 0 : i32
    %c0_i32_1 = arith.constant 0 : i32
    return %c0_i32, %c0_i32_0 : i32, i32
  }
  func.func @transform_2(%arg0: i32) -> (i32, i32, i32) {
    %c0_i32 = arith.constant 0 : i32
    %c0_i32_0 = arith.constant 0 : i32
    %c0_i32_1 = arith.constant 0 : i32
    return %arg0, %c0_i32, %c0_i32_0 : i32, i32, i32
  }
  func.func @transform_3(%arg0: i32) -> (i32, i32, i32) {
    %c0_i32 = arith.constant 0 : i32
    %c0_i32_0 = arith.constant 0 : i32
    %c0_i32_1 = arith.constant 0 : i32
    return %arg0, %c0_i32, %c0_i32_0 : i32, i32, i32
  }
  func.func @transform_4(%arg0: i32) -> (i32, i32, i32) {
    %c0_i32 = arith.constant 0 : i32
    %c0_i32_0 = arith.constant 0 : i32
    %c0_i32_1 = arith.constant 0 : i32
    return %arg0, %c0_i32, %c0_i32_0 : i32, i32, i32
  }
  func.func @transform_5(%arg0: i32) -> (i32, i32, i32) {
    %c0_i32 = arith.constant 0 : i32
    %c0_i32_0 = arith.constant 0 : i32
    %c0_i32_1 = arith.constant 0 : i32
    return %arg0, %c0_i32, %c0_i32_0 : i32, i32, i32
  }
  func.func @transform_6(%arg0: i32) -> (i32, i32, i32) {
    %c0_i32 = arith.constant 0 : i32
    %c0_i32_0 = arith.constant 0 : i32
    %c0_i32_1 = arith.constant 0 : i32
    return %arg0, %c0_i32, %c0_i32_0 : i32, i32, i32
  }
  func.func @transform_7(%arg0: i32) -> (i32, i32, i32) {
    %c0_i32 = arith.constant 0 : i32
    %c0_i32_0 = arith.constant 0 : i32
    %c0_i32_1 = arith.constant 0 : i32
    return %arg0, %c0_i32, %c0_i32_0 : i32, i32, i32
  }
  func.func @transform_8(%arg0: i32) -> (i32, i32, i32) {
    %c0_i32 = arith.constant 0 : i32
    %c0_i32_0 = arith.constant 0 : i32
    %c0_i32_1 = arith.constant 0 : i32
    return %arg0, %c0_i32, %c0_i32_0 : i32, i32, i32
  }
  func.func @transform_9(%arg0: i32) -> (i32, i32, i32) {
    %c0_i32 = arith.constant 0 : i32
    %c0_i32_0 = arith.constant 0 : i32
    %c0_i32_1 = arith.constant 0 : i32
    return %arg0, %c0_i32, %c0_i32_0 : i32, i32, i32
  }
  func.func @transform_10(%arg0: i32) -> (i32, i32, i32) {
    %c0_i32 = arith.constant 0 : i32
    %c0_i32_0 = arith.constant 0 : i32
    %c0_i32_1 = arith.constant 0 : i32
    return %arg0, %c0_i32, %c0_i32_0 : i32, i32, i32
  }
  func.func @transform_11(%arg0: i32) -> (i32, i32, i32) {
    %c0_i32 = arith.constant 0 : i32
    %c0_i32_0 = arith.constant 0 : i32
    %c0_i32_1 = arith.constant 0 : i32
    return %arg0, %c0_i32, %c0_i32_0 : i32, i32, i32
  }
  func.func @transform_12(%arg0: i32) -> (i32, i32, i32) {
    %c0_i32 = arith.constant 0 : i32
    %c0_i32_0 = arith.constant 0 : i32
    %c0_i32_1 = arith.constant 0 : i32
    return %arg0, %c0_i32, %c0_i32_0 : i32, i32, i32
  }
  func.func @transform_13(%arg0: i32) -> (i32, i32, i32) {
    %c0_i32 = arith.constant 0 : i32
    %c0_i32_0 = arith.constant 0 : i32
    %c0_i32_1 = arith.constant 0 : i32
    return %arg0, %c0_i32, %c0_i32_0 : i32, i32, i32
  }
  func.func @transform_14(%arg0: i32) -> (i32, i32, i32) {
    %c0_i32 = arith.constant 0 : i32
    %c0_i32_0 = arith.constant 0 : i32
    %c0_i32_1 = arith.constant 0 : i32
    return %arg0, %c0_i32, %c0_i32_0 : i32, i32, i32
  }
  func.func @transform_15(%arg0: i32) -> (i32, i32, i32) {
    %c0_i32 = arith.constant 0 : i32
    %c0_i32_0 = arith.constant 0 : i32
    %c0_i32_1 = arith.constant 0 : i32
    return %arg0, %c0_i32, %c0_i32_0 : i32, i32, i32
  }
  func.func @transform_16(%arg0: i32) -> (i32, i32, i32) {
    %c0_i32 = arith.constant 0 : i32
    %c0_i32_0 = arith.constant 0 : i32
    %c0_i32_1 = arith.constant 0 : i32
    return %arg0, %c0_i32, %c0_i32_0 : i32, i32, i32
  }
  func.func @transform_17(%arg0: i32) -> (i32, i32, i32) {
    %c0_i32 = arith.constant 0 : i32
    %c0_i32_0 = arith.constant 0 : i32
    %c0_i32_1 = arith.constant 0 : i32
    return %arg0, %c0_i32, %c0_i32_0 : i32, i32, i32
  }
  func.func @transform_18(%arg0: i32) -> (i32, i32, i32) {
    %c0_i32 = arith.constant 0 : i32
    %c0_i32_0 = arith.constant 0 : i32
    %c0_i32_1 = arith.constant 0 : i32
    return %arg0, %c0_i32, %c0_i32_0 : i32, i32, i32
  }
  func.func @transform_19(%arg0: i32) -> (i32, i32, i32) {
    %c0_i32 = arith.constant 0 : i32
    %c0_i32_0 = arith.constant 0 : i32
    %c0_i32_1 = arith.constant 0 : i32
    return %arg0, %c0_i32, %c0_i32_0 : i32, i32, i32
  }
  func.func @transform_20(%arg0: i32) -> (i32, i32, i32) {
    %c0_i32 = arith.constant 0 : i32
    %c0_i32_0 = arith.constant 0 : i32
    %c0_i32_1 = arith.constant 0 : i32
    return %arg0, %c0_i32, %c0_i32_0 : i32, i32, i32
  }
  func.func @transform_21(%arg0: i32) -> (i32, i32, i32) {
    %c0_i32 = arith.constant 0 : i32
    %c0_i32_0 = arith.constant 0 : i32
    %c0_i32_1 = arith.constant 0 : i32
    return %arg0, %c0_i32, %c0_i32_0 : i32, i32, i32
  }
  func.func @transform_22(%arg0: i32) -> (i32, i32) {
    %c0_i32 = arith.constant 0 : i32
    %c0_i32_0 = arith.constant 0 : i32
    %c0_i32_1 = arith.constant 0 : i32
    return %c0_i32, %c0_i32_0 : i32, i32
  }
  func.func @transform_23(%arg0: i32) -> (i32, i32) {
    %c0_i32 = arith.constant 0 : i32
    %c0_i32_0 = arith.constant 0 : i32
    %c0_i32_1 = arith.constant 0 : i32
    return %c0_i32, %c0_i32_0 : i32, i32
  }
  func.func @transform_24(%arg0: i32) -> (i32, i32) {
    %c0_i32 = arith.constant 0 : i32
    %c0_i32_0 = arith.constant 0 : i32
    %c0_i32_1 = arith.constant 0 : i32
    return %c0_i32, %c0_i32_0 : i32, i32
  }
}

module attributes {stable_mosaic.version = 11 : i64} {
  func.func @_encoder_stack_kernel(%arg0: i32, %arg1: memref<16x128xf32, #tpu.memory_space<vmem>>, %arg2: memref<1x128x1536xbf16, #tpu.memory_space<vmem>>, %arg3: memref<1x1x1536xf32, #tpu.memory_space<vmem>>, %arg4: memref<1x512x128xbf16, #tpu.memory_space<vmem>>, %arg5: memref<1x1x128xf32, #tpu.memory_space<vmem>>, %arg6: memref<1x1x128xf32, #tpu.memory_space<vmem>>, %arg7: memref<1x1x128xf32, #tpu.memory_space<vmem>>, %arg8: memref<1x128x512xbf16, #tpu.memory_space<vmem>>, %arg9: memref<1x1x512xf32, #tpu.memory_space<vmem>>, %arg10: memref<1x512x128xbf16, #tpu.memory_space<vmem>>, %arg11: memref<1x1x128xf32, #tpu.memory_space<vmem>>, %arg12: memref<1x1x128xf32, #tpu.memory_space<vmem>>, %arg13: memref<1x1x128xf32, #tpu.memory_space<vmem>>, %arg14: memref<16x128xf32, #tpu.memory_space<vmem>>) attributes {dimension_semantics = [#tpu.dimension_semantics<arbitrary>], iteration_bounds = array<i64: 6>, scalar_prefetch = 0 : i64, scratch_operands = 0 : i64, tpu.core_type = #tpu.core_type<tc>, window_params = [{pipeline_mode = #tpu.pipeline_mode<synchronous>, transform_indices = @transform_0, window_bounds = array<i64: 16, 128>}, {transform_indices = @transform_1, window_bounds = array<i64: 1, 128, 1536>}, {transform_indices = @transform_2, window_bounds = array<i64: 1, 1, 1536>}, {transform_indices = @transform_3, window_bounds = array<i64: 1, 512, 128>}, {transform_indices = @transform_4, window_bounds = array<i64: 1, 1, 128>}, {transform_indices = @transform_5, window_bounds = array<i64: 1, 1, 128>}, {transform_indices = @transform_6, window_bounds = array<i64: 1, 1, 128>}, {transform_indices = @transform_7, window_bounds = array<i64: 1, 128, 512>}, {transform_indices = @transform_8, window_bounds = array<i64: 1, 1, 512>}, {transform_indices = @transform_9, window_bounds = array<i64: 1, 512, 128>}, {transform_indices = @transform_10, window_bounds = array<i64: 1, 1, 128>}, {transform_indices = @transform_11, window_bounds = array<i64: 1, 1, 128>}, {transform_indices = @transform_12, window_bounds = array<i64: 1, 1, 128>}, {pipeline_mode = #tpu.pipeline_mode<synchronous>, transform_indices = @transform_13, window_bounds = array<i64: 16, 128>}]} {
    %c0_i32 = arith.constant 0 : i32
    %0 = arith.cmpi eq, %arg0, %c0_i32 : i32
    %1 = arith.extui %0 : i1 to i32
    %c0_i32_0 = arith.constant 0 : i32
    %2 = arith.cmpi ne, %1, %c0_i32_0 : i32
    scf.if %2 {
      %c0_70 = arith.constant 0 : index
      %c0_71 = arith.constant 0 : index
      %168 = vector.load %arg1[%c0_70, %c0_71] : memref<16x128xf32, #tpu.memory_space<vmem>>, vector<16x128xf32>
      %c0_72 = arith.constant 0 : index
      %c0_73 = arith.constant 0 : index
      %169 = vector.load %arg14[%c0_72, %c0_73] : memref<16x128xf32, #tpu.memory_space<vmem>>, vector<16x128xf32>
      tpu.vector_store %arg14[%c0_72, %c0_73], %168 {strides = array<i32>} : memref<16x128xf32, #tpu.memory_space<vmem>>, vector<16x128xf32>,
    } else {
    }
    %c0 = arith.constant 0 : index
    %c0_1 = arith.constant 0 : index
    %3 = vector.load %arg14[%c0, %c0_1] : memref<16x128xf32, #tpu.memory_space<vmem>>, vector<16x128xf32>
    %4 = arith.truncf %3 : vector<16x128xf32> to vector<16x128xbf16>
    %c0_2 = arith.constant 0 : index
    %c0_3 = arith.constant 0 : index
    %c0_4 = arith.constant 0 : index
    %5 = vector.load %arg2[%c0_2, %c0_3, %c0_4] : memref<1x128x1536xbf16, #tpu.memory_space<vmem>>, vector<1x128x1536xbf16>
    %6 = vector.shape_cast %5 : vector<1x128x1536xbf16> to vector<128x1536xbf16>
    %cst = arith.constant dense<0.000000e+00> : vector<16x1536xf32>
    %7 = tpu.matmul %4, %6, %cst {dimension_numbers = #tpu.dot_dimension_numbers<[1], [0], [0], [1], [0, 0, 1, 1], [], []>} : vector<16x128xbf16>, vector<128x1536xbf16>, vector<16x1536xf32> -> vector<16x1536xf32>
    %c0_5 = arith.constant 0 : index
    %c0_6 = arith.constant 0 : index
    %c0_7 = arith.constant 0 : index
    %8 = vector.load %arg3[%c0_5, %c0_6, %c0_7] : memref<1x1x1536xf32, #tpu.memory_space<vmem>>, vector<1x1x1536xf32>
    %9 = vector.shape_cast %8 : vector<1x1x1536xf32> to vector<1x1536xf32>
    %10 = vector.broadcast %9 : vector<1x1536xf32> to vector<16x1536xf32>
    %11 = arith.addf %7, %10 : vector<16x1536xf32>
    %12 = vector.extract_strided_slice %11 {offsets = [0, 0], sizes = [16, 512], strides = [1, 1]} : vector<16x1536xf32> to vector<16x512xf32>
    %13 = vector.extract_strided_slice %11 {offsets = [0, 512], sizes = [16, 512], strides = [1, 1]} : vector<16x1536xf32> to vector<16x512xf32>
    %14 = vector.extract_strided_slice %11 {offsets = [0, 1024], sizes = [16, 512], strides = [1, 1]} : vector<16x1536xf32> to vector<16x512xf32>
    %15 = vector.shape_cast %12 : vector<16x512xf32> to vector<2x8x512xf32>
    %16 = arith.truncf %15 : vector<2x8x512xf32> to vector<2x8x512xbf16>
    %17 = vector.shape_cast %13 : vector<16x512xf32> to vector<2x8x512xf32>
    %18 = arith.truncf %17 : vector<2x8x512xf32> to vector<2x8x512xbf16>
    %19 = vector.shape_cast %14 : vector<16x512xf32> to vector<2x8x512xf32>
    %20 = arith.truncf %19 : vector<2x8x512xf32> to vector<2x8x512xbf16>
    %21 = vector.extract_strided_slice %16 {offsets = [0, 0, 0], sizes = [2, 8, 128], strides = [1, 1, 1]} : vector<2x8x512xbf16> to vector<2x8x128xbf16>
    %22 = vector.extract_strided_slice %18 {offsets = [0, 0, 0], sizes = [2, 8, 128], strides = [1, 1, 1]} : vector<2x8x512xbf16> to vector<2x8x128xbf16>
    %23 = vector.extract_strided_slice %20 {offsets = [0, 0, 0], sizes = [2, 8, 128], strides = [1, 1, 1]} : vector<2x8x512xbf16> to vector<2x8x128xbf16>
    %cst_8 = arith.constant dense<0.000000e+00> : vector<2x8x8xf32>
    %24 = tpu.matmul %21, %22, %cst_8 {dimension_numbers = #tpu.dot_dimension_numbers<[2], [2], [1], [1], [0, 0, 0, 1, 1, 1], [0], [0]>} : vector<2x8x128xbf16>, vector<2x8x128xbf16>, vector<2x8x8xf32> -> vector<2x8x8xf32>
    %cst_9 = arith.constant dense<0xFF800000> : vector<2x8xf32>
    %25 = vector.multi_reduction <maximumf>, %24, %cst_9 [2] : vector<2x8x8xf32> to vector<2x8xf32>
    %26 = vector.shape_cast %25 : vector<2x8xf32> to vector<2x8x1xf32>
    %27 = vector.broadcast %26 : vector<2x8x1xf32> to vector<2x8x8xf32>
    %28 = arith.subf %24, %27 : vector<2x8x8xf32>
    %29 = math.exp %28 : vector<2x8x8xf32>
    %cst_10 = arith.constant dense<0.000000e+00> : vector<2x8xf32>
    %30 = vector.multi_reduction <add>, %29, %cst_10 [2] : vector<2x8x8xf32> to vector<2x8xf32>
    %31 = vector.shape_cast %30 : vector<2x8xf32> to vector<2x8x1xf32>
    %32 = tpu.reciprocal %31 {approx = true} : vector<2x8x1xf32> -> vector<2x8x1xf32>
    %33 = vector.broadcast %32 : vector<2x8x1xf32> to vector<2x8x8xf32>
    %34 = arith.mulf %29, %33 : vector<2x8x8xf32>
    %35 = arith.truncf %34 : vector<2x8x8xf32> to vector<2x8x8xbf16>
    %cst_11 = arith.constant dense<0.000000e+00> : vector<2x8x128xf32>
    %36 = tpu.matmul %35, %23, %cst_11 {dimension_numbers = #tpu.dot_dimension_numbers<[2], [1], [1], [2], [0, 0, 0, 1, 1, 2], [0], [0]>} : vector<2x8x8xbf16>, vector<2x8x128xbf16>, vector<2x8x128xf32> -> vector<2x8x128xf32>
    %37 = vector.extract_strided_slice %16 {offsets = [0, 0, 128], sizes = [2, 8, 128], strides = [1, 1, 1]} : vector<2x8x512xbf16> to vector<2x8x128xbf16>
    %38 = vector.extract_strided_slice %18 {offsets = [0, 0, 128], sizes = [2, 8, 128], strides = [1, 1, 1]} : vector<2x8x512xbf16> to vector<2x8x128xbf16>
    %39 = vector.extract_strided_slice %20 {offsets = [0, 0, 128], sizes = [2, 8, 128], strides = [1, 1, 1]} : vector<2x8x512xbf16> to vector<2x8x128xbf16>
    %cst_12 = arith.constant dense<0.000000e+00> : vector<2x8x8xf32>
    %40 = tpu.matmul %37, %38, %cst_12 {dimension_numbers = #tpu.dot_dimension_numbers<[2], [2], [1], [1], [0, 0, 0, 1, 1, 1], [0], [0]>} : vector<2x8x128xbf16>, vector<2x8x128xbf16>, vector<2x8x8xf32> -> vector<2x8x8xf32>
    %cst_13 = arith.constant dense<0xFF800000> : vector<2x8xf32>
    %41 = vector.multi_reduction <maximumf>, %40, %cst_13 [2] : vector<2x8x8xf32> to vector<2x8xf32>
    %42 = vector.shape_cast %41 : vector<2x8xf32> to vector<2x8x1xf32>
    %43 = vector.broadcast %42 : vector<2x8x1xf32> to vector<2x8x8xf32>
    %44 = arith.subf %40, %43 : vector<2x8x8xf32>
    %45 = math.exp %44 : vector<2x8x8xf32>
    %cst_14 = arith.constant dense<0.000000e+00> : vector<2x8xf32>
    %46 = vector.multi_reduction <add>, %45, %cst_14 [2] : vector<2x8x8xf32> to vector<2x8xf32>
    %47 = vector.shape_cast %46 : vector<2x8xf32> to vector<2x8x1xf32>
    %48 = tpu.reciprocal %47 {approx = true} : vector<2x8x1xf32> -> vector<2x8x1xf32>
    %49 = vector.broadcast %48 : vector<2x8x1xf32> to vector<2x8x8xf32>
    %50 = arith.mulf %45, %49 : vector<2x8x8xf32>
    %51 = arith.truncf %50 : vector<2x8x8xf32> to vector<2x8x8xbf16>
    %cst_15 = arith.constant dense<0.000000e+00> : vector<2x8x128xf32>
    %52 = tpu.matmul %51, %39, %cst_15 {dimension_numbers = #tpu.dot_dimension_numbers<[2], [1], [1], [2], [0, 0, 0, 1, 1, 2], [0], [0]>} : vector<2x8x8xbf16>, vector<2x8x128xbf16>, vector<2x8x128xf32> -> vector<2x8x128xf32>
    %53 = vector.extract_strided_slice %16 {offsets = [0, 0, 256], sizes = [2, 8, 128], strides = [1, 1, 1]} : vector<2x8x512xbf16> to vector<2x8x128xbf16>
    %54 = vector.extract_strided_slice %18 {offsets = [0, 0, 256], sizes = [2, 8, 128], strides = [1, 1, 1]} : vector<2x8x512xbf16> to vector<2x8x128xbf16>
    %55 = vector.extract_strided_slice %20 {offsets = [0, 0, 256], sizes = [2, 8, 128], strides = [1, 1, 1]} : vector<2x8x512xbf16> to vector<2x8x128xbf16>
    %cst_16 = arith.constant dense<0.000000e+00> : vector<2x8x8xf32>
    %56 = tpu.matmul %53, %54, %cst_16 {dimension_numbers = #tpu.dot_dimension_numbers<[2], [2], [1], [1], [0, 0, 0, 1, 1, 1], [0], [0]>} : vector<2x8x128xbf16>, vector<2x8x128xbf16>, vector<2x8x8xf32> -> vector<2x8x8xf32>
    %cst_17 = arith.constant dense<0xFF800000> : vector<2x8xf32>
    %57 = vector.multi_reduction <maximumf>, %56, %cst_17 [2] : vector<2x8x8xf32> to vector<2x8xf32>
    %58 = vector.shape_cast %57 : vector<2x8xf32> to vector<2x8x1xf32>
    %59 = vector.broadcast %58 : vector<2x8x1xf32> to vector<2x8x8xf32>
    %60 = arith.subf %56, %59 : vector<2x8x8xf32>
    %61 = math.exp %60 : vector<2x8x8xf32>
    %cst_18 = arith.constant dense<0.000000e+00> : vector<2x8xf32>
    %62 = vector.multi_reduction <add>, %61, %cst_18 [2] : vector<2x8x8xf32> to vector<2x8xf32>
    %63 = vector.shape_cast %62 : vector<2x8xf32> to vector<2x8x1xf32>
    %64 = tpu.reciprocal %63 {approx = true} : vector<2x8x1xf32> -> vector<2x8x1xf32>
    %65 = vector.broadcast %64 : vector<2x8x1xf32> to vector<2x8x8xf32>
    %66 = arith.mulf %61, %65 : vector<2x8x8xf32>
    %67 = arith.truncf %66 : vector<2x8x8xf32> to vector<2x8x8xbf16>
    %cst_19 = arith.constant dense<0.000000e+00> : vector<2x8x128xf32>
    %68 = tpu.matmul %67, %55, %cst_19 {dimension_numbers = #tpu.dot_dimension_numbers<[2], [1], [1], [2], [0, 0, 0, 1, 1, 2], [0], [0]>} : vector<2x8x8xbf16>, vector<2x8x128xbf16>, vector<2x8x128xf32> -> vector<2x8x128xf32>
    %69 = vector.extract_strided_slice %16 {offsets = [0, 0, 384], sizes = [2, 8, 128], strides = [1, 1, 1]} : vector<2x8x512xbf16> to vector<2x8x128xbf16>
    %70 = vector.extract_strided_slice %18 {offsets = [0, 0, 384], sizes = [2, 8, 128], strides = [1, 1, 1]} : vector<2x8x512xbf16> to vector<2x8x128xbf16>
    %71 = vector.extract_strided_slice %20 {offsets = [0, 0, 384], sizes = [2, 8, 128], strides = [1, 1, 1]} : vector<2x8x512xbf16> to vector<2x8x128xbf16>
    %cst_20 = arith.constant dense<0.000000e+00> : vector<2x8x8xf32>
    %72 = tpu.matmul %69, %70, %cst_20 {dimension_numbers = #tpu.dot_dimension_numbers<[2], [2], [1], [1], [0, 0, 0, 1, 1, 1], [0], [0]>} : vector<2x8x128xbf16>, vector<2x8x128xbf16>, vector<2x8x8xf32> -> vector<2x8x8xf32>
    %cst_21 = arith.constant dense<0xFF800000> : vector<2x8xf32>
    %73 = vector.multi_reduction <maximumf>, %72, %cst_21 [2] : vector<2x8x8xf32> to vector<2x8xf32>
    %74 = vector.shape_cast %73 : vector<2x8xf32> to vector<2x8x1xf32>
    %75 = vector.broadcast %74 : vector<2x8x1xf32> to vector<2x8x8xf32>
    %76 = arith.subf %72, %75 : vector<2x8x8xf32>
    %77 = math.exp %76 : vector<2x8x8xf32>
    %cst_22 = arith.constant dense<0.000000e+00> : vector<2x8xf32>
    %78 = vector.multi_reduction <add>, %77, %cst_22 [2] : vector<2x8x8xf32> to vector<2x8xf32>
    %79 = vector.shape_cast %78 : vector<2x8xf32> to vector<2x8x1xf32>
    %80 = tpu.reciprocal %79 {approx = true} : vector<2x8x1xf32> -> vector<2x8x1xf32>
    %81 = vector.broadcast %80 : vector<2x8x1xf32> to vector<2x8x8xf32>
    %82 = arith.mulf %77, %81 : vector<2x8x8xf32>
    %83 = arith.truncf %82 : vector<2x8x8xf32> to vector<2x8x8xbf16>
    %cst_23 = arith.constant dense<0.000000e+00> : vector<2x8x128xf32>
    %84 = tpu.matmul %83, %71, %cst_23 {dimension_numbers = #tpu.dot_dimension_numbers<[2], [1], [1], [2], [0, 0, 0, 1, 1, 2], [0], [0]>} : vector<2x8x8xbf16>, vector<2x8x128xbf16>, vector<2x8x128xf32> -> vector<2x8x128xf32>
    %85 = tpu.concatenate %36, %52, %68, %84 in 2 : vector<2x8x128xf32>, vector<2x8x128xf32>, vector<2x8x128xf32>, vector<2x8x128xf32> -> vector<2x8x512xf32>
    %86 = vector.shape_cast %85 : vector<2x8x512xf32> to vector<16x512xf32>
    %87 = arith.truncf %86 : vector<16x512xf32> to vector<16x512xbf16>
    %c0_24 = arith.constant 0 : index
    %c0_25 = arith.constant 0 : index
    %c0_26 = arith.constant 0 : index
    %88 = vector.load %arg4[%c0_24, %c0_25, %c0_26] : memref<1x512x128xbf16, #tpu.memory_space<vmem>>, vector<1x512x128xbf16>
    %89 = vector.shape_cast %88 : vector<1x512x128xbf16> to vector<512x128xbf16>
    %cst_27 = arith.constant dense<0.000000e+00> : vector<16x128xf32>
    %90 = tpu.matmul %87, %89, %cst_27 {dimension_numbers = #tpu.dot_dimension_numbers<[1], [0], [0], [1], [0, 0, 1, 1], [], []>} : vector<16x512xbf16>, vector<512x128xbf16>, vector<16x128xf32> -> vector<16x128xf32>
    %c0_28 = arith.constant 0 : index
    %c0_29 = arith.constant 0 : index
    %c0_30 = arith.constant 0 : index
    %91 = vector.load %arg5[%c0_28, %c0_29, %c0_30] : memref<1x1x128xf32, #tpu.memory_space<vmem>>, vector<1x1x128xf32>
    %92 = vector.shape_cast %91 : vector<1x1x128xf32> to vector<1x128xf32>
    %93 = vector.broadcast %92 : vector<1x128xf32> to vector<16x128xf32>
    %94 = arith.addf %90, %93 : vector<16x128xf32>
    %95 = arith.addf %3, %94 : vector<16x128xf32>
    %c0_31 = arith.constant 0 : index
    %c0_32 = arith.constant 0 : index
    %c0_33 = arith.constant 0 : index
    %96 = vector.load %arg6[%c0_31, %c0_32, %c0_33] : memref<1x1x128xf32, #tpu.memory_space<vmem>>, vector<1x1x128xf32>
    %97 = vector.shape_cast %96 : vector<1x1x128xf32> to vector<1x128xf32>
    %c0_34 = arith.constant 0 : index
    %c0_35 = arith.constant 0 : index
    %c0_36 = arith.constant 0 : index
    %98 = vector.load %arg7[%c0_34, %c0_35, %c0_36] : memref<1x1x128xf32, #tpu.memory_space<vmem>>, vector<1x1x128xf32>
    %99 = vector.shape_cast %98 : vector<1x1x128xf32> to vector<1x128xf32>
    %cst_37 = arith.constant dense<0.000000e+00> : vector<16xf32>
    %100 = vector.multi_reduction <add>, %95, %cst_37 [1] : vector<16x128xf32> to vector<16xf32>
    %101 = vector.shape_cast %100 : vector<16xf32> to vector<16x1xf32>
    %cst_38 = arith.constant 1.280000e+02 : f32
    %102 = vector.broadcast %cst_38 : f32 to vector<16x1xf32>
    %103 = arith.divf %101, %102 : vector<16x1xf32>
    %104 = vector.broadcast %103 : vector<16x1xf32> to vector<16x128xf32>
    %105 = arith.subf %95, %104 : vector<16x128xf32>
    %106 = arith.mulf %105, %105 : vector<16x128xf32>
    %cst_39 = arith.constant dense<0.000000e+00> : vector<16xf32>
    %107 = vector.multi_reduction <add>, %106, %cst_39 [1] : vector<16x128xf32> to vector<16xf32>
    %108 = vector.shape_cast %107 : vector<16xf32> to vector<16x1xf32>
    %cst_40 = arith.constant 1.280000e+02 : f32
    %109 = vector.broadcast %cst_40 : f32 to vector<16x1xf32>
    %110 = arith.divf %108, %109 : vector<16x1xf32>
    %111 = vector.broadcast %103 : vector<16x1xf32> to vector<16x128xf32>
    %112 = arith.subf %95, %111 : vector<16x128xf32>
    %cst_41 = arith.constant 9.99999974E-6 : f32
    %113 = vector.broadcast %cst_41 : f32 to vector<16x1xf32>
    %114 = arith.addf %110, %113 : vector<16x1xf32>
    %115 = math.rsqrt %114 : vector<16x1xf32>
    %116 = vector.broadcast %115 : vector<16x1xf32> to vector<16x128xf32>
    %117 = arith.mulf %112, %116 : vector<16x128xf32>
    %118 = vector.broadcast %97 : vector<1x128xf32> to vector<16x128xf32>
    %119 = arith.mulf %117, %118 : vector<16x128xf32>
    %120 = vector.broadcast %99 : vector<1x128xf32> to vector<16x128xf32>
    %121 = arith.addf %119, %120 : vector<16x128xf32>
    %122 = arith.truncf %121 : vector<16x128xf32> to vector<16x128xbf16>
    %c0_42 = arith.constant 0 : index
    %c0_43 = arith.constant 0 : index
    %c0_44 = arith.constant 0 : index
    %123 = vector.load %arg8[%c0_42, %c0_43, %c0_44] : memref<1x128x512xbf16, #tpu.memory_space<vmem>>, vector<1x128x512xbf16>
    %124 = vector.shape_cast %123 : vector<1x128x512xbf16> to vector<128x512xbf16>
    %cst_45 = arith.constant dense<0.000000e+00> : vector<16x512xf32>
    %125 = tpu.matmul %122, %124, %cst_45 {dimension_numbers = #tpu.dot_dimension_numbers<[1], [0], [0], [1], [0, 0, 1, 1], [], []>} : vector<16x128xbf16>, vector<128x512xbf16>, vector<16x512xf32> -> vector<16x512xf32>
    %c0_46 = arith.constant 0 : index
    %c0_47 = arith.constant 0 : index
    %c0_48 = arith.constant 0 : index
    %126 = vector.load %arg9[%c0_46, %c0_47, %c0_48] : memref<1x1x512xf32, #tpu.memory_space<vmem>>, vector<1x1x512xf32>
    %127 = vector.shape_cast %126 : vector<1x1x512xf32> to vector<1x512xf32>
    %128 = vector.broadcast %127 : vector<1x512xf32> to vector<16x512xf32>
    %129 = arith.addf %125, %128 : vector<16x512xf32>
    %cst_49 = arith.constant 0.000000e+00 : f32
    %130 = vector.broadcast %cst_49 : f32 to vector<16x512xf32>
    %131 = arith.maximumf %129, %130 : vector<16x512xf32>
    %132 = arith.truncf %131 : vector<16x512xf32> to vector<16x512xbf16>
    %c0_50 = arith.constant 0 : index
    %c0_51 = arith.constant 0 : index
    %c0_52 = arith.constant 0 : index
    %133 = vector.load %arg10[%c0_50, %c0_51, %c0_52] : memref<1x512x128xbf16, #tpu.memory_space<vmem>>, vector<1x512x128xbf16>
    %134 = vector.shape_cast %133 : vector<1x512x128xbf16> to vector<512x128xbf16>
    %cst_53 = arith.constant dense<0.000000e+00> : vector<16x128xf32>
    %135 = tpu.matmul %132, %134, %cst_53 {dimension_numbers = #tpu.dot_dimension_numbers<[1], [0], [0], [1], [0, 0, 1, 1], [], []>} : vector<16x512xbf16>, vector<512x128xbf16>, vector<16x128xf32> -> vector<16x128xf32>
    %c0_54 = arith.constant 0 : index
    %c0_55 = arith.constant 0 : index
    %c0_56 = arith.constant 0 : index
    %136 = vector.load %arg11[%c0_54, %c0_55, %c0_56] : memref<1x1x128xf32, #tpu.memory_space<vmem>>, vector<1x1x128xf32>
    %137 = vector.shape_cast %136 : vector<1x1x128xf32> to vector<1x128xf32>
    %138 = vector.broadcast %137 : vector<1x128xf32> to vector<16x128xf32>
    %139 = arith.addf %135, %138 : vector<16x128xf32>
    %140 = arith.addf %121, %139 : vector<16x128xf32>
    %c0_57 = arith.constant 0 : index
    %c0_58 = arith.constant 0 : index
    %c0_59 = arith.constant 0 : index
    %141 = vector.load %arg12[%c0_57, %c0_58, %c0_59] : memref<1x1x128xf32, #tpu.memory_space<vmem>>, vector<1x1x128xf32>
    %142 = vector.shape_cast %141 : vector<1x1x128xf32> to vector<1x128xf32>
    %c0_60 = arith.constant 0 : index
    %c0_61 = arith.constant 0 : index
    %c0_62 = arith.constant 0 : index
    %143 = vector.load %arg13[%c0_60, %c0_61, %c0_62] : memref<1x1x128xf32, #tpu.memory_space<vmem>>, vector<1x1x128xf32>
    %144 = vector.shape_cast %143 : vector<1x1x128xf32> to vector<1x128xf32>
    %cst_63 = arith.constant dense<0.000000e+00> : vector<16xf32>
    %145 = vector.multi_reduction <add>, %140, %cst_63 [1] : vector<16x128xf32> to vector<16xf32>
    %146 = vector.shape_cast %145 : vector<16xf32> to vector<16x1xf32>
    %cst_64 = arith.constant 1.280000e+02 : f32
    %147 = vector.broadcast %cst_64 : f32 to vector<16x1xf32>
    %148 = arith.divf %146, %147 : vector<16x1xf32>
    %149 = vector.broadcast %148 : vector<16x1xf32> to vector<16x128xf32>
    %150 = arith.subf %140, %149 : vector<16x128xf32>
    %151 = arith.mulf %150, %150 : vector<16x128xf32>
    %cst_65 = arith.constant dense<0.000000e+00> : vector<16xf32>
    %152 = vector.multi_reduction <add>, %151, %cst_65 [1] : vector<16x128xf32> to vector<16xf32>
    %153 = vector.shape_cast %152 : vector<16xf32> to vector<16x1xf32>
    %cst_66 = arith.constant 1.280000e+02 : f32
    %154 = vector.broadcast %cst_66 : f32 to vector<16x1xf32>
    %155 = arith.divf %153, %154 : vector<16x1xf32>
    %156 = vector.broadcast %148 : vector<16x1xf32> to vector<16x128xf32>
    %157 = arith.subf %140, %156 : vector<16x128xf32>
    %cst_67 = arith.constant 9.99999974E-6 : f32
    %158 = vector.broadcast %cst_67 : f32 to vector<16x1xf32>
    %159 = arith.addf %155, %158 : vector<16x1xf32>
    %160 = math.rsqrt %159 : vector<16x1xf32>
    %161 = vector.broadcast %160 : vector<16x1xf32> to vector<16x128xf32>
    %162 = arith.mulf %157, %161 : vector<16x128xf32>
    %163 = vector.broadcast %142 : vector<1x128xf32> to vector<16x128xf32>
    %164 = arith.mulf %162, %163 : vector<16x128xf32>
    %165 = vector.broadcast %144 : vector<1x128xf32> to vector<16x128xf32>
    %166 = arith.addf %164, %165 : vector<16x128xf32>
    %c0_68 = arith.constant 0 : index
    %c0_69 = arith.constant 0 : index
    %167 = vector.load %arg14[%c0_68, %c0_69] : memref<16x128xf32, #tpu.memory_space<vmem>>, vector<16x128xf32>
    tpu.vector_store %arg14[%c0_68, %c0_69], %166 {strides = array<i32>} : memref<16x128xf32, #tpu.memory_space<vmem>>, vector<16x128xf32>,
    return
  }
  func.func @transform_0(%arg0: i32) -> (i32, i32) {
    %c0_i32 = arith.constant 0 : i32
    %c0_i32_0 = arith.constant 0 : i32
    %c0_i32_1 = arith.constant 0 : i32
    return %c0_i32, %c0_i32_0 : i32, i32
  }
  func.func @transform_1(%arg0: i32) -> (i32, i32, i32) {
    %c0_i32 = arith.constant 0 : i32
    %c0_i32_0 = arith.constant 0 : i32
    %c0_i32_1 = arith.constant 0 : i32
    return %arg0, %c0_i32, %c0_i32_0 : i32, i32, i32
  }
  func.func @transform_2(%arg0: i32) -> (i32, i32, i32) {
    %c0_i32 = arith.constant 0 : i32
    %c0_i32_0 = arith.constant 0 : i32
    %c0_i32_1 = arith.constant 0 : i32
    return %arg0, %c0_i32, %c0_i32_0 : i32, i32, i32
  }
  func.func @transform_3(%arg0: i32) -> (i32, i32, i32) {
    %c0_i32 = arith.constant 0 : i32
    %c0_i32_0 = arith.constant 0 : i32
    %c0_i32_1 = arith.constant 0 : i32
    return %arg0, %c0_i32, %c0_i32_0 : i32, i32, i32
  }
  func.func @transform_4(%arg0: i32) -> (i32, i32, i32) {
    %c0_i32 = arith.constant 0 : i32
    %c0_i32_0 = arith.constant 0 : i32
    %c0_i32_1 = arith.constant 0 : i32
    return %arg0, %c0_i32, %c0_i32_0 : i32, i32, i32
  }
  func.func @transform_5(%arg0: i32) -> (i32, i32, i32) {
    %c0_i32 = arith.constant 0 : i32
    %c0_i32_0 = arith.constant 0 : i32
    %c0_i32_1 = arith.constant 0 : i32
    return %arg0, %c0_i32, %c0_i32_0 : i32, i32, i32
  }
  func.func @transform_6(%arg0: i32) -> (i32, i32, i32) {
    %c0_i32 = arith.constant 0 : i32
    %c0_i32_0 = arith.constant 0 : i32
    %c0_i32_1 = arith.constant 0 : i32
    return %arg0, %c0_i32, %c0_i32_0 : i32, i32, i32
  }
  func.func @transform_7(%arg0: i32) -> (i32, i32, i32) {
    %c0_i32 = arith.constant 0 : i32
    %c0_i32_0 = arith.constant 0 : i32
    %c0_i32_1 = arith.constant 0 : i32
    return %arg0, %c0_i32, %c0_i32_0 : i32, i32, i32
  }
  func.func @transform_8(%arg0: i32) -> (i32, i32, i32) {
    %c0_i32 = arith.constant 0 : i32
    %c0_i32_0 = arith.constant 0 : i32
    %c0_i32_1 = arith.constant 0 : i32
    return %arg0, %c0_i32, %c0_i32_0 : i32, i32, i32
  }
  func.func @transform_9(%arg0: i32) -> (i32, i32, i32) {
    %c0_i32 = arith.constant 0 : i32
    %c0_i32_0 = arith.constant 0 : i32
    %c0_i32_1 = arith.constant 0 : i32
    return %arg0, %c0_i32, %c0_i32_0 : i32, i32, i32
  }
  func.func @transform_10(%arg0: i32) -> (i32, i32, i32) {
    %c0_i32 = arith.constant 0 : i32
    %c0_i32_0 = arith.constant 0 : i32
    %c0_i32_1 = arith.constant 0 : i32
    return %arg0, %c0_i32, %c0_i32_0 : i32, i32, i32
  }
  func.func @transform_11(%arg0: i32) -> (i32, i32, i32) {
    %c0_i32 = arith.constant 0 : i32
    %c0_i32_0 = arith.constant 0 : i32
    %c0_i32_1 = arith.constant 0 : i32
    return %arg0, %c0_i32, %c0_i32_0 : i32, i32, i32
  }
  func.func @transform_12(%arg0: i32) -> (i32, i32, i32) {
    %c0_i32 = arith.constant 0 : i32
    %c0_i32_0 = arith.constant 0 : i32
    %c0_i32_1 = arith.constant 0 : i32
    return %arg0, %c0_i32, %c0_i32_0 : i32, i32, i32
  }
  func.func @transform_13(%arg0: i32) -> (i32, i32) {
    %c0_i32 = arith.constant 0 : i32
    %c0_i32_0 = arith.constant 0 : i32
    %c0_i32_1 = arith.constant 0 : i32
    return %c0_i32, %c0_i32_0 : i32, i32
  }
}

</mosaic_0001>

<llo_original>
// kernel: transformer_forward.2
$region0: #{transformer_forward.2}
  #allocation0 [shape = 'u32[]', space=smem, size = 0x4, offset = 0x4, fixed_abs, tag = 'smem constant byte address 0x4 - core index']
  #allocation1 [shape = 'u32[144,128]{1,0:T(1,128)}', space=vmem, size = 0x12000, scoped, tag = 'internal scratch']
  %s0 = inlined_call_operand.vmem [shape: f32[16,128], index: 0, kind: input, shape index: {}]
  %s1 = inlined_call_operand.hbm [shape: bf16[6,128,1536], index: 1, kind: input, shape index: {}]
  %s2 = inlined_call_operand.hbm [shape: f32[6,1,1536], index: 2, kind: input, shape index: {}]
  %s3 = inlined_call_operand.hbm [shape: bf16[6,512,128], index: 3, kind: input, shape index: {}]
  %s4 = inlined_call_operand.hbm [shape: f32[6,1,128], index: 4, kind: input, shape index: {}]
  %s5 = inlined_call_operand.hbm [shape: f32[6,1,128], index: 5, kind: input, shape index: {}]
  %s6 = inlined_call_operand.hbm [shape: f32[6,1,128], index: 6, kind: input, shape index: {}]
  %s7 = inlined_call_operand.hbm [shape: bf16[6,128,512], index: 7, kind: input, shape index: {}]
  %s8 = inlined_call_operand.hbm [shape: f32[6,1,512], index: 8, kind: input, shape index: {}]
  %s9 = inlined_call_operand.hbm [shape: bf16[6,512,128], index: 9, kind: input, shape index: {}]
  %s10 = inlined_call_operand.hbm [shape: f32[6,1,128], index: 10, kind: input, shape index: {}]
  %s11 = inlined_call_operand.hbm [shape: f32[6,1,128], index: 11, kind: input, shape index: {}]
  %s12 = inlined_call_operand.hbm [shape: f32[6,1,128], index: 12, kind: input, shape index: {}]
  %s13 = inlined_call_operand.vmem [shape: f32[16,128], index: 13, kind: output, shape index: {}]
  %s14 = sld [smem:[#allocation0]]
  $region137: #{transformer_forward.2} parent=0
    _
  %s16 = ssub.s32 1, %s14
  %s17 = scalar_select 0, %s16, %s14
  $region1: #{transformer_forward.2} parent=0
    #allocation2 [shape = 'u8[786432]{0}', space=vmem, size = 0xc0000, scoped, tag = 'input window, operand 1']
    #allocation3 [shape = 's32[2]{0}', space=sflag, size = 0x8, scoped, tag = 'scoped memory for transformer_forward.2']
    #allocation4 [shape = 'u8[12288]{0}', space=vmem, size = 0x3000, scoped, tag = 'input window, operand 2']
    #allocation5 [shape = 's32[2]{0}', space=sflag, size = 0x8, scoped, tag = 'scoped memory for transformer_forward.2']
    #allocation6 [shape = 'u8[262144]{0}', space=vmem, size = 0x40000, scoped, tag = 'input window, operand 3']
    #allocation7 [shape = 'u8[1024]{0}', space=vmem, size = 0x400, scoped, tag = 'input window, operand 4']
    #allocation8 [shape = 's32[2]{0}', space=sflag, size = 0x8, scoped, tag = 'scoped memory for transformer_forward.2']
    #allocation9 [shape = 'u8[1024]{0}', space=vmem, size = 0x400, scoped, tag = 'input window, operand 5']
    #allocation10 [shape = 'u8[1024]{0}', space=vmem, size = 0x400, scoped, tag = 'input window, operand 6']
    #allocation11 [shape = 's32[2]{0}', space=sflag, size = 0x8, scoped, tag = 'scoped memory for transformer_forward.2']
    #allocation12 [shape = 'u8[262144]{0}', space=vmem, size = 0x40000, scoped, tag = 'input window, operand 7']
    #allocation13 [shape = 'u8[4096]{0}', space=vmem, size = 0x1000, scoped, tag = 'input window, operand 8']
    #allocation14 [shape = 's32[2]{0}', space=sflag, size = 0x8, scoped, tag = 'scoped memory for transformer_forward.2']
    #allocation15 [shape = 'u8[262144]{0}', space=vmem, size = 0x40000, scoped, tag = 'input window, operand 9']
    #allocation16 [shape = 'u8[1024]{0}', space=vmem, size = 0x400, scoped, tag = 'input window, operand 10']
    #allocation17 [shape = 's32[2]{0}', space=sflag, size = 0x8, scoped, tag = 'scoped memory for transformer_forward.2']
    #allocation18 [shape = 'u8[1024]{0}', space=vmem, size = 0x400, scoped, tag = 'input window, operand 11']
    #allocation19 [shape = 'u8[1024]{0}', space=vmem, size = 0x400, scoped, tag = 'input window, operand 12']
    #allocation20 [shape = 's32[2]{0}', space=sflag, size = 0x8, scoped, tag = 'scoped memory for transformer_forward.2']
    %18 = vsyncpa [#allocation3], 0
    %s19 = scalar_lea.sflag [#allocation3], 1
    %20 = vsyncpa %s19, 0
    %21 = vsyncpa [#allocation5], 0
    %s22 = scalar_lea.sflag [#allocation5], 1
    %23 = vsyncpa %s22, 0
    %24 = vsyncpa [#allocation8], 0
    %s25 = scalar_lea.sflag [#allocation8], 1
    %26 = vsyncpa %s25, 0
    %27 = vsyncpa [#allocation11], 0
    %s28 = scalar_lea.sflag [#allocation11], 1
    %29 = vsyncpa %s28, 0
    %30 = vsyncpa [#allocation14], 0
    %s31 = scalar_lea.sflag [#allocation14], 1
    %32 = vsyncpa %s31, 0
    %33 = vsyncpa [#allocation17], 0
    %s34 = scalar_lea.sflag [#allocation17], 1
    %35 = vsyncpa %s34, 0
    %36 = vsyncpa [#allocation20], 0
    %s37 = scalar_lea.sflag [#allocation20], 1
    %38 = vsyncpa %s37, 0
    loop: start=0, step=1, limit=8
    $region2: #{transformer_forward.2} parent=1 // loop_pre_header
      _
    $region3: #{transformer_forward.2} parent=1 // loop_header
      %s40 = sphi 0, %s44
      %p41 = scmp.ge.s32.totalorder %s40, 8
      %s48 = sphi 0, %s48
      %s50 = sphi 0, %s48
      %s51 = sphi 0, %s50
      %s65 = sphi 0, %s51
      %s71 = sphi 0, %s73
      %s74 = sphi 0, %s71
      %s75 = sphi 0, %s74
      %s91 = sphi 0, %s75
      %s97 = sphi 0, %s99
      %s100 = sphi 0, %s97
      %s101 = sphi 0, %s100
      %s117 = sphi 0, %s101
      %s123 = sphi 0, %s125
      %s126 = sphi 0, %s123
      %s127 = sphi 0, %s126
      %s143 = sphi 0, %s127
      %s149 = sphi 0, %s151
      %s152 = sphi 0, %s149
      %s153 = sphi 0, %s152
      %s169 = sphi 0, %s153
      %s175 = sphi 0, %s177
      %s178 = sphi 0, %s175
      %s179 = sphi 0, %s178
      %s195 = sphi 0, %s179
      %s201 = sphi 0, %s203
      %s204 = sphi 0, %s201
      %s205 = sphi 0, %s204
      %s221 = sphi 0, %s205
      %s227 = sphi 0, %s229
      %s230 = sphi 0, %s227
      %s231 = sphi 0, %s230
      %s247 = sphi 0, %s231
      %s253 = sphi 0, %s255
      %s256 = sphi 0, %s253
      %s257 = sphi 0, %s256
      %s273 = sphi 0, %s257
      %s279 = sphi 0, %s281
      %s282 = sphi 0, %s279
      %s283 = sphi 0, %s282
      %s299 = sphi 0, %s283
      %s305 = sphi 0, %s307
      %s308 = sphi 0, %s305
      %s309 = sphi 0, %s308
      %s325 = sphi 0, %s309
      %s331 = sphi 0, %s333
      %s334 = sphi 0, %s331
      %s335 = sphi 0, %s334
      %s351 = sphi 0, %s335
      %s357 = sphi 0, %s359
      %s360 = sphi 0, %s357
      %s361 = sphi 0, %s360
      %s377 = sphi 0, %s361
      %s381 = sphi 0, %s381
      %s383 = sphi 0, %s381
      %s384 = sphi 0, %s383
      %s398 = sphi 0, %s384
    $region4: #{transformer_forward.2} parent=1 // loop_header_branch
      %43 = sbr.rel (%p41) target = $region8
    $region5: #{transformer_forward.2} parent=1 // loop_body
      %s45 = ssub.s32 %s40, 1
      %s46 = ssub.s32 %s40, 2
      %s47 = sadd.s32 %s40, 1
      %s49 = sadd.s32 %s48, 1
      %p52 = scmp.eq.s32.totalorder %s40, 5
      %p53 = scmp.ne.s32.totalorder %s48, %s50
      %p54 = scmp.eq.s32.totalorder %s40, 0
      %p55 = por %p53, %p54
      %p56 = scmp.ne.s32.totalorder %s48, %s50
      %p57 = scmp.eq.s32.totalorder %s45, 5
      %p58 = por %p56, %p57
      %p59 = scmp.ne.s32.totalorder %s50, %s51
      %p60 = scmp.eq.s32.totalorder %s45, 0
      %p61 = por %p59, %p60
      %p62 = scmp.ne.s32.totalorder %s50, %s51
      %p63 = scmp.eq.s32.totalorder %s46, 5
      %p64 = por %p62, %p63
      %p66 = scmp.ne.s32.totalorder %s51, %s65
      %p67 = scmp.eq.s32.totalorder %s46, 0
      %p68 = por %p66, %p67
      %s69 = ssub.s32 %s40, %s47
      %p70 = scmp.eq.s32.totalorder %s69, 0
      %s72 = sadd.s32 %s71, 1
      %s73 = scalar_select %p70, %s71, %s72
      %p76 = pneg %p70
      %p77 = scmp.eq.s32.totalorder %s40, 5
      %p78 = por %p76, %p77
      %p79 = scmp.ne.s32.totalorder %s71, %s74
      %p80 = scmp.eq.s32.totalorder %s40, 0
      %p81 = por %p79, %p80
      %p82 = scmp.ne.s32.totalorder %s71, %s74
      %p83 = scmp.eq.s32.totalorder %s45, 5
      %p84 = por %p82, %p83
      %p85 = scmp.ne.s32.totalorder %s74, %s75
      %p86 = scmp.eq.s32.totalorder %s45, 0
      %p87 = por %p85, %p86
      %p88 = scmp.ne.s32.totalorder %s74, %s75
      %p89 = scmp.eq.s32.totalorder %s46, 5
      %p90 = por %p88, %p89
      %p92 = scmp.ne.s32.totalorder %s75, %s91
      %p93 = scmp.eq.s32.totalorder %s46, 0
      %p94 = por %p92, %p93
      %s95 = ssub.s32 %s40, %s47
      %p96 = scmp.eq.s32.totalorder %s95, 0
      %s98 = sadd.s32 %s97, 1
      %s99 = scalar_select %p96, %s97, %s98
      %p102 = pneg %p96
      %p103 = scmp.eq.s32.totalorder %s40, 5
      %p104 = por %p102, %p103
      %p105 = scmp.ne.s32.totalorder %s97, %s100
      %p106 = scmp.eq.s32.totalorder %s40, 0
      %p107 = por %p105, %p106
      %p108 = scmp.ne.s32.totalorder %s97, %s100
      %p109 = scmp.eq.s32.totalorder %s45, 5
      %p110 = por %p108, %p109
      %p111 = scmp.ne.s32.totalorder %s100, %s101
      %p112 = scmp.eq.s32.totalorder %s45, 0
      %p113 = por %p111, %p112
      %p114 = scmp.ne.s32.totalorder %s100, %s101
      %p115 = scmp.eq.s32.totalorder %s46, 5
      %p116 = por %p114, %p115
      %p118 = scmp.ne.s32.totalorder %s101, %s117
      %p119 = scmp.eq.s32.totalorder %s46, 0
      %p120 = por %p118, %p119
      %s121 = ssub.s32 %s40, %s47
      %p122 = scmp.eq.s32.totalorder %s121, 0
      %s124 = sadd.s32 %s123, 1
      %s125 = scalar_select %p122, %s123, %s124
      %p128 = pneg %p122
      %p129 = scmp.eq.s32.totalorder %s40, 5
      %p130 = por %p128, %p129
      %p131 = scmp.ne.s32.totalorder %s123, %s126
      %p132 = scmp.eq.s32.totalorder %s40, 0
      %p133 = por %p131, %p132
      %p134 = scmp.ne.s32.totalorder %s123, %s126
      %p135 = scmp.eq.s32.totalorder %s45, 5
      %p136 = por %p134, %p135
      %p137 = scmp.ne.s32.totalorder %s126, %s127
      %p138 = scmp.eq.s32.totalorder %s45, 0
      %p139 = por %p137, %p138
      %p140 = scmp.ne.s32.totalorder %s126, %s127
      %p141 = scmp.eq.s32.totalorder %s46, 5
      %p142 = por %p140, %p141
      %p144 = scmp.ne.s32.totalorder %s127, %s143
      %p145 = scmp.eq.s32.totalorder %s46, 0
      %p146 = por %p144, %p145
      %s147 = ssub.s32 %s40, %s47
      %p148 = scmp.eq.s32.totalorder %s147, 0
      %s150 = sadd.s32 %s149, 1
      %s151 = scalar_select %p148, %s149, %s150
      %p154 = pneg %p148
      %p155 = scmp.eq.s32.totalorder %s40, 5
      %p156 = por %p154, %p155
      %p157 = scmp.ne.s32.totalorder %s149, %s152
      %p158 = scmp.eq.s32.totalorder %s40, 0
      %p159 = por %p157, %p158
      %p160 = scmp.ne.s32.totalorder %s149, %s152
      %p161 = scmp.eq.s32.totalorder %s45, 5
      %p162 = por %p160, %p161
      %p163 = scmp.ne.s32.totalorder %s152, %s153
      %p164 = scmp.eq.s32.totalorder %s45, 0
      %p165 = por %p163, %p164
      %p166 = scmp.ne.s32.totalorder %s152, %s153
      %p167 = scmp.eq.s32.totalorder %s46, 5
      %p168 = por %p166, %p167
      %p170 = scmp.ne.s32.totalorder %s153, %s169
      %p171 = scmp.eq.s32.totalorder %s46, 0
      %p172 = por %p170, %p171
      %s173 = ssub.s32 %s40, %s47
      %p174 = scmp.eq.s32.totalorder %s173, 0
      %s176 = sadd.s32 %s175, 1
      %s177 = scalar_select %p174, %s175, %s176
      %p180 = pneg %p174
      %p181 = scmp.eq.s32.totalorder %s40, 5
      %p182 = por %p180, %p181
      %p183 = scmp.ne.s32.totalorder %s175, %s178
      %p184 = scmp.eq.s32.totalorder %s40, 0
      %p185 = por %p183, %p184
      %p186 = scmp.ne.s32.totalorder %s175, %s178
      %p187 = scmp.eq.s32.totalorder %s45, 5
      %p188 = por %p186, %p187
      %p189 = scmp.ne.s32.totalorder %s178, %s179
      %p190 = scmp.eq.s32.totalorder %s45, 0
      %p191 = por %p189, %p190
      %p192 = scmp.ne.s32.totalorder %s178, %s179
      %p193 = scmp.eq.s32.totalorder %s46, 5
      %p194 = por %p192, %p193
      %p196 = scmp.ne.s32.totalorder %s179, %s195
      %p197 = scmp.eq.s32.totalorder %s46, 0
      %p198 = por %p196, %p197
      %s199 = ssub.s32 %s40, %s47
      %p200 = scmp.eq.s32.totalorder %s199, 0
      %s202 = sadd.s32 %s201, 1
      %s203 = scalar_select %p200, %s201, %s202
      %p206 = pneg %p200
      %p207 = scmp.eq.s32.totalorder %s40, 5
      %p208 = por %p206, %p207
      %p209 = scmp.ne.s32.totalorder %s201, %s204
      %p210 = scmp.eq.s32.totalorder %s40, 0
      %p211 = por %p209, %p210
      %p212 = scmp.ne.s32.totalorder %s201, %s204
      %p213 = scmp.eq.s32.totalorder %s45, 5
      %p214 = por %p212, %p213
      %p215 = scmp.ne.s32.totalorder %s204, %s205
      %p216 = scmp.eq.s32.totalorder %s45, 0
      %p217 = por %p215, %p216
      %p218 = scmp.ne.s32.totalorder %s204, %s205
      %p219 = scmp.eq.s32.totalorder %s46, 5
      %p220 = por %p218, %p219
      %p222 = scmp.ne.s32.totalorder %s205, %s221
      %p223 = scmp.eq.s32.totalorder %s46, 0
      %p224 = por %p222, %p223
      %s225 = ssub.s32 %s40, %s47
      %p226 = scmp.eq.s32.totalorder %s225, 0
      %s228 = sadd.s32 %s227, 1
      %s229 = scalar_select %p226, %s227, %s228
      %p232 = pneg %p226
      %p233 = scmp.eq.s32.totalorder %s40, 5
      %p234 = por %p232, %p233
      %p235 = scmp.ne.s32.totalorder %s227, %s230
      %p236 = scmp.eq.s32.totalorder %s40, 0
      %p237 = por %p235, %p236
      %p238 = scmp.ne.s32.totalorder %s227, %s230
      %p239 = scmp.eq.s32.totalorder %s45, 5
      %p240 = por %p238, %p239
      %p241 = scmp.ne.s32.totalorder %s230, %s231
      %p242 = scmp.eq.s32.totalorder %s45, 0
      %p243 = por %p241, %p242
      %p244 = scmp.ne.s32.totalorder %s230, %s231
      %p245 = scmp.eq.s32.totalorder %s46, 5
      %p246 = por %p244, %p245
      %p248 = scmp.ne.s32.totalorder %s231, %s247
      %p249 = scmp.eq.s32.totalorder %s46, 0
      %p250 = por %p248, %p249
      %s251 = ssub.s32 %s40, %s47
      %p252 = scmp.eq.s32.totalorder %s251, 0
      %s254 = sadd.s32 %s253, 1
      %s255 = scalar_select %p252, %s253, %s254
      %p258 = pneg %p252
      %p259 = scmp.eq.s32.totalorder %s40, 5
      %p260 = por %p258, %p259
      %p261 = scmp.ne.s32.totalorder %s253, %s256
      %p262 = scmp.eq.s32.totalorder %s40, 0
      %p263 = por %p261, %p262
      %p264 = scmp.ne.s32.totalorder %s253, %s256
      %p265 = scmp.eq.s32.totalorder %s45, 5
      %p266 = por %p264, %p265
      %p267 = scmp.ne.s32.totalorder %s256, %s257
      %p268 = scmp.eq.s32.totalorder %s45, 0
      %p269 = por %p267, %p268
      %p270 = scmp.ne.s32.totalorder %s256, %s257
      %p271 = scmp.eq.s32.totalorder %s46, 5
      %p272 = por %p270, %p271
      %p274 = scmp.ne.s32.totalorder %s257, %s273
      %p275 = scmp.eq.s32.totalorder %s46, 0
      %p276 = por %p274, %p275
      %s277 = ssub.s32 %s40, %s47
      %p278 = scmp.eq.s32.totalorder %s277, 0
      %s280 = sadd.s32 %s279, 1
      %s281 = scalar_select %p278, %s279, %s280
      %p284 = pneg %p278
      %p285 = scmp.eq.s32.totalorder %s40, 5
      %p286 = por %p284, %p285
      %p287 = scmp.ne.s32.totalorder %s279, %s282
      %p288 = scmp.eq.s32.totalorder %s40, 0
      %p289 = por %p287, %p288
      %p290 = scmp.ne.s32.totalorder %s279, %s282
      %p291 = scmp.eq.s32.totalorder %s45, 5
      %p292 = por %p290, %p291
      %p293 = scmp.ne.s32.totalorder %s282, %s283
      %p294 = scmp.eq.s32.totalorder %s45, 0
      %p295 = por %p293, %p294
      %p296 = scmp.ne.s32.totalorder %s282, %s283
      %p297 = scmp.eq.s32.totalorder %s46, 5
      %p298 = por %p296, %p297
      %p300 = scmp.ne.s32.totalorder %s283, %s299
      %p301 = scmp.eq.s32.totalorder %s46, 0
      %p302 = por %p300, %p301
      %s303 = ssub.s32 %s40, %s47
      %p304 = scmp.eq.s32.totalorder %s303, 0
      %s306 = sadd.s32 %s305, 1
      %s307 = scalar_select %p304, %s305, %s306
      %p310 = pneg %p304
      %p311 = scmp.eq.s32.totalorder %s40, 5
      %p312 = por %p310, %p311
      %p313 = scmp.ne.s32.totalorder %s305, %s308
      %p314 = scmp.eq.s32.totalorder %s40, 0
      %p315 = por %p313, %p314
      %p316 = scmp.ne.s32.totalorder %s305, %s308
      %p317 = scmp.eq.s32.totalorder %s45, 5
      %p318 = por %p316, %p317
      %p319 = scmp.ne.s32.totalorder %s308, %s309
      %p320 = scmp.eq.s32.totalorder %s45, 0
      %p321 = por %p319, %p320
      %p322 = scmp.ne.s32.totalorder %s308, %s309
      %p323 = scmp.eq.s32.totalorder %s46, 5
      %p324 = por %p322, %p323
      %p326 = scmp.ne.s32.totalorder %s309, %s325
      %p327 = scmp.eq.s32.totalorder %s46, 0
      %p328 = por %p326, %p327
      %s329 = ssub.s32 %s40, %s47
      %p330 = scmp.eq.s32.totalorder %s329, 0
      %s332 = sadd.s32 %s331, 1
      %s333 = scalar_select %p330, %s331, %s332
      %p336 = pneg %p330
      %p337 = scmp.eq.s32.totalorder %s40, 5
      %p338 = por %p336, %p337
      %p339 = scmp.ne.s32.totalorder %s331, %s334
      %p340 = scmp.eq.s32.totalorder %s40, 0
      %p341 = por %p339, %p340
      %p342 = scmp.ne.s32.totalorder %s331, %s334
      %p343 = scmp.eq.s32.totalorder %s45, 5
      %p344 = por %p342, %p343
      %p345 = scmp.ne.s32.totalorder %s334, %s335
      %p346 = scmp.eq.s32.totalorder %s45, 0
      %p347 = por %p345, %p346
      %p348 = scmp.ne.s32.totalorder %s334, %s335
      %p349 = scmp.eq.s32.totalorder %s46, 5
      %p350 = por %p348, %p349
      %p352 = scmp.ne.s32.totalorder %s335, %s351
      %p353 = scmp.eq.s32.totalorder %s46, 0
      %p354 = por %p352, %p353
      %s355 = ssub.s32 %s40, %s47
      %p356 = scmp.eq.s32.totalorder %s355, 0
      %s358 = sadd.s32 %s357, 1
      %s359 = scalar_select %p356, %s357, %s358
      %p362 = pneg %p356
      %p363 = scmp.eq.s32.totalorder %s40, 5
      %p364 = por %p362, %p363
      %p365 = scmp.ne.s32.totalorder %s357, %s360
      %p366 = scmp.eq.s32.totalorder %s40, 0
      %p367 = por %p365, %p366
      %p368 = scmp.ne.s32.totalorder %s357, %s360
      %p369 = scmp.eq.s32.totalorder %s45, 5
      %p370 = por %p368, %p369
      %p371 = scmp.ne.s32.totalorder %s360, %s361
      %p372 = scmp.eq.s32.totalorder %s45, 0
      %p373 = por %p371, %p372
      %p374 = scmp.ne.s32.totalorder %s360, %s361
      %p375 = scmp.eq.s32.totalorder %s46, 5
      %p376 = por %p374, %p375
      %p378 = scmp.ne.s32.totalorder %s361, %s377
      %p379 = scmp.eq.s32.totalorder %s46, 0
      %p380 = por %p378, %p379
      %s382 = sadd.s32 %s381, 1
      %p385 = scmp.eq.s32.totalorder %s40, 5
      %p386 = scmp.ne.s32.totalorder %s381, %s383
      %p387 = scmp.eq.s32.totalorder %s40, 0
      %p388 = por %p386, %p387
      %p389 = scmp.ne.s32.totalorder %s381, %s383
      %p390 = scmp.eq.s32.totalorder %s45, 5
      %p391 = por %p389, %p390
      %p392 = scmp.ne.s32.totalorder %s383, %s384
      %p393 = scmp.eq.s32.totalorder %s45, 0
      %p394 = por %p392, %p393
      %p395 = scmp.ne.s32.totalorder %s383, %s384
      %p396 = scmp.eq.s32.totalorder %s46, 5
      %p397 = por %p395, %p396
      %p399 = scmp.ne.s32.totalorder %s384, %s398
      %p400 = scmp.eq.s32.totalorder %s46, 0
      %p401 = por %p399, %p400
      %p402 = scmp.le.s32.totalorder 1, %s40
      %p403 = scmp.lt.s32.totalorder %s40, 7
      %p404 = pnand %p402, %p403
      %p405 = pneg %p404
      // Predicated region
      $region9: #{transformer_forward.2} parent=5 // pred_check
        _
      $region10: #{transformer_forward.2} parent=5 // pred_check_branch
        %407 = sbr.rel (%p404) target = $region12
      $region11: #{transformer_forward.2} parent=5 // pred_region
        %s408 = ssub.s32 %s40, 1
        // Predicated region
        $region13: #{transformer_forward.2} parent=11 // pred_check
          %p409 = pneg %p61
        $region14: #{transformer_forward.2} parent=11 // pred_check_branch
          %411 = sbr.rel (%p409) target = $region16
        $region15: #{transformer_forward.2} parent=11 // pred_region
          _
        $region16: #{transformer_forward.2} parent=11 // pred_fallthru
          _
      $region12: #{transformer_forward.2} parent=5 // pred_fallthru
        _
      %p412 = scmp.lt.s32.totalorder %s40, 6
      // Predicated region
      $region17: #{transformer_forward.2} parent=5 // pred_check
        %p413 = pneg %p412
      $region18: #{transformer_forward.2} parent=5 // pred_check_branch
        %415 = sbr.rel (%p413) target = $region20
      $region19: #{transformer_forward.2} parent=5 // pred_region
        // Predicated region
        $region21: #{transformer_forward.2} parent=19 // pred_check
          %p416 = pneg %p81
        $region22: #{transformer_forward.2} parent=19 // pred_check_branch
          %418 = sbr.rel (%p416) target = $region24
        $region23: #{transformer_forward.2} parent=19 // pred_region
          %s419 = sand.u32 %s71, 1
          %s420 = scalar_lea.sflag [#allocation3], %s419
          %s421 = sand.u32 %s71, 1
          %s422 = smul.addr %s421, 768
          %s423 = scalar_lea.vmem [#allocation2], %s422
          %s425 = ssub.s32 12288, 12288
          %426 = vsyncadd %s420, %s425
          %s427 = smul.addr %s40, 192
          %s428 = smul.addr %s427, 64
          %s429 = scalar_lea.hbm %s1, %s428
          %s430 = sshll.u32 %s423, 4
          %s431 = int_to_ptr.vmem [resolvable:$true] %s430
          %436 = dma.hbm_to_vmem [thread:$0]  %s429, 12288, %s431, %s420, 768, 768, 48
        $region24: #{transformer_forward.2} parent=19 // pred_fallthru
          _
        // Predicated region
        $region25: #{transformer_forward.2} parent=19 // pred_check
          %p437 = pneg %p107
        $region26: #{transformer_forward.2} parent=19 // pred_check_branch
          %439 = sbr.rel (%p437) target = $region28
        $region27: #{transformer_forward.2} parent=19 // pred_region
          %s440 = sand.u32 %s40, 1
          %s441 = scalar_lea.sflag [#allocation5], %s440
          %s442 = sand.u32 %s97, 1
          %s443 = smul.addr %s442, 12
          %s444 = scalar_lea.vmem [#allocation4], %s443
          %s446 = ssub.s32 192, 192
          %447 = vsyncadd %s441, %s446
          %s448 = smul.addr %s40, 12
          %s449 = smul.addr %s448, 16
          %s450 = scalar_lea.hbm %s2, %s449
          %s452 = sshll.u32 %s444, 4
          %s453 = int_to_ptr.vmem [resolvable:$true] %s452
          %455 = dma.hbm_to_vmem [thread:$0]  %s450, 192, %s453, %s441
        $region28: #{transformer_forward.2} parent=19 // pred_fallthru
          _
        // Predicated region
        $region29: #{transformer_forward.2} parent=19 // pred_check
          %p456 = pneg %p133
        $region30: #{transformer_forward.2} parent=19 // pred_check_branch
          %458 = sbr.rel (%p456) target = $region32
        $region31: #{transformer_forward.2} parent=19 // pred_region
          %s459 = sand.u32 %s40, 1
          %s460 = scalar_lea.sflag [#allocation5], %s459
          %s461 = sand.u32 %s123, 1
          %s462 = smul.addr %s461, 256
          %s463 = scalar_lea.vmem [#allocation6], %s462
          %s465 = ssub.s32 4096, 4096
          %466 = vsyncadd %s460, %s465
          %s467 = smul.addr %s40, 64
          %s468 = smul.addr %s467, 64
          %s469 = scalar_lea.hbm %s3, %s468
          %s470 = sshll.u32 %s463, 4
          %s471 = int_to_ptr.vmem [resolvable:$true] %s470
          %476 = dma.hbm_to_vmem [thread:$0]  %s469, 4096, %s471, %s460, 64, 64, 4
        $region32: #{transformer_forward.2} parent=19 // pred_fallthru
          _
        // Predicated region
        $region33: #{transformer_forward.2} parent=19 // pred_check
          %p477 = pneg %p159
        $region34: #{transformer_forward.2} parent=19 // pred_check_branch
          %479 = sbr.rel (%p477) target = $region36
        $region35: #{transformer_forward.2} parent=19 // pred_region
          %s480 = sand.u32 %s40, 1
          %s481 = scalar_lea.sflag [#allocation8], %s480
          %s482 = sand.u32 %s149, 1
          %s483 = scalar_lea.vmem [#allocation7], %s482
          %s485 = ssub.s32 16, 16
          %486 = vsyncadd %s481, %s485
          %s487 = smul.addr %s40, 16
          %s488 = scalar_lea.hbm %s4, %s487
          %s490 = sshll.u32 %s483, 4
          %s491 = int_to_ptr.vmem [resolvable:$true] %s490
          %493 = dma.hbm_to_vmem [thread:$0]  %s488, 16, %s491, %s481
        $region36: #{transformer_forward.2} parent=19 // pred_fallthru
          _
        // Predicated region
        $region37: #{transformer_forward.2} parent=19 // pred_check
          %p494 = pneg %p185
        $region38: #{transformer_forward.2} parent=19 // pred_check_branch
          %496 = sbr.rel (%p494) target = $region40
        $region39: #{transformer_forward.2} parent=19 // pred_region
          %s497 = sand.u32 %s40, 1
          %s498 = scalar_lea.sflag [#allocation8], %s497
          %s499 = sand.u32 %s175, 1
          %s500 = scalar_lea.vmem [#allocation9], %s499
          %s502 = ssub.s32 16, 16
          %503 = vsyncadd %s498, %s502
          %s504 = smul.addr %s40, 16
          %s505 = scalar_lea.hbm %s5, %s504
          %s507 = sshll.u32 %s500, 4
          %s508 = int_to_ptr.vmem [resolvable:$true] %s507
          %510 = dma.hbm_to_vmem [thread:$0]  %s505, 16, %s508, %s498
        $region40: #{transformer_forward.2} parent=19 // pred_fallthru
          _
        // Predicated region
        $region41: #{transformer_forward.2} parent=19 // pred_check
          %p511 = pneg %p211
        $region42: #{transformer_forward.2} parent=19 // pred_check_branch
          %513 = sbr.rel (%p511) target = $region44
        $region43: #{transformer_forward.2} parent=19 // pred_region
          %s514 = sand.u32 %s40, 1
          %s515 = scalar_lea.sflag [#allocation11], %s514
          %s516 = sand.u32 %s201, 1
          %s517 = scalar_lea.vmem [#allocation10], %s516
          %s519 = ssub.s32 16, 16
          %520 = vsyncadd %s515, %s519
          %s521 = smul.addr %s40, 16
          %s522 = scalar_lea.hbm %s6, %s521
          %s524 = sshll.u32 %s517, 4
          %s525 = int_to_ptr.vmem [resolvable:$true] %s524
          %527 = dma.hbm_to_vmem [thread:$0]  %s522, 16, %s525, %s515
        $region44: #{transformer_forward.2} parent=19 // pred_fallthru
          _
        // Predicated region
        $region45: #{transformer_forward.2} parent=19 // pred_check
          %p528 = pneg %p237
        $region46: #{transformer_forward.2} parent=19 // pred_check_branch
          %530 = sbr.rel (%p528) target = $region48
        $region47: #{transformer_forward.2} parent=19 // pred_region
          %s531 = sand.u32 %s40, 1
          %s532 = scalar_lea.sflag [#allocation11], %s531
          %s533 = sand.u32 %s227, 1
          %s534 = smul.addr %s533, 256
          %s535 = scalar_lea.vmem [#allocation12], %s534
          %s537 = ssub.s32 4096, 4096
          %538 = vsyncadd %s532, %s537
          %s539 = smul.addr %s40, 64
          %s540 = smul.addr %s539, 64
          %s541 = scalar_lea.hbm %s7, %s540
          %s542 = sshll.u32 %s535, 4
          %s543 = int_to_ptr.vmem [resolvable:$true] %s542
          %548 = dma.hbm_to_vmem [thread:$0]  %s541, 4096, %s543, %s532, 256, 256, 16
        $region48: #{transformer_forward.2} parent=19 // pred_fallthru
          _
        // Predicated region
        $region49: #{transformer_forward.2} parent=19 // pred_check
          %p549 = pneg %p263
        $region50: #{transformer_forward.2} parent=19 // pred_check_branch
          %551 = sbr.rel (%p549) target = $region52
        $region51: #{transformer_forward.2} parent=19 // pred_region
          %s552 = sand.u32 %s40, 1
          %s553 = scalar_lea.sflag [#allocation14], %s552
          %s554 = sand.u32 %s253, 1
          %s555 = smul.addr %s554, 4
          %s556 = scalar_lea.vmem [#allocation13], %s555
          %s558 = ssub.s32 64, 64
          %559 = vsyncadd %s553, %s558
          %s560 = smul.addr %s40, 4
          %s561 = smul.addr %s560, 16
          %s562 = scalar_lea.hbm %s8, %s561
          %s564 = sshll.u32 %s556, 4
          %s565 = int_to_ptr.vmem [resolvable:$true] %s564
          %567 = dma.hbm_to_vmem [thread:$0]  %s562, 64, %s565, %s553
        $region52: #{transformer_forward.2} parent=19 // pred_fallthru
          _
        // Predicated region
        $region53: #{transformer_forward.2} parent=19 // pred_check
          %p568 = pneg %p289
        $region54: #{transformer_forward.2} parent=19 // pred_check_branch
          %570 = sbr.rel (%p568) target = $region56
        $region55: #{transformer_forward.2} parent=19 // pred_region
          %s571 = sand.u32 %s40, 1
          %s572 = scalar_lea.sflag [#allocation14], %s571
          %s573 = sand.u32 %s279, 1
          %s574 = smul.addr %s573, 256
          %s575 = scalar_lea.vmem [#allocation15], %s574
          %s577 = ssub.s32 4096, 4096
          %578 = vsyncadd %s572, %s577
          %s579 = smul.addr %s40, 64
          %s580 = smul.addr %s579, 64
          %s581 = scalar_lea.hbm %s9, %s580
          %s582 = sshll.u32 %s575, 4
          %s583 = int_to_ptr.vmem [resolvable:$true] %s582
          %588 = dma.hbm_to_vmem [thread:$0]  %s581, 4096, %s583, %s572, 64, 64, 4
        $region56: #{transformer_forward.2} parent=19 // pred_fallthru
          _
        // Predicated region
        $region57: #{transformer_forward.2} parent=19 // pred_check
          %p589 = pneg %p315
        $region58: #{transformer_forward.2} parent=19 // pred_check_branch
          %591 = sbr.rel (%p589) target = $region60
        $region59: #{transformer_forward.2} parent=19 // pred_region
          %s592 = sand.u32 %s40, 1
          %s593 = scalar_lea.sflag [#allocation17], %s592
          %s594 = sand.u32 %s305, 1
          %s595 = scalar_lea.vmem [#allocation16], %s594
          %s597 = ssub.s32 16, 16
          %598 = vsyncadd %s593, %s597
          %s599 = smul.addr %s40, 16
          %s600 = scalar_lea.hbm %s10, %s599
          %s602 = sshll.u32 %s595, 4
          %s603 = int_to_ptr.vmem [resolvable:$true] %s602
          %605 = dma.hbm_to_vmem [thread:$0]  %s600, 16, %s603, %s593
        $region60: #{transformer_forward.2} parent=19 // pred_fallthru
          _
        // Predicated region
        $region61: #{transformer_forward.2} parent=19 // pred_check
          %p606 = pneg %p341
        $region62: #{transformer_forward.2} parent=19 // pred_check_branch
          %608 = sbr.rel (%p606) target = $region64
        $region63: #{transformer_forward.2} parent=19 // pred_region
          %s609 = sand.u32 %s40, 1
          %s610 = scalar_lea.sflag [#allocation17], %s609
          %s611 = sand.u32 %s331, 1
          %s612 = scalar_lea.vmem [#allocation18], %s611
          %s614 = ssub.s32 16, 16
          %615 = vsyncadd %s610, %s614
          %s616 = smul.addr %s40, 16
          %s617 = scalar_lea.hbm %s11, %s616
          %s619 = sshll.u32 %s612, 4
          %s620 = int_to_ptr.vmem [resolvable:$true] %s619
          %622 = dma.hbm_to_vmem [thread:$0]  %s617, 16, %s620, %s610
        $region64: #{transformer_forward.2} parent=19 // pred_fallthru
          _
        // Predicated region
        $region65: #{transformer_forward.2} parent=19 // pred_check
          %p623 = pneg %p367
        $region66: #{transformer_forward.2} parent=19 // pred_check_branch
          %625 = sbr.rel (%p623) target = $region68
        $region67: #{transformer_forward.2} parent=19 // pred_region
          %s626 = sand.u32 %s357, 1
          %s627 = scalar_lea.sflag [#allocation20], %s626
          %s628 = sand.u32 %s357, 1
          %s629 = scalar_lea.vmem [#allocation19], %s628
          %s631 = ssub.s32 16, 16
          %632 = vsyncadd %s627, %s631
          %s633 = smul.addr %s40, 16
          %s634 = scalar_lea.hbm %s12, %s633
          %s636 = sshll.u32 %s629, 4
          %s637 = int_to_ptr.vmem [resolvable:$true] %s636
          %639 = dma.hbm_to_vmem [thread:$0]  %s634, 16, %s637, %s627
        $region68: #{transformer_forward.2} parent=19 // pred_fallthru
          _
      $region20: #{transformer_forward.2} parent=5 // pred_fallthru
        _
      %p640 = scmp.le.s32.totalorder 1, %s40
      %p641 = scmp.lt.s32.totalorder %s40, 7
      %p642 = pnand %p640, %p641
      %p643 = pneg %p642
      // Predicated region
      $region69: #{transformer_forward.2} parent=5 // pred_check
        _
      $region70: #{transformer_forward.2} parent=5 // pred_check_branch
        %645 = sbr.rel (%p642) target = $region72
      $region71: #{transformer_forward.2} parent=5 // pred_region
        %s646 = ssub.s32 %s40, 1
        %s647 = sand.u32 %s74, 1
        %s648 = scalar_lea.sflag [#allocation3], %s647
        %s649 = sand.u32 %s74, 1
        %s650 = smul.addr %s649, 768
        %s651 = scalar_lea.vmem [#allocation2], %s650
        // Predicated region
        $region73: #{transformer_forward.2} parent=71 // pred_check
          %p652 = pneg %p87
        $region74: #{transformer_forward.2} parent=71 // pred_check_branch
          %654 = sbr.rel (%p652) target = $region76
        $region75: #{transformer_forward.2} parent=71 // pred_region
          %655 = dma.done %s648, 12288
        $region76: #{transformer_forward.2} parent=71 // pred_fallthru
          _
        %s656 = sand.u32 %s45, 1
        %s657 = scalar_lea.sflag [#allocation5], %s656
        %s658 = sand.u32 %s100, 1
        %s659 = smul.addr %s658, 12
        %s660 = scalar_lea.vmem [#allocation4], %s659
        // Predicated region
        $region77: #{transformer_forward.2} parent=71 // pred_check
          %p661 = pneg %p113
        $region78: #{transformer_forward.2} parent=71 // pred_check_branch
          %663 = sbr.rel (%p661) target = $region80
        $region79: #{transformer_forward.2} parent=71 // pred_region
          %664 = dma.done %s657, 192
        $region80: #{transformer_forward.2} parent=71 // pred_fallthru
          _
        %s665 = sand.u32 %s45, 1
        %s666 = scalar_lea.sflag [#allocation5], %s665
        %s667 = sand.u32 %s126, 1
        %s668 = smul.addr %s667, 256
        %s669 = scalar_lea.vmem [#allocation6], %s668
        // Predicated region
        $region81: #{transformer_forward.2} parent=71 // pred_check
          %p670 = pneg %p139
        $region82: #{transformer_forward.2} parent=71 // pred_check_branch
          %672 = sbr.rel (%p670) target = $region84
        $region83: #{transformer_forward.2} parent=71 // pred_region
          %673 = dma.done %s666, 4096
        $region84: #{transformer_forward.2} parent=71 // pred_fallthru
          _
        %s674 = sand.u32 %s45, 1
        %s675 = scalar_lea.sflag [#allocation8], %s674
        %s676 = sand.u32 %s152, 1
        %s677 = scalar_lea.vmem [#allocation7], %s676
        // Predicated region
        $region85: #{transformer_forward.2} parent=71 // pred_check
          %p678 = pneg %p165
        $region86: #{transformer_forward.2} parent=71 // pred_check_branch
          %680 = sbr.rel (%p678) target = $region88
        $region87: #{transformer_forward.2} parent=71 // pred_region
          %681 = dma.done %s675, 16
        $region88: #{transformer_forward.2} parent=71 // pred_fallthru
          _
        %s682 = sand.u32 %s45, 1
        %s683 = scalar_lea.sflag [#allocation8], %s682
        %s684 = sand.u32 %s178, 1
        %s685 = scalar_lea.vmem [#allocation9], %s684
        // Predicated region
        $region89: #{transformer_forward.2} parent=71 // pred_check
          %p686 = pneg %p191
        $region90: #{transformer_forward.2} parent=71 // pred_check_branch
          %688 = sbr.rel (%p686) target = $region92
        $region91: #{transformer_forward.2} parent=71 // pred_region
          %689 = dma.done %s683, 16
        $region92: #{transformer_forward.2} parent=71 // pred_fallthru
          _
        %s690 = sand.u32 %s45, 1
        %s691 = scalar_lea.sflag [#allocation11], %s690
        %s692 = sand.u32 %s204, 1
        %s693 = scalar_lea.vmem [#allocation10], %s692
        // Predicated region
        $region93: #{transformer_forward.2} parent=71 // pred_check
          %p694 = pneg %p217
        $region94: #{transformer_forward.2} parent=71 // pred_check_branch
          %696 = sbr.rel (%p694) target = $region96
        $region95: #{transformer_forward.2} parent=71 // pred_region
          %697 = dma.done %s691, 16
        $region96: #{transformer_forward.2} parent=71 // pred_fallthru
          _
        %s698 = sand.u32 %s45, 1
        %s699 = scalar_lea.sflag [#allocation11], %s698
        %s700 = sand.u32 %s230, 1
        %s701 = smul.addr %s700, 256
        %s702 = scalar_lea.vmem [#allocation12], %s701
        // Predicated region
        $region97: #{transformer_forward.2} parent=71 // pred_check
          %p703 = pneg %p243
        $region98: #{transformer_forward.2} parent=71 // pred_check_branch
          %705 = sbr.rel (%p703) target = $region100
        $region99: #{transformer_forward.2} parent=71 // pred_region
          %706 = dma.done %s699, 4096
        $region100: #{transformer_forward.2} parent=71 // pred_fallthru
          _
        %s707 = sand.u32 %s45, 1
        %s708 = scalar_lea.sflag [#allocation14], %s707
        %s709 = sand.u32 %s256, 1
        %s710 = smul.addr %s709, 4
        %s711 = scalar_lea.vmem [#allocation13], %s710
        // Predicated region
        $region101: #{transformer_forward.2} parent=71 // pred_check
          %p712 = pneg %p269
        $region102: #{transformer_forward.2} parent=71 // pred_check_branch
          %714 = sbr.rel (%p712) target = $region104
        $region103: #{transformer_forward.2} parent=71 // pred_region
          %715 = dma.done %s708, 64
        $region104: #{transformer_forward.2} parent=71 // pred_fallthru
          _
        %s716 = sand.u32 %s45, 1
        %s717 = scalar_lea.sflag [#allocation14], %s716
        %s718 = sand.u32 %s282, 1
        %s719 = smul.addr %s718, 256
        %s720 = scalar_lea.vmem [#allocation15], %s719
        // Predicated region
        $region105: #{transformer_forward.2} parent=71 // pred_check
          %p721 = pneg %p295
        $region106: #{transformer_forward.2} parent=71 // pred_check_branch
          %723 = sbr.rel (%p721) target = $region108
        $region107: #{transformer_forward.2} parent=71 // pred_region
          %724 = dma.done %s717, 4096
        $region108: #{transformer_forward.2} parent=71 // pred_fallthru
          _
        %s725 = sand.u32 %s45, 1
        %s726 = scalar_lea.sflag [#allocation17], %s725
        %s727 = sand.u32 %s308, 1
        %s728 = scalar_lea.vmem [#allocation16], %s727
        // Predicated region
        $region109: #{transformer_forward.2} parent=71 // pred_check
          %p729 = pneg %p321
        $region110: #{transformer_forward.2} parent=71 // pred_check_branch
          %731 = sbr.rel (%p729) target = $region112
        $region111: #{transformer_forward.2} parent=71 // pred_region
          %732 = dma.done %s726, 16
        $region112: #{transformer_forward.2} parent=71 // pred_fallthru
          _
        %s733 = sand.u32 %s45, 1
        %s734 = scalar_lea.sflag [#allocation17], %s733
        %s735 = sand.u32 %s334, 1
        %s736 = scalar_lea.vmem [#allocation18], %s735
        // Predicated region
        $region113: #{transformer_forward.2} parent=71 // pred_check
          %p737 = pneg %p347
        $region114: #{transformer_forward.2} parent=71 // pred_check_branch
          %739 = sbr.rel (%p737) target = $region116
        $region115: #{transformer_forward.2} parent=71 // pred_region
          %740 = dma.done %s734, 16
        $region116: #{transformer_forward.2} parent=71 // pred_fallthru
          _
        %s741 = sand.u32 %s360, 1
        %s742 = scalar_lea.sflag [#allocation20], %s741
        %s743 = sand.u32 %s360, 1
        %s744 = scalar_lea.vmem [#allocation19], %s743
        // Predicated region
        $region117: #{transformer_forward.2} parent=71 // pred_check
          %p745 = pneg %p373
        $region118: #{transformer_forward.2} parent=71 // pred_check_branch
          %747 = sbr.rel (%p745) target = $region120
        $region119: #{transformer_forward.2} parent=71 // pred_region
          %748 = dma.done %s742, 16
        $region120: #{transformer_forward.2} parent=71 // pred_fallthru
          _
        %p749 = pneg %p61
        %p750 = pneg %p58
        %s751 = sand.u32 %s74, 1
        %s752 = scalar_lea.sflag [#allocation3], %s751
        %s753 = sand.u32 %s74, 1
        %s754 = smul.addr %s753, 768
        %s755 = scalar_lea.vmem [#allocation2], %s754
        %p756 = pneg %p87
        %p757 = pneg %p84
        %s758 = sand.u32 %s45, 1
        %s759 = scalar_lea.sflag [#allocation5], %s758
        %s760 = sand.u32 %s100, 1
        %s761 = smul.addr %s760, 12
        %s762 = scalar_lea.vmem [#allocation4], %s761
        %p763 = pneg %p113
        %p764 = pneg %p110
        %s765 = sand.u32 %s45, 1
        %s766 = scalar_lea.sflag [#allocation5], %s765
        %s767 = sand.u32 %s126, 1
        %s768 = smul.addr %s767, 256
        %s769 = scalar_lea.vmem [#allocation6], %s768
        %p770 = pneg %p139
        %p771 = pneg %p136
        %s772 = sand.u32 %s45, 1
        %s773 = scalar_lea.sflag [#allocation8], %s772
        %s774 = sand.u32 %s152, 1
        %s775 = scalar_lea.vmem [#allocation7], %s774
        %p776 = pneg %p165
        %p777 = pneg %p162
        %s778 = sand.u32 %s45, 1
        %s779 = scalar_lea.sflag [#allocation8], %s778
        %s780 = sand.u32 %s178, 1
        %s781 = scalar_lea.vmem [#allocation9], %s780
        %p782 = pneg %p191
        %p783 = pneg %p188
        %s784 = sand.u32 %s45, 1
        %s785 = scalar_lea.sflag [#allocation11], %s784
        %s786 = sand.u32 %s204, 1
        %s787 = scalar_lea.vmem [#allocation10], %s786
        %p788 = pneg %p217
        %p789 = pneg %p214
        %s790 = sand.u32 %s45, 1
        %s791 = scalar_lea.sflag [#allocation11], %s790
        %s792 = sand.u32 %s230, 1
        %s793 = smul.addr %s792, 256
        %s794 = scalar_lea.vmem [#allocation12], %s793
        %p795 = pneg %p243
        %p796 = pneg %p240
        %s797 = sand.u32 %s45, 1
        %s798 = scalar_lea.sflag [#allocation14], %s797
        %s799 = sand.u32 %s256, 1
        %s800 = smul.addr %s799, 4
        %s801 = scalar_lea.vmem [#allocation13], %s800
        %p802 = pneg %p269
        %p803 = pneg %p266
        %s804 = sand.u32 %s45, 1
        %s805 = scalar_lea.sflag [#allocation14], %s804
        %s806 = sand.u32 %s282, 1
        %s807 = smul.addr %s806, 256
        %s808 = scalar_lea.vmem [#allocation15], %s807
        %p809 = pneg %p295
        %p810 = pneg %p292
        %s811 = sand.u32 %s45, 1
        %s812 = scalar_lea.sflag [#allocation17], %s811
        %s813 = sand.u32 %s308, 1
        %s814 = scalar_lea.vmem [#allocation16], %s813
        %p815 = pneg %p321
        %p816 = pneg %p318
        %s817 = sand.u32 %s45, 1
        %s818 = scalar_lea.sflag [#allocation17], %s817
        %s819 = sand.u32 %s334, 1
        %s820 = scalar_lea.vmem [#allocation18], %s819
        %p821 = pneg %p347
        %p822 = pneg %p344
        %s823 = sand.u32 %s360, 1
        %s824 = scalar_lea.sflag [#allocation20], %s823
        %s825 = sand.u32 %s360, 1
        %s826 = scalar_lea.vmem [#allocation19], %s825
        %p827 = pneg %p373
        %p828 = pneg %p370
        %p829 = pneg %p394
        %p830 = pneg %p391
        %p832 = scmp.eq.s32.totalorder %s45, 0
        // Predicated region
        $region121: #{transformer_forward.2} parent=71 // pred_check
          %p833 = pneg %p832
        $region122: #{transformer_forward.2} parent=71 // pred_check_branch
          %835 = sbr.rel (%p833) target = $region124
        $region123: #{transformer_forward.2} parent=71 // pred_region
          %v836 = vld [vmem:[%s0] sm:$0xff]
          %v837 = vld [vmem:[%s0 + $0x8] sm:$0xff]
          %838 = vst [vmem:[%s13] sm:$0xff] %v836
          %839 = vst [vmem:[%s13 + $0x8] sm:$0xff] %v837
        $region124: #{transformer_forward.2} parent=71 // pred_fallthru
          _
        %v840 = vld [vmem:[%s13] sm:$0xff]
        %v841 = vld [vmem:[%s13 + $0x8] sm:$0xff]
        %v842 = vpack.c.bf16 %v841, %v840
        %v843 = vld [vmem:[%s651] sm:$0xff]
        %v844 = vld [vmem:[%s651 + $0x8] sm:$0xff]
        %v845 = vld [vmem:[%s651 + $0x10] sm:$0xff]
        %v846 = vld [vmem:[%s651 + $0x18] sm:$0xff]
        %v847 = vld [vmem:[%s651 + $0x20] sm:$0xff]
        %v848 = vld [vmem:[%s651 + $0x28] sm:$0xff]
        %v849 = vld [vmem:[%s651 + $0x30] sm:$0xff]
        %v850 = vld [vmem:[%s651 + $0x38] sm:$0xff]
        %v851 = vld [vmem:[%s651 + $0x40] sm:$0xff]
        %v852 = vld [vmem:[%s651 + $0x48] sm:$0xff]
        %v853 = vld [vmem:[%s651 + $0x50] sm:$0xff]
        %v854 = vld [vmem:[%s651 + $0x58] sm:$0xff]
        %v855 = vld [vmem:[%s651 + $0x60] sm:$0xff]
        %v856 = vld [vmem:[%s651 + $0x68] sm:$0xff]
        %v857 = vld [vmem:[%s651 + $0x70] sm:$0xff]
        %v858 = vld [vmem:[%s651 + $0x78] sm:$0xff]
        %v859 = vld [vmem:[%s651 + $0x80] sm:$0xff]
        %v860 = vld [vmem:[%s651 + $0x88] sm:$0xff]
        %v861 = vld [vmem:[%s651 + $0x90] sm:$0xff]
        %v862 = vld [vmem:[%s651 + $0x98] sm:$0xff]
        %v863 = vld [vmem:[%s651 + $0xa0] sm:$0xff]
        %v864 = vld [vmem:[%s651 + $0xa8] sm:$0xff]
        %v865 = vld [vmem:[%s651 + $0xb0] sm:$0xff]
        %v866 = vld [vmem:[%s651 + $0xb8] sm:$0xff]
        %v867 = vld [vmem:[%s651 + $0xc0] sm:$0xff]
        %v868 = vld [vmem:[%s651 + $0xc8] sm:$0xff]
        %v869 = vld [vmem:[%s651 + $0xd0] sm:$0xff]
        %v870 = vld [vmem:[%s651 + $0xd8] sm:$0xff]
        %v871 = vld [vmem:[%s651 + $0xe0] sm:$0xff]
        %v872 = vld [vmem:[%s651 + $0xe8] sm:$0xff]
        %v873 = vld [vmem:[%s651 + $0xf0] sm:$0xff]
        %v874 = vld [vmem:[%s651 + $0xf8] sm:$0xff]
        %v875 = vld [vmem:[%s651 + $0x100] sm:$0xff]
        %v876 = vld [vmem:[%s651 + $0x108] sm:$0xff]
        %v877 = vld [vmem:[%s651 + $0x110] sm:$0xff]
        %v878 = vld [vmem:[%s651 + $0x118] sm:$0xff]
        %v879 = vld [vmem:[%s651 + $0x120] sm:$0xff]
        %v880 = vld [vmem:[%s651 + $0x128] sm:$0xff]
        %v881 = vld [vmem:[%s651 + $0x130] sm:$0xff]
        %v882 = vld [vmem:[%s651 + $0x138] sm:$0xff]
        %v883 = vld [vmem:[%s651 + $0x140] sm:$0xff]
        %v884 = vld [vmem:[%s651 + $0x148] sm:$0xff]
        %v885 = vld [vmem:[%s651 + $0x150] sm:$0xff]
        %v886 = vld [vmem:[%s651 + $0x158] sm:$0xff]
        %v887 = vld [vmem:[%s651 + $0x160] sm:$0xff]
        %v888 = vld [vmem:[%s651 + $0x168] sm:$0xff]
        %v889 = vld [vmem:[%s651 + $0x170] sm:$0xff]
        %v890 = vld [vmem:[%s651 + $0x178] sm:$0xff]
        %v891 = vld [vmem:[%s651 + $0x180] sm:$0xff]
        %v892 = vld [vmem:[%s651 + $0x188] sm:$0xff]
        %v893 = vld [vmem:[%s651 + $0x190] sm:$0xff]
        %v894 = vld [vmem:[%s651 + $0x198] sm:$0xff]
        %v895 = vld [vmem:[%s651 + $0x1a0] sm:$0xff]
        %v896 = vld [vmem:[%s651 + $0x1a8] sm:$0xff]
        %v897 = vld [vmem:[%s651 + $0x1b0] sm:$0xff]
        %v898 = vld [vmem:[%s651 + $0x1b8] sm:$0xff]
        %v899 = vld [vmem:[%s651 + $0x1c0] sm:$0xff]
        %v900 = vld [vmem:[%s651 + $0x1c8] sm:$0xff]
        %v901 = vld [vmem:[%s651 + $0x1d0] sm:$0xff]
        %v902 = vld [vmem:[%s651 + $0x1d8] sm:$0xff]
        %v903 = vld [vmem:[%s651 + $0x1e0] sm:$0xff]
        %v904 = vld [vmem:[%s651 + $0x1e8] sm:$0xff]
        %v905 = vld [vmem:[%s651 + $0x1f0] sm:$0xff]
        %v906 = vld [vmem:[%s651 + $0x1f8] sm:$0xff]
        %v907 = vld [vmem:[%s651 + $0x200] sm:$0xff]
        %v908 = vld [vmem:[%s651 + $0x208] sm:$0xff]
        %v909 = vld [vmem:[%s651 + $0x210] sm:$0xff]
        %v910 = vld [vmem:[%s651 + $0x218] sm:$0xff]
        %v911 = vld [vmem:[%s651 + $0x220] sm:$0xff]
        %v912 = vld [vmem:[%s651 + $0x228] sm:$0xff]
        %v913 = vld [vmem:[%s651 + $0x230] sm:$0xff]
        %v914 = vld [vmem:[%s651 + $0x238] sm:$0xff]
        %v915 = vld [vmem:[%s651 + $0x240] sm:$0xff]
        %v916 = vld [vmem:[%s651 + $0x248] sm:$0xff]
        %v917 = vld [vmem:[%s651 + $0x250] sm:$0xff]
        %v918 = vld [vmem:[%s651 + $0x258] sm:$0xff]
        %v919 = vld [vmem:[%s651 + $0x260] sm:$0xff]
        %v920 = vld [vmem:[%s651 + $0x268] sm:$0xff]
        %v921 = vld [vmem:[%s651 + $0x270] sm:$0xff]
        %v922 = vld [vmem:[%s651 + $0x278] sm:$0xff]
        %v923 = vld [vmem:[%s651 + $0x280] sm:$0xff]
        %v924 = vld [vmem:[%s651 + $0x288] sm:$0xff]
        %v925 = vld [vmem:[%s651 + $0x290] sm:$0xff]
        %v926 = vld [vmem:[%s651 + $0x298] sm:$0xff]
        %v927 = vld [vmem:[%s651 + $0x2a0] sm:$0xff]
        %v928 = vld [vmem:[%s651 + $0x2a8] sm:$0xff]
        %v929 = vld [vmem:[%s651 + $0x2b0] sm:$0xff]
        %v930 = vld [vmem:[%s651 + $0x2b8] sm:$0xff]
        %v931 = vld [vmem:[%s651 + $0x2c0] sm:$0xff]
        %v932 = vld [vmem:[%s651 + $0x2c8] sm:$0xff]
        %v933 = vld [vmem:[%s651 + $0x2d0] sm:$0xff]
        %v934 = vld [vmem:[%s651 + $0x2d8] sm:$0xff]
        %v935 = vld [vmem:[%s651 + $0x2e0] sm:$0xff]
        %v936 = vld [vmem:[%s651 + $0x2e8] sm:$0xff]
        %v937 = vld [vmem:[%s651 + $0x2f0] sm:$0xff]
        %v938 = vld [vmem:[%s651 + $0x2f8] sm:$0xff]
        %v939 = vld [vmem:[%s660] sm:$0xff]
        %v940 = vld [vmem:[%s660 + $0x8] sm:$0xf]
        %v943 = vlaneseq
        %v944 = vshrl.u32 %v943, 7
        %v945 = vsub.s32 0, %v944
        %v946 = vrot.slane %v939, %v945
        %v947 = vlaneseq
        %v948 = vshrl.u32 %v947, 7
        %v949 = vsub.s32 1, %v948
        %v950 = vrot.slane %v939, %v949
        %v951 = vlaneseq
        %v952 = vshrl.u32 %v951, 7
        %v953 = vsub.s32 2, %v952
        %v954 = vrot.slane %v939, %v953
        %v955 = vlaneseq
        %v956 = vshrl.u32 %v955, 7
        %v957 = vsub.s32 3, %v956
        %v958 = vrot.slane %v939, %v957
        %v959 = vlaneseq
        %v960 = vshrl.u32 %v959, 7
        %v961 = vsub.s32 4, %v960
        %v962 = vrot.slane %v939, %v961
        %v963 = vlaneseq
        %v964 = vshrl.u32 %v963, 7
        %v965 = vsub.s32 5, %v964
        %v966 = vrot.slane %v939, %v965
        %v967 = vlaneseq
        %v968 = vshrl.u32 %v967, 7
        %v969 = vsub.s32 6, %v968
        %v970 = vrot.slane %v939, %v969
        %v971 = vlaneseq
        %v972 = vshrl.u32 %v971, 7
        %v973 = vsub.s32 7, %v972
        %v974 = vrot.slane %v939, %v973
        %v975 = vlaneseq
        %v976 = vshrl.u32 %v975, 7
        %v977 = vsub.s32 0, %v976
        %v978 = vrot.slane %v940, %v977
        %v979 = vlaneseq
        %v980 = vshrl.u32 %v979, 7
        %v981 = vsub.s32 1, %v980
        %v982 = vrot.slane %v940, %v981
        %v983 = vlaneseq
        %v984 = vshrl.u32 %v983, 7
        %v985 = vsub.s32 2, %v984
        %v986 = vrot.slane %v940, %v985
        %v987 = vlaneseq
        %v988 = vshrl.u32 %v987, 7
        %v989 = vsub.s32 3, %v988
        %v990 = vrot.slane %v940, %v989
        %v1099 = vunpack.c.l.b16 %v843
        %v1100 = vunpack.c.h.b16 %v843
        %v1101 = vunpack.c.l.b16 %v844
        %v1102 = vunpack.c.h.b16 %v844
        %v1103 = vunpack.c.l.b16 %v845
        %v1104 = vunpack.c.h.b16 %v845
        %v1105 = vunpack.c.l.b16 %v846
        %v1106 = vunpack.c.h.b16 %v846
        %v1107 = vunpack.c.l.b16 %v847
        %v1108 = vunpack.c.h.b16 %v847
        %v1109 = vunpack.c.l.b16 %v848
        %v1110 = vunpack.c.h.b16 %v848
        %v1111 = vunpack.c.l.b16 %v849
        %v1112 = vunpack.c.h.b16 %v849
        %v1113 = vunpack.c.l.b16 %v850
        %v1114 = vunpack.c.h.b16 %v850
        %v1115 = vunpack.c.l.b16 %v851
        %v1116 = vunpack.c.h.b16 %v851
        %v1117 = vunpack.c.l.b16 %v852
        %v1118 = vunpack.c.h.b16 %v852
        %v1119 = vunpack.c.l.b16 %v853
        %v1120 = vunpack.c.h.b16 %v853
        %v1121 = vunpack.c.l.b16 %v854
        %v1122 = vunpack.c.h.b16 %v854
        %v1123 = vunpack.c.l.b16 %v855
        %v1124 = vunpack.c.h.b16 %v855
        %v1125 = vunpack.c.l.b16 %v856
        %v1126 = vunpack.c.h.b16 %v856
        %v1127 = vunpack.c.l.b16 %v857
        %v1128 = vunpack.c.h.b16 %v857
        %v1129 = vunpack.c.l.b16 %v858
        %v1130 = vunpack.c.h.b16 %v858
        %v1131 = vunpack.c.l.b16 %v859
        %v1132 = vunpack.c.h.b16 %v859
        %v1133 = vunpack.c.l.b16 %v860
        %v1134 = vunpack.c.h.b16 %v860
        %v1135 = vunpack.c.l.b16 %v861
        %v1136 = vunpack.c.h.b16 %v861
        %v1137 = vunpack.c.l.b16 %v862
        %v1138 = vunpack.c.h.b16 %v862
        %v1139 = vunpack.c.l.b16 %v863
        %v1140 = vunpack.c.h.b16 %v863
        %v1141 = vunpack.c.l.b16 %v864
        %v1142 = vunpack.c.h.b16 %v864
        %v1143 = vunpack.c.l.b16 %v865
        %v1144 = vunpack.c.h.b16 %v865
        %v1145 = vunpack.c.l.b16 %v866
        %v1146 = vunpack.c.h.b16 %v866
        %v1147 = vunpack.c.l.b16 %v867
        %v1148 = vunpack.c.h.b16 %v867
        %v1149 = vunpack.c.l.b16 %v868
        %v1150 = vunpack.c.h.b16 %v868
        %v1151 = vunpack.c.l.b16 %v869
        %v1152 = vunpack.c.h.b16 %v869
        %v1153 = vunpack.c.l.b16 %v870
        %v1154 = vunpack.c.h.b16 %v870
        %v1155 = vunpack.c.l.b16 %v871
        %v1156 = vunpack.c.h.b16 %v871
        %v1157 = vunpack.c.l.b16 %v872
        %v1158 = vunpack.c.h.b16 %v872
        %v1159 = vunpack.c.l.b16 %v873
        %v1160 = vunpack.c.h.b16 %v873
        %v1161 = vunpack.c.l.b16 %v874
        %v1162 = vunpack.c.h.b16 %v874
        %v1163 = vunpack.c.l.b16 %v875
        %v1164 = vunpack.c.h.b16 %v875
        %v1165 = vunpack.c.l.b16 %v876
        %v1166 = vunpack.c.h.b16 %v876
        %v1167 = vunpack.c.l.b16 %v877
        %v1168 = vunpack.c.h.b16 %v877
        %v1169 = vunpack.c.l.b16 %v878
        %v1170 = vunpack.c.h.b16 %v878
        %v1171 = vunpack.c.l.b16 %v879
        %v1172 = vunpack.c.h.b16 %v879
        %v1173 = vunpack.c.l.b16 %v880
        %v1174 = vunpack.c.h.b16 %v880
        %v1175 = vunpack.c.l.b16 %v881
        %v1176 = vunpack.c.h.b16 %v881
        %v1177 = vunpack.c.l.b16 %v882
        %v1178 = vunpack.c.h.b16 %v882
        %v1179 = vunpack.c.l.b16 %v883
        %v1180 = vunpack.c.h.b16 %v883
        %v1181 = vunpack.c.l.b16 %v884
        %v1182 = vunpack.c.h.b16 %v884
        %v1183 = vunpack.c.l.b16 %v885
        %v1184 = vunpack.c.h.b16 %v885
        %v1185 = vunpack.c.l.b16 %v886
        %v1186 = vunpack.c.h.b16 %v886
        %v1187 = vunpack.c.l.b16 %v887
        %v1188 = vunpack.c.h.b16 %v887
        %v1189 = vunpack.c.l.b16 %v888
        %v1190 = vunpack.c.h.b16 %v888
        %v1191 = vunpack.c.l.b16 %v889
        %v1192 = vunpack.c.h.b16 %v889
        %v1193 = vunpack.c.l.b16 %v890
        %v1194 = vunpack.c.h.b16 %v890
        %v1195 = vunpack.c.l.b16 %v891
        %v1196 = vunpack.c.h.b16 %v891
        %v1197 = vunpack.c.l.b16 %v892
        %v1198 = vunpack.c.h.b16 %v892
        %v1199 = vunpack.c.l.b16 %v893
        %v1200 = vunpack.c.h.b16 %v893
        %v1201 = vunpack.c.l.b16 %v894
        %v1202 = vunpack.c.h.b16 %v894
        %v1203 = vunpack.c.l.b16 %v895
        %v1204 = vunpack.c.h.b16 %v895
        %v1205 = vunpack.c.l.b16 %v896
        %v1206 = vunpack.c.h.b16 %v896
        %v1207 = vunpack.c.l.b16 %v897
        %v1208 = vunpack.c.h.b16 %v897
        %v1209 = vunpack.c.l.b16 %v898
        %v1210 = vunpack.c.h.b16 %v898
        %v1211 = vunpack.c.l.b16 %v899
        %v1212 = vunpack.c.h.b16 %v899
        %v1213 = vunpack.c.l.b16 %v900
        %v1214 = vunpack.c.h.b16 %v900
        %v1215 = vunpack.c.l.b16 %v901
        %v1216 = vunpack.c.h.b16 %v901
        %v1217 = vunpack.c.l.b16 %v902
        %v1218 = vunpack.c.h.b16 %v902
        %v1219 = vunpack.c.l.b16 %v903
        %v1220 = vunpack.c.h.b16 %v903
        %v1221 = vunpack.c.l.b16 %v904
        %v1222 = vunpack.c.h.b16 %v904
        %v1223 = vunpack.c.l.b16 %v905
        %v1224 = vunpack.c.h.b16 %v905
        %v1225 = vunpack.c.l.b16 %v906
        %v1226 = vunpack.c.h.b16 %v906
        %v1227 = vunpack.c.l.b16 %v907
        %v1228 = vunpack.c.h.b16 %v907
        %v1229 = vunpack.c.l.b16 %v908
        %v1230 = vunpack.c.h.b16 %v908
        %v1231 = vunpack.c.l.b16 %v909
        %v1232 = vunpack.c.h.b16 %v909
        %v1233 = vunpack.c.l.b16 %v910
        %v1234 = vunpack.c.h.b16 %v910
        %v1235 = vunpack.c.l.b16 %v911
        %v1236 = vunpack.c.h.b16 %v911
        %v1237 = vunpack.c.l.b16 %v912
        %v1238 = vunpack.c.h.b16 %v912
        %v1239 = vunpack.c.l.b16 %v913
        %v1240 = vunpack.c.h.b16 %v913
        %v1241 = vunpack.c.l.b16 %v914
        %v1242 = vunpack.c.h.b16 %v914
        %v1243 = vunpack.c.l.b16 %v915
        %v1244 = vunpack.c.h.b16 %v915
        %v1245 = vunpack.c.l.b16 %v916
        %v1246 = vunpack.c.h.b16 %v916
        %v1247 = vunpack.c.l.b16 %v917
        %v1248 = vunpack.c.h.b16 %v917
        %v1249 = vunpack.c.l.b16 %v918
        %v1250 = vunpack.c.h.b16 %v918
        %v1251 = vunpack.c.l.b16 %v919
        %v1252 = vunpack.c.h.b16 %v919
        %v1253 = vunpack.c.l.b16 %v920
        %v1254 = vunpack.c.h.b16 %v920
        %v1255 = vunpack.c.l.b16 %v921
        %v1256 = vunpack.c.h.b16 %v921
        %v1257 = vunpack.c.l.b16 %v922
        %v1258 = vunpack.c.h.b16 %v922
        %v1259 = vunpack.c.l.b16 %v923
        %v1260 = vunpack.c.h.b16 %v923
        %v1261 = vunpack.c.l.b16 %v924
        %v1262 = vunpack.c.h.b16 %v924
        %v1263 = vunpack.c.l.b16 %v925
        %v1264 = vunpack.c.h.b16 %v925
        %v1265 = vunpack.c.l.b16 %v926
        %v1266 = vunpack.c.h.b16 %v926
        %v1267 = vunpack.c.l.b16 %v927
        %v1268 = vunpack.c.h.b16 %v927
        %v1269 = vunpack.c.l.b16 %v928
        %v1270 = vunpack.c.h.b16 %v928
        %v1271 = vunpack.c.l.b16 %v929
        %v1272 = vunpack.c.h.b16 %v929
        %v1273 = vunpack.c.l.b16 %v930
        %v1274 = vunpack.c.h.b16 %v930
        %v1275 = vunpack.c.l.b16 %v931
        %v1276 = vunpack.c.h.b16 %v931
        %v1277 = vunpack.c.l.b16 %v932
        %v1278 = vunpack.c.h.b16 %v932
        %v1279 = vunpack.c.l.b16 %v933
        %v1280 = vunpack.c.h.b16 %v933
        %v1281 = vunpack.c.l.b16 %v934
        %v1282 = vunpack.c.h.b16 %v934
        %v1283 = vunpack.c.l.b16 %v935
        %v1284 = vunpack.c.h.b16 %v935
        %v1285 = vunpack.c.l.b16 %v936
        %v1286 = vunpack.c.h.b16 %v936
        %v1287 = vunpack.c.l.b16 %v937
        %v1288 = vunpack.c.h.b16 %v937
        %v1289 = vunpack.c.l.b16 %v938
        %v1290 = vunpack.c.h.b16 %v938
        %v1291 = vpack.c.b16 %v1111, %v1099
        %v1292 = vpack.c.b16 %v1112, %v1100
        %v1293 = vpack.c.b16 %v1113, %v1101
        %v1294 = vpack.c.b16 %v1114, %v1102
        %v1295 = vpack.c.b16 %v1115, %v1103
        %v1296 = vpack.c.b16 %v1116, %v1104
        %v1297 = vpack.c.b16 %v1117, %v1105
        %v1298 = vpack.c.b16 %v1118, %v1106
        %v1299 = vpack.c.b16 %v1119, %v1107
        %v1300 = vpack.c.b16 %v1120, %v1108
        %v1301 = vpack.c.b16 %v1121, %v1109
        %v1302 = vpack.c.b16 %v1122, %v1110
        %v1303 = vpack.c.b16 %v1135, %v1123
        %v1304 = vpack.c.b16 %v1136, %v1124
        %v1305 = vpack.c.b16 %v1137, %v1125
        %v1306 = vpack.c.b16 %v1138, %v1126
        %v1307 = vpack.c.b16 %v1139, %v1127
        %v1308 = vpack.c.b16 %v1140, %v1128
        %v1309 = vpack.c.b16 %v1141, %v1129
        %v1310 = vpack.c.b16 %v1142, %v1130
        %v1311 = vpack.c.b16 %v1143, %v1131
        %v1312 = vpack.c.b16 %v1144, %v1132
        %v1313 = vpack.c.b16 %v1145, %v1133
        %v1314 = vpack.c.b16 %v1146, %v1134
        %v1315 = vpack.c.b16 %v1159, %v1147
        %v1316 = vpack.c.b16 %v1160, %v1148
        %v1317 = vpack.c.b16 %v1161, %v1149
        %v1318 = vpack.c.b16 %v1162, %v1150
        %v1319 = vpack.c.b16 %v1163, %v1151
        %v1320 = vpack.c.b16 %v1164, %v1152
        %v1321 = vpack.c.b16 %v1165, %v1153
        %v1322 = vpack.c.b16 %v1166, %v1154
        %v1323 = vpack.c.b16 %v1167, %v1155
        %v1324 = vpack.c.b16 %v1168, %v1156
        %v1325 = vpack.c.b16 %v1169, %v1157
        %v1326 = vpack.c.b16 %v1170, %v1158
        %v1327 = vpack.c.b16 %v1183, %v1171
        %v1328 = vpack.c.b16 %v1184, %v1172
        %v1329 = vpack.c.b16 %v1185, %v1173
        %v1330 = vpack.c.b16 %v1186, %v1174
        %v1331 = vpack.c.b16 %v1187, %v1175
        %v1332 = vpack.c.b16 %v1188, %v1176
        %v1333 = vpack.c.b16 %v1189, %v1177
        %v1334 = vpack.c.b16 %v1190, %v1178
        %v1335 = vpack.c.b16 %v1191, %v1179
        %v1336 = vpack.c.b16 %v1192, %v1180
        %v1337 = vpack.c.b16 %v1193, %v1181
        %v1338 = vpack.c.b16 %v1194, %v1182
        %v1339 = vpack.c.b16 %v1207, %v1195
        %v1340 = vpack.c.b16 %v1208, %v1196
        %v1341 = vpack.c.b16 %v1209, %v1197
        %v1342 = vpack.c.b16 %v1210, %v1198
        %v1343 = vpack.c.b16 %v1211, %v1199
        %v1344 = vpack.c.b16 %v1212, %v1200
        %v1345 = vpack.c.b16 %v1213, %v1201
        %v1346 = vpack.c.b16 %v1214, %v1202
        %v1347 = vpack.c.b16 %v1215, %v1203
        %v1348 = vpack.c.b16 %v1216, %v1204
        %v1349 = vpack.c.b16 %v1217, %v1205
        %v1350 = vpack.c.b16 %v1218, %v1206
        %v1351 = vpack.c.b16 %v1231, %v1219
        %v1352 = vpack.c.b16 %v1232, %v1220
        %v1353 = vpack.c.b16 %v1233, %v1221
        %v1354 = vpack.c.b16 %v1234, %v1222
        %v1355 = vpack.c.b16 %v1235, %v1223
        %v1356 = vpack.c.b16 %v1236, %v1224
        %v1357 = vpack.c.b16 %v1237, %v1225
        %v1358 = vpack.c.b16 %v1238, %v1226
        %v1359 = vpack.c.b16 %v1239, %v1227
        %v1360 = vpack.c.b16 %v1240, %v1228
        %v1361 = vpack.c.b16 %v1241, %v1229
        %v1362 = vpack.c.b16 %v1242, %v1230
        %v1363 = vpack.c.b16 %v1255, %v1243
        %v1364 = vpack.c.b16 %v1256, %v1244
        %v1365 = vpack.c.b16 %v1257, %v1245
        %v1366 = vpack.c.b16 %v1258, %v1246
        %v1367 = vpack.c.b16 %v1259, %v1247
        %v1368 = vpack.c.b16 %v1260, %v1248
        %v1369 = vpack.c.b16 %v1261, %v1249
        %v1370 = vpack.c.b16 %v1262, %v1250
        %v1371 = vpack.c.b16 %v1263, %v1251
        %v1372 = vpack.c.b16 %v1264, %v1252
        %v1373 = vpack.c.b16 %v1265, %v1253
        %v1374 = vpack.c.b16 %v1266, %v1254
        %v1375 = vpack.c.b16 %v1279, %v1267
        %v1376 = vpack.c.b16 %v1280, %v1268
        %v1377 = vpack.c.b16 %v1281, %v1269
        %v1378 = vpack.c.b16 %v1282, %v1270
        %v1379 = vpack.c.b16 %v1283, %v1271
        %v1380 = vpack.c.b16 %v1284, %v1272
        %v1381 = vpack.c.b16 %v1285, %v1273
        %v1382 = vpack.c.b16 %v1286, %v1274
        %v1383 = vpack.c.b16 %v1287, %v1275
        %v1384 = vpack.c.b16 %v1288, %v1276
        %v1385 = vpack.c.b16 %v1289, %v1277
        %v1386 = vpack.c.b16 %v1290, %v1278
        %1483 = vmatprep.subr.bf16.mxu0 %v1292
        %1484 = vmatpush1.bf16.msra.mxu0 %v1291
        %1485 = vmatprep.subr.bf16.mxu0 %v1304
        %1486 = vmatpush1.bf16.msra.mxu0 %v1303
        %1487 = vmatprep.subr.bf16.mxu0 %v1316
        %1488 = vmatpush1.bf16.msra.mxu0 %v1315
        %1489 = vmatprep.subr.bf16.mxu0 %v1328
        %1490 = vmatpush1.bf16.msra.mxu0 %v1327
        %1491 = vmatprep.subr.bf16.mxu0 %v1340
        %1492 = vmatpush1.bf16.msra.mxu0 %v1339
        %1493 = vmatprep.subr.bf16.mxu0 %v1352
        %1494 = vmatpush1.bf16.msra.mxu0 %v1351
        %1495 = vmatprep.subr.bf16.mxu0 %v1364
        %1496 = vmatpush1.bf16.msra.mxu0 %v1363
        %1497 = vmatprep.subr.bf16.mxu0 %v1376
        %1498 = vmatpush1.bf16.msra.mxu0 %v1375
        %1499 = vmatprep.subr.bf16.mxu0 0
        %1500 = vmatpush1.bf16.msra.mxu0 0
        %1501 = vmatprep.subr.bf16.mxu0 0
        %1502 = vmatpush1.bf16.msra.mxu0 0
        %1503 = vmatprep.subr.bf16.mxu0 0
        %1504 = vmatpush1.bf16.msra.mxu0 0
        %1505 = vmatprep.subr.bf16.mxu0 0
        %1506 = vmatpush1.bf16.msra.mxu0 0
        %1507 = vmatprep.subr.bf16.mxu0 0
        %1508 = vmatpush1.bf16.msra.mxu0 0
        %1509 = vmatprep.subr.bf16.mxu0 0
        %1510 = vmatpush1.bf16.msra.mxu0 0
        %1511 = vmatprep.subr.bf16.mxu0 0
        %1512 = vmatpush1.bf16.msra.mxu0 0
        %1513 = vmatprep.subr.bf16.mxu0 0
        %1514 = vmatpush1.bf16.msra.mxu0 0
        %1515 = vmatprep.mubr.bf16.mxu0 0
        %1516 = vmatmul.mubr.bf16.gmra.mrb[0].mxu0 %v842
        %v1517 = vpop.f32.mrb[0].mxu0
        %v1518 = vadd.f32 %v946, %v1517
        %v1519 = vpop.f32.mrb[0].mxu0
        %v1520 = vadd.f32 %v950, %v1519
        %v1521 = vpop.f32.mrb[0].mxu0
        %v1522 = vadd.f32 %v946, %v1521
        %v1523 = vpop.f32.mrb[0].mxu0
        %v1524 = vadd.f32 %v950, %v1523
        %1525 = vdwg.mxu0
        %1526 = vmatprep.subr.bf16.mxu0 %v1294
        %1527 = vmatpush1.bf16.msra.mxu0 %v1293
        %1528 = vmatprep.subr.bf16.mxu0 %v1306
        %1529 = vmatpush1.bf16.msra.mxu0 %v1305
        %1530 = vmatprep.subr.bf16.mxu0 %v1318
        %1531 = vmatpush1.bf16.msra.mxu0 %v1317
        %1532 = vmatprep.subr.bf16.mxu0 %v1330
        %1533 = vmatpush1.bf16.msra.mxu0 %v1329
        %1534 = vmatprep.subr.bf16.mxu0 %v1342
        %1535 = vmatpush1.bf16.msra.mxu0 %v1341
        %1536 = vmatprep.subr.bf16.mxu0 %v1354
        %1537 = vmatpush1.bf16.msra.mxu0 %v1353
        %1538 = vmatprep.subr.bf16.mxu0 %v1366
        %1539 = vmatpush1.bf16.msra.mxu0 %v1365
        %1540 = vmatprep.subr.bf16.mxu0 %v1378
        %1541 = vmatpush1.bf16.msra.mxu0 %v1377
        %1542 = vmatprep.subr.bf16.mxu0 0
        %1543 = vmatpush1.bf16.msra.mxu0 0
        %1544 = vmatprep.subr.bf16.mxu0 0
        %1545 = vmatpush1.bf16.msra.mxu0 0
        %1546 = vmatprep.subr.bf16.mxu0 0
        %1547 = vmatpush1.bf16.msra.mxu0 0
        %1548 = vmatprep.subr.bf16.mxu0 0
        %1549 = vmatpush1.bf16.msra.mxu0 0
        %1550 = vmatprep.subr.bf16.mxu0 0
        %1551 = vmatpush1.bf16.msra.mxu0 0
        %1552 = vmatprep.subr.bf16.mxu0 0
        %1553 = vmatpush1.bf16.msra.mxu0 0
        %1554 = vmatprep.subr.bf16.mxu0 0
        %1555 = vmatpush1.bf16.msra.mxu0 0
        %1556 = vmatprep.subr.bf16.mxu0 0
        %1557 = vmatpush1.bf16.msra.mxu0 0
        %1558 = vmatprep.mubr.bf16.mxu0 0
        %1559 = vmatmul.mubr.bf16.gmra.mrb[0].mxu0 %v842
        %v1560 = vpop.f32.mrb[0].mxu0
        %v1561 = vadd.f32 %v954, %v1560
        %v1562 = vpop.f32.mrb[0].mxu0
        %v1563 = vadd.f32 %v958, %v1562
        %v1564 = vpop.f32.mrb[0].mxu0
        %v1565 = vadd.f32 %v954, %v1564
        %v1566 = vpop.f32.mrb[0].mxu0
        %v1567 = vadd.f32 %v958, %v1566
        %1568 = vdwg.mxu0
        %1569 = vmatprep.subr.bf16.mxu0 %v1296
        %1570 = vmatpush1.bf16.msra.mxu0 %v1295
        %1571 = vmatprep.subr.bf16.mxu0 %v1308
        %1572 = vmatpush1.bf16.msra.mxu0 %v1307
        %1573 = vmatprep.subr.bf16.mxu0 %v1320
        %1574 = vmatpush1.bf16.msra.mxu0 %v1319
        %1575 = vmatprep.subr.bf16.mxu0 %v1332
        %1576 = vmatpush1.bf16.msra.mxu0 %v1331
        %1577 = vmatprep.subr.bf16.mxu0 %v1344
        %1578 = vmatpush1.bf16.msra.mxu0 %v1343
        %1579 = vmatprep.subr.bf16.mxu0 %v1356
        %1580 = vmatpush1.bf16.msra.mxu0 %v1355
        %1581 = vmatprep.subr.bf16.mxu0 %v1368
        %1582 = vmatpush1.bf16.msra.mxu0 %v1367
        %1583 = vmatprep.subr.bf16.mxu0 %v1380
        %1584 = vmatpush1.bf16.msra.mxu0 %v1379
        %1585 = vmatprep.subr.bf16.mxu0 0
        %1586 = vmatpush1.bf16.msra.mxu0 0
        %1587 = vmatprep.subr.bf16.mxu0 0
        %1588 = vmatpush1.bf16.msra.mxu0 0
        %1589 = vmatprep.subr.bf16.mxu0 0
        %1590 = vmatpush1.bf16.msra.mxu0 0
        %1591 = vmatprep.subr.bf16.mxu0 0
        %1592 = vmatpush1.bf16.msra.mxu0 0
        %1593 = vmatprep.subr.bf16.mxu0 0
        %1594 = vmatpush1.bf16.msra.mxu0 0
        %1595 = vmatprep.subr.bf16.mxu0 0
        %1596 = vmatpush1.bf16.msra.mxu0 0
        %1597 = vmatprep.subr.bf16.mxu0 0
        %1598 = vmatpush1.bf16.msra.mxu0 0
        %1599 = vmatprep.subr.bf16.mxu0 0
        %1600 = vmatpush1.bf16.msra.mxu0 0
        %1601 = vmatprep.mubr.bf16.mxu0 0
        %1602 = vmatmul.mubr.bf16.gmra.mrb[0].mxu0 %v842
        %v1603 = vpop.f32.mrb[0].mxu0
        %v1604 = vadd.f32 %v962, %v1603
        %v1605 = vpop.f32.mrb[0].mxu0
        %v1606 = vadd.f32 %v966, %v1605
        %v1607 = vpop.f32.mrb[0].mxu0
        %v1608 = vadd.f32 %v962, %v1607
        %v1609 = vpop.f32.mrb[0].mxu0
        %v1610 = vadd.f32 %v966, %v1609
        %1611 = vdwg.mxu0
        %1612 = vmatprep.subr.bf16.mxu0 %v1298
        %1613 = vmatpush1.bf16.msra.mxu0 %v1297
        %1614 = vmatprep.subr.bf16.mxu0 %v1310
        %1615 = vmatpush1.bf16.msra.mxu0 %v1309
        %1616 = vmatprep.subr.bf16.mxu0 %v1322
        %1617 = vmatpush1.bf16.msra.mxu0 %v1321
        %1618 = vmatprep.subr.bf16.mxu0 %v1334
        %1619 = vmatpush1.bf16.msra.mxu0 %v1333
        %1620 = vmatprep.subr.bf16.mxu0 %v1346
        %1621 = vmatpush1.bf16.msra.mxu0 %v1345
        %1622 = vmatprep.subr.bf16.mxu0 %v1358
        %1623 = vmatpush1.bf16.msra.mxu0 %v1357
        %1624 = vmatprep.subr.bf16.mxu0 %v1370
        %1625 = vmatpush1.bf16.msra.mxu0 %v1369
        %1626 = vmatprep.subr.bf16.mxu0 %v1382
        %1627 = vmatpush1.bf16.msra.mxu0 %v1381
        %1628 = vmatprep.subr.bf16.mxu0 0
        %1629 = vmatpush1.bf16.msra.mxu0 0
        %1630 = vmatprep.subr.bf16.mxu0 0
        %1631 = vmatpush1.bf16.msra.mxu0 0
        %1632 = vmatprep.subr.bf16.mxu0 0
        %1633 = vmatpush1.bf16.msra.mxu0 0
        %1634 = vmatprep.subr.bf16.mxu0 0
        %1635 = vmatpush1.bf16.msra.mxu0 0
        %1636 = vmatprep.subr.bf16.mxu0 0
        %1637 = vmatpush1.bf16.msra.mxu0 0
        %1638 = vmatprep.subr.bf16.mxu0 0
        %1639 = vmatpush1.bf16.msra.mxu0 0
        %1640 = vmatprep.subr.bf16.mxu0 0
        %1641 = vmatpush1.bf16.msra.mxu0 0
        %1642 = vmatprep.subr.bf16.mxu0 0
        %1643 = vmatpush1.bf16.msra.mxu0 0
        %1644 = vmatprep.mubr.bf16.mxu0 0
        %1645 = vmatmul.mubr.bf16.gmra.mrb[0].mxu0 %v842
        %v1646 = vpop.f32.mrb[0].mxu0
        %v1647 = vadd.f32 %v970, %v1646
        %v1648 = vpop.f32.mrb[0].mxu0
        %v1649 = vadd.f32 %v974, %v1648
        %v1650 = vpop.f32.mrb[0].mxu0
        %v1651 = vadd.f32 %v970, %v1650
        %v1652 = vpop.f32.mrb[0].mxu0
        %v1653 = vadd.f32 %v974, %v1652
        %1654 = vdwg.mxu0
        %1655 = vmatprep.subr.bf16.mxu0 %v1300
        %1656 = vmatpush1.bf16.msra.mxu0 %v1299
        %1657 = vmatprep.subr.bf16.mxu0 %v1312
        %1658 = vmatpush1.bf16.msra.mxu0 %v1311
        %1659 = vmatprep.subr.bf16.mxu0 %v1324
        %1660 = vmatpush1.bf16.msra.mxu0 %v1323
        %1661 = vmatprep.subr.bf16.mxu0 %v1336
        %1662 = vmatpush1.bf16.msra.mxu0 %v1335
        %1663 = vmatprep.subr.bf16.mxu0 %v1348
        %1664 = vmatpush1.bf16.msra.mxu0 %v1347
        %1665 = vmatprep.subr.bf16.mxu0 %v1360
        %1666 = vmatpush1.bf16.msra.mxu0 %v1359
        %1667 = vmatprep.subr.bf16.mxu0 %v1372
        %1668 = vmatpush1.bf16.msra.mxu0 %v1371
        %1669 = vmatprep.subr.bf16.mxu0 %v1384
        %1670 = vmatpush1.bf16.msra.mxu0 %v1383
        %1671 = vmatprep.subr.bf16.mxu0 0
        %1672 = vmatpush1.bf16.msra.mxu0 0
        %1673 = vmatprep.subr.bf16.mxu0 0
        %1674 = vmatpush1.bf16.msra.mxu0 0
        %1675 = vmatprep.subr.bf16.mxu0 0
        %1676 = vmatpush1.bf16.msra.mxu0 0
        %1677 = vmatprep.subr.bf16.mxu0 0
        %1678 = vmatpush1.bf16.msra.mxu0 0
        %1679 = vmatprep.subr.bf16.mxu0 0
        %1680 = vmatpush1.bf16.msra.mxu0 0
        %1681 = vmatprep.subr.bf16.mxu0 0
        %1682 = vmatpush1.bf16.msra.mxu0 0
        %1683 = vmatprep.subr.bf16.mxu0 0
        %1684 = vmatpush1.bf16.msra.mxu0 0
        %1685 = vmatprep.subr.bf16.mxu0 0
        %1686 = vmatpush1.bf16.msra.mxu0 0
        %1687 = vmatprep.mubr.bf16.mxu0 0
        %1688 = vmatmul.mubr.bf16.gmra.mrb[0].mxu0 %v842
        %v1689 = vpop.f32.mrb[0].mxu0
        %v1690 = vadd.f32 %v978, %v1689
        %v1691 = vpop.f32.mrb[0].mxu0
        %v1692 = vadd.f32 %v982, %v1691
        %v1693 = vpop.f32.mrb[0].mxu0
        %v1694 = vadd.f32 %v978, %v1693
        %v1695 = vpop.f32.mrb[0].mxu0
        %v1696 = vadd.f32 %v982, %v1695
        %1697 = vdwg.mxu0
        %1698 = vmatprep.subr.bf16.mxu0 %v1302
        %1699 = vmatpush1.bf16.msra.mxu0 %v1301
        %1700 = vmatprep.subr.bf16.mxu0 %v1314
        %1701 = vmatpush1.bf16.msra.mxu0 %v1313
        %1702 = vmatprep.subr.bf16.mxu0 %v1326
        %1703 = vmatpush1.bf16.msra.mxu0 %v1325
        %1704 = vmatprep.subr.bf16.mxu0 %v1338
        %1705 = vmatpush1.bf16.msra.mxu0 %v1337
        %1706 = vmatprep.subr.bf16.mxu0 %v1350
        %1707 = vmatpush1.bf16.msra.mxu0 %v1349
        %1708 = vmatprep.subr.bf16.mxu0 %v1362
        %1709 = vmatpush1.bf16.msra.mxu0 %v1361
        %1710 = vmatprep.subr.bf16.mxu0 %v1374
        %1711 = vmatpush1.bf16.msra.mxu0 %v1373
        %1712 = vmatprep.subr.bf16.mxu0 %v1386
        %1713 = vmatpush1.bf16.msra.mxu0 %v1385
        %1714 = vmatprep.subr.bf16.mxu0 0
        %1715 = vmatpush1.bf16.msra.mxu0 0
        %1716 = vmatprep.subr.bf16.mxu0 0
        %1717 = vmatpush1.bf16.msra.mxu0 0
        %1718 = vmatprep.subr.bf16.mxu0 0
        %1719 = vmatpush1.bf16.msra.mxu0 0
        %1720 = vmatprep.subr.bf16.mxu0 0
        %1721 = vmatpush1.bf16.msra.mxu0 0
        %1722 = vmatprep.subr.bf16.mxu0 0
        %1723 = vmatpush1.bf16.msra.mxu0 0
        %1724 = vmatprep.subr.bf16.mxu0 0
        %1725 = vmatpush1.bf16.msra.mxu0 0
        %1726 = vmatprep.subr.bf16.mxu0 0
        %1727 = vmatpush1.bf16.msra.mxu0 0
        %1728 = vmatprep.subr.bf16.mxu0 0
        %1729 = vmatpush1.bf16.msra.mxu0 0
        %1730 = vmatprep.mubr.bf16.mxu0 0
        %1731 = vmatmul.mubr.bf16.gmra.mrb[0].mxu0 %v842
        %v1732 = vpop.f32.mrb[0].mxu0
        %v1733 = vadd.f32 %v986, %v1732
        %v1734 = vpop.f32.mrb[0].mxu0
        %v1735 = vadd.f32 %v990, %v1734
        %v1736 = vpop.f32.mrb[0].mxu0
        %v1737 = vadd.f32 %v986, %v1736
        %v1738 = vpop.f32.mrb[0].mxu0
        %v1739 = vadd.f32 %v990, %v1738
        %1740 = vdwg.mxu0
        %v1741 = vpack.c.bf16 %v1518, %v1518
        %v1742 = vpack.c.bf16 %v1520, %v1520
        %v1743 = vpack.c.bf16 %v1561, %v1561
        %v1744 = vpack.c.bf16 %v1563, %v1563
        %v1745 = vpack.c.bf16 %v1522, %v1522
        %v1746 = vpack.c.bf16 %v1524, %v1524
        %v1747 = vpack.c.bf16 %v1565, %v1565
        %v1748 = vpack.c.bf16 %v1567, %v1567
        %v1749 = vpack.c.bf16 %v1604, %v1604
        %v1750 = vpack.c.bf16 %v1606, %v1606
        %v1751 = vpack.c.bf16 %v1647, %v1647
        %v1752 = vpack.c.bf16 %v1649, %v1649
        %v1753 = vpack.c.bf16 %v1608, %v1608
        %v1754 = vpack.c.bf16 %v1610, %v1610
        %v1755 = vpack.c.bf16 %v1651, %v1651
        %v1756 = vpack.c.bf16 %v1653, %v1653
        %v1757 = vpack.c.bf16 %v1690, %v1690
        %v1758 = vpack.c.bf16 %v1692, %v1692
        %v1759 = vpack.c.bf16 %v1733, %v1733
        %v1760 = vpack.c.bf16 %v1735, %v1735
        %v1761 = vpack.c.bf16 %v1694, %v1694
        %v1762 = vpack.c.bf16 %v1696, %v1696
        %v1763 = vpack.c.bf16 %v1737, %v1737
        %v1764 = vpack.c.bf16 %v1739, %v1739
        %1765 = vmatprep.subr.bf16.mxu0 0
        %1766 = vmatpush1.bf16.xpose.msra.mxu0 %v1749
        %1767 = vmatprep.subr.bf16.mxu0 0
        %1768 = vmatpush1.bf16.xpose.msra.mxu0 0
        %1769 = vmatprep.subr.bf16.mxu0 0
        %1770 = vmatpush1.bf16.xpose.msra.mxu0 0
        %1771 = vmatprep.subr.bf16.mxu0 0
        %1772 = vmatpush1.bf16.xpose.msra.mxu0 0
        %1773 = vmatprep.subr.bf16.mxu0 0
        %1774 = vmatpush1.bf16.xpose.msra.mxu0 0
        %1775 = vmatprep.subr.bf16.mxu0 0
        %1776 = vmatpush1.bf16.xpose.msra.mxu0 0
        %1777 = vmatprep.subr.bf16.mxu0 0
        %1778 = vmatpush1.bf16.xpose.msra.mxu0 0
        %1779 = vmatprep.subr.bf16.mxu0 0
        %1780 = vmatpush1.bf16.xpose.msra.mxu0 0
        %1781 = vmatprep.subr.bf16.mxu0 0
        %1782 = vmatpush1.bf16.xpose.msra.mxu0 0
        %1783 = vmatprep.subr.bf16.mxu0 0
        %1784 = vmatpush1.bf16.xpose.msra.mxu0 0
        %1785 = vmatprep.subr.bf16.mxu0 0
        %1786 = vmatpush1.bf16.xpose.msra.mxu0 0
        %1787 = vmatprep.subr.bf16.mxu0 0
        %1788 = vmatpush1.bf16.xpose.msra.mxu0 0
        %1789 = vmatprep.subr.bf16.mxu0 0
        %1790 = vmatpush1.bf16.xpose.msra.mxu0 0
        %1791 = vmatprep.subr.bf16.mxu0 0
        %1792 = vmatpush1.bf16.xpose.msra.mxu0 0
        %1793 = vmatprep.subr.bf16.mxu0 0
        %1794 = vmatpush1.bf16.xpose.msra.mxu0 0
        %1795 = vmatprep.subr.bf16.mxu0 0
        %1796 = vmatpush1.bf16.xpose.msra.mxu0 0
        %1797 = vmatprep.mubr.bf16.mxu0 0
        %1798 = vmatmul.mubr.bf16.gmra.mrb[0].mxu0 %v1741
        %v1799 = vpop.f32.mrb[0].mxu0
        %v1800 = vadd.f32 0.0, %v1799
        %v1801 = vpop.f32.mrb[0].mxu0
        %v1802 = vpop.f32.mrb[0].mxu0
        %v1803 = vpop.f32.mrb[0].mxu0
        %1804 = vdwg.mxu0
        %1805 = vmatprep.subr.bf16.mxu0 0
        %1806 = vmatpush1.bf16.xpose.msra.mxu0 %v1753
        %1807 = vmatprep.subr.bf16.mxu0 0
        %1808 = vmatpush1.bf16.xpose.msra.mxu0 0
        %1809 = vmatprep.subr.bf16.mxu0 0
        %1810 = vmatpush1.bf16.xpose.msra.mxu0 0
        %1811 = vmatprep.subr.bf16.mxu0 0
        %1812 = vmatpush1.bf16.xpose.msra.mxu0 0
        %1813 = vmatprep.subr.bf16.mxu0 0
        %1814 = vmatpush1.bf16.xpose.msra.mxu0 0
        %1815 = vmatprep.subr.bf16.mxu0 0
        %1816 = vmatpush1.bf16.xpose.msra.mxu0 0
        %1817 = vmatprep.subr.bf16.mxu0 0
        %1818 = vmatpush1.bf16.xpose.msra.mxu0 0
        %1819 = vmatprep.subr.bf16.mxu0 0
        %1820 = vmatpush1.bf16.xpose.msra.mxu0 0
        %1821 = vmatprep.subr.bf16.mxu0 0
        %1822 = vmatpush1.bf16.xpose.msra.mxu0 0
        %1823 = vmatprep.subr.bf16.mxu0 0
        %1824 = vmatpush1.bf16.xpose.msra.mxu0 0
        %1825 = vmatprep.subr.bf16.mxu0 0
        %1826 = vmatpush1.bf16.xpose.msra.mxu0 0
        %1827 = vmatprep.subr.bf16.mxu0 0
        %1828 = vmatpush1.bf16.xpose.msra.mxu0 0
        %1829 = vmatprep.subr.bf16.mxu0 0
        %1830 = vmatpush1.bf16.xpose.msra.mxu0 0
        %1831 = vmatprep.subr.bf16.mxu0 0
        %1832 = vmatpush1.bf16.xpose.msra.mxu0 0
        %1833 = vmatprep.subr.bf16.mxu0 0
        %1834 = vmatpush1.bf16.xpose.msra.mxu0 0
        %1835 = vmatprep.subr.bf16.mxu0 0
        %1836 = vmatpush1.bf16.xpose.msra.mxu0 0
        %1837 = vmatprep.mubr.bf16.mxu0 0
        %1838 = vmatmul.mubr.bf16.gmra.mrb[0].mxu0 %v1745
        %v1839 = vpop.f32.mrb[0].mxu0
        %v1840 = vadd.f32 0.0, %v1839
        %v1841 = vpop.f32.mrb[0].mxu0
        %v1842 = vpop.f32.mrb[0].mxu0
        %v1843 = vpop.f32.mrb[0].mxu0
        %1844 = vdwg.mxu0
        %vm1845 = vcmask 64512
        %v1846 = vsel %vm1845, %v1800, -inf
        %1847 = vmax.xlane.f32.xlu0 %v1846
        %v1848 = vpop.xlane.xlu0 %1847
        %v1849 = vsel %vm1845, %v1840, -inf
        %1850 = vmax.xlane.f32.xlu0 %v1849
        %v1851 = vpop.xlane.xlu0 %1850
        %v1852 = vsub.f32 %v1800, %v1848
        %v1853 = vsub.f32 %v1840, %v1851
        %v1854 = vmul.f32 %v1852, 1.442695
        %v1855 = vpow.pop %v1854
        %v1856 = vmul.f32 %v1853, 1.442695
        %v1857 = vpow.pop %v1856
        %v1858 = vsel %vm1845, %v1855, 0.0
        %1859 = vadd.xlane.f32.xlu0 %v1858
        %v1860 = vpop.xlane.xlu0 %1859
        %v1861 = vsel %vm1845, %v1857, 0.0
        %1862 = vadd.xlane.f32.xlu0 %v1861
        %v1863 = vpop.xlane.xlu0 %1862
        %v1864 = vrcp.pop %v1860
        %v1865 = vrcp.pop %v1863
        %v1866 = vmul.f32 %v1855, %v1864
        %v1867 = vmul.f32 %v1857, %v1865
        %v1868 = vpack.c.bf16 %v1866, %v1866
        %v1869 = vpack.c.bf16 %v1867, %v1867
        %v1871 = vsel %vm1845, %v1868, 0
        %vm1873 = vcmask 1043456
        %v1875 = vsel %vm1873, %v1757, 0
        %1877 = vmatprep.subr.bf16.mxu0 0
        %1878 = vmatpush1.bf16.msra.mxu0 %v1875
        %1879 = vmatprep.subr.bf16.mxu0 0
        %1880 = vmatpush1.bf16.msra.mxu0 0
        %1881 = vmatprep.subr.bf16.mxu0 0
        %1882 = vmatpush1.bf16.msra.mxu0 0
        %1883 = vmatprep.subr.bf16.mxu0 0
        %1884 = vmatpush1.bf16.msra.mxu0 0
        %1885 = vmatprep.subr.bf16.mxu0 0
        %1886 = vmatpush1.bf16.msra.mxu0 0
        %1887 = vmatprep.subr.bf16.mxu0 0
        %1888 = vmatpush1.bf16.msra.mxu0 0
        %1889 = vmatprep.subr.bf16.mxu0 0
        %1890 = vmatpush1.bf16.msra.mxu0 0
        %1891 = vmatprep.subr.bf16.mxu0 0
        %1892 = vmatpush1.bf16.msra.mxu0 0
        %1893 = vmatprep.subr.bf16.mxu0 0
        %1894 = vmatpush1.bf16.msra.mxu0 0
        %1895 = vmatprep.subr.bf16.mxu0 0
        %1896 = vmatpush1.bf16.msra.mxu0 0
        %1897 = vmatprep.subr.bf16.mxu0 0
        %1898 = vmatpush1.bf16.msra.mxu0 0
        %1899 = vmatprep.subr.bf16.mxu0 0
        %1900 = vmatpush1.bf16.msra.mxu0 0
        %1901 = vmatprep.subr.bf16.mxu0 0
        %1902 = vmatpush1.bf16.msra.mxu0 0
        %1903 = vmatprep.subr.bf16.mxu0 0
        %1904 = vmatpush1.bf16.msra.mxu0 0
        %1905 = vmatprep.subr.bf16.mxu0 0
        %1906 = vmatpush1.bf16.msra.mxu0 0
        %1907 = vmatprep.subr.bf16.mxu0 0
        %1908 = vmatpush1.bf16.msra.mxu0 0
        %1909 = vmatprep.mubr.bf16.mxu0 0
        %1910 = vmatmul.mubr.bf16.gmra.mrb[0].mxu0 %v1871
        %v1911 = vpop.f32.mrb[0].mxu0
        %v1912 = vadd.f32 0.0, %v1911
        %v1913 = vpop.f32.mrb[0].mxu0
        %v1914 = vpop.f32.mrb[0].mxu0
        %v1915 = vpop.f32.mrb[0].mxu0
        %1916 = vdwg.mxu0
        %v1918 = vsel %vm1845, %v1869, 0
        %v1921 = vsel %vm1873, %v1761, 0
        %1923 = vmatprep.subr.bf16.mxu0 0
        %1924 = vmatpush1.bf16.msra.mxu0 %v1921
        %1925 = vmatprep.subr.bf16.mxu0 0
        %1926 = vmatpush1.bf16.msra.mxu0 0
        %1927 = vmatprep.subr.bf16.mxu0 0
        %1928 = vmatpush1.bf16.msra.mxu0 0
        %1929 = vmatprep.subr.bf16.mxu0 0
        %1930 = vmatpush1.bf16.msra.mxu0 0
        %1931 = vmatprep.subr.bf16.mxu0 0
        %1932 = vmatpush1.bf16.msra.mxu0 0
        %1933 = vmatprep.subr.bf16.mxu0 0
        %1934 = vmatpush1.bf16.msra.mxu0 0
        %1935 = vmatprep.subr.bf16.mxu0 0
        %1936 = vmatpush1.bf16.msra.mxu0 0
        %1937 = vmatprep.subr.bf16.mxu0 0
        %1938 = vmatpush1.bf16.msra.mxu0 0
        %1939 = vmatprep.subr.bf16.mxu0 0
        %1940 = vmatpush1.bf16.msra.mxu0 0
        %1941 = vmatprep.subr.bf16.mxu0 0
        %1942 = vmatpush1.bf16.msra.mxu0 0
        %1943 = vmatprep.subr.bf16.mxu0 0
        %1944 = vmatpush1.bf16.msra.mxu0 0
        %1945 = vmatprep.subr.bf16.mxu0 0
        %1946 = vmatpush1.bf16.msra.mxu0 0
        %1947 = vmatprep.subr.bf16.mxu0 0
        %1948 = vmatpush1.bf16.msra.mxu0 0
        %1949 = vmatprep.subr.bf16.mxu0 0
        %1950 = vmatpush1.bf16.msra.mxu0 0
        %1951 = vmatprep.subr.bf16.mxu0 0
        %1952 = vmatpush1.bf16.msra.mxu0 0
        %1953 = vmatprep.subr.bf16.mxu0 0
        %1954 = vmatpush1.bf16.msra.mxu0 0
        %1955 = vmatprep.mubr.bf16.mxu0 0
        %1956 = vmatmul.mubr.bf16.gmra.mrb[0].mxu0 %v1918
        %v1957 = vpop.f32.mrb[0].mxu0
        %v1958 = vadd.f32 0.0, %v1957
        %v1959 = vpop.f32.mrb[0].mxu0
        %v1960 = vpop.f32.mrb[0].mxu0
        %v1961 = vpop.f32.mrb[0].mxu0
        %1962 = vdwg.mxu0
        %1963 = vmatprep.subr.bf16.mxu0 0
        %1964 = vmatpush1.bf16.xpose.msra.mxu0 %v1750
        %1965 = vmatprep.subr.bf16.mxu0 0
        %1966 = vmatpush1.bf16.xpose.msra.mxu0 0
        %1967 = vmatprep.subr.bf16.mxu0 0
        %1968 = vmatpush1.bf16.xpose.msra.mxu0 0
        %1969 = vmatprep.subr.bf16.mxu0 0
        %1970 = vmatpush1.bf16.xpose.msra.mxu0 0
        %1971 = vmatprep.subr.bf16.mxu0 0
        %1972 = vmatpush1.bf16.xpose.msra.mxu0 0
        %1973 = vmatprep.subr.bf16.mxu0 0
        %1974 = vmatpush1.bf16.xpose.msra.mxu0 0
        %1975 = vmatprep.subr.bf16.mxu0 0
        %1976 = vmatpush1.bf16.xpose.msra.mxu0 0
        %1977 = vmatprep.subr.bf16.mxu0 0
        %1978 = vmatpush1.bf16.xpose.msra.mxu0 0
        %1979 = vmatprep.subr.bf16.mxu0 0
        %1980 = vmatpush1.bf16.xpose.msra.mxu0 0
        %1981 = vmatprep.subr.bf16.mxu0 0
        %1982 = vmatpush1.bf16.xpose.msra.mxu0 0
        %1983 = vmatprep.subr.bf16.mxu0 0
        %1984 = vmatpush1.bf16.xpose.msra.mxu0 0
        %1985 = vmatprep.subr.bf16.mxu0 0
        %1986 = vmatpush1.bf16.xpose.msra.mxu0 0
        %1987 = vmatprep.subr.bf16.mxu0 0
        %1988 = vmatpush1.bf16.xpose.msra.mxu0 0
        %1989 = vmatprep.subr.bf16.mxu0 0
        %1990 = vmatpush1.bf16.xpose.msra.mxu0 0
        %1991 = vmatprep.subr.bf16.mxu0 0
        %1992 = vmatpush1.bf16.xpose.msra.mxu0 0
        %1993 = vmatprep.subr.bf16.mxu0 0
        %1994 = vmatpush1.bf16.xpose.msra.mxu0 0
        %1995 = vmatprep.mubr.bf16.mxu0 0
        %1996 = vmatmul.mubr.bf16.gmra.mrb[0].mxu0 %v1742
        %v1997 = vpop.f32.mrb[0].mxu0
        %v1998 = vadd.f32 0.0, %v1997
        %v1999 = vpop.f32.mrb[0].mxu0
        %v2000 = vpop.f32.mrb[0].mxu0
        %v2001 = vpop.f32.mrb[0].mxu0
        %2002 = vdwg.mxu0
        %2003 = vmatprep.subr.bf16.mxu0 0
        %2004 = vmatpush1.bf16.xpose.msra.mxu0 %v1754
        %2005 = vmatprep.subr.bf16.mxu0 0
        %2006 = vmatpush1.bf16.xpose.msra.mxu0 0
        %2007 = vmatprep.subr.bf16.mxu0 0
        %2008 = vmatpush1.bf16.xpose.msra.mxu0 0
        %2009 = vmatprep.subr.bf16.mxu0 0
        %2010 = vmatpush1.bf16.xpose.msra.mxu0 0
        %2011 = vmatprep.subr.bf16.mxu0 0
        %2012 = vmatpush1.bf16.xpose.msra.mxu0 0
        %2013 = vmatprep.subr.bf16.mxu0 0
        %2014 = vmatpush1.bf16.xpose.msra.mxu0 0
        %2015 = vmatprep.subr.bf16.mxu0 0
        %2016 = vmatpush1.bf16.xpose.msra.mxu0 0
        %2017 = vmatprep.subr.bf16.mxu0 0
        %2018 = vmatpush1.bf16.xpose.msra.mxu0 0
        %2019 = vmatprep.subr.bf16.mxu0 0
        %2020 = vmatpush1.bf16.xpose.msra.mxu0 0
        %2021 = vmatprep.subr.bf16.mxu0 0
        %2022 = vmatpush1.bf16.xpose.msra.mxu0 0
        %2023 = vmatprep.subr.bf16.mxu0 0
        %2024 = vmatpush1.bf16.xpose.msra.mxu0 0
        %2025 = vmatprep.subr.bf16.mxu0 0
        %2026 = vmatpush1.bf16.xpose.msra.mxu0 0
        %2027 = vmatprep.subr.bf16.mxu0 0
        %2028 = vmatpush1.bf16.xpose.msra.mxu0 0
        %2029 = vmatprep.subr.bf16.mxu0 0
        %2030 = vmatpush1.bf16.xpose.msra.mxu0 0
        %2031 = vmatprep.subr.bf16.mxu0 0
        %2032 = vmatpush1.bf16.xpose.msra.mxu0 0
        %2033 = vmatprep.subr.bf16.mxu0 0
        %2034 = vmatpush1.bf16.xpose.msra.mxu0 0
        %2035 = vmatprep.mubr.bf16.mxu0 0
        %2036 = vmatmul.mubr.bf16.gmra.mrb[0].mxu0 %v1746
        %v2037 = vpop.f32.mrb[0].mxu0
        %v2038 = vadd.f32 0.0, %v2037
        %v2039 = vpop.f32.mrb[0].mxu0
        %v2040 = vpop.f32.mrb[0].mxu0
        %v2041 = vpop.f32.mrb[0].mxu0
        %2042 = vdwg.mxu0
        %v2043 = vsel %vm1845, %v1998, -inf
        %2044 = vmax.xlane.f32.xlu0 %v2043
        %v2045 = vpop.xlane.xlu0 %2044
        %v2046 = vsel %vm1845, %v2038, -inf
        %2047 = vmax.xlane.f32.xlu0 %v2046
        %v2048 = vpop.xlane.xlu0 %2047
        %v2049 = vsub.f32 %v1998, %v2045
        %v2050 = vsub.f32 %v2038, %v2048
        %v2051 = vmul.f32 %v2049, 1.442695
        %v2052 = vpow.pop %v2051
        %v2053 = vmul.f32 %v2050, 1.442695
        %v2054 = vpow.pop %v2053
        %v2055 = vsel %vm1845, %v2052, 0.0
        %2056 = vadd.xlane.f32.xlu0 %v2055
        %v2057 = vpop.xlane.xlu0 %2056
        %v2058 = vsel %vm1845, %v2054, 0.0
        %2059 = vadd.xlane.f32.xlu0 %v2058
        %v2060 = vpop.xlane.xlu0 %2059
        %v2061 = vrcp.pop %v2057
        %v2062 = vrcp.pop %v2060
        %v2063 = vmul.f32 %v2052, %v2061
        %v2064 = vmul.f32 %v2054, %v2062
        %v2065 = vpack.c.bf16 %v2063, %v2063
        %v2066 = vpack.c.bf16 %v2064, %v2064
        %v2068 = vsel %vm1845, %v2065, 0
        %v2071 = vsel %vm1873, %v1758, 0
        %2073 = vmatprep.subr.bf16.mxu0 0
        %2074 = vmatpush1.bf16.msra.mxu0 %v2071
        %2075 = vmatprep.subr.bf16.mxu0 0
        %2076 = vmatpush1.bf16.msra.mxu0 0
        %2077 = vmatprep.subr.bf16.mxu0 0
        %2078 = vmatpush1.bf16.msra.mxu0 0
        %2079 = vmatprep.subr.bf16.mxu0 0
        %2080 = vmatpush1.bf16.msra.mxu0 0
        %2081 = vmatprep.subr.bf16.mxu0 0
        %2082 = vmatpush1.bf16.msra.mxu0 0
        %2083 = vmatprep.subr.bf16.mxu0 0
        %2084 = vmatpush1.bf16.msra.mxu0 0
        %2085 = vmatprep.subr.bf16.mxu0 0
        %2086 = vmatpush1.bf16.msra.mxu0 0
        %2087 = vmatprep.subr.bf16.mxu0 0
        %2088 = vmatpush1.bf16.msra.mxu0 0
        %2089 = vmatprep.subr.bf16.mxu0 0
        %2090 = vmatpush1.bf16.msra.mxu0 0
        %2091 = vmatprep.subr.bf16.mxu0 0
        %2092 = vmatpush1.bf16.msra.mxu0 0
        %2093 = vmatprep.subr.bf16.mxu0 0
        %2094 = vmatpush1.bf16.msra.mxu0 0
        %2095 = vmatprep.subr.bf16.mxu0 0
        %2096 = vmatpush1.bf16.msra.mxu0 0
        %2097 = vmatprep.subr.bf16.mxu0 0
        %2098 = vmatpush1.bf16.msra.mxu0 0
        %2099 = vmatprep.subr.bf16.mxu0 0
        %2100 = vmatpush1.bf16.msra.mxu0 0
        %2101 = vmatprep.subr.bf16.mxu0 0
        %2102 = vmatpush1.bf16.msra.mxu0 0
        %2103 = vmatprep.subr.bf16.mxu0 0
        %2104 = vmatpush1.bf16.msra.mxu0 0
        %2105 = vmatprep.mubr.bf16.mxu0 0
        %2106 = vmatmul.mubr.bf16.gmra.mrb[0].mxu0 %v2068
        %v2107 = vpop.f32.mrb[0].mxu0
        %v2108 = vadd.f32 0.0, %v2107
        %v2109 = vpop.f32.mrb[0].mxu0
        %v2110 = vpop.f32.mrb[0].mxu0
        %v2111 = vpop.f32.mrb[0].mxu0
        %2112 = vdwg.mxu0
        %v2114 = vsel %vm1845, %v2066, 0
        %v2117 = vsel %vm1873, %v1762, 0
        %2119 = vmatprep.subr.bf16.mxu0 0
        %2120 = vmatpush1.bf16.msra.mxu0 %v2117
        %2121 = vmatprep.subr.bf16.mxu0 0
        %2122 = vmatpush1.bf16.msra.mxu0 0
        %2123 = vmatprep.subr.bf16.mxu0 0
        %2124 = vmatpush1.bf16.msra.mxu0 0
        %2125 = vmatprep.subr.bf16.mxu0 0
        %2126 = vmatpush1.bf16.msra.mxu0 0
        %2127 = vmatprep.subr.bf16.mxu0 0
        %2128 = vmatpush1.bf16.msra.mxu0 0
        %2129 = vmatprep.subr.bf16.mxu0 0
        %2130 = vmatpush1.bf16.msra.mxu0 0
        %2131 = vmatprep.subr.bf16.mxu0 0
        %2132 = vmatpush1.bf16.msra.mxu0 0
        %2133 = vmatprep.subr.bf16.mxu0 0
        %2134 = vmatpush1.bf16.msra.mxu0 0
        %2135 = vmatprep.subr.bf16.mxu0 0
        %2136 = vmatpush1.bf16.msra.mxu0 0
        %2137 = vmatprep.subr.bf16.mxu0 0
        %2138 = vmatpush1.bf16.msra.mxu0 0
        %2139 = vmatprep.subr.bf16.mxu0 0
        %2140 = vmatpush1.bf16.msra.mxu0 0
        %2141 = vmatprep.subr.bf16.mxu0 0
        %2142 = vmatpush1.bf16.msra.mxu0 0
        %2143 = vmatprep.subr.bf16.mxu0 0
        %2144 = vmatpush1.bf16.msra.mxu0 0
        %2145 = vmatprep.subr.bf16.mxu0 0
        %2146 = vmatpush1.bf16.msra.mxu0 0
        %2147 = vmatprep.subr.bf16.mxu0 0
        %2148 = vmatpush1.bf16.msra.mxu0 0
        %2149 = vmatprep.subr.bf16.mxu0 0
        %2150 = vmatpush1.bf16.msra.mxu0 0
        %2151 = vmatprep.mubr.bf16.mxu0 0
        %2152 = vmatmul.mubr.bf16.gmra.mrb[0].mxu0 %v2114
        %v2153 = vpop.f32.mrb[0].mxu0
        %v2154 = vadd.f32 0.0, %v2153
        %v2155 = vpop.f32.mrb[0].mxu0
        %v2156 = vpop.f32.mrb[0].mxu0
        %v2157 = vpop.f32.mrb[0].mxu0
        %2158 = vdwg.mxu0
        %2159 = vmatprep.subr.bf16.mxu0 0
        %2160 = vmatpush1.bf16.xpose.msra.mxu0 %v1751
        %2161 = vmatprep.subr.bf16.mxu0 0
        %2162 = vmatpush1.bf16.xpose.msra.mxu0 0
        %2163 = vmatprep.subr.bf16.mxu0 0
        %2164 = vmatpush1.bf16.xpose.msra.mxu0 0
        %2165 = vmatprep.subr.bf16.mxu0 0
        %2166 = vmatpush1.bf16.xpose.msra.mxu0 0
        %2167 = vmatprep.subr.bf16.mxu0 0
        %2168 = vmatpush1.bf16.xpose.msra.mxu0 0
        %2169 = vmatprep.subr.bf16.mxu0 0
        %2170 = vmatpush1.bf16.xpose.msra.mxu0 0
        %2171 = vmatprep.subr.bf16.mxu0 0
        %2172 = vmatpush1.bf16.xpose.msra.mxu0 0
        %2173 = vmatprep.subr.bf16.mxu0 0
        %2174 = vmatpush1.bf16.xpose.msra.mxu0 0
        %2175 = vmatprep.subr.bf16.mxu0 0
        %2176 = vmatpush1.bf16.xpose.msra.mxu0 0
        %2177 = vmatprep.subr.bf16.mxu0 0
        %2178 = vmatpush1.bf16.xpose.msra.mxu0 0
        %2179 = vmatprep.subr.bf16.mxu0 0
        %2180 = vmatpush1.bf16.xpose.msra.mxu0 0
        %2181 = vmatprep.subr.bf16.mxu0 0
        %2182 = vmatpush1.bf16.xpose.msra.mxu0 0
        %2183 = vmatprep.subr.bf16.mxu0 0
        %2184 = vmatpush1.bf16.xpose.msra.mxu0 0
        %2185 = vmatprep.subr.bf16.mxu0 0
        %2186 = vmatpush1.bf16.xpose.msra.mxu0 0
        %2187 = vmatprep.subr.bf16.mxu0 0
        %2188 = vmatpush1.bf16.xpose.msra.mxu0 0
        %2189 = vmatprep.subr.bf16.mxu0 0
        %2190 = vmatpush1.bf16.xpose.msra.mxu0 0
        %2191 = vmatprep.mubr.bf16.mxu0 0
        %2192 = vmatmul.mubr.bf16.gmra.mrb[0].mxu0 %v1743
        %v2193 = vpop.f32.mrb[0].mxu0
        %v2194 = vadd.f32 0.0, %v2193
        %v2195 = vpop.f32.mrb[0].mxu0
        %v2196 = vpop.f32.mrb[0].mxu0
        %v2197 = vpop.f32.mrb[0].mxu0
        %2198 = vdwg.mxu0
        %2199 = vmatprep.subr.bf16.mxu0 0
        %2200 = vmatpush1.bf16.xpose.msra.mxu0 %v1755
        %2201 = vmatprep.subr.bf16.mxu0 0
        %2202 = vmatpush1.bf16.xpose.msra.mxu0 0
        %2203 = vmatprep.subr.bf16.mxu0 0
        %2204 = vmatpush1.bf16.xpose.msra.mxu0 0
        %2205 = vmatprep.subr.bf16.mxu0 0
        %2206 = vmatpush1.bf16.xpose.msra.mxu0 0
        %2207 = vmatprep.subr.bf16.mxu0 0
        %2208 = vmatpush1.bf16.xpose.msra.mxu0 0
        %2209 = vmatprep.subr.bf16.mxu0 0
        %2210 = vmatpush1.bf16.xpose.msra.mxu0 0
        %2211 = vmatprep.subr.bf16.mxu0 0
        %2212 = vmatpush1.bf16.xpose.msra.mxu0 0
        %2213 = vmatprep.subr.bf16.mxu0 0
        %2214 = vmatpush1.bf16.xpose.msra.mxu0 0
        %2215 = vmatprep.subr.bf16.mxu0 0
        %2216 = vmatpush1.bf16.xpose.msra.mxu0 0
        %2217 = vmatprep.subr.bf16.mxu0 0
        %2218 = vmatpush1.bf16.xpose.msra.mxu0 0
        %2219 = vmatprep.subr.bf16.mxu0 0
        %2220 = vmatpush1.bf16.xpose.msra.mxu0 0
        %2221 = vmatprep.subr.bf16.mxu0 0
        %2222 = vmatpush1.bf16.xpose.msra.mxu0 0
        %2223 = vmatprep.subr.bf16.mxu0 0
        %2224 = vmatpush1.bf16.xpose.msra.mxu0 0
        %2225 = vmatprep.subr.bf16.mxu0 0
        %2226 = vmatpush1.bf16.xpose.msra.mxu0 0
        %2227 = vmatprep.subr.bf16.mxu0 0
        %2228 = vmatpush1.bf16.xpose.msra.mxu0 0
        %2229 = vmatprep.subr.bf16.mxu0 0
        %2230 = vmatpush1.bf16.xpose.msra.mxu0 0
        %2231 = vmatprep.mubr.bf16.mxu0 0
        %2232 = vmatmul.mubr.bf16.gmra.mrb[0].mxu0 %v1747
        %v2233 = vpop.f32.mrb[0].mxu0
        %v2234 = vadd.f32 0.0, %v2233
        %v2235 = vpop.f32.mrb[0].mxu0
        %v2236 = vpop.f32.mrb[0].mxu0
        %v2237 = vpop.f32.mrb[0].mxu0
        %2238 = vdwg.mxu0
        %v2239 = vsel %vm1845, %v2194, -inf
        %2240 = vmax.xlane.f32.xlu0 %v2239
        %v2241 = vpop.xlane.xlu0 %2240
        %v2242 = vsel %vm1845, %v2234, -inf
        %2243 = vmax.xlane.f32.xlu0 %v2242
        %v2244 = vpop.xlane.xlu0 %2243
        %v2245 = vsub.f32 %v2194, %v2241
        %v2246 = vsub.f32 %v2234, %v2244
        %v2247 = vmul.f32 %v2245, 1.442695
        %v2248 = vpow.pop %v2247
        %v2249 = vmul.f32 %v2246, 1.442695
        %v2250 = vpow.pop %v2249
        %v2251 = vsel %vm1845, %v2248, 0.0
        %2252 = vadd.xlane.f32.xlu0 %v2251
        %v2253 = vpop.xlane.xlu0 %2252
        %v2254 = vsel %vm1845, %v2250, 0.0
        %2255 = vadd.xlane.f32.xlu0 %v2254
        %v2256 = vpop.xlane.xlu0 %2255
        %v2257 = vrcp.pop %v2253
        %v2258 = vrcp.pop %v2256
        %v2259 = vmul.f32 %v2248, %v2257
        %v2260 = vmul.f32 %v2250, %v2258
        %v2261 = vpack.c.bf16 %v2259, %v2259
        %v2262 = vpack.c.bf16 %v2260, %v2260
        %v2264 = vsel %vm1845, %v2261, 0
        %v2267 = vsel %vm1873, %v1759, 0
        %2269 = vmatprep.subr.bf16.mxu0 0
        %2270 = vmatpush1.bf16.msra.mxu0 %v2267
        %2271 = vmatprep.subr.bf16.mxu0 0
        %2272 = vmatpush1.bf16.msra.mxu0 0
        %2273 = vmatprep.subr.bf16.mxu0 0
        %2274 = vmatpush1.bf16.msra.mxu0 0
        %2275 = vmatprep.subr.bf16.mxu0 0
        %2276 = vmatpush1.bf16.msra.mxu0 0
        %2277 = vmatprep.subr.bf16.mxu0 0
        %2278 = vmatpush1.bf16.msra.mxu0 0
        %2279 = vmatprep.subr.bf16.mxu0 0
        %2280 = vmatpush1.bf16.msra.mxu0 0
        %2281 = vmatprep.subr.bf16.mxu0 0
        %2282 = vmatpush1.bf16.msra.mxu0 0
        %2283 = vmatprep.subr.bf16.mxu0 0
        %2284 = vmatpush1.bf16.msra.mxu0 0
        %2285 = vmatprep.subr.bf16.mxu0 0
        %2286 = vmatpush1.bf16.msra.mxu0 0
        %2287 = vmatprep.subr.bf16.mxu0 0
        %2288 = vmatpush1.bf16.msra.mxu0 0
        %2289 = vmatprep.subr.bf16.mxu0 0
        %2290 = vmatpush1.bf16.msra.mxu0 0
        %2291 = vmatprep.subr.bf16.mxu0 0
        %2292 = vmatpush1.bf16.msra.mxu0 0
        %2293 = vmatprep.subr.bf16.mxu0 0
        %2294 = vmatpush1.bf16.msra.mxu0 0
        %2295 = vmatprep.subr.bf16.mxu0 0
        %2296 = vmatpush1.bf16.msra.mxu0 0
        %2297 = vmatprep.subr.bf16.mxu0 0
        %2298 = vmatpush1.bf16.msra.mxu0 0
        %2299 = vmatprep.subr.bf16.mxu0 0
        %2300 = vmatpush1.bf16.msra.mxu0 0
        %2301 = vmatprep.mubr.bf16.mxu0 0
        %2302 = vmatmul.mubr.bf16.gmra.mrb[0].mxu0 %v2264
        %v2303 = vpop.f32.mrb[0].mxu0
        %v2304 = vadd.f32 0.0, %v2303
        %v2305 = vpop.f32.mrb[0].mxu0
        %v2306 = vpop.f32.mrb[0].mxu0
        %v2307 = vpop.f32.mrb[0].mxu0
        %2308 = vdwg.mxu0
        %v2310 = vsel %vm1845, %v2262, 0
        %v2313 = vsel %vm1873, %v1763, 0
        %2315 = vmatprep.subr.bf16.mxu0 0
        %2316 = vmatpush1.bf16.msra.mxu0 %v2313
        %2317 = vmatprep.subr.bf16.mxu0 0
        %2318 = vmatpush1.bf16.msra.mxu0 0
        %2319 = vmatprep.subr.bf16.mxu0 0
        %2320 = vmatpush1.bf16.msra.mxu0 0
        %2321 = vmatprep.subr.bf16.mxu0 0
        %2322 = vmatpush1.bf16.msra.mxu0 0
        %2323 = vmatprep.subr.bf16.mxu0 0
        %2324 = vmatpush1.bf16.msra.mxu0 0
        %2325 = vmatprep.subr.bf16.mxu0 0
        %2326 = vmatpush1.bf16.msra.mxu0 0
        %2327 = vmatprep.subr.bf16.mxu0 0
        %2328 = vmatpush1.bf16.msra.mxu0 0
        %2329 = vmatprep.subr.bf16.mxu0 0
        %2330 = vmatpush1.bf16.msra.mxu0 0
        %2331 = vmatprep.subr.bf16.mxu0 0
        %2332 = vmatpush1.bf16.msra.mxu0 0
        %2333 = vmatprep.subr.bf16.mxu0 0
        %2334 = vmatpush1.bf16.msra.mxu0 0
        %2335 = vmatprep.subr.bf16.mxu0 0
        %2336 = vmatpush1.bf16.msra.mxu0 0
        %2337 = vmatprep.subr.bf16.mxu0 0
        %2338 = vmatpush1.bf16.msra.mxu0 0
        %2339 = vmatprep.subr.bf16.mxu0 0
        %2340 = vmatpush1.bf16.msra.mxu0 0
        %2341 = vmatprep.subr.bf16.mxu0 0
        %2342 = vmatpush1.bf16.msra.mxu0 0
        %2343 = vmatprep.subr.bf16.mxu0 0
        %2344 = vmatpush1.bf16.msra.mxu0 0
        %2345 = vmatprep.subr.bf16.mxu0 0
        %2346 = vmatpush1.bf16.msra.mxu0 0
        %2347 = vmatprep.mubr.bf16.mxu0 0
        %2348 = vmatmul.mubr.bf16.gmra.mrb[0].mxu0 %v2310
        %v2349 = vpop.f32.mrb[0].mxu0
        %v2350 = vadd.f32 0.0, %v2349
        %v2351 = vpop.f32.mrb[0].mxu0
        %v2352 = vpop.f32.mrb[0].mxu0
        %v2353 = vpop.f32.mrb[0].mxu0
        %2354 = vdwg.mxu0
        %2355 = vmatprep.subr.bf16.mxu0 0
        %2356 = vmatpush1.bf16.xpose.msra.mxu0 %v1752
        %2357 = vmatprep.subr.bf16.mxu0 0
        %2358 = vmatpush1.bf16.xpose.msra.mxu0 0
        %2359 = vmatprep.subr.bf16.mxu0 0
        %2360 = vmatpush1.bf16.xpose.msra.mxu0 0
        %2361 = vmatprep.subr.bf16.mxu0 0
        %2362 = vmatpush1.bf16.xpose.msra.mxu0 0
        %2363 = vmatprep.subr.bf16.mxu0 0
        %2364 = vmatpush1.bf16.xpose.msra.mxu0 0
        %2365 = vmatprep.subr.bf16.mxu0 0
        %2366 = vmatpush1.bf16.xpose.msra.mxu0 0
        %2367 = vmatprep.subr.bf16.mxu0 0
        %2368 = vmatpush1.bf16.xpose.msra.mxu0 0
        %2369 = vmatprep.subr.bf16.mxu0 0
        %2370 = vmatpush1.bf16.xpose.msra.mxu0 0
        %2371 = vmatprep.subr.bf16.mxu0 0
        %2372 = vmatpush1.bf16.xpose.msra.mxu0 0
        %2373 = vmatprep.subr.bf16.mxu0 0
        %2374 = vmatpush1.bf16.xpose.msra.mxu0 0
        %2375 = vmatprep.subr.bf16.mxu0 0
        %2376 = vmatpush1.bf16.xpose.msra.mxu0 0
        %2377 = vmatprep.subr.bf16.mxu0 0
        %2378 = vmatpush1.bf16.xpose.msra.mxu0 0
        %2379 = vmatprep.subr.bf16.mxu0 0
        %2380 = vmatpush1.bf16.xpose.msra.mxu0 0
        %2381 = vmatprep.subr.bf16.mxu0 0
        %2382 = vmatpush1.bf16.xpose.msra.mxu0 0
        %2383 = vmatprep.subr.bf16.mxu0 0
        %2384 = vmatpush1.bf16.xpose.msra.mxu0 0
        %2385 = vmatprep.subr.bf16.mxu0 0
        %2386 = vmatpush1.bf16.xpose.msra.mxu0 0
        %2387 = vmatprep.mubr.bf16.mxu0 0
        %2388 = vmatmul.mubr.bf16.gmra.mrb[0].mxu0 %v1744
        %v2389 = vpop.f32.mrb[0].mxu0
        %v2390 = vadd.f32 0.0, %v2389
        %v2391 = vpop.f32.mrb[0].mxu0
        %v2392 = vpop.f32.mrb[0].mxu0
        %v2393 = vpop.f32.mrb[0].mxu0
        %2394 = vdwg.mxu0
        %2395 = vmatprep.subr.bf16.mxu0 0
        %2396 = vmatpush1.bf16.xpose.msra.mxu0 %v1756
        %2397 = vmatprep.subr.bf16.mxu0 0
        %2398 = vmatpush1.bf16.xpose.msra.mxu0 0
        %2399 = vmatprep.subr.bf16.mxu0 0
        %2400 = vmatpush1.bf16.xpose.msra.mxu0 0
        %2401 = vmatprep.subr.bf16.mxu0 0
        %2402 = vmatpush1.bf16.xpose.msra.mxu0 0
        %2403 = vmatprep.subr.bf16.mxu0 0
        %2404 = vmatpush1.bf16.xpose.msra.mxu0 0
        %2405 = vmatprep.subr.bf16.mxu0 0
        %2406 = vmatpush1.bf16.xpose.msra.mxu0 0
        %2407 = vmatprep.subr.bf16.mxu0 0
        %2408 = vmatpush1.bf16.xpose.msra.mxu0 0
        %2409 = vmatprep.subr.bf16.mxu0 0
        %2410 = vmatpush1.bf16.xpose.msra.mxu0 0
        %2411 = vmatprep.subr.bf16.mxu0 0
        %2412 = vmatpush1.bf16.xpose.msra.mxu0 0
        %2413 = vmatprep.subr.bf16.mxu0 0
        %2414 = vmatpush1.bf16.xpose.msra.mxu0 0
        %2415 = vmatprep.subr.bf16.mxu0 0
        %2416 = vmatpush1.bf16.xpose.msra.mxu0 0
        %2417 = vmatprep.subr.bf16.mxu0 0
        %2418 = vmatpush1.bf16.xpose.msra.mxu0 0
        %2419 = vmatprep.subr.bf16.mxu0 0
        %2420 = vmatpush1.bf16.xpose.msra.mxu0 0
        %2421 = vmatprep.subr.bf16.mxu0 0
        %2422 = vmatpush1.bf16.xpose.msra.mxu0 0
        %2423 = vmatprep.subr.bf16.mxu0 0
        %2424 = vmatpush1.bf16.xpose.msra.mxu0 0
        %2425 = vmatprep.subr.bf16.mxu0 0
        %2426 = vmatpush1.bf16.xpose.msra.mxu0 0
        %2427 = vmatprep.mubr.bf16.mxu0 0
        %2428 = vmatmul.mubr.bf16.gmra.mrb[0].mxu0 %v1748
        %v2429 = vpop.f32.mrb[0].mxu0
        %v2430 = vadd.f32 0.0, %v2429
        %v2431 = vpop.f32.mrb[0].mxu0
        %v2432 = vpop.f32.mrb[0].mxu0
        %v2433 = vpop.f32.mrb[0].mxu0
        %2434 = vdwg.mxu0
        %v2435 = vsel %vm1845, %v2390, -inf
        %2436 = vmax.xlane.f32.xlu0 %v2435
        %v2437 = vpop.xlane.xlu0 %2436
        %v2438 = vsel %vm1845, %v2430, -inf
        %2439 = vmax.xlane.f32.xlu0 %v2438
        %v2440 = vpop.xlane.xlu0 %2439
        %v2441 = vsub.f32 %v2390, %v2437
        %v2442 = vsub.f32 %v2430, %v2440
        %v2443 = vmul.f32 %v2441, 1.442695
        %v2444 = vpow.pop %v2443
        %v2445 = vmul.f32 %v2442, 1.442695
        %v2446 = vpow.pop %v2445
        %v2447 = vsel %vm1845, %v2444, 0.0
        %2448 = vadd.xlane.f32.xlu0 %v2447
        %v2449 = vpop.xlane.xlu0 %2448
        %v2450 = vsel %vm1845, %v2446, 0.0
        %2451 = vadd.xlane.f32.xlu0 %v2450
        %v2452 = vpop.xlane.xlu0 %2451
        %v2453 = vrcp.pop %v2449
        %v2454 = vrcp.pop %v2452
        %v2455 = vmul.f32 %v2444, %v2453
        %v2456 = vmul.f32 %v2446, %v2454
        %v2457 = vpack.c.bf16 %v2455, %v2455
        %v2458 = vpack.c.bf16 %v2456, %v2456
        %v2460 = vsel %vm1845, %v2457, 0
        %v2463 = vsel %vm1873, %v1760, 0
        %2465 = vmatprep.subr.bf16.mxu0 0
        %2466 = vmatpush1.bf16.msra.mxu0 %v2463
        %2467 = vmatprep.subr.bf16.mxu0 0
        %2468 = vmatpush1.bf16.msra.mxu0 0
        %2469 = vmatprep.subr.bf16.mxu0 0
        %2470 = vmatpush1.bf16.msra.mxu0 0
        %2471 = vmatprep.subr.bf16.mxu0 0
        %2472 = vmatpush1.bf16.msra.mxu0 0
        %2473 = vmatprep.subr.bf16.mxu0 0
        %2474 = vmatpush1.bf16.msra.mxu0 0
        %2475 = vmatprep.subr.bf16.mxu0 0
        %2476 = vmatpush1.bf16.msra.mxu0 0
        %2477 = vmatprep.subr.bf16.mxu0 0
        %2478 = vmatpush1.bf16.msra.mxu0 0
        %2479 = vmatprep.subr.bf16.mxu0 0
        %2480 = vmatpush1.bf16.msra.mxu0 0
        %2481 = vmatprep.subr.bf16.mxu0 0
        %2482 = vmatpush1.bf16.msra.mxu0 0
        %2483 = vmatprep.subr.bf16.mxu0 0
        %2484 = vmatpush1.bf16.msra.mxu0 0
        %2485 = vmatprep.subr.bf16.mxu0 0
        %2486 = vmatpush1.bf16.msra.mxu0 0
        %2487 = vmatprep.subr.bf16.mxu0 0
        %2488 = vmatpush1.bf16.msra.mxu0 0
        %2489 = vmatprep.subr.bf16.mxu0 0
        %2490 = vmatpush1.bf16.msra.mxu0 0
        %2491 = vmatprep.subr.bf16.mxu0 0
        %2492 = vmatpush1.bf16.msra.mxu0 0
        %2493 = vmatprep.subr.bf16.mxu0 0
        %2494 = vmatpush1.bf16.msra.mxu0 0
        %2495 = vmatprep.subr.bf16.mxu0 0
        %2496 = vmatpush1.bf16.msra.mxu0 0
        %2497 = vmatprep.mubr.bf16.mxu0 0
        %2498 = vmatmul.mubr.bf16.gmra.mrb[0].mxu0 %v2460
        %v2499 = vpop.f32.mrb[0].mxu0
        %v2500 = vadd.f32 0.0, %v2499
        %v2501 = vpop.f32.mrb[0].mxu0
        %v2502 = vpop.f32.mrb[0].mxu0
        %v2503 = vpop.f32.mrb[0].mxu0
        %2504 = vdwg.mxu0
        %v2506 = vsel %vm1845, %v2458, 0
        %v2509 = vsel %vm1873, %v1764, 0
        %2511 = vmatprep.subr.bf16.mxu0 0
        %2512 = vmatpush1.bf16.msra.mxu0 %v2509
        %2513 = vmatprep.subr.bf16.mxu0 0
        %2514 = vmatpush1.bf16.msra.mxu0 0
        %2515 = vmatprep.subr.bf16.mxu0 0
        %2516 = vmatpush1.bf16.msra.mxu0 0
        %2517 = vmatprep.subr.bf16.mxu0 0
        %2518 = vmatpush1.bf16.msra.mxu0 0
        %2519 = vmatprep.subr.bf16.mxu0 0
        %2520 = vmatpush1.bf16.msra.mxu0 0
        %2521 = vmatprep.subr.bf16.mxu0 0
        %2522 = vmatpush1.bf16.msra.mxu0 0
        %2523 = vmatprep.subr.bf16.mxu0 0
        %2524 = vmatpush1.bf16.msra.mxu0 0
        %2525 = vmatprep.subr.bf16.mxu0 0
        %2526 = vmatpush1.bf16.msra.mxu0 0
        %2527 = vmatprep.subr.bf16.mxu0 0
        %2528 = vmatpush1.bf16.msra.mxu0 0
        %2529 = vmatprep.subr.bf16.mxu0 0
        %2530 = vmatpush1.bf16.msra.mxu0 0
        %2531 = vmatprep.subr.bf16.mxu0 0
        %2532 = vmatpush1.bf16.msra.mxu0 0
        %2533 = vmatprep.subr.bf16.mxu0 0
        %2534 = vmatpush1.bf16.msra.mxu0 0
        %2535 = vmatprep.subr.bf16.mxu0 0
        %2536 = vmatpush1.bf16.msra.mxu0 0
        %2537 = vmatprep.subr.bf16.mxu0 0
        %2538 = vmatpush1.bf16.msra.mxu0 0
        %2539 = vmatprep.subr.bf16.mxu0 0
        %2540 = vmatpush1.bf16.msra.mxu0 0
        %2541 = vmatprep.subr.bf16.mxu0 0
        %2542 = vmatpush1.bf16.msra.mxu0 0
        %2543 = vmatprep.mubr.bf16.mxu0 0
        %2544 = vmatmul.mubr.bf16.gmra.mrb[0].mxu0 %v2506
        %v2545 = vpop.f32.mrb[0].mxu0
        %v2546 = vadd.f32 0.0, %v2545
        %v2547 = vpop.f32.mrb[0].mxu0
        %v2548 = vpop.f32.mrb[0].mxu0
        %v2549 = vpop.f32.mrb[0].mxu0
        %2550 = vdwg.mxu0
        %v2551 = vpack.c.bf16 %v1958, %v1912
        %v2552 = vpack.c.bf16 %v2154, %v2108
        %v2553 = vpack.c.bf16 %v2350, %v2304
        %v2554 = vpack.c.bf16 %v2546, %v2500
        %v2555 = vld [vmem:[%s669] sm:$0xf]
        %v2556 = vld [vmem:[%s669 + $0x4] sm:$0xf]
        %v2557 = vld [vmem:[%s669 + $0x8] sm:$0xf]
        %v2558 = vld [vmem:[%s669 + $0xc] sm:$0xf]
        %v2559 = vld [vmem:[%s669 + $0x10] sm:$0xf]
        %v2560 = vld [vmem:[%s669 + $0x14] sm:$0xf]
        %v2561 = vld [vmem:[%s669 + $0x18] sm:$0xf]
        %v2562 = vld [vmem:[%s669 + $0x1c] sm:$0xf]
        %v2563 = vld [vmem:[%s669 + $0x20] sm:$0xf]
        %v2564 = vld [vmem:[%s669 + $0x24] sm:$0xf]
        %v2565 = vld [vmem:[%s669 + $0x28] sm:$0xf]
        %v2566 = vld [vmem:[%s669 + $0x2c] sm:$0xf]
        %v2567 = vld [vmem:[%s669 + $0x30] sm:$0xf]
        %v2568 = vld [vmem:[%s669 + $0x34] sm:$0xf]
        %v2569 = vld [vmem:[%s669 + $0x38] sm:$0xf]
        %v2570 = vld [vmem:[%s669 + $0x3c] sm:$0xf]
        %v2571 = vld [vmem:[%s669 + $0x40] sm:$0xf]
        %v2572 = vld [vmem:[%s669 + $0x44] sm:$0xf]
        %v2573 = vld [vmem:[%s669 + $0x48] sm:$0xf]
        %v2574 = vld [vmem:[%s669 + $0x4c] sm:$0xf]
        %v2575 = vld [vmem:[%s669 + $0x50] sm:$0xf]
        %v2576 = vld [vmem:[%s669 + $0x54] sm:$0xf]
        %v2577 = vld [vmem:[%s669 + $0x58] sm:$0xf]
        %v2578 = vld [vmem:[%s669 + $0x5c] sm:$0xf]
        %v2579 = vld [vmem:[%s669 + $0x60] sm:$0xf]
        %v2580 = vld [vmem:[%s669 + $0x64] sm:$0xf]
        %v2581 = vld [vmem:[%s669 + $0x68] sm:$0xf]
        %v2582 = vld [vmem:[%s669 + $0x6c] sm:$0xf]
        %v2583 = vld [vmem:[%s669 + $0x70] sm:$0xf]
        %v2584 = vld [vmem:[%s669 + $0x74] sm:$0xf]
        %v2585 = vld [vmem:[%s669 + $0x78] sm:$0xf]
        %v2586 = vld [vmem:[%s669 + $0x7c] sm:$0xf]
        %v2587 = vld [vmem:[%s669 + $0x80] sm:$0xf]
        %v2588 = vld [vmem:[%s669 + $0x84] sm:$0xf]
        %v2589 = vld [vmem:[%s669 + $0x88] sm:$0xf]
        %v2590 = vld [vmem:[%s669 + $0x8c] sm:$0xf]
        %v2591 = vld [vmem:[%s669 + $0x90] sm:$0xf]
        %v2592 = vld [vmem:[%s669 + $0x94] sm:$0xf]
        %v2593 = vld [vmem:[%s669 + $0x98] sm:$0xf]
        %v2594 = vld [vmem:[%s669 + $0x9c] sm:$0xf]
        %v2595 = vld [vmem:[%s669 + $0xa0] sm:$0xf]
        %v2596 = vld [vmem:[%s669 + $0xa4] sm:$0xf]
        %v2597 = vld [vmem:[%s669 + $0xa8] sm:$0xf]
        %v2598 = vld [vmem:[%s669 + $0xac] sm:$0xf]
        %v2599 = vld [vmem:[%s669 + $0xb0] sm:$0xf]
        %v2600 = vld [vmem:[%s669 + $0xb4] sm:$0xf]
        %v2601 = vld [vmem:[%s669 + $0xb8] sm:$0xf]
        %v2602 = vld [vmem:[%s669 + $0xbc] sm:$0xf]
        %v2603 = vld [vmem:[%s669 + $0xc0] sm:$0xf]
        %v2604 = vld [vmem:[%s669 + $0xc4] sm:$0xf]
        %v2605 = vld [vmem:[%s669 + $0xc8] sm:$0xf]
        %v2606 = vld [vmem:[%s669 + $0xcc] sm:$0xf]
        %v2607 = vld [vmem:[%s669 + $0xd0] sm:$0xf]
        %v2608 = vld [vmem:[%s669 + $0xd4] sm:$0xf]
        %v2609 = vld [vmem:[%s669 + $0xd8] sm:$0xf]
        %v2610 = vld [vmem:[%s669 + $0xdc] sm:$0xf]
        %v2611 = vld [vmem:[%s669 + $0xe0] sm:$0xf]
        %v2612 = vld [vmem:[%s669 + $0xe4] sm:$0xf]
        %v2613 = vld [vmem:[%s669 + $0xe8] sm:$0xf]
        %v2614 = vld [vmem:[%s669 + $0xec] sm:$0xf]
        %v2615 = vld [vmem:[%s669 + $0xf0] sm:$0xf]
        %v2616 = vld [vmem:[%s669 + $0xf4] sm:$0xf]
        %v2617 = vld [vmem:[%s669 + $0xf8] sm:$0xf]
        %v2618 = vld [vmem:[%s669 + $0xfc] sm:$0xf]
        %v2619 = vld [vmem:[%s677] sm:$0x1]
        %v2621 = vlaneseq
        %v2622 = vshrl.u32 %v2621, 7
        %v2623 = vsub.s32 0, %v2622
        %v2624 = vrot.slane %v2619, %v2623
        %v2690 = vunpack.c.l.b16 %v2555
        %v2691 = vunpack.c.l.b16 %v2556
        %v2692 = vunpack.c.l.b16 %v2557
        %v2693 = vunpack.c.l.b16 %v2558
        %v2694 = vunpack.c.l.b16 %v2559
        %v2695 = vunpack.c.l.b16 %v2560
        %v2696 = vunpack.c.l.b16 %v2561
        %v2697 = vunpack.c.l.b16 %v2562
        %v2698 = vunpack.c.l.b16 %v2563
        %v2699 = vunpack.c.l.b16 %v2564
        %v2700 = vunpack.c.l.b16 %v2565
        %v2701 = vunpack.c.l.b16 %v2566
        %v2702 = vunpack.c.l.b16 %v2567
        %v2703 = vunpack.c.l.b16 %v2568
        %v2704 = vunpack.c.l.b16 %v2569
        %v2705 = vunpack.c.l.b16 %v2570
        %v2706 = vunpack.c.l.b16 %v2571
        %v2707 = vunpack.c.l.b16 %v2572
        %v2708 = vunpack.c.l.b16 %v2573
        %v2709 = vunpack.c.l.b16 %v2574
        %v2710 = vunpack.c.l.b16 %v2575
        %v2711 = vunpack.c.l.b16 %v2576
        %v2712 = vunpack.c.l.b16 %v2577
        %v2713 = vunpack.c.l.b16 %v2578
        %v2714 = vunpack.c.l.b16 %v2579
        %v2715 = vunpack.c.l.b16 %v2580
        %v2716 = vunpack.c.l.b16 %v2581
        %v2717 = vunpack.c.l.b16 %v2582
        %v2718 = vunpack.c.l.b16 %v2583
        %v2719 = vunpack.c.l.b16 %v2584
        %v2720 = vunpack.c.l.b16 %v2585
        %v2721 = vunpack.c.l.b16 %v2586
        %v2722 = vunpack.c.l.b16 %v2587
        %v2723 = vunpack.c.l.b16 %v2588
        %v2724 = vunpack.c.l.b16 %v2589
        %v2725 = vunpack.c.l.b16 %v2590
        %v2726 = vunpack.c.l.b16 %v2591
        %v2727 = vunpack.c.l.b16 %v2592
        %v2728 = vunpack.c.l.b16 %v2593
        %v2729 = vunpack.c.l.b16 %v2594
        %v2730 = vunpack.c.l.b16 %v2595
        %v2731 = vunpack.c.l.b16 %v2596
        %v2732 = vunpack.c.l.b16 %v2597
        %v2733 = vunpack.c.l.b16 %v2598
        %v2734 = vunpack.c.l.b16 %v2599
        %v2735 = vunpack.c.l.b16 %v2600
        %v2736 = vunpack.c.l.b16 %v2601
        %v2737 = vunpack.c.l.b16 %v2602
        %v2738 = vunpack.c.l.b16 %v2603
        %v2739 = vunpack.c.l.b16 %v2604
        %v2740 = vunpack.c.l.b16 %v2605
        %v2741 = vunpack.c.l.b16 %v2606
        %v2742 = vunpack.c.l.b16 %v2607
        %v2743 = vunpack.c.l.b16 %v2608
        %v2744 = vunpack.c.l.b16 %v2609
        %v2745 = vunpack.c.l.b16 %v2610
        %v2746 = vunpack.c.l.b16 %v2611
        %v2747 = vunpack.c.l.b16 %v2612
        %v2748 = vunpack.c.l.b16 %v2613
        %v2749 = vunpack.c.l.b16 %v2614
        %v2750 = vunpack.c.l.b16 %v2615
        %v2751 = vunpack.c.l.b16 %v2616
        %v2752 = vunpack.c.l.b16 %v2617
        %v2753 = vunpack.c.l.b16 %v2618
        %v2754 = vpack.c.b16 %v2691, %v2690
        %v2755 = vpack.c.b16 %v2693, %v2692
        %v2756 = vpack.c.b16 %v2695, %v2694
        %v2757 = vpack.c.b16 %v2697, %v2696
        %v2758 = vpack.c.b16 %v2699, %v2698
        %v2759 = vpack.c.b16 %v2701, %v2700
        %v2760 = vpack.c.b16 %v2703, %v2702
        %v2761 = vpack.c.b16 %v2705, %v2704
        %v2762 = vpack.c.b16 %v2707, %v2706
        %v2763 = vpack.c.b16 %v2709, %v2708
        %v2764 = vpack.c.b16 %v2711, %v2710
        %v2765 = vpack.c.b16 %v2713, %v2712
        %v2766 = vpack.c.b16 %v2715, %v2714
        %v2767 = vpack.c.b16 %v2717, %v2716
        %v2768 = vpack.c.b16 %v2719, %v2718
        %v2769 = vpack.c.b16 %v2721, %v2720
        %v2770 = vpack.c.b16 %v2723, %v2722
        %v2771 = vpack.c.b16 %v2725, %v2724
        %v2772 = vpack.c.b16 %v2727, %v2726
        %v2773 = vpack.c.b16 %v2729, %v2728
        %v2774 = vpack.c.b16 %v2731, %v2730
        %v2775 = vpack.c.b16 %v2733, %v2732
        %v2776 = vpack.c.b16 %v2735, %v2734
        %v2777 = vpack.c.b16 %v2737, %v2736
        %v2778 = vpack.c.b16 %v2739, %v2738
        %v2779 = vpack.c.b16 %v2741, %v2740
        %v2780 = vpack.c.b16 %v2743, %v2742
        %v2781 = vpack.c.b16 %v2745, %v2744
        %v2782 = vpack.c.b16 %v2747, %v2746
        %v2783 = vpack.c.b16 %v2749, %v2748
        %v2784 = vpack.c.b16 %v2751, %v2750
        %v2785 = vpack.c.b16 %v2753, %v2752
        %2818 = vmatprep.subr.bf16.mxu0 0
        %2819 = vmatpush1.bf16.msra.mxu0 %v2754
        %2820 = vmatprep.subr.bf16.mxu0 0
        %2821 = vmatpush1.bf16.msra.mxu0 %v2755
        %2822 = vmatprep.subr.bf16.mxu0 0
        %2823 = vmatpush1.bf16.msra.mxu0 %v2756
        %2824 = vmatprep.subr.bf16.mxu0 0
        %2825 = vmatpush1.bf16.msra.mxu0 %v2757
        %2826 = vmatprep.subr.bf16.mxu0 0
        %2827 = vmatpush1.bf16.msra.mxu0 %v2758
        %2828 = vmatprep.subr.bf16.mxu0 0
        %2829 = vmatpush1.bf16.msra.mxu0 %v2759
        %2830 = vmatprep.subr.bf16.mxu0 0
        %2831 = vmatpush1.bf16.msra.mxu0 %v2760
        %2832 = vmatprep.subr.bf16.mxu0 0
        %2833 = vmatpush1.bf16.msra.mxu0 %v2761
        %2834 = vmatprep.subr.bf16.mxu0 0
        %2835 = vmatpush1.bf16.msra.mxu0 %v2762
        %2836 = vmatprep.subr.bf16.mxu0 0
        %2837 = vmatpush1.bf16.msra.mxu0 %v2763
        %2838 = vmatprep.subr.bf16.mxu0 0
        %2839 = vmatpush1.bf16.msra.mxu0 %v2764
        %2840 = vmatprep.subr.bf16.mxu0 0
        %2841 = vmatpush1.bf16.msra.mxu0 %v2765
        %2842 = vmatprep.subr.bf16.mxu0 0
        %2843 = vmatpush1.bf16.msra.mxu0 %v2766
        %2844 = vmatprep.subr.bf16.mxu0 0
        %2845 = vmatpush1.bf16.msra.mxu0 %v2767
        %2846 = vmatprep.subr.bf16.mxu0 0
        %2847 = vmatpush1.bf16.msra.mxu0 %v2768
        %2848 = vmatprep.subr.bf16.mxu0 0
        %2849 = vmatpush1.bf16.msra.mxu0 %v2769
        %2850 = vmatprep.mubr.bf16.mxu0 %v2552
        %2851 = vmatmul.mubr.bf16.gmra.mrb[0].mxu0 %v2551
        %v2852 = vpop.f32.mrb[0].mxu0
        %v2853 = vadd.f32 %v2624, %v2852
        %v2854 = vpop.f32.mrb[0].mxu0
        %v2855 = vpop.f32.mrb[0].mxu0
        %v2856 = vadd.f32 %v2624, %v2855
        %v2857 = vpop.f32.mrb[0].mxu0
        %2858 = vdwg.mxu0
        %2859 = vmatprep.subr.bf16.mxu0 0
        %2860 = vmatpush1.bf16.msra.mxu0 %v2770
        %2861 = vmatprep.subr.bf16.mxu0 0
        %2862 = vmatpush1.bf16.msra.mxu0 %v2771
        %2863 = vmatprep.subr.bf16.mxu0 0
        %2864 = vmatpush1.bf16.msra.mxu0 %v2772
        %2865 = vmatprep.subr.bf16.mxu0 0
        %2866 = vmatpush1.bf16.msra.mxu0 %v2773
        %2867 = vmatprep.subr.bf16.mxu0 0
        %2868 = vmatpush1.bf16.msra.mxu0 %v2774
        %2869 = vmatprep.subr.bf16.mxu0 0
        %2870 = vmatpush1.bf16.msra.mxu0 %v2775
        %2871 = vmatprep.subr.bf16.mxu0 0
        %2872 = vmatpush1.bf16.msra.mxu0 %v2776
        %2873 = vmatprep.subr.bf16.mxu0 0
        %2874 = vmatpush1.bf16.msra.mxu0 %v2777
        %2875 = vmatprep.subr.bf16.mxu0 0
        %2876 = vmatpush1.bf16.msra.mxu0 %v2778
        %2877 = vmatprep.subr.bf16.mxu0 0
        %2878 = vmatpush1.bf16.msra.mxu0 %v2779
        %2879 = vmatprep.subr.bf16.mxu0 0
        %2880 = vmatpush1.bf16.msra.mxu0 %v2780
        %2881 = vmatprep.subr.bf16.mxu0 0
        %2882 = vmatpush1.bf16.msra.mxu0 %v2781
        %2883 = vmatprep.subr.bf16.mxu0 0
        %2884 = vmatpush1.bf16.msra.mxu0 %v2782
        %2885 = vmatprep.subr.bf16.mxu0 0
        %2886 = vmatpush1.bf16.msra.mxu0 %v2783
        %2887 = vmatprep.subr.bf16.mxu0 0
        %2888 = vmatpush1.bf16.msra.mxu0 %v2784
        %2889 = vmatprep.subr.bf16.mxu0 0
        %2890 = vmatpush1.bf16.msra.mxu0 %v2785
        %2891 = vmatprep.mubr.bf16.mxu0 %v2554
        %2892 = vmatmul.mubr.bf16.gmra.mrb[0].mxu0 %v2553
        %v2893 = vpop.f32.mrb[0].mxu0
        %v2894 = vadd.f32 %v2853, %v2893
        %v2895 = vpop.f32.mrb[0].mxu0
        %v2896 = vpop.f32.mrb[0].mxu0
        %v2897 = vadd.f32 %v2856, %v2896
        %v2898 = vpop.f32.mrb[0].mxu0
        %2899 = vdwg.mxu0
        %v2900 = vadd.f32 %v840, %v2894
        %v2901 = vadd.f32 %v841, %v2897
        %v2902 = vld [vmem:[%s685] sm:$0x1]
        %v2903 = vld [vmem:[%s693] sm:$0x1]
        %2904 = vadd.xlane.f32.xlu0 %v2900
        %v2905 = vpop.xlane.xlu0 %2904
        %2906 = vadd.xlane.f32.xlu0 %v2901
        %v2907 = vpop.xlane.xlu0 %2906
        %v2908 = vrcp.pop 128.0
        %v2909 = vmul.f32 %v2905, %v2908
        %v2910 = vmul.f32 %v2907, %v2908
        %v2911 = vsub.f32 %v2900, %v2909
        %v2912 = vsub.f32 %v2901, %v2910
        %v2913 = vmul.f32 %v2911, %v2911
        %v2914 = vmul.f32 %v2912, %v2912
        %2915 = vadd.xlane.f32.xlu0 %v2913
        %v2916 = vpop.xlane.xlu0 %2915
        %2917 = vadd.xlane.f32.xlu0 %v2914
        %v2918 = vpop.xlane.xlu0 %2917
        %v2919 = vmul.f32 %v2916, %v2908
        %v2920 = vmul.f32 %v2918, %v2908
        %v2921 = vadd.f32 %v2919, 1e-05
        %v2922 = vadd.f32 %v2920, 1e-05
        %v2923 = vrsqrt.pop %v2921
        %v2924 = vrsqrt.pop %v2922
        %v2925 = vmul.f32 %v2911, %v2923
        %v2926 = vmul.f32 %v2912, %v2924
        %v2928 = vlaneseq
        %v2929 = vshrl.u32 %v2928, 7
        %v2930 = vsub.s32 0, %v2929
        %v2931 = vrot.slane %v2902, %v2930
        %v2933 = vmul.f32 %v2925, %v2931
        %v2934 = vmul.f32 %v2926, %v2931
        %v2936 = vlaneseq
        %v2937 = vshrl.u32 %v2936, 7
        %v2938 = vsub.s32 0, %v2937
        %v2939 = vrot.slane %v2903, %v2938
        %v2941 = vadd.f32 %v2933, %v2939
        %v2942 = vadd.f32 %v2934, %v2939
        %v2943 = vpack.c.bf16 %v2942, %v2941
        %v2944 = vld [vmem:[%s702] sm:$0xff]
        %v2945 = vld [vmem:[%s702 + $0x8] sm:$0xff]
        %v2946 = vld [vmem:[%s702 + $0x10] sm:$0xff]
        %v2947 = vld [vmem:[%s702 + $0x18] sm:$0xff]
        %v2948 = vld [vmem:[%s702 + $0x20] sm:$0xff]
        %v2949 = vld [vmem:[%s702 + $0x28] sm:$0xff]
        %v2950 = vld [vmem:[%s702 + $0x30] sm:$0xff]
        %v2951 = vld [vmem:[%s702 + $0x38] sm:$0xff]
        %v2952 = vld [vmem:[%s702 + $0x40] sm:$0xff]
        %v2953 = vld [vmem:[%s702 + $0x48] sm:$0xff]
        %v2954 = vld [vmem:[%s702 + $0x50] sm:$0xff]
        %v2955 = vld [vmem:[%s702 + $0x58] sm:$0xff]
        %v2956 = vld [vmem:[%s702 + $0x60] sm:$0xff]
        %v2957 = vld [vmem:[%s702 + $0x68] sm:$0xff]
        %v2958 = vld [vmem:[%s702 + $0x70] sm:$0xff]
        %v2959 = vld [vmem:[%s702 + $0x78] sm:$0xff]
        %v2960 = vld [vmem:[%s702 + $0x80] sm:$0xff]
        %v2961 = vld [vmem:[%s702 + $0x88] sm:$0xff]
        %v2962 = vld [vmem:[%s702 + $0x90] sm:$0xff]
        %v2963 = vld [vmem:[%s702 + $0x98] sm:$0xff]
        %v2964 = vld [vmem:[%s702 + $0xa0] sm:$0xff]
        %v2965 = vld [vmem:[%s702 + $0xa8] sm:$0xff]
        %v2966 = vld [vmem:[%s702 + $0xb0] sm:$0xff]
        %v2967 = vld [vmem:[%s702 + $0xb8] sm:$0xff]
        %v2968 = vld [vmem:[%s702 + $0xc0] sm:$0xff]
        %v2969 = vld [vmem:[%s702 + $0xc8] sm:$0xff]
        %v2970 = vld [vmem:[%s702 + $0xd0] sm:$0xff]
        %v2971 = vld [vmem:[%s702 + $0xd8] sm:$0xff]
        %v2972 = vld [vmem:[%s702 + $0xe0] sm:$0xff]
        %v2973 = vld [vmem:[%s702 + $0xe8] sm:$0xff]
        %v2974 = vld [vmem:[%s702 + $0xf0] sm:$0xff]
        %v2975 = vld [vmem:[%s702 + $0xf8] sm:$0xff]
        %v2976 = vld [vmem:[%s711] sm:$0xf]
        %v2978 = vlaneseq
        %v2979 = vshrl.u32 %v2978, 7
        %v2980 = vsub.s32 0, %v2979
        %v2981 = vrot.slane %v2976, %v2980
        %v2982 = vlaneseq
        %v2983 = vshrl.u32 %v2982, 7
        %v2984 = vsub.s32 1, %v2983
        %v2985 = vrot.slane %v2976, %v2984
        %v2986 = vlaneseq
        %v2987 = vshrl.u32 %v2986, 7
        %v2988 = vsub.s32 2, %v2987
        %v2989 = vrot.slane %v2976, %v2988
        %v2990 = vlaneseq
        %v2991 = vshrl.u32 %v2990, 7
        %v2992 = vsub.s32 3, %v2991
        %v2993 = vrot.slane %v2976, %v2992
        %v3030 = vunpack.c.l.b16 %v2944
        %v3031 = vunpack.c.h.b16 %v2944
        %v3032 = vunpack.c.l.b16 %v2945
        %v3033 = vunpack.c.h.b16 %v2945
        %v3034 = vunpack.c.l.b16 %v2946
        %v3035 = vunpack.c.h.b16 %v2946
        %v3036 = vunpack.c.l.b16 %v2947
        %v3037 = vunpack.c.h.b16 %v2947
        %v3038 = vunpack.c.l.b16 %v2948
        %v3039 = vunpack.c.h.b16 %v2948
        %v3040 = vunpack.c.l.b16 %v2949
        %v3041 = vunpack.c.h.b16 %v2949
        %v3042 = vunpack.c.l.b16 %v2950
        %v3043 = vunpack.c.h.b16 %v2950
        %v3044 = vunpack.c.l.b16 %v2951
        %v3045 = vunpack.c.h.b16 %v2951
        %v3046 = vunpack.c.l.b16 %v2952
        %v3047 = vunpack.c.h.b16 %v2952
        %v3048 = vunpack.c.l.b16 %v2953
        %v3049 = vunpack.c.h.b16 %v2953
        %v3050 = vunpack.c.l.b16 %v2954
        %v3051 = vunpack.c.h.b16 %v2954
        %v3052 = vunpack.c.l.b16 %v2955
        %v3053 = vunpack.c.h.b16 %v2955
        %v3054 = vunpack.c.l.b16 %v2956
        %v3055 = vunpack.c.h.b16 %v2956
        %v3056 = vunpack.c.l.b16 %v2957
        %v3057 = vunpack.c.h.b16 %v2957
        %v3058 = vunpack.c.l.b16 %v2958
        %v3059 = vunpack.c.h.b16 %v2958
        %v3060 = vunpack.c.l.b16 %v2959
        %v3061 = vunpack.c.h.b16 %v2959
        %v3062 = vunpack.c.l.b16 %v2960
        %v3063 = vunpack.c.h.b16 %v2960
        %v3064 = vunpack.c.l.b16 %v2961
        %v3065 = vunpack.c.h.b16 %v2961
        %v3066 = vunpack.c.l.b16 %v2962
        %v3067 = vunpack.c.h.b16 %v2962
        %v3068 = vunpack.c.l.b16 %v2963
        %v3069 = vunpack.c.h.b16 %v2963
        %v3070 = vunpack.c.l.b16 %v2964
        %v3071 = vunpack.c.h.b16 %v2964
        %v3072 = vunpack.c.l.b16 %v2965
        %v3073 = vunpack.c.h.b16 %v2965
        %v3074 = vunpack.c.l.b16 %v2966
        %v3075 = vunpack.c.h.b16 %v2966
        %v3076 = vunpack.c.l.b16 %v2967
        %v3077 = vunpack.c.h.b16 %v2967
        %v3078 = vunpack.c.l.b16 %v2968
        %v3079 = vunpack.c.h.b16 %v2968
        %v3080 = vunpack.c.l.b16 %v2969
        %v3081 = vunpack.c.h.b16 %v2969
        %v3082 = vunpack.c.l.b16 %v2970
        %v3083 = vunpack.c.h.b16 %v2970
        %v3084 = vunpack.c.l.b16 %v2971
        %v3085 = vunpack.c.h.b16 %v2971
        %v3086 = vunpack.c.l.b16 %v2972
        %v3087 = vunpack.c.h.b16 %v2972
        %v3088 = vunpack.c.l.b16 %v2973
        %v3089 = vunpack.c.h.b16 %v2973
        %v3090 = vunpack.c.l.b16 %v2974
        %v3091 = vunpack.c.h.b16 %v2974
        %v3092 = vunpack.c.l.b16 %v2975
        %v3093 = vunpack.c.h.b16 %v2975
        %v3094 = vpack.c.b16 %v3034, %v3030
        %v3095 = vpack.c.b16 %v3035, %v3031
        %v3096 = vpack.c.b16 %v3036, %v3032
        %v3097 = vpack.c.b16 %v3037, %v3033
        %v3098 = vpack.c.b16 %v3042, %v3038
        %v3099 = vpack.c.b16 %v3043, %v3039
        %v3100 = vpack.c.b16 %v3044, %v3040
        %v3101 = vpack.c.b16 %v3045, %v3041
        %v3102 = vpack.c.b16 %v3050, %v3046
        %v3103 = vpack.c.b16 %v3051, %v3047
        %v3104 = vpack.c.b16 %v3052, %v3048
        %v3105 = vpack.c.b16 %v3053, %v3049
        %v3106 = vpack.c.b16 %v3058, %v3054
        %v3107 = vpack.c.b16 %v3059, %v3055
        %v3108 = vpack.c.b16 %v3060, %v3056
        %v3109 = vpack.c.b16 %v3061, %v3057
        %v3110 = vpack.c.b16 %v3066, %v3062
        %v3111 = vpack.c.b16 %v3067, %v3063
        %v3112 = vpack.c.b16 %v3068, %v3064
        %v3113 = vpack.c.b16 %v3069, %v3065
        %v3114 = vpack.c.b16 %v3074, %v3070
        %v3115 = vpack.c.b16 %v3075, %v3071
        %v3116 = vpack.c.b16 %v3076, %v3072
        %v3117 = vpack.c.b16 %v3077, %v3073
        %v3118 = vpack.c.b16 %v3082, %v3078
        %v3119 = vpack.c.b16 %v3083, %v3079
        %v3120 = vpack.c.b16 %v3084, %v3080
        %v3121 = vpack.c.b16 %v3085, %v3081
        %v3122 = vpack.c.b16 %v3090, %v3086
        %v3123 = vpack.c.b16 %v3091, %v3087
        %v3124 = vpack.c.b16 %v3092, %v3088
        %v3125 = vpack.c.b16 %v3093, %v3089
        %3158 = vmatprep.subr.bf16.mxu0 %v3095
        %3159 = vmatpush1.bf16.msra.mxu0 %v3094
        %3160 = vmatprep.subr.bf16.mxu0 %v3099
        %3161 = vmatpush1.bf16.msra.mxu0 %v3098
        %3162 = vmatprep.subr.bf16.mxu0 %v3103
        %3163 = vmatpush1.bf16.msra.mxu0 %v3102
        %3164 = vmatprep.subr.bf16.mxu0 %v3107
        %3165 = vmatpush1.bf16.msra.mxu0 %v3106
        %3166 = vmatprep.subr.bf16.mxu0 %v3111
        %3167 = vmatpush1.bf16.msra.mxu0 %v3110
        %3168 = vmatprep.subr.bf16.mxu0 %v3115
        %3169 = vmatpush1.bf16.msra.mxu0 %v3114
        %3170 = vmatprep.subr.bf16.mxu0 %v3119
        %3171 = vmatpush1.bf16.msra.mxu0 %v3118
        %3172 = vmatprep.subr.bf16.mxu0 %v3123
        %3173 = vmatpush1.bf16.msra.mxu0 %v3122
        %3174 = vmatprep.subr.bf16.mxu0 0
        %3175 = vmatpush1.bf16.msra.mxu0 0
        %3176 = vmatprep.subr.bf16.mxu0 0
        %3177 = vmatpush1.bf16.msra.mxu0 0
        %3178 = vmatprep.subr.bf16.mxu0 0
        %3179 = vmatpush1.bf16.msra.mxu0 0
        %3180 = vmatprep.subr.bf16.mxu0 0
        %3181 = vmatpush1.bf16.msra.mxu0 0
        %3182 = vmatprep.subr.bf16.mxu0 0
        %3183 = vmatpush1.bf16.msra.mxu0 0
        %3184 = vmatprep.subr.bf16.mxu0 0
        %3185 = vmatpush1.bf16.msra.mxu0 0
        %3186 = vmatprep.subr.bf16.mxu0 0
        %3187 = vmatpush1.bf16.msra.mxu0 0
        %3188 = vmatprep.subr.bf16.mxu0 0
        %3189 = vmatpush1.bf16.msra.mxu0 0
        %3190 = vmatprep.mubr.bf16.mxu0 0
        %3191 = vmatmul.mubr.bf16.gmra.mrb[0].mxu0 %v2943
        %v3192 = vpop.f32.mrb[0].mxu0
        %v3193 = vadd.f32 %v2981, %v3192
        %v3194 = vpop.f32.mrb[0].mxu0
        %v3195 = vadd.f32 %v2985, %v3194
        %v3196 = vpop.f32.mrb[0].mxu0
        %v3197 = vadd.f32 %v2981, %v3196
        %v3198 = vpop.f32.mrb[0].mxu0
        %v3199 = vadd.f32 %v2985, %v3198
        %3200 = vdwg.mxu0
        %3201 = vmatprep.subr.bf16.mxu0 %v3097
        %3202 = vmatpush1.bf16.msra.mxu0 %v3096
        %3203 = vmatprep.subr.bf16.mxu0 %v3101
        %3204 = vmatpush1.bf16.msra.mxu0 %v3100
        %3205 = vmatprep.subr.bf16.mxu0 %v3105
        %3206 = vmatpush1.bf16.msra.mxu0 %v3104
        %3207 = vmatprep.subr.bf16.mxu0 %v3109
        %3208 = vmatpush1.bf16.msra.mxu0 %v3108
        %3209 = vmatprep.subr.bf16.mxu0 %v3113
        %3210 = vmatpush1.bf16.msra.mxu0 %v3112
        %3211 = vmatprep.subr.bf16.mxu0 %v3117
        %3212 = vmatpush1.bf16.msra.mxu0 %v3116
        %3213 = vmatprep.subr.bf16.mxu0 %v3121
        %3214 = vmatpush1.bf16.msra.mxu0 %v3120
        %3215 = vmatprep.subr.bf16.mxu0 %v3125
        %3216 = vmatpush1.bf16.msra.mxu0 %v3124
        %3217 = vmatprep.subr.bf16.mxu0 0
        %3218 = vmatpush1.bf16.msra.mxu0 0
        %3219 = vmatprep.subr.bf16.mxu0 0
        %3220 = vmatpush1.bf16.msra.mxu0 0
        %3221 = vmatprep.subr.bf16.mxu0 0
        %3222 = vmatpush1.bf16.msra.mxu0 0
        %3223 = vmatprep.subr.bf16.mxu0 0
        %3224 = vmatpush1.bf16.msra.mxu0 0
        %3225 = vmatprep.subr.bf16.mxu0 0
        %3226 = vmatpush1.bf16.msra.mxu0 0
        %3227 = vmatprep.subr.bf16.mxu0 0
        %3228 = vmatpush1.bf16.msra.mxu0 0
        %3229 = vmatprep.subr.bf16.mxu0 0
        %3230 = vmatpush1.bf16.msra.mxu0 0
        %3231 = vmatprep.subr.bf16.mxu0 0
        %3232 = vmatpush1.bf16.msra.mxu0 0
        %3233 = vmatprep.mubr.bf16.mxu0 0
        %3234 = vmatmul.mubr.bf16.gmra.mrb[0].mxu0 %v2943
        %v3235 = vpop.f32.mrb[0].mxu0
        %v3236 = vadd.f32 %v2989, %v3235
        %v3237 = vpop.f32.mrb[0].mxu0
        %v3238 = vadd.f32 %v2993, %v3237
        %v3239 = vpop.f32.mrb[0].mxu0
        %v3240 = vadd.f32 %v2989, %v3239
        %v3241 = vpop.f32.mrb[0].mxu0
        %v3242 = vadd.f32 %v2993, %v3241
        %3243 = vdwg.mxu0
        %v3244 = vmax.f32 %v3193, 0.0
        %v3245 = vmax.f32 %v3195, 0.0
        %v3246 = vmax.f32 %v3236, 0.0
        %v3247 = vmax.f32 %v3238, 0.0
        %v3248 = vmax.f32 %v3197, 0.0
        %v3249 = vmax.f32 %v3199, 0.0
        %v3250 = vmax.f32 %v3240, 0.0
        %v3251 = vmax.f32 %v3242, 0.0
        %v3252 = vpack.c.bf16 %v3248, %v3244
        %v3253 = vpack.c.bf16 %v3249, %v3245
        %v3254 = vpack.c.bf16 %v3250, %v3246
        %v3255 = vpack.c.bf16 %v3251, %v3247
        %v3256 = vld [vmem:[%s720] sm:$0xf]
        %v3257 = vld [vmem:[%s720 + $0x4] sm:$0xf]
        %v3258 = vld [vmem:[%s720 + $0x8] sm:$0xf]
        %v3259 = vld [vmem:[%s720 + $0xc] sm:$0xf]
        %v3260 = vld [vmem:[%s720 + $0x10] sm:$0xf]
        %v3261 = vld [vmem:[%s720 + $0x14] sm:$0xf]
        %v3262 = vld [vmem:[%s720 + $0x18] sm:$0xf]
        %v3263 = vld [vmem:[%s720 + $0x1c] sm:$0xf]
        %v3264 = vld [vmem:[%s720 + $0x20] sm:$0xf]
        %v3265 = vld [vmem:[%s720 + $0x24] sm:$0xf]
        %v3266 = vld [vmem:[%s720 + $0x28] sm:$0xf]
        %v3267 = vld [vmem:[%s720 + $0x2c] sm:$0xf]
        %v3268 = vld [vmem:[%s720 + $0x30] sm:$0xf]
        %v3269 = vld [vmem:[%s720 + $0x34] sm:$0xf]
        %v3270 = vld [vmem:[%s720 + $0x38] sm:$0xf]
        %v3271 = vld [vmem:[%s720 + $0x3c] sm:$0xf]
        %v3272 = vld [vmem:[%s720 + $0x40] sm:$0xf]
        %v3273 = vld [vmem:[%s720 + $0x44] sm:$0xf]
        %v3274 = vld [vmem:[%s720 + $0x48] sm:$0xf]
        %v3275 = vld [vmem:[%s720 + $0x4c] sm:$0xf]
        %v3276 = vld [vmem:[%s720 + $0x50] sm:$0xf]
        %v3277 = vld [vmem:[%s720 + $0x54] sm:$0xf]
        %v3278 = vld [vmem:[%s720 + $0x58] sm:$0xf]
        %v3279 = vld [vmem:[%s720 + $0x5c] sm:$0xf]
        %v3280 = vld [vmem:[%s720 + $0x60] sm:$0xf]
        %v3281 = vld [vmem:[%s720 + $0x64] sm:$0xf]
        %v3282 = vld [vmem:[%s720 + $0x68] sm:$0xf]
        %v3283 = vld [vmem:[%s720 + $0x6c] sm:$0xf]
        %v3284 = vld [vmem:[%s720 + $0x70] sm:$0xf]
        %v3285 = vld [vmem:[%s720 + $0x74] sm:$0xf]
        %v3286 = vld [vmem:[%s720 + $0x78] sm:$0xf]
        %v3287 = vld [vmem:[%s720 + $0x7c] sm:$0xf]
        %v3288 = vld [vmem:[%s720 + $0x80] sm:$0xf]
        %v3289 = vld [vmem:[%s720 + $0x84] sm:$0xf]
        %v3290 = vld [vmem:[%s720 + $0x88] sm:$0xf]
        %v3291 = vld [vmem:[%s720 + $0x8c] sm:$0xf]
        %v3292 = vld [vmem:[%s720 + $0x90] sm:$0xf]
        %v3293 = vld [vmem:[%s720 + $0x94] sm:$0xf]
        %v3294 = vld [vmem:[%s720 + $0x98] sm:$0xf]
        %v3295 = vld [vmem:[%s720 + $0x9c] sm:$0xf]
        %v3296 = vld [vmem:[%s720 + $0xa0] sm:$0xf]
        %v3297 = vld [vmem:[%s720 + $0xa4] sm:$0xf]
        %v3298 = vld [vmem:[%s720 + $0xa8] sm:$0xf]
        %v3299 = vld [vmem:[%s720 + $0xac] sm:$0xf]
        %v3300 = vld [vmem:[%s720 + $0xb0] sm:$0xf]
        %v3301 = vld [vmem:[%s720 + $0xb4] sm:$0xf]
        %v3302 = vld [vmem:[%s720 + $0xb8] sm:$0xf]
        %v3303 = vld [vmem:[%s720 + $0xbc] sm:$0xf]
        %v3304 = vld [vmem:[%s720 + $0xc0] sm:$0xf]
        %v3305 = vld [vmem:[%s720 + $0xc4] sm:$0xf]
        %v3306 = vld [vmem:[%s720 + $0xc8] sm:$0xf]
        %v3307 = vld [vmem:[%s720 + $0xcc] sm:$0xf]
        %v3308 = vld [vmem:[%s720 + $0xd0] sm:$0xf]
        %v3309 = vld [vmem:[%s720 + $0xd4] sm:$0xf]
        %v3310 = vld [vmem:[%s720 + $0xd8] sm:$0xf]
        %v3311 = vld [vmem:[%s720 + $0xdc] sm:$0xf]
        %v3312 = vld [vmem:[%s720 + $0xe0] sm:$0xf]
        %v3313 = vld [vmem:[%s720 + $0xe4] sm:$0xf]
        %v3314 = vld [vmem:[%s720 + $0xe8] sm:$0xf]
        %v3315 = vld [vmem:[%s720 + $0xec] sm:$0xf]
        %v3316 = vld [vmem:[%s720 + $0xf0] sm:$0xf]
        %v3317 = vld [vmem:[%s720 + $0xf4] sm:$0xf]
        %v3318 = vld [vmem:[%s720 + $0xf8] sm:$0xf]
        %v3319 = vld [vmem:[%s720 + $0xfc] sm:$0xf]
        %v3320 = vld [vmem:[%s728] sm:$0x1]
        %v3322 = vlaneseq
        %v3323 = vshrl.u32 %v3322, 7
        %v3324 = vsub.s32 0, %v3323
        %v3325 = vrot.slane %v3320, %v3324
        %v3391 = vunpack.c.l.b16 %v3256
        %v3392 = vunpack.c.l.b16 %v3257
        %v3393 = vunpack.c.l.b16 %v3258
        %v3394 = vunpack.c.l.b16 %v3259
        %v3395 = vunpack.c.l.b16 %v3260
        %v3396 = vunpack.c.l.b16 %v3261
        %v3397 = vunpack.c.l.b16 %v3262
        %v3398 = vunpack.c.l.b16 %v3263
        %v3399 = vunpack.c.l.b16 %v3264
        %v3400 = vunpack.c.l.b16 %v3265
        %v3401 = vunpack.c.l.b16 %v3266
        %v3402 = vunpack.c.l.b16 %v3267
        %v3403 = vunpack.c.l.b16 %v3268
        %v3404 = vunpack.c.l.b16 %v3269
        %v3405 = vunpack.c.l.b16 %v3270
        %v3406 = vunpack.c.l.b16 %v3271
        %v3407 = vunpack.c.l.b16 %v3272
        %v3408 = vunpack.c.l.b16 %v3273
        %v3409 = vunpack.c.l.b16 %v3274
        %v3410 = vunpack.c.l.b16 %v3275
        %v3411 = vunpack.c.l.b16 %v3276
        %v3412 = vunpack.c.l.b16 %v3277
        %v3413 = vunpack.c.l.b16 %v3278
        %v3414 = vunpack.c.l.b16 %v3279
        %v3415 = vunpack.c.l.b16 %v3280
        %v3416 = vunpack.c.l.b16 %v3281
        %v3417 = vunpack.c.l.b16 %v3282
        %v3418 = vunpack.c.l.b16 %v3283
        %v3419 = vunpack.c.l.b16 %v3284
        %v3420 = vunpack.c.l.b16 %v3285
        %v3421 = vunpack.c.l.b16 %v3286
        %v3422 = vunpack.c.l.b16 %v3287
        %v3423 = vunpack.c.l.b16 %v3288
        %v3424 = vunpack.c.l.b16 %v3289
        %v3425 = vunpack.c.l.b16 %v3290
        %v3426 = vunpack.c.l.b16 %v3291
        %v3427 = vunpack.c.l.b16 %v3292
        %v3428 = vunpack.c.l.b16 %v3293
        %v3429 = vunpack.c.l.b16 %v3294
        %v3430 = vunpack.c.l.b16 %v3295
        %v3431 = vunpack.c.l.b16 %v3296
        %v3432 = vunpack.c.l.b16 %v3297
        %v3433 = vunpack.c.l.b16 %v3298
        %v3434 = vunpack.c.l.b16 %v3299
        %v3435 = vunpack.c.l.b16 %v3300
        %v3436 = vunpack.c.l.b16 %v3301
        %v3437 = vunpack.c.l.b16 %v3302
        %v3438 = vunpack.c.l.b16 %v3303
        %v3439 = vunpack.c.l.b16 %v3304
        %v3440 = vunpack.c.l.b16 %v3305
        %v3441 = vunpack.c.l.b16 %v3306
        %v3442 = vunpack.c.l.b16 %v3307
        %v3443 = vunpack.c.l.b16 %v3308
        %v3444 = vunpack.c.l.b16 %v3309
        %v3445 = vunpack.c.l.b16 %v3310
        %v3446 = vunpack.c.l.b16 %v3311
        %v3447 = vunpack.c.l.b16 %v3312
        %v3448 = vunpack.c.l.b16 %v3313
        %v3449 = vunpack.c.l.b16 %v3314
        %v3450 = vunpack.c.l.b16 %v3315
        %v3451 = vunpack.c.l.b16 %v3316
        %v3452 = vunpack.c.l.b16 %v3317
        %v3453 = vunpack.c.l.b16 %v3318
        %v3454 = vunpack.c.l.b16 %v3319
        %v3455 = vpack.c.b16 %v3392, %v3391
        %v3456 = vpack.c.b16 %v3394, %v3393
        %v3457 = vpack.c.b16 %v3396, %v3395
        %v3458 = vpack.c.b16 %v3398, %v3397
        %v3459 = vpack.c.b16 %v3400, %v3399
        %v3460 = vpack.c.b16 %v3402, %v3401
        %v3461 = vpack.c.b16 %v3404, %v3403
        %v3462 = vpack.c.b16 %v3406, %v3405
        %v3463 = vpack.c.b16 %v3408, %v3407
        %v3464 = vpack.c.b16 %v3410, %v3409
        %v3465 = vpack.c.b16 %v3412, %v3411
        %v3466 = vpack.c.b16 %v3414, %v3413
        %v3467 = vpack.c.b16 %v3416, %v3415
        %v3468 = vpack.c.b16 %v3418, %v3417
        %v3469 = vpack.c.b16 %v3420, %v3419
        %v3470 = vpack.c.b16 %v3422, %v3421
        %v3471 = vpack.c.b16 %v3424, %v3423
        %v3472 = vpack.c.b16 %v3426, %v3425
        %v3473 = vpack.c.b16 %v3428, %v3427
        %v3474 = vpack.c.b16 %v3430, %v3429
        %v3475 = vpack.c.b16 %v3432, %v3431
        %v3476 = vpack.c.b16 %v3434, %v3433
        %v3477 = vpack.c.b16 %v3436, %v3435
        %v3478 = vpack.c.b16 %v3438, %v3437
        %v3479 = vpack.c.b16 %v3440, %v3439
        %v3480 = vpack.c.b16 %v3442, %v3441
        %v3481 = vpack.c.b16 %v3444, %v3443
        %v3482 = vpack.c.b16 %v3446, %v3445
        %v3483 = vpack.c.b16 %v3448, %v3447
        %v3484 = vpack.c.b16 %v3450, %v3449
        %v3485 = vpack.c.b16 %v3452, %v3451
        %v3486 = vpack.c.b16 %v3454, %v3453
        %3519 = vmatprep.subr.bf16.mxu0 0
        %3520 = vmatpush1.bf16.msra.mxu0 %v3455
        %3521 = vmatprep.subr.bf16.mxu0 0
        %3522 = vmatpush1.bf16.msra.mxu0 %v3456
        %3523 = vmatprep.subr.bf16.mxu0 0
        %3524 = vmatpush1.bf16.msra.mxu0 %v3457
        %3525 = vmatprep.subr.bf16.mxu0 0
        %3526 = vmatpush1.bf16.msra.mxu0 %v3458
        %3527 = vmatprep.subr.bf16.mxu0 0
        %3528 = vmatpush1.bf16.msra.mxu0 %v3459
        %3529 = vmatprep.subr.bf16.mxu0 0
        %3530 = vmatpush1.bf16.msra.mxu0 %v3460
        %3531 = vmatprep.subr.bf16.mxu0 0
        %3532 = vmatpush1.bf16.msra.mxu0 %v3461
        %3533 = vmatprep.subr.bf16.mxu0 0
        %3534 = vmatpush1.bf16.msra.mxu0 %v3462
        %3535 = vmatprep.subr.bf16.mxu0 0
        %3536 = vmatpush1.bf16.msra.mxu0 %v3463
        %3537 = vmatprep.subr.bf16.mxu0 0
        %3538 = vmatpush1.bf16.msra.mxu0 %v3464
        %3539 = vmatprep.subr.bf16.mxu0 0
        %3540 = vmatpush1.bf16.msra.mxu0 %v3465
        %3541 = vmatprep.subr.bf16.mxu0 0
        %3542 = vmatpush1.bf16.msra.mxu0 %v3466
        %3543 = vmatprep.subr.bf16.mxu0 0
        %3544 = vmatpush1.bf16.msra.mxu0 %v3467
        %3545 = vmatprep.subr.bf16.mxu0 0
        %3546 = vmatpush1.bf16.msra.mxu0 %v3468
        %3547 = vmatprep.subr.bf16.mxu0 0
        %3548 = vmatpush1.bf16.msra.mxu0 %v3469
        %3549 = vmatprep.subr.bf16.mxu0 0
        %3550 = vmatpush1.bf16.msra.mxu0 %v3470
        %3551 = vmatprep.mubr.bf16.mxu0 %v3253
        %3552 = vmatmul.mubr.bf16.gmra.mrb[0].mxu0 %v3252
        %v3553 = vpop.f32.mrb[0].mxu0
        %v3554 = vadd.f32 %v3325, %v3553
        %v3555 = vpop.f32.mrb[0].mxu0
        %v3556 = vpop.f32.mrb[0].mxu0
        %v3557 = vadd.f32 %v3325, %v3556
        %v3558 = vpop.f32.mrb[0].mxu0
        %3559 = vdwg.mxu0
        %3560 = vmatprep.subr.bf16.mxu0 0
        %3561 = vmatpush1.bf16.msra.mxu0 %v3471
        %3562 = vmatprep.subr.bf16.mxu0 0
        %3563 = vmatpush1.bf16.msra.mxu0 %v3472
        %3564 = vmatprep.subr.bf16.mxu0 0
        %3565 = vmatpush1.bf16.msra.mxu0 %v3473
        %3566 = vmatprep.subr.bf16.mxu0 0
        %3567 = vmatpush1.bf16.msra.mxu0 %v3474
        %3568 = vmatprep.subr.bf16.mxu0 0
        %3569 = vmatpush1.bf16.msra.mxu0 %v3475
        %3570 = vmatprep.subr.bf16.mxu0 0
        %3571 = vmatpush1.bf16.msra.mxu0 %v3476
        %3572 = vmatprep.subr.bf16.mxu0 0
        %3573 = vmatpush1.bf16.msra.mxu0 %v3477
        %3574 = vmatprep.subr.bf16.mxu0 0
        %3575 = vmatpush1.bf16.msra.mxu0 %v3478
        %3576 = vmatprep.subr.bf16.mxu0 0
        %3577 = vmatpush1.bf16.msra.mxu0 %v3479
        %3578 = vmatprep.subr.bf16.mxu0 0
        %3579 = vmatpush1.bf16.msra.mxu0 %v3480
        %3580 = vmatprep.subr.bf16.mxu0 0
        %3581 = vmatpush1.bf16.msra.mxu0 %v3481
        %3582 = vmatprep.subr.bf16.mxu0 0
        %3583 = vmatpush1.bf16.msra.mxu0 %v3482
        %3584 = vmatprep.subr.bf16.mxu0 0
        %3585 = vmatpush1.bf16.msra.mxu0 %v3483
        %3586 = vmatprep.subr.bf16.mxu0 0
        %3587 = vmatpush1.bf16.msra.mxu0 %v3484
        %3588 = vmatprep.subr.bf16.mxu0 0
        %3589 = vmatpush1.bf16.msra.mxu0 %v3485
        %3590 = vmatprep.subr.bf16.mxu0 0
        %3591 = vmatpush1.bf16.msra.mxu0 %v3486
        %3592 = vmatprep.mubr.bf16.mxu0 %v3255
        %3593 = vmatmul.mubr.bf16.gmra.mrb[0].mxu0 %v3254
        %v3594 = vpop.f32.mrb[0].mxu0
        %v3595 = vadd.f32 %v3554, %v3594
        %v3596 = vpop.f32.mrb[0].mxu0
        %v3597 = vpop.f32.mrb[0].mxu0
        %v3598 = vadd.f32 %v3557, %v3597
        %v3599 = vpop.f32.mrb[0].mxu0
        %3600 = vdwg.mxu0
        %v3601 = vadd.f32 %v2941, %v3595
        %v3602 = vadd.f32 %v2942, %v3598
        %v3603 = vld [vmem:[%s736] sm:$0x1]
        %v3604 = vld [vmem:[%s744] sm:$0x1]
        %3605 = vadd.xlane.f32.xlu0 %v3601
        %v3606 = vpop.xlane.xlu0 %3605
        %3607 = vadd.xlane.f32.xlu0 %v3602
        %v3608 = vpop.xlane.xlu0 %3607
        %v3609 = vmul.f32 %v3606, %v2908
        %v3610 = vmul.f32 %v3608, %v2908
        %v3611 = vsub.f32 %v3601, %v3609
        %v3612 = vsub.f32 %v3602, %v3610
        %v3613 = vmul.f32 %v3611, %v3611
        %v3614 = vmul.f32 %v3612, %v3612
        %3615 = vadd.xlane.f32.xlu0 %v3613
        %v3616 = vpop.xlane.xlu0 %3615
        %3617 = vadd.xlane.f32.xlu0 %v3614
        %v3618 = vpop.xlane.xlu0 %3617
        %v3619 = vmul.f32 %v3616, %v2908
        %v3620 = vmul.f32 %v3618, %v2908
        %v3621 = vadd.f32 %v3619, 1e-05
        %v3622 = vadd.f32 %v3620, 1e-05
        %v3623 = vrsqrt.pop %v3621
        %v3624 = vrsqrt.pop %v3622
        %v3625 = vmul.f32 %v3611, %v3623
        %v3626 = vmul.f32 %v3612, %v3624
        %v3628 = vlaneseq
        %v3629 = vshrl.u32 %v3628, 7
        %v3630 = vsub.s32 0, %v3629
        %v3631 = vrot.slane %v3603, %v3630
        %v3633 = vmul.f32 %v3625, %v3631
        %v3634 = vmul.f32 %v3626, %v3631
        %v3636 = vlaneseq
        %v3637 = vshrl.u32 %v3636, 7
        %v3638 = vsub.s32 0, %v3637
        %v3639 = vrot.slane %v3604, %v3638
        %v3641 = vadd.f32 %v3633, %v3639
        %v3642 = vadd.f32 %v3634, %v3639
        %3643 = vst [vmem:[%s13] sm:$0xff] %v3641
        %3644 = vst [vmem:[%s13 + $0x8] sm:$0xff] %v3642
        // Predicated region
        $region125: #{transformer_forward.2} parent=71 // pred_check
          %p3645 = pneg %p391
        $region126: #{transformer_forward.2} parent=71 // pred_check_branch
          %3647 = sbr.rel (%p3645) target = $region128
        $region127: #{transformer_forward.2} parent=71 // pred_region
          _
        $region128: #{transformer_forward.2} parent=71 // pred_fallthru
          _
        // Predicated region
        $region129: #{transformer_forward.2} parent=71 // pred_check
          %p3648 = pneg %p391
        $region130: #{transformer_forward.2} parent=71 // pred_check_branch
          %3650 = sbr.rel (%p3648) target = $region132
        $region131: #{transformer_forward.2} parent=71 // pred_region
          _
        $region132: #{transformer_forward.2} parent=71 // pred_fallthru
          _
      $region72: #{transformer_forward.2} parent=5 // pred_fallthru
        _
      %p3651 = scmp.le.s32.totalorder 2, %s40
      // Predicated region
      $region133: #{transformer_forward.2} parent=5 // pred_check
        %p3652 = pneg %p3651
      $region134: #{transformer_forward.2} parent=5 // pred_check_branch
        %3654 = sbr.rel (%p3652) target = $region136
      $region135: #{transformer_forward.2} parent=5 // pred_region
        %s3655 = ssub.s32 %s40, 2
      $region136: #{transformer_forward.2} parent=5 // pred_fallthru
        _
    $region6: #{transformer_forward.2} parent=1 // loop_footer
      %s44 = sadd.s32 1, %s40
    $region7: #{transformer_forward.2} parent=1 // loop_footer_branch
      %39 = sbr.rel target = $region3
    $region8: #{transformer_forward.2} parent=1 // loop_exit
      _
    %3656 = vsyncpa [#allocation3], 1
    %s3657 = scalar_lea.sflag [#allocation3], 1
    %3658 = vsyncpa %s3657, 1
    %3659 = vsyncpa [#allocation5], 1
    %s3660 = scalar_lea.sflag [#allocation5], 1
    %3661 = vsyncpa %s3660, 1
    %3662 = vsyncpa [#allocation8], 1
    %s3663 = scalar_lea.sflag [#allocation8], 1
    %3664 = vsyncpa %s3663, 1
    %3665 = vsyncpa [#allocation11], 1
    %s3666 = scalar_lea.sflag [#allocation11], 1
    %3667 = vsyncpa %s3666, 1
    %3668 = vsyncpa [#allocation14], 1
    %s3669 = scalar_lea.sflag [#allocation14], 1
    %3670 = vsyncpa %s3669, 1
    %3671 = vsyncpa [#allocation17], 1
    %s3672 = scalar_lea.sflag [#allocation17], 1
    %3673 = vsyncpa %s3672, 1
    %3674 = vsyncpa [#allocation20], 1
    %s3675 = scalar_lea.sflag [#allocation20], 1
    %3676 = vsyncpa %s3675, 1

// kernel: transformer_forward.3
$region0: #{transformer_forward.3}
  #allocation0 [shape = 'u32[]', space=smem, size = 0x4, offset = 0x4, fixed_abs, tag = 'smem constant byte address 0x4 - core index']
  #allocation1 [shape = 'u32[144,128]{1,0:T(1,128)}', space=vmem, size = 0x12000, scoped, tag = 'internal scratch']
  #allocation2 [shape = 'f32[16,128]{1,0:T(8,128)}', space=vmem, size = 0x2000, scoped, tag = 'scratch operand']
  %s0 = inlined_call_operand.vmem [shape: f32[16,128], index: 0, kind: input, shape index: {}]
  %s1 = inlined_call_operand.vmem [shape: f32[16,128], index: 1, kind: input, shape index: {}]
  %s2 = inlined_call_operand.vmem [shape: bf16[6,128,1536], index: 2, kind: input, shape index: {}]
  %s3 = inlined_call_operand.vmem [shape: f32[6,1,1536], index: 3, kind: input, shape index: {}]
  %s4 = inlined_call_operand.vmem [shape: bf16[6,512,128], index: 4, kind: input, shape index: {}]
  %s5 = inlined_call_operand.vmem [shape: f32[6,1,128], index: 5, kind: input, shape index: {}]
  %s6 = inlined_call_operand.vmem [shape: f32[6,1,128], index: 6, kind: input, shape index: {}]
  %s7 = inlined_call_operand.vmem [shape: f32[6,1,128], index: 7, kind: input, shape index: {}]
  %s8 = inlined_call_operand.hbm [shape: bf16[6,128,512], index: 8, kind: input, shape index: {}]
  %s9 = inlined_call_operand.vmem [shape: f32[6,1,512], index: 9, kind: input, shape index: {}]
  %s10 = inlined_call_operand.vmem [shape: bf16[6,128,1024], index: 10, kind: input, shape index: {}]
  %s11 = inlined_call_operand.vmem [shape: f32[6,1,1024], index: 11, kind: input, shape index: {}]
  %s12 = inlined_call_operand.hbm [shape: bf16[6,512,128], index: 12, kind: input, shape index: {}]
  %s13 = inlined_call_operand.vmem [shape: f32[6,1,128], index: 13, kind: input, shape index: {}]
  %s14 = inlined_call_operand.vmem [shape: f32[6,1,128], index: 14, kind: input, shape index: {}]
  %s15 = inlined_call_operand.vmem [shape: f32[6,1,128], index: 15, kind: input, shape index: {}]
  %s16 = inlined_call_operand.hbm [shape: bf16[6,128,512], index: 16, kind: input, shape index: {}]
  %s17 = inlined_call_operand.vmem [shape: f32[6,1,512], index: 17, kind: input, shape index: {}]
  %s18 = inlined_call_operand.hbm [shape: bf16[6,512,128], index: 18, kind: input, shape index: {}]
  %s19 = inlined_call_operand.vmem [shape: f32[6,1,128], index: 19, kind: input, shape index: {}]
  %s20 = inlined_call_operand.vmem [shape: f32[6,1,128], index: 20, kind: input, shape index: {}]
  %s21 = inlined_call_operand.vmem [shape: f32[6,1,128], index: 21, kind: input, shape index: {}]
  %s22 = inlined_call_operand.vmem [shape: bf16[128,128], index: 22, kind: input, shape index: {}]
  %s23 = inlined_call_operand.vmem [shape: f32[1,128], index: 23, kind: input, shape index: {}]
  %s24 = inlined_call_operand.vmem [shape: f32[16,128], index: 24, kind: output, shape index: {}]
  %s25 = sld [smem:[#allocation0]]
  $region153: #{transformer_forward.3} parent=0
    _
  %s27 = ssub.s32 1, %s25
  %s28 = scalar_select 0, %s27, %s25
  $region1: #{transformer_forward.3} parent=0
    #allocation3 [shape = 'u8[262144]{0}', space=vmem, size = 0x40000, scoped, tag = 'input window, operand 8']
    #allocation4 [shape = 's32[2]{0}', space=sflag, size = 0x8, scoped, tag = 'scoped memory for transformer_forward.3']
    #allocation5 [shape = 'u8[262144]{0}', space=vmem, size = 0x40000, scoped, tag = 'input window, operand 12']
    #allocation6 [shape = 's32[2]{0}', space=sflag, size = 0x8, scoped, tag = 'scoped memory for transformer_forward.3']
    #allocation7 [shape = 'u8[262144]{0}', space=vmem, size = 0x40000, scoped, tag = 'input window, operand 16']
    #allocation8 [shape = 'u8[262144]{0}', space=vmem, size = 0x40000, scoped, tag = 'input window, operand 18']
    #allocation9 [shape = 's32[2]{0}', space=sflag, size = 0x8, scoped, tag = 'scoped memory for transformer_forward.3']
    %29 = vsyncpa [#allocation4], 0
    %s30 = scalar_lea.sflag [#allocation4], 1
    %31 = vsyncpa %s30, 0
    %32 = vsyncpa [#allocation6], 0
    %s33 = scalar_lea.sflag [#allocation6], 1
    %34 = vsyncpa %s33, 0
    %35 = vsyncpa [#allocation9], 0
    %s36 = scalar_lea.sflag [#allocation9], 1
    %37 = vsyncpa %s36, 0
    loop: start=0, step=1, limit=8
    $region2: #{transformer_forward.3} parent=1 // loop_pre_header
      _
    $region3: #{transformer_forward.3} parent=1 // loop_header
      %s39 = sphi 0, %s43
      %p40 = scmp.ge.s32.totalorder %s39, 8
      %s47 = sphi 0, %s47
      %s49 = sphi 0, %s47
      %s50 = sphi 0, %s49
      %s64 = sphi 0, %s50
      %s68 = sphi 0, %s68
      %s70 = sphi 0, %s68
      %s71 = sphi 0, %s70
      %s85 = sphi 0, %s71
      %s91 = sphi 0, %s93
      %s94 = sphi 0, %s91
      %s95 = sphi 0, %s94
      %s111 = sphi 0, %s95
      %s117 = sphi 0, %s119
      %s120 = sphi 0, %s117
      %s121 = sphi 0, %s120
      %s137 = sphi 0, %s121
      %s143 = sphi 0, %s145
      %s146 = sphi 0, %s143
      %s147 = sphi 0, %s146
      %s163 = sphi 0, %s147
      %s169 = sphi 0, %s171
      %s172 = sphi 0, %s169
      %s173 = sphi 0, %s172
      %s189 = sphi 0, %s173
      %s195 = sphi 0, %s197
      %s198 = sphi 0, %s195
      %s199 = sphi 0, %s198
      %s215 = sphi 0, %s199
      %s221 = sphi 0, %s223
      %s224 = sphi 0, %s221
      %s225 = sphi 0, %s224
      %s241 = sphi 0, %s225
      %s247 = sphi 0, %s249
      %s250 = sphi 0, %s247
      %s251 = sphi 0, %s250
      %s267 = sphi 0, %s251
      %s273 = sphi 0, %s275
      %s276 = sphi 0, %s273
      %s277 = sphi 0, %s276
      %s293 = sphi 0, %s277
      %s299 = sphi 0, %s301
      %s302 = sphi 0, %s299
      %s303 = sphi 0, %s302
      %s319 = sphi 0, %s303
      %s325 = sphi 0, %s327
      %s328 = sphi 0, %s325
      %s329 = sphi 0, %s328
      %s345 = sphi 0, %s329
      %s351 = sphi 0, %s353
      %s354 = sphi 0, %s351
      %s355 = sphi 0, %s354
      %s371 = sphi 0, %s355
      %s377 = sphi 0, %s379
      %s380 = sphi 0, %s377
      %s381 = sphi 0, %s380
      %s397 = sphi 0, %s381
      %s403 = sphi 0, %s405
      %s406 = sphi 0, %s403
      %s407 = sphi 0, %s406
      %s423 = sphi 0, %s407
      %s429 = sphi 0, %s431
      %s432 = sphi 0, %s429
      %s433 = sphi 0, %s432
      %s449 = sphi 0, %s433
      %s455 = sphi 0, %s457
      %s458 = sphi 0, %s455
      %s459 = sphi 0, %s458
      %s475 = sphi 0, %s459
      %s481 = sphi 0, %s483
      %s484 = sphi 0, %s481
      %s485 = sphi 0, %s484
      %s501 = sphi 0, %s485
      %s507 = sphi 0, %s509
      %s510 = sphi 0, %s507
      %s511 = sphi 0, %s510
      %s527 = sphi 0, %s511
      %s533 = sphi 0, %s535
      %s536 = sphi 0, %s533
      %s537 = sphi 0, %s536
      %s553 = sphi 0, %s537
      %s559 = sphi 0, %s561
      %s562 = sphi 0, %s559
      %s563 = sphi 0, %s562
      %s579 = sphi 0, %s563
      %s585 = sphi 0, %s587
      %s588 = sphi 0, %s585
      %s589 = sphi 0, %s588
      %s605 = sphi 0, %s589
      %s609 = sphi 0, %s609
      %s611 = sphi 0, %s609
      %s612 = sphi 0, %s611
      %s626 = sphi 0, %s612
      %s630 = sphi 0, %s630
      %s632 = sphi 0, %s630
      %s633 = sphi 0, %s632
      %s647 = sphi 0, %s633
      %s651 = sphi 0, %s651
      %s653 = sphi 0, %s651
      %s654 = sphi 0, %s653
      %s668 = sphi 0, %s654
    $region4: #{transformer_forward.3} parent=1 // loop_header_branch
      %42 = sbr.rel (%p40) target = $region8
    $region5: #{transformer_forward.3} parent=1 // loop_body
      %s44 = ssub.s32 %s39, 1
      %s45 = ssub.s32 %s39, 2
      %s46 = sadd.s32 %s39, 1
      %s48 = sadd.s32 %s47, 1
      %p51 = scmp.eq.s32.totalorder %s39, 5
      %p52 = scmp.ne.s32.totalorder %s47, %s49
      %p53 = scmp.eq.s32.totalorder %s39, 0
      %p54 = por %p52, %p53
      %p55 = scmp.ne.s32.totalorder %s47, %s49
      %p56 = scmp.eq.s32.totalorder %s44, 5
      %p57 = por %p55, %p56
      %p58 = scmp.ne.s32.totalorder %s49, %s50
      %p59 = scmp.eq.s32.totalorder %s44, 0
      %p60 = por %p58, %p59
      %p61 = scmp.ne.s32.totalorder %s49, %s50
      %p62 = scmp.eq.s32.totalorder %s45, 5
      %p63 = por %p61, %p62
      %p65 = scmp.ne.s32.totalorder %s50, %s64
      %p66 = scmp.eq.s32.totalorder %s45, 0
      %p67 = por %p65, %p66
      %s69 = sadd.s32 %s68, 1
      %p72 = scmp.eq.s32.totalorder %s39, 5
      %p73 = scmp.ne.s32.totalorder %s68, %s70
      %p74 = scmp.eq.s32.totalorder %s39, 0
      %p75 = por %p73, %p74
      %p76 = scmp.ne.s32.totalorder %s68, %s70
      %p77 = scmp.eq.s32.totalorder %s44, 5
      %p78 = por %p76, %p77
      %p79 = scmp.ne.s32.totalorder %s70, %s71
      %p80 = scmp.eq.s32.totalorder %s44, 0
      %p81 = por %p79, %p80
      %p82 = scmp.ne.s32.totalorder %s70, %s71
      %p83 = scmp.eq.s32.totalorder %s45, 5
      %p84 = por %p82, %p83
      %p86 = scmp.ne.s32.totalorder %s71, %s85
      %p87 = scmp.eq.s32.totalorder %s45, 0
      %p88 = por %p86, %p87
      %s89 = ssub.s32 %s39, %s46
      %p90 = scmp.eq.s32.totalorder %s89, 0
      %s92 = sadd.s32 %s91, 1
      %s93 = scalar_select %p90, %s91, %s92
      %p96 = pneg %p90
      %p97 = scmp.eq.s32.totalorder %s39, 5
      %p98 = por %p96, %p97
      %p99 = scmp.ne.s32.totalorder %s91, %s94
      %p100 = scmp.eq.s32.totalorder %s39, 0
      %p101 = por %p99, %p100
      %p102 = scmp.ne.s32.totalorder %s91, %s94
      %p103 = scmp.eq.s32.totalorder %s44, 5
      %p104 = por %p102, %p103
      %p105 = scmp.ne.s32.totalorder %s94, %s95
      %p106 = scmp.eq.s32.totalorder %s44, 0
      %p107 = por %p105, %p106
      %p108 = scmp.ne.s32.totalorder %s94, %s95
      %p109 = scmp.eq.s32.totalorder %s45, 5
      %p110 = por %p108, %p109
      %p112 = scmp.ne.s32.totalorder %s95, %s111
      %p113 = scmp.eq.s32.totalorder %s45, 0
      %p114 = por %p112, %p113
      %s115 = ssub.s32 %s39, %s46
      %p116 = scmp.eq.s32.totalorder %s115, 0
      %s118 = sadd.s32 %s117, 1
      %s119 = scalar_select %p116, %s117, %s118
      %p122 = pneg %p116
      %p123 = scmp.eq.s32.totalorder %s39, 5
      %p124 = por %p122, %p123
      %p125 = scmp.ne.s32.totalorder %s117, %s120
      %p126 = scmp.eq.s32.totalorder %s39, 0
      %p127 = por %p125, %p126
      %p128 = scmp.ne.s32.totalorder %s117, %s120
      %p129 = scmp.eq.s32.totalorder %s44, 5
      %p130 = por %p128, %p129
      %p131 = scmp.ne.s32.totalorder %s120, %s121
      %p132 = scmp.eq.s32.totalorder %s44, 0
      %p133 = por %p131, %p132
      %p134 = scmp.ne.s32.totalorder %s120, %s121
      %p135 = scmp.eq.s32.totalorder %s45, 5
      %p136 = por %p134, %p135
      %p138 = scmp.ne.s32.totalorder %s121, %s137
      %p139 = scmp.eq.s32.totalorder %s45, 0
      %p140 = por %p138, %p139
      %s141 = ssub.s32 %s39, %s46
      %p142 = scmp.eq.s32.totalorder %s141, 0
      %s144 = sadd.s32 %s143, 1
      %s145 = scalar_select %p142, %s143, %s144
      %p148 = pneg %p142
      %p149 = scmp.eq.s32.totalorder %s39, 5
      %p150 = por %p148, %p149
      %p151 = scmp.ne.s32.totalorder %s143, %s146
      %p152 = scmp.eq.s32.totalorder %s39, 0
      %p153 = por %p151, %p152
      %p154 = scmp.ne.s32.totalorder %s143, %s146
      %p155 = scmp.eq.s32.totalorder %s44, 5
      %p156 = por %p154, %p155
      %p157 = scmp.ne.s32.totalorder %s146, %s147
      %p158 = scmp.eq.s32.totalorder %s44, 0
      %p159 = por %p157, %p158
      %p160 = scmp.ne.s32.totalorder %s146, %s147
      %p161 = scmp.eq.s32.totalorder %s45, 5
      %p162 = por %p160, %p161
      %p164 = scmp.ne.s32.totalorder %s147, %s163
      %p165 = scmp.eq.s32.totalorder %s45, 0
      %p166 = por %p164, %p165
      %s167 = ssub.s32 %s39, %s46
      %p168 = scmp.eq.s32.totalorder %s167, 0
      %s170 = sadd.s32 %s169, 1
      %s171 = scalar_select %p168, %s169, %s170
      %p174 = pneg %p168
      %p175 = scmp.eq.s32.totalorder %s39, 5
      %p176 = por %p174, %p175
      %p177 = scmp.ne.s32.totalorder %s169, %s172
      %p178 = scmp.eq.s32.totalorder %s39, 0
      %p179 = por %p177, %p178
      %p180 = scmp.ne.s32.totalorder %s169, %s172
      %p181 = scmp.eq.s32.totalorder %s44, 5
      %p182 = por %p180, %p181
      %p183 = scmp.ne.s32.totalorder %s172, %s173
      %p184 = scmp.eq.s32.totalorder %s44, 0
      %p185 = por %p183, %p184
      %p186 = scmp.ne.s32.totalorder %s172, %s173
      %p187 = scmp.eq.s32.totalorder %s45, 5
      %p188 = por %p186, %p187
      %p190 = scmp.ne.s32.totalorder %s173, %s189
      %p191 = scmp.eq.s32.totalorder %s45, 0
      %p192 = por %p190, %p191
      %s193 = ssub.s32 %s39, %s46
      %p194 = scmp.eq.s32.totalorder %s193, 0
      %s196 = sadd.s32 %s195, 1
      %s197 = scalar_select %p194, %s195, %s196
      %p200 = pneg %p194
      %p201 = scmp.eq.s32.totalorder %s39, 5
      %p202 = por %p200, %p201
      %p203 = scmp.ne.s32.totalorder %s195, %s198
      %p204 = scmp.eq.s32.totalorder %s39, 0
      %p205 = por %p203, %p204
      %p206 = scmp.ne.s32.totalorder %s195, %s198
      %p207 = scmp.eq.s32.totalorder %s44, 5
      %p208 = por %p206, %p207
      %p209 = scmp.ne.s32.totalorder %s198, %s199
      %p210 = scmp.eq.s32.totalorder %s44, 0
      %p211 = por %p209, %p210
      %p212 = scmp.ne.s32.totalorder %s198, %s199
      %p213 = scmp.eq.s32.totalorder %s45, 5
      %p214 = por %p212, %p213
      %p216 = scmp.ne.s32.totalorder %s199, %s215
      %p217 = scmp.eq.s32.totalorder %s45, 0
      %p218 = por %p216, %p217
      %s219 = ssub.s32 %s39, %s46
      %p220 = scmp.eq.s32.totalorder %s219, 0
      %s222 = sadd.s32 %s221, 1
      %s223 = scalar_select %p220, %s221, %s222
      %p226 = pneg %p220
      %p227 = scmp.eq.s32.totalorder %s39, 5
      %p228 = por %p226, %p227
      %p229 = scmp.ne.s32.totalorder %s221, %s224
      %p230 = scmp.eq.s32.totalorder %s39, 0
      %p231 = por %p229, %p230
      %p232 = scmp.ne.s32.totalorder %s221, %s224
      %p233 = scmp.eq.s32.totalorder %s44, 5
      %p234 = por %p232, %p233
      %p235 = scmp.ne.s32.totalorder %s224, %s225
      %p236 = scmp.eq.s32.totalorder %s44, 0
      %p237 = por %p235, %p236
      %p238 = scmp.ne.s32.totalorder %s224, %s225
      %p239 = scmp.eq.s32.totalorder %s45, 5
      %p240 = por %p238, %p239
      %p242 = scmp.ne.s32.totalorder %s225, %s241
      %p243 = scmp.eq.s32.totalorder %s45, 0
      %p244 = por %p242, %p243
      %s245 = ssub.s32 %s39, %s46
      %p246 = scmp.eq.s32.totalorder %s245, 0
      %s248 = sadd.s32 %s247, 1
      %s249 = scalar_select %p246, %s247, %s248
      %p252 = pneg %p246
      %p253 = scmp.eq.s32.totalorder %s39, 5
      %p254 = por %p252, %p253
      %p255 = scmp.ne.s32.totalorder %s247, %s250
      %p256 = scmp.eq.s32.totalorder %s39, 0
      %p257 = por %p255, %p256
      %p258 = scmp.ne.s32.totalorder %s247, %s250
      %p259 = scmp.eq.s32.totalorder %s44, 5
      %p260 = por %p258, %p259
      %p261 = scmp.ne.s32.totalorder %s250, %s251
      %p262 = scmp.eq.s32.totalorder %s44, 0
      %p263 = por %p261, %p262
      %p264 = scmp.ne.s32.totalorder %s250, %s251
      %p265 = scmp.eq.s32.totalorder %s45, 5
      %p266 = por %p264, %p265
      %p268 = scmp.ne.s32.totalorder %s251, %s267
      %p269 = scmp.eq.s32.totalorder %s45, 0
      %p270 = por %p268, %p269
      %s271 = ssub.s32 %s39, %s46
      %p272 = scmp.eq.s32.totalorder %s271, 0
      %s274 = sadd.s32 %s273, 1
      %s275 = scalar_select %p272, %s273, %s274
      %p278 = pneg %p272
      %p279 = scmp.eq.s32.totalorder %s39, 5
      %p280 = por %p278, %p279
      %p281 = scmp.ne.s32.totalorder %s273, %s276
      %p282 = scmp.eq.s32.totalorder %s39, 0
      %p283 = por %p281, %p282
      %p284 = scmp.ne.s32.totalorder %s273, %s276
      %p285 = scmp.eq.s32.totalorder %s44, 5
      %p286 = por %p284, %p285
      %p287 = scmp.ne.s32.totalorder %s276, %s277
      %p288 = scmp.eq.s32.totalorder %s44, 0
      %p289 = por %p287, %p288
      %p290 = scmp.ne.s32.totalorder %s276, %s277
      %p291 = scmp.eq.s32.totalorder %s45, 5
      %p292 = por %p290, %p291
      %p294 = scmp.ne.s32.totalorder %s277, %s293
      %p295 = scmp.eq.s32.totalorder %s45, 0
      %p296 = por %p294, %p295
      %s297 = ssub.s32 %s39, %s46
      %p298 = scmp.eq.s32.totalorder %s297, 0
      %s300 = sadd.s32 %s299, 1
      %s301 = scalar_select %p298, %s299, %s300
      %p304 = pneg %p298
      %p305 = scmp.eq.s32.totalorder %s39, 5
      %p306 = por %p304, %p305
      %p307 = scmp.ne.s32.totalorder %s299, %s302
      %p308 = scmp.eq.s32.totalorder %s39, 0
      %p309 = por %p307, %p308
      %p310 = scmp.ne.s32.totalorder %s299, %s302
      %p311 = scmp.eq.s32.totalorder %s44, 5
      %p312 = por %p310, %p311
      %p313 = scmp.ne.s32.totalorder %s302, %s303
      %p314 = scmp.eq.s32.totalorder %s44, 0
      %p315 = por %p313, %p314
      %p316 = scmp.ne.s32.totalorder %s302, %s303
      %p317 = scmp.eq.s32.totalorder %s45, 5
      %p318 = por %p316, %p317
      %p320 = scmp.ne.s32.totalorder %s303, %s319
      %p321 = scmp.eq.s32.totalorder %s45, 0
      %p322 = por %p320, %p321
      %s323 = ssub.s32 %s39, %s46
      %p324 = scmp.eq.s32.totalorder %s323, 0
      %s326 = sadd.s32 %s325, 1
      %s327 = scalar_select %p324, %s325, %s326
      %p330 = pneg %p324
      %p331 = scmp.eq.s32.totalorder %s39, 5
      %p332 = por %p330, %p331
      %p333 = scmp.ne.s32.totalorder %s325, %s328
      %p334 = scmp.eq.s32.totalorder %s39, 0
      %p335 = por %p333, %p334
      %p336 = scmp.ne.s32.totalorder %s325, %s328
      %p337 = scmp.eq.s32.totalorder %s44, 5
      %p338 = por %p336, %p337
      %p339 = scmp.ne.s32.totalorder %s328, %s329
      %p340 = scmp.eq.s32.totalorder %s44, 0
      %p341 = por %p339, %p340
      %p342 = scmp.ne.s32.totalorder %s328, %s329
      %p343 = scmp.eq.s32.totalorder %s45, 5
      %p344 = por %p342, %p343
      %p346 = scmp.ne.s32.totalorder %s329, %s345
      %p347 = scmp.eq.s32.totalorder %s45, 0
      %p348 = por %p346, %p347
      %s349 = ssub.s32 %s39, %s46
      %p350 = scmp.eq.s32.totalorder %s349, 0
      %s352 = sadd.s32 %s351, 1
      %s353 = scalar_select %p350, %s351, %s352
      %p356 = pneg %p350
      %p357 = scmp.eq.s32.totalorder %s39, 5
      %p358 = por %p356, %p357
      %p359 = scmp.ne.s32.totalorder %s351, %s354
      %p360 = scmp.eq.s32.totalorder %s39, 0
      %p361 = por %p359, %p360
      %p362 = scmp.ne.s32.totalorder %s351, %s354
      %p363 = scmp.eq.s32.totalorder %s44, 5
      %p364 = por %p362, %p363
      %p365 = scmp.ne.s32.totalorder %s354, %s355
      %p366 = scmp.eq.s32.totalorder %s44, 0
      %p367 = por %p365, %p366
      %p368 = scmp.ne.s32.totalorder %s354, %s355
      %p369 = scmp.eq.s32.totalorder %s45, 5
      %p370 = por %p368, %p369
      %p372 = scmp.ne.s32.totalorder %s355, %s371
      %p373 = scmp.eq.s32.totalorder %s45, 0
      %p374 = por %p372, %p373
      %s375 = ssub.s32 %s39, %s46
      %p376 = scmp.eq.s32.totalorder %s375, 0
      %s378 = sadd.s32 %s377, 1
      %s379 = scalar_select %p376, %s377, %s378
      %p382 = pneg %p376
      %p383 = scmp.eq.s32.totalorder %s39, 5
      %p384 = por %p382, %p383
      %p385 = scmp.ne.s32.totalorder %s377, %s380
      %p386 = scmp.eq.s32.totalorder %s39, 0
      %p387 = por %p385, %p386
      %p388 = scmp.ne.s32.totalorder %s377, %s380
      %p389 = scmp.eq.s32.totalorder %s44, 5
      %p390 = por %p388, %p389
      %p391 = scmp.ne.s32.totalorder %s380, %s381
      %p392 = scmp.eq.s32.totalorder %s44, 0
      %p393 = por %p391, %p392
      %p394 = scmp.ne.s32.totalorder %s380, %s381
      %p395 = scmp.eq.s32.totalorder %s45, 5
      %p396 = por %p394, %p395
      %p398 = scmp.ne.s32.totalorder %s381, %s397
      %p399 = scmp.eq.s32.totalorder %s45, 0
      %p400 = por %p398, %p399
      %s401 = ssub.s32 %s39, %s46
      %p402 = scmp.eq.s32.totalorder %s401, 0
      %s404 = sadd.s32 %s403, 1
      %s405 = scalar_select %p402, %s403, %s404
      %p408 = pneg %p402
      %p409 = scmp.eq.s32.totalorder %s39, 5
      %p410 = por %p408, %p409
      %p411 = scmp.ne.s32.totalorder %s403, %s406
      %p412 = scmp.eq.s32.totalorder %s39, 0
      %p413 = por %p411, %p412
      %p414 = scmp.ne.s32.totalorder %s403, %s406
      %p415 = scmp.eq.s32.totalorder %s44, 5
      %p416 = por %p414, %p415
      %p417 = scmp.ne.s32.totalorder %s406, %s407
      %p418 = scmp.eq.s32.totalorder %s44, 0
      %p419 = por %p417, %p418
      %p420 = scmp.ne.s32.totalorder %s406, %s407
      %p421 = scmp.eq.s32.totalorder %s45, 5
      %p422 = por %p420, %p421
      %p424 = scmp.ne.s32.totalorder %s407, %s423
      %p425 = scmp.eq.s32.totalorder %s45, 0
      %p426 = por %p424, %p425
      %s427 = ssub.s32 %s39, %s46
      %p428 = scmp.eq.s32.totalorder %s427, 0
      %s430 = sadd.s32 %s429, 1
      %s431 = scalar_select %p428, %s429, %s430
      %p434 = pneg %p428
      %p435 = scmp.eq.s32.totalorder %s39, 5
      %p436 = por %p434, %p435
      %p437 = scmp.ne.s32.totalorder %s429, %s432
      %p438 = scmp.eq.s32.totalorder %s39, 0
      %p439 = por %p437, %p438
      %p440 = scmp.ne.s32.totalorder %s429, %s432
      %p441 = scmp.eq.s32.totalorder %s44, 5
      %p442 = por %p440, %p441
      %p443 = scmp.ne.s32.totalorder %s432, %s433
      %p444 = scmp.eq.s32.totalorder %s44, 0
      %p445 = por %p443, %p444
      %p446 = scmp.ne.s32.totalorder %s432, %s433
      %p447 = scmp.eq.s32.totalorder %s45, 5
      %p448 = por %p446, %p447
      %p450 = scmp.ne.s32.totalorder %s433, %s449
      %p451 = scmp.eq.s32.totalorder %s45, 0
      %p452 = por %p450, %p451
      %s453 = ssub.s32 %s39, %s46
      %p454 = scmp.eq.s32.totalorder %s453, 0
      %s456 = sadd.s32 %s455, 1
      %s457 = scalar_select %p454, %s455, %s456
      %p460 = pneg %p454
      %p461 = scmp.eq.s32.totalorder %s39, 5
      %p462 = por %p460, %p461
      %p463 = scmp.ne.s32.totalorder %s455, %s458
      %p464 = scmp.eq.s32.totalorder %s39, 0
      %p465 = por %p463, %p464
      %p466 = scmp.ne.s32.totalorder %s455, %s458
      %p467 = scmp.eq.s32.totalorder %s44, 5
      %p468 = por %p466, %p467
      %p469 = scmp.ne.s32.totalorder %s458, %s459
      %p470 = scmp.eq.s32.totalorder %s44, 0
      %p471 = por %p469, %p470
      %p472 = scmp.ne.s32.totalorder %s458, %s459
      %p473 = scmp.eq.s32.totalorder %s45, 5
      %p474 = por %p472, %p473
      %p476 = scmp.ne.s32.totalorder %s459, %s475
      %p477 = scmp.eq.s32.totalorder %s45, 0
      %p478 = por %p476, %p477
      %s479 = ssub.s32 %s39, %s46
      %p480 = scmp.eq.s32.totalorder %s479, 0
      %s482 = sadd.s32 %s481, 1
      %s483 = scalar_select %p480, %s481, %s482
      %p486 = pneg %p480
      %p487 = scmp.eq.s32.totalorder %s39, 5
      %p488 = por %p486, %p487
      %p489 = scmp.ne.s32.totalorder %s481, %s484
      %p490 = scmp.eq.s32.totalorder %s39, 0
      %p491 = por %p489, %p490
      %p492 = scmp.ne.s32.totalorder %s481, %s484
      %p493 = scmp.eq.s32.totalorder %s44, 5
      %p494 = por %p492, %p493
      %p495 = scmp.ne.s32.totalorder %s484, %s485
      %p496 = scmp.eq.s32.totalorder %s44, 0
      %p497 = por %p495, %p496
      %p498 = scmp.ne.s32.totalorder %s484, %s485
      %p499 = scmp.eq.s32.totalorder %s45, 5
      %p500 = por %p498, %p499
      %p502 = scmp.ne.s32.totalorder %s485, %s501
      %p503 = scmp.eq.s32.totalorder %s45, 0
      %p504 = por %p502, %p503
      %s505 = ssub.s32 %s39, %s46
      %p506 = scmp.eq.s32.totalorder %s505, 0
      %s508 = sadd.s32 %s507, 1
      %s509 = scalar_select %p506, %s507, %s508
      %p512 = pneg %p506
      %p513 = scmp.eq.s32.totalorder %s39, 5
      %p514 = por %p512, %p513
      %p515 = scmp.ne.s32.totalorder %s507, %s510
      %p516 = scmp.eq.s32.totalorder %s39, 0
      %p517 = por %p515, %p516
      %p518 = scmp.ne.s32.totalorder %s507, %s510
      %p519 = scmp.eq.s32.totalorder %s44, 5
      %p520 = por %p518, %p519
      %p521 = scmp.ne.s32.totalorder %s510, %s511
      %p522 = scmp.eq.s32.totalorder %s44, 0
      %p523 = por %p521, %p522
      %p524 = scmp.ne.s32.totalorder %s510, %s511
      %p525 = scmp.eq.s32.totalorder %s45, 5
      %p526 = por %p524, %p525
      %p528 = scmp.ne.s32.totalorder %s511, %s527
      %p529 = scmp.eq.s32.totalorder %s45, 0
      %p530 = por %p528, %p529
      %s531 = ssub.s32 %s39, %s46
      %p532 = scmp.eq.s32.totalorder %s531, 0
      %s534 = sadd.s32 %s533, 1
      %s535 = scalar_select %p532, %s533, %s534
      %p538 = pneg %p532
      %p539 = scmp.eq.s32.totalorder %s39, 5
      %p540 = por %p538, %p539
      %p541 = scmp.ne.s32.totalorder %s533, %s536
      %p542 = scmp.eq.s32.totalorder %s39, 0
      %p543 = por %p541, %p542
      %p544 = scmp.ne.s32.totalorder %s533, %s536
      %p545 = scmp.eq.s32.totalorder %s44, 5
      %p546 = por %p544, %p545
      %p547 = scmp.ne.s32.totalorder %s536, %s537
      %p548 = scmp.eq.s32.totalorder %s44, 0
      %p549 = por %p547, %p548
      %p550 = scmp.ne.s32.totalorder %s536, %s537
      %p551 = scmp.eq.s32.totalorder %s45, 5
      %p552 = por %p550, %p551
      %p554 = scmp.ne.s32.totalorder %s537, %s553
      %p555 = scmp.eq.s32.totalorder %s45, 0
      %p556 = por %p554, %p555
      %s557 = ssub.s32 %s39, %s46
      %p558 = scmp.eq.s32.totalorder %s557, 0
      %s560 = sadd.s32 %s559, 1
      %s561 = scalar_select %p558, %s559, %s560
      %p564 = pneg %p558
      %p565 = scmp.eq.s32.totalorder %s39, 5
      %p566 = por %p564, %p565
      %p567 = scmp.ne.s32.totalorder %s559, %s562
      %p568 = scmp.eq.s32.totalorder %s39, 0
      %p569 = por %p567, %p568
      %p570 = scmp.ne.s32.totalorder %s559, %s562
      %p571 = scmp.eq.s32.totalorder %s44, 5
      %p572 = por %p570, %p571
      %p573 = scmp.ne.s32.totalorder %s562, %s563
      %p574 = scmp.eq.s32.totalorder %s44, 0
      %p575 = por %p573, %p574
      %p576 = scmp.ne.s32.totalorder %s562, %s563
      %p577 = scmp.eq.s32.totalorder %s45, 5
      %p578 = por %p576, %p577
      %p580 = scmp.ne.s32.totalorder %s563, %s579
      %p581 = scmp.eq.s32.totalorder %s45, 0
      %p582 = por %p580, %p581
      %s583 = ssub.s32 %s39, %s46
      %p584 = scmp.eq.s32.totalorder %s583, 0
      %s586 = sadd.s32 %s585, 1
      %s587 = scalar_select %p584, %s585, %s586
      %p590 = pneg %p584
      %p591 = scmp.eq.s32.totalorder %s39, 5
      %p592 = por %p590, %p591
      %p593 = scmp.ne.s32.totalorder %s585, %s588
      %p594 = scmp.eq.s32.totalorder %s39, 0
      %p595 = por %p593, %p594
      %p596 = scmp.ne.s32.totalorder %s585, %s588
      %p597 = scmp.eq.s32.totalorder %s44, 5
      %p598 = por %p596, %p597
      %p599 = scmp.ne.s32.totalorder %s588, %s589
      %p600 = scmp.eq.s32.totalorder %s44, 0
      %p601 = por %p599, %p600
      %p602 = scmp.ne.s32.totalorder %s588, %s589
      %p603 = scmp.eq.s32.totalorder %s45, 5
      %p604 = por %p602, %p603
      %p606 = scmp.ne.s32.totalorder %s589, %s605
      %p607 = scmp.eq.s32.totalorder %s45, 0
      %p608 = por %p606, %p607
      %s610 = sadd.s32 %s609, 1
      %p613 = scmp.eq.s32.totalorder %s39, 5
      %p614 = scmp.ne.s32.totalorder %s609, %s611
      %p615 = scmp.eq.s32.totalorder %s39, 0
      %p616 = por %p614, %p615
      %p617 = scmp.ne.s32.totalorder %s609, %s611
      %p618 = scmp.eq.s32.totalorder %s44, 5
      %p619 = por %p617, %p618
      %p620 = scmp.ne.s32.totalorder %s611, %s612
      %p621 = scmp.eq.s32.totalorder %s44, 0
      %p622 = por %p620, %p621
      %p623 = scmp.ne.s32.totalorder %s611, %s612
      %p624 = scmp.eq.s32.totalorder %s45, 5
      %p625 = por %p623, %p624
      %p627 = scmp.ne.s32.totalorder %s612, %s626
      %p628 = scmp.eq.s32.totalorder %s45, 0
      %p629 = por %p627, %p628
      %s631 = sadd.s32 %s630, 1
      %p634 = scmp.eq.s32.totalorder %s39, 5
      %p635 = scmp.ne.s32.totalorder %s630, %s632
      %p636 = scmp.eq.s32.totalorder %s39, 0
      %p637 = por %p635, %p636
      %p638 = scmp.ne.s32.totalorder %s630, %s632
      %p639 = scmp.eq.s32.totalorder %s44, 5
      %p640 = por %p638, %p639
      %p641 = scmp.ne.s32.totalorder %s632, %s633
      %p642 = scmp.eq.s32.totalorder %s44, 0
      %p643 = por %p641, %p642
      %p644 = scmp.ne.s32.totalorder %s632, %s633
      %p645 = scmp.eq.s32.totalorder %s45, 5
      %p646 = por %p644, %p645
      %p648 = scmp.ne.s32.totalorder %s633, %s647
      %p649 = scmp.eq.s32.totalorder %s45, 0
      %p650 = por %p648, %p649
      %s652 = sadd.s32 %s651, 1
      %p655 = scmp.eq.s32.totalorder %s39, 5
      %p656 = scmp.ne.s32.totalorder %s651, %s653
      %p657 = scmp.eq.s32.totalorder %s39, 0
      %p658 = por %p656, %p657
      %p659 = scmp.ne.s32.totalorder %s651, %s653
      %p660 = scmp.eq.s32.totalorder %s44, 5
      %p661 = por %p659, %p660
      %p662 = scmp.ne.s32.totalorder %s653, %s654
      %p663 = scmp.eq.s32.totalorder %s44, 0
      %p664 = por %p662, %p663
      %p665 = scmp.ne.s32.totalorder %s653, %s654
      %p666 = scmp.eq.s32.totalorder %s45, 5
      %p667 = por %p665, %p666
      %p669 = scmp.ne.s32.totalorder %s654, %s668
      %p670 = scmp.eq.s32.totalorder %s45, 0
      %p671 = por %p669, %p670
      %p672 = scmp.le.s32.totalorder 1, %s39
      %p673 = scmp.lt.s32.totalorder %s39, 7
      %p674 = pnand %p672, %p673
      %p675 = pneg %p674
      // Predicated region
      $region9: #{transformer_forward.3} parent=5 // pred_check
        _
      $region10: #{transformer_forward.3} parent=5 // pred_check_branch
        %677 = sbr.rel (%p674) target = $region12
      $region11: #{transformer_forward.3} parent=5 // pred_region
        %s678 = ssub.s32 %s39, 1
        // Predicated region
        $region13: #{transformer_forward.3} parent=11 // pred_check
          %p679 = pneg %p60
        $region14: #{transformer_forward.3} parent=11 // pred_check_branch
          %681 = sbr.rel (%p679) target = $region16
        $region15: #{transformer_forward.3} parent=11 // pred_region
          _
        $region16: #{transformer_forward.3} parent=11 // pred_fallthru
          _
        // Predicated region
        $region17: #{transformer_forward.3} parent=11 // pred_check
          %p682 = pneg %p81
        $region18: #{transformer_forward.3} parent=11 // pred_check_branch
          %684 = sbr.rel (%p682) target = $region20
        $region19: #{transformer_forward.3} parent=11 // pred_region
          _
        $region20: #{transformer_forward.3} parent=11 // pred_fallthru
          _
        // Predicated region
        $region21: #{transformer_forward.3} parent=11 // pred_check
          %p685 = pneg %p622
        $region22: #{transformer_forward.3} parent=11 // pred_check_branch
          %687 = sbr.rel (%p685) target = $region24
        $region23: #{transformer_forward.3} parent=11 // pred_region
          _
        $region24: #{transformer_forward.3} parent=11 // pred_fallthru
          _
        // Predicated region
        $region25: #{transformer_forward.3} parent=11 // pred_check
          %p688 = pneg %p643
        $region26: #{transformer_forward.3} parent=11 // pred_check_branch
          %690 = sbr.rel (%p688) target = $region28
        $region27: #{transformer_forward.3} parent=11 // pred_region
          _
        $region28: #{transformer_forward.3} parent=11 // pred_fallthru
          _
      $region12: #{transformer_forward.3} parent=5 // pred_fallthru
        _
      %p691 = scmp.lt.s32.totalorder %s39, 6
      // Predicated region
      $region29: #{transformer_forward.3} parent=5 // pred_check
        %p692 = pneg %p691
      $region30: #{transformer_forward.3} parent=5 // pred_check_branch
        %694 = sbr.rel (%p692) target = $region32
      $region31: #{transformer_forward.3} parent=5 // pred_region
        // Predicated region
        $region33: #{transformer_forward.3} parent=31 // pred_check
          %p695 = pneg %p101
        $region34: #{transformer_forward.3} parent=31 // pred_check_branch
          %697 = sbr.rel (%p695) target = $region36
        $region35: #{transformer_forward.3} parent=31 // pred_region
          %p698 = scmp.lt.s32.totalorder %s39, 5
          %s699 = scalar_select %p698, %s39, 5
          %s700 = smul.addr %s699, 192
          %s701 = smul.addr %s700, 4
          %s702 = scalar_lea.vmem %s2, %s701
        $region36: #{transformer_forward.3} parent=31 // pred_fallthru
          _
        // Predicated region
        $region37: #{transformer_forward.3} parent=31 // pred_check
          %p703 = pneg %p127
        $region38: #{transformer_forward.3} parent=31 // pred_check_branch
          %705 = sbr.rel (%p703) target = $region40
        $region39: #{transformer_forward.3} parent=31 // pred_region
          %p706 = scmp.lt.s32.totalorder %s39, 5
          %s707 = scalar_select %p706, %s39, 5
          %s708 = smul.addr %s707, 12
          %s709 = scalar_lea.vmem %s3, %s708
        $region40: #{transformer_forward.3} parent=31 // pred_fallthru
          _
        // Predicated region
        $region41: #{transformer_forward.3} parent=31 // pred_check
          %p710 = pneg %p153
        $region42: #{transformer_forward.3} parent=31 // pred_check_branch
          %712 = sbr.rel (%p710) target = $region44
        $region43: #{transformer_forward.3} parent=31 // pred_region
          %p713 = scmp.lt.s32.totalorder %s39, 5
          %s714 = scalar_select %p713, %s39, 5
          %s715 = smul.addr %s714, 64
          %s716 = smul.addr %s715, 4
          %s717 = scalar_lea.vmem %s4, %s716
        $region44: #{transformer_forward.3} parent=31 // pred_fallthru
          _
        // Predicated region
        $region45: #{transformer_forward.3} parent=31 // pred_check
          %p718 = pneg %p179
        $region46: #{transformer_forward.3} parent=31 // pred_check_branch
          %720 = sbr.rel (%p718) target = $region48
        $region47: #{transformer_forward.3} parent=31 // pred_region
          %p721 = scmp.lt.s32.totalorder %s39, 5
          %s722 = scalar_select %p721, %s39, 5
          %s723 = scalar_lea.vmem %s5, %s722
        $region48: #{transformer_forward.3} parent=31 // pred_fallthru
          _
        // Predicated region
        $region49: #{transformer_forward.3} parent=31 // pred_check
          %p724 = pneg %p205
        $region50: #{transformer_forward.3} parent=31 // pred_check_branch
          %726 = sbr.rel (%p724) target = $region52
        $region51: #{transformer_forward.3} parent=31 // pred_region
          %p727 = scmp.lt.s32.totalorder %s39, 5
          %s728 = scalar_select %p727, %s39, 5
          %s729 = scalar_lea.vmem %s6, %s728
        $region52: #{transformer_forward.3} parent=31 // pred_fallthru
          _
        // Predicated region
        $region53: #{transformer_forward.3} parent=31 // pred_check
          %p730 = pneg %p231
        $region54: #{transformer_forward.3} parent=31 // pred_check_branch
          %732 = sbr.rel (%p730) target = $region56
        $region55: #{transformer_forward.3} parent=31 // pred_region
          %p733 = scmp.lt.s32.totalorder %s39, 5
          %s734 = scalar_select %p733, %s39, 5
          %s735 = scalar_lea.vmem %s7, %s734
        $region56: #{transformer_forward.3} parent=31 // pred_fallthru
          _
        // Predicated region
        $region57: #{transformer_forward.3} parent=31 // pred_check
          %p736 = pneg %p257
        $region58: #{transformer_forward.3} parent=31 // pred_check_branch
          %738 = sbr.rel (%p736) target = $region60
        $region59: #{transformer_forward.3} parent=31 // pred_region
          %s739 = sand.u32 %s247, 1
          %s740 = scalar_lea.sflag [#allocation4], %s739
          %s741 = sand.u32 %s247, 1
          %s742 = smul.addr %s741, 256
          %s743 = scalar_lea.vmem [#allocation3], %s742
          %s745 = ssub.s32 4096, 4096
          %746 = vsyncadd %s740, %s745
          %s747 = smul.addr %s39, 64
          %s748 = smul.addr %s747, 64
          %s749 = scalar_lea.hbm %s8, %s748
          %s750 = sshll.u32 %s743, 4
          %s751 = int_to_ptr.vmem [resolvable:$true] %s750
          %756 = dma.hbm_to_vmem [thread:$0]  %s749, 4096, %s751, %s740, 256, 256, 16
        $region60: #{transformer_forward.3} parent=31 // pred_fallthru
          _
        // Predicated region
        $region61: #{transformer_forward.3} parent=31 // pred_check
          %p757 = pneg %p283
        $region62: #{transformer_forward.3} parent=31 // pred_check_branch
          %759 = sbr.rel (%p757) target = $region64
        $region63: #{transformer_forward.3} parent=31 // pred_region
          %p760 = scmp.lt.s32.totalorder %s39, 5
          %s761 = scalar_select %p760, %s39, 5
          %s762 = smul.addr %s761, 4
          %s763 = scalar_lea.vmem %s9, %s762
        $region64: #{transformer_forward.3} parent=31 // pred_fallthru
          _
        // Predicated region
        $region65: #{transformer_forward.3} parent=31 // pred_check
          %p764 = pneg %p309
        $region66: #{transformer_forward.3} parent=31 // pred_check_branch
          %766 = sbr.rel (%p764) target = $region68
        $region67: #{transformer_forward.3} parent=31 // pred_region
          %p767 = scmp.lt.s32.totalorder %s39, 5
          %s768 = scalar_select %p767, %s39, 5
          %s769 = smul.addr %s768, 128
          %s770 = smul.addr %s769, 4
          %s771 = scalar_lea.vmem %s10, %s770
        $region68: #{transformer_forward.3} parent=31 // pred_fallthru
          _
        // Predicated region
        $region69: #{transformer_forward.3} parent=31 // pred_check
          %p772 = pneg %p335
        $region70: #{transformer_forward.3} parent=31 // pred_check_branch
          %774 = sbr.rel (%p772) target = $region72
        $region71: #{transformer_forward.3} parent=31 // pred_region
          %p775 = scmp.lt.s32.totalorder %s39, 5
          %s776 = scalar_select %p775, %s39, 5
          %s777 = smul.addr %s776, 8
          %s778 = scalar_lea.vmem %s11, %s777
        $region72: #{transformer_forward.3} parent=31 // pred_fallthru
          _
        // Predicated region
        $region73: #{transformer_forward.3} parent=31 // pred_check
          %p779 = pneg %p361
        $region74: #{transformer_forward.3} parent=31 // pred_check_branch
          %781 = sbr.rel (%p779) target = $region76
        $region75: #{transformer_forward.3} parent=31 // pred_region
          %s782 = sand.u32 %s39, 1
          %s783 = scalar_lea.sflag [#allocation6], %s782
          %s784 = sand.u32 %s351, 1
          %s785 = smul.addr %s784, 256
          %s786 = scalar_lea.vmem [#allocation5], %s785
          %s788 = ssub.s32 4096, 4096
          %789 = vsyncadd %s783, %s788
          %s790 = smul.addr %s39, 64
          %s791 = smul.addr %s790, 64
          %s792 = scalar_lea.hbm %s12, %s791
          %s793 = sshll.u32 %s786, 4
          %s794 = int_to_ptr.vmem [resolvable:$true] %s793
          %799 = dma.hbm_to_vmem [thread:$0]  %s792, 4096, %s794, %s783, 64, 64, 4
        $region76: #{transformer_forward.3} parent=31 // pred_fallthru
          _
        // Predicated region
        $region77: #{transformer_forward.3} parent=31 // pred_check
          %p800 = pneg %p387
        $region78: #{transformer_forward.3} parent=31 // pred_check_branch
          %802 = sbr.rel (%p800) target = $region80
        $region79: #{transformer_forward.3} parent=31 // pred_region
          %p803 = scmp.lt.s32.totalorder %s39, 5
          %s804 = scalar_select %p803, %s39, 5
          %s805 = scalar_lea.vmem %s13, %s804
        $region80: #{transformer_forward.3} parent=31 // pred_fallthru
          _
        // Predicated region
        $region81: #{transformer_forward.3} parent=31 // pred_check
          %p806 = pneg %p413
        $region82: #{transformer_forward.3} parent=31 // pred_check_branch
          %808 = sbr.rel (%p806) target = $region84
        $region83: #{transformer_forward.3} parent=31 // pred_region
          %p809 = scmp.lt.s32.totalorder %s39, 5
          %s810 = scalar_select %p809, %s39, 5
          %s811 = scalar_lea.vmem %s14, %s810
        $region84: #{transformer_forward.3} parent=31 // pred_fallthru
          _
        // Predicated region
        $region85: #{transformer_forward.3} parent=31 // pred_check
          %p812 = pneg %p439
        $region86: #{transformer_forward.3} parent=31 // pred_check_branch
          %814 = sbr.rel (%p812) target = $region88
        $region87: #{transformer_forward.3} parent=31 // pred_region
          %p815 = scmp.lt.s32.totalorder %s39, 5
          %s816 = scalar_select %p815, %s39, 5
          %s817 = scalar_lea.vmem %s15, %s816
        $region88: #{transformer_forward.3} parent=31 // pred_fallthru
          _
        // Predicated region
        $region89: #{transformer_forward.3} parent=31 // pred_check
          %p818 = pneg %p465
        $region90: #{transformer_forward.3} parent=31 // pred_check_branch
          %820 = sbr.rel (%p818) target = $region92
        $region91: #{transformer_forward.3} parent=31 // pred_region
          %s821 = sand.u32 %s39, 1
          %s822 = scalar_lea.sflag [#allocation6], %s821
          %s823 = sand.u32 %s455, 1
          %s824 = smul.addr %s823, 256
          %s825 = scalar_lea.vmem [#allocation7], %s824
          %s827 = ssub.s32 4096, 4096
          %828 = vsyncadd %s822, %s827
          %s829 = smul.addr %s39, 64
          %s830 = smul.addr %s829, 64
          %s831 = scalar_lea.hbm %s16, %s830
          %s832 = sshll.u32 %s825, 4
          %s833 = int_to_ptr.vmem [resolvable:$true] %s832
          %838 = dma.hbm_to_vmem [thread:$0]  %s831, 4096, %s833, %s822, 256, 256, 16
        $region92: #{transformer_forward.3} parent=31 // pred_fallthru
          _
        // Predicated region
        $region93: #{transformer_forward.3} parent=31 // pred_check
          %p839 = pneg %p491
        $region94: #{transformer_forward.3} parent=31 // pred_check_branch
          %841 = sbr.rel (%p839) target = $region96
        $region95: #{transformer_forward.3} parent=31 // pred_region
          %p842 = scmp.lt.s32.totalorder %s39, 5
          %s843 = scalar_select %p842, %s39, 5
          %s844 = smul.addr %s843, 4
          %s845 = scalar_lea.vmem %s17, %s844
        $region96: #{transformer_forward.3} parent=31 // pred_fallthru
          _
        // Predicated region
        $region97: #{transformer_forward.3} parent=31 // pred_check
          %p846 = pneg %p517
        $region98: #{transformer_forward.3} parent=31 // pred_check_branch
          %848 = sbr.rel (%p846) target = $region100
        $region99: #{transformer_forward.3} parent=31 // pred_region
          %s849 = sand.u32 %s507, 1
          %s850 = scalar_lea.sflag [#allocation9], %s849
          %s851 = sand.u32 %s507, 1
          %s852 = smul.addr %s851, 256
          %s853 = scalar_lea.vmem [#allocation8], %s852
          %s855 = ssub.s32 4096, 4096
          %856 = vsyncadd %s850, %s855
          %s857 = smul.addr %s39, 64
          %s858 = smul.addr %s857, 64
          %s859 = scalar_lea.hbm %s18, %s858
          %s860 = sshll.u32 %s853, 4
          %s861 = int_to_ptr.vmem [resolvable:$true] %s860
          %866 = dma.hbm_to_vmem [thread:$0]  %s859, 4096, %s861, %s850, 64, 64, 4
        $region100: #{transformer_forward.3} parent=31 // pred_fallthru
          _
        // Predicated region
        $region101: #{transformer_forward.3} parent=31 // pred_check
          %p867 = pneg %p543
        $region102: #{transformer_forward.3} parent=31 // pred_check_branch
          %869 = sbr.rel (%p867) target = $region104
        $region103: #{transformer_forward.3} parent=31 // pred_region
          %p870 = scmp.lt.s32.totalorder %s39, 5
          %s871 = scalar_select %p870, %s39, 5
          %s872 = scalar_lea.vmem %s19, %s871
        $region104: #{transformer_forward.3} parent=31 // pred_fallthru
          _
        // Predicated region
        $region105: #{transformer_forward.3} parent=31 // pred_check
          %p873 = pneg %p569
        $region106: #{transformer_forward.3} parent=31 // pred_check_branch
          %875 = sbr.rel (%p873) target = $region108
        $region107: #{transformer_forward.3} parent=31 // pred_region
          %p876 = scmp.lt.s32.totalorder %s39, 5
          %s877 = scalar_select %p876, %s39, 5
          %s878 = scalar_lea.vmem %s20, %s877
        $region108: #{transformer_forward.3} parent=31 // pred_fallthru
          _
        // Predicated region
        $region109: #{transformer_forward.3} parent=31 // pred_check
          %p879 = pneg %p595
        $region110: #{transformer_forward.3} parent=31 // pred_check_branch
          %881 = sbr.rel (%p879) target = $region112
        $region111: #{transformer_forward.3} parent=31 // pred_region
          %p882 = scmp.lt.s32.totalorder %s39, 5
          %s883 = scalar_select %p882, %s39, 5
          %s884 = scalar_lea.vmem %s21, %s883
        $region112: #{transformer_forward.3} parent=31 // pred_fallthru
          _
      $region32: #{transformer_forward.3} parent=5 // pred_fallthru
        _
      %p885 = scmp.le.s32.totalorder 1, %s39
      %p886 = scmp.lt.s32.totalorder %s39, 7
      %p887 = pnand %p885, %p886
      %p888 = pneg %p887
      // Predicated region
      $region113: #{transformer_forward.3} parent=5 // pred_check
        _
      $region114: #{transformer_forward.3} parent=5 // pred_check_branch
        %890 = sbr.rel (%p887) target = $region116
      $region115: #{transformer_forward.3} parent=5 // pred_region
        %s891 = ssub.s32 %s39, 1
        %s892 = sand.u32 %s250, 1
        %s893 = scalar_lea.sflag [#allocation4], %s892
        %s894 = sand.u32 %s250, 1
        %s895 = smul.addr %s894, 256
        %s896 = scalar_lea.vmem [#allocation3], %s895
        // Predicated region
        $region117: #{transformer_forward.3} parent=115 // pred_check
          %p897 = pneg %p263
        $region118: #{transformer_forward.3} parent=115 // pred_check_branch
          %899 = sbr.rel (%p897) target = $region120
        $region119: #{transformer_forward.3} parent=115 // pred_region
          %900 = dma.done %s893, 4096
        $region120: #{transformer_forward.3} parent=115 // pred_fallthru
          _
        %s901 = sand.u32 %s44, 1
        %s902 = scalar_lea.sflag [#allocation6], %s901
        %s903 = sand.u32 %s354, 1
        %s904 = smul.addr %s903, 256
        %s905 = scalar_lea.vmem [#allocation5], %s904
        // Predicated region
        $region121: #{transformer_forward.3} parent=115 // pred_check
          %p906 = pneg %p367
        $region122: #{transformer_forward.3} parent=115 // pred_check_branch
          %908 = sbr.rel (%p906) target = $region124
        $region123: #{transformer_forward.3} parent=115 // pred_region
          %909 = dma.done %s902, 4096
        $region124: #{transformer_forward.3} parent=115 // pred_fallthru
          _
        %s910 = sand.u32 %s44, 1
        %s911 = scalar_lea.sflag [#allocation6], %s910
        %s912 = sand.u32 %s458, 1
        %s913 = smul.addr %s912, 256
        %s914 = scalar_lea.vmem [#allocation7], %s913
        // Predicated region
        $region125: #{transformer_forward.3} parent=115 // pred_check
          %p915 = pneg %p471
        $region126: #{transformer_forward.3} parent=115 // pred_check_branch
          %917 = sbr.rel (%p915) target = $region128
        $region127: #{transformer_forward.3} parent=115 // pred_region
          %918 = dma.done %s911, 4096
        $region128: #{transformer_forward.3} parent=115 // pred_fallthru
          _
        %s919 = sand.u32 %s510, 1
        %s920 = scalar_lea.sflag [#allocation9], %s919
        %s921 = sand.u32 %s510, 1
        %s922 = smul.addr %s921, 256
        %s923 = scalar_lea.vmem [#allocation8], %s922
        // Predicated region
        $region129: #{transformer_forward.3} parent=115 // pred_check
          %p924 = pneg %p523
        $region130: #{transformer_forward.3} parent=115 // pred_check_branch
          %926 = sbr.rel (%p924) target = $region132
        $region131: #{transformer_forward.3} parent=115 // pred_region
          %927 = dma.done %s920, 4096
        $region132: #{transformer_forward.3} parent=115 // pred_fallthru
          _
        %p928 = pneg %p60
        %p929 = pneg %p57
        %p930 = pneg %p81
        %p931 = pneg %p78
        %p932 = scmp.lt.s32.totalorder %s44, 5
        %s933 = scalar_select %p932, %s44, 5
        %s934 = smul.addr %s933, 192
        %s935 = smul.addr %s934, 4
        %s936 = scalar_lea.vmem %s2, %s935
        %p937 = pneg %p107
        %p938 = pneg %p104
        %p939 = scmp.lt.s32.totalorder %s44, 5
        %s940 = scalar_select %p939, %s44, 5
        %s941 = smul.addr %s940, 12
        %s942 = scalar_lea.vmem %s3, %s941
        %p943 = pneg %p133
        %p944 = pneg %p130
        %p945 = scmp.lt.s32.totalorder %s44, 5
        %s946 = scalar_select %p945, %s44, 5
        %s947 = smul.addr %s946, 64
        %s948 = smul.addr %s947, 4
        %s949 = scalar_lea.vmem %s4, %s948
        %p950 = pneg %p159
        %p951 = pneg %p156
        %p952 = scmp.lt.s32.totalorder %s44, 5
        %s953 = scalar_select %p952, %s44, 5
        %s954 = scalar_lea.vmem %s5, %s953
        %p955 = pneg %p185
        %p956 = pneg %p182
        %p957 = scmp.lt.s32.totalorder %s44, 5
        %s958 = scalar_select %p957, %s44, 5
        %s959 = scalar_lea.vmem %s6, %s958
        %p960 = pneg %p211
        %p961 = pneg %p208
        %p962 = scmp.lt.s32.totalorder %s44, 5
        %s963 = scalar_select %p962, %s44, 5
        %s964 = scalar_lea.vmem %s7, %s963
        %p965 = pneg %p237
        %p966 = pneg %p234
        %s967 = sand.u32 %s250, 1
        %s968 = scalar_lea.sflag [#allocation4], %s967
        %s969 = sand.u32 %s250, 1
        %s970 = smul.addr %s969, 256
        %s971 = scalar_lea.vmem [#allocation3], %s970
        %p972 = pneg %p263
        %p973 = pneg %p260
        %p974 = scmp.lt.s32.totalorder %s44, 5
        %s975 = scalar_select %p974, %s44, 5
        %s976 = smul.addr %s975, 4
        %s977 = scalar_lea.vmem %s9, %s976
        %p978 = pneg %p289
        %p979 = pneg %p286
        %p980 = scmp.lt.s32.totalorder %s44, 5
        %s981 = scalar_select %p980, %s44, 5
        %s982 = smul.addr %s981, 128
        %s983 = smul.addr %s982, 4
        %s984 = scalar_lea.vmem %s10, %s983
        %p985 = pneg %p315
        %p986 = pneg %p312
        %p987 = scmp.lt.s32.totalorder %s44, 5
        %s988 = scalar_select %p987, %s44, 5
        %s989 = smul.addr %s988, 8
        %s990 = scalar_lea.vmem %s11, %s989
        %p991 = pneg %p341
        %p992 = pneg %p338
        %s993 = sand.u32 %s44, 1
        %s994 = scalar_lea.sflag [#allocation6], %s993
        %s995 = sand.u32 %s354, 1
        %s996 = smul.addr %s995, 256
        %s997 = scalar_lea.vmem [#allocation5], %s996
        %p998 = pneg %p367
        %p999 = pneg %p364
        %p1000 = scmp.lt.s32.totalorder %s44, 5
        %s1001 = scalar_select %p1000, %s44, 5
        %s1002 = scalar_lea.vmem %s13, %s1001
        %p1003 = pneg %p393
        %p1004 = pneg %p390
        %p1005 = scmp.lt.s32.totalorder %s44, 5
        %s1006 = scalar_select %p1005, %s44, 5
        %s1007 = scalar_lea.vmem %s14, %s1006
        %p1008 = pneg %p419
        %p1009 = pneg %p416
        %p1010 = scmp.lt.s32.totalorder %s44, 5
        %s1011 = scalar_select %p1010, %s44, 5
        %s1012 = scalar_lea.vmem %s15, %s1011
        %p1013 = pneg %p445
        %p1014 = pneg %p442
        %s1015 = sand.u32 %s44, 1
        %s1016 = scalar_lea.sflag [#allocation6], %s1015
        %s1017 = sand.u32 %s458, 1
        %s1018 = smul.addr %s1017, 256
        %s1019 = scalar_lea.vmem [#allocation7], %s1018
        %p1020 = pneg %p471
        %p1021 = pneg %p468
        %p1022 = scmp.lt.s32.totalorder %s44, 5
        %s1023 = scalar_select %p1022, %s44, 5
        %s1024 = smul.addr %s1023, 4
        %s1025 = scalar_lea.vmem %s17, %s1024
        %p1026 = pneg %p497
        %p1027 = pneg %p494
        %s1028 = sand.u32 %s510, 1
        %s1029 = scalar_lea.sflag [#allocation9], %s1028
        %s1030 = sand.u32 %s510, 1
        %s1031 = smul.addr %s1030, 256
        %s1032 = scalar_lea.vmem [#allocation8], %s1031
        %p1033 = pneg %p523
        %p1034 = pneg %p520
        %p1035 = scmp.lt.s32.totalorder %s44, 5
        %s1036 = scalar_select %p1035, %s44, 5
        %s1037 = scalar_lea.vmem %s19, %s1036
        %p1038 = pneg %p549
        %p1039 = pneg %p546
        %p1040 = scmp.lt.s32.totalorder %s44, 5
        %s1041 = scalar_select %p1040, %s44, 5
        %s1042 = scalar_lea.vmem %s20, %s1041
        %p1043 = pneg %p575
        %p1044 = pneg %p572
        %p1045 = scmp.lt.s32.totalorder %s44, 5
        %s1046 = scalar_select %p1045, %s44, 5
        %s1047 = scalar_lea.vmem %s21, %s1046
        %p1048 = pneg %p601
        %p1049 = pneg %p598
        %p1050 = pneg %p622
        %p1051 = pneg %p619
        %p1052 = pneg %p643
        %p1053 = pneg %p640
        %p1054 = pneg %p664
        %p1055 = pneg %p661
        %p1056 = scmp.lt.s32.totalorder %s44, 5
        %s1057 = scalar_select %p1056, %s44, 5
        %s1058 = smul.addr %s1057, 192
        %s1059 = smul.addr %s1058, 4
        %s1060 = scalar_lea.vmem %s2, %s1059
        %p1061 = scmp.lt.s32.totalorder %s44, 5
        %s1062 = scalar_select %p1061, %s44, 5
        %s1063 = smul.addr %s1062, 12
        %s1064 = scalar_lea.vmem %s3, %s1063
        %p1065 = scmp.lt.s32.totalorder %s44, 5
        %s1066 = scalar_select %p1065, %s44, 5
        %s1067 = smul.addr %s1066, 64
        %s1068 = smul.addr %s1067, 4
        %s1069 = scalar_lea.vmem %s4, %s1068
        %p1070 = scmp.lt.s32.totalorder %s44, 5
        %s1071 = scalar_select %p1070, %s44, 5
        %s1072 = scalar_lea.vmem %s5, %s1071
        %p1073 = scmp.lt.s32.totalorder %s44, 5
        %s1074 = scalar_select %p1073, %s44, 5
        %s1075 = scalar_lea.vmem %s6, %s1074
        %p1076 = scmp.lt.s32.totalorder %s44, 5
        %s1077 = scalar_select %p1076, %s44, 5
        %s1078 = scalar_lea.vmem %s7, %s1077
        %p1079 = scmp.lt.s32.totalorder %s44, 5
        %s1080 = scalar_select %p1079, %s44, 5
        %s1081 = smul.addr %s1080, 4
        %s1082 = scalar_lea.vmem %s9, %s1081
        %p1083 = scmp.lt.s32.totalorder %s44, 5
        %s1084 = scalar_select %p1083, %s44, 5
        %s1085 = smul.addr %s1084, 128
        %s1086 = smul.addr %s1085, 4
        %s1087 = scalar_lea.vmem %s10, %s1086
        %p1088 = scmp.lt.s32.totalorder %s44, 5
        %s1089 = scalar_select %p1088, %s44, 5
        %s1090 = smul.addr %s1089, 8
        %s1091 = scalar_lea.vmem %s11, %s1090
        %p1092 = scmp.lt.s32.totalorder %s44, 5
        %s1093 = scalar_select %p1092, %s44, 5
        %s1094 = scalar_lea.vmem %s13, %s1093
        %p1095 = scmp.lt.s32.totalorder %s44, 5
        %s1096 = scalar_select %p1095, %s44, 5
        %s1097 = scalar_lea.vmem %s14, %s1096
        %p1098 = scmp.lt.s32.totalorder %s44, 5
        %s1099 = scalar_select %p1098, %s44, 5
        %s1100 = scalar_lea.vmem %s15, %s1099
        %p1101 = scmp.lt.s32.totalorder %s44, 5
        %s1102 = scalar_select %p1101, %s44, 5
        %s1103 = smul.addr %s1102, 4
        %s1104 = scalar_lea.vmem %s17, %s1103
        %p1105 = scmp.lt.s32.totalorder %s44, 5
        %s1106 = scalar_select %p1105, %s44, 5
        %s1107 = scalar_lea.vmem %s19, %s1106
        %p1108 = scmp.lt.s32.totalorder %s44, 5
        %s1109 = scalar_select %p1108, %s44, 5
        %s1110 = scalar_lea.vmem %s20, %s1109
        %p1111 = scmp.lt.s32.totalorder %s44, 5
        %s1112 = scalar_select %p1111, %s44, 5
        %s1113 = scalar_lea.vmem %s21, %s1112
        %p1115 = scmp.eq.s32.totalorder %s44, 0
        // Predicated region
        $region133: #{transformer_forward.3} parent=115 // pred_check
          %p1116 = pneg %p1115
        $region134: #{transformer_forward.3} parent=115 // pred_check_branch
          %1118 = sbr.rel (%p1116) target = $region136
        $region135: #{transformer_forward.3} parent=115 // pred_region
          %v1119 = vld [vmem:[%s0] sm:$0xff]
          %v1120 = vld [vmem:[%s0 + $0x8] sm:$0xff]
          %1121 = vst [vmem:[#allocation2] sm:$0xff] %v1119
          %1122 = vst [vmem:[#allocation2 + $0x8] sm:$0xff] %v1120
        $region136: #{transformer_forward.3} parent=115 // pred_fallthru
          _
        %v1123 = vld [vmem:[#allocation2] sm:$0xff]
        %v1124 = vld [vmem:[#allocation2 + $0x8] sm:$0xff]
        %v1125 = vld [vmem:[%s1] sm:$0xff]
        %v1126 = vld [vmem:[%s1 + $0x8] sm:$0xff]
        %v1127 = vlaneseq
        %v1128 = vshrl.u32 %v1127, 7
        %v1129 = vlaneseq
        %v1130 = vand.u32 %v1129, 127
        %vm1131 = vcmp.gt.s32.totalorder %v1130, %v1128
        %v1132 = vsel %vm1131, -inf, 0.0
        %v1133 = vpack.c.bf16 %v1124, %v1123
        %v1134 = vld [vmem:[%s1060] sm:$0xff]
        %v1135 = vld [vmem:[%s1060 + $0x8] sm:$0xff]
        %v1136 = vld [vmem:[%s1060 + $0x10] sm:$0xff]
        %v1137 = vld [vmem:[%s1060 + $0x18] sm:$0xff]
        %v1138 = vld [vmem:[%s1060 + $0x20] sm:$0xff]
        %v1139 = vld [vmem:[%s1060 + $0x28] sm:$0xff]
        %v1140 = vld [vmem:[%s1060 + $0x30] sm:$0xff]
        %v1141 = vld [vmem:[%s1060 + $0x38] sm:$0xff]
        %v1142 = vld [vmem:[%s1060 + $0x40] sm:$0xff]
        %v1143 = vld [vmem:[%s1060 + $0x48] sm:$0xff]
        %v1144 = vld [vmem:[%s1060 + $0x50] sm:$0xff]
        %v1145 = vld [vmem:[%s1060 + $0x58] sm:$0xff]
        %v1146 = vld [vmem:[%s1060 + $0x60] sm:$0xff]
        %v1147 = vld [vmem:[%s1060 + $0x68] sm:$0xff]
        %v1148 = vld [vmem:[%s1060 + $0x70] sm:$0xff]
        %v1149 = vld [vmem:[%s1060 + $0x78] sm:$0xff]
        %v1150 = vld [vmem:[%s1060 + $0x80] sm:$0xff]
        %v1151 = vld [vmem:[%s1060 + $0x88] sm:$0xff]
        %v1152 = vld [vmem:[%s1060 + $0x90] sm:$0xff]
        %v1153 = vld [vmem:[%s1060 + $0x98] sm:$0xff]
        %v1154 = vld [vmem:[%s1060 + $0xa0] sm:$0xff]
        %v1155 = vld [vmem:[%s1060 + $0xa8] sm:$0xff]
        %v1156 = vld [vmem:[%s1060 + $0xb0] sm:$0xff]
        %v1157 = vld [vmem:[%s1060 + $0xb8] sm:$0xff]
        %v1158 = vld [vmem:[%s1060 + $0xc0] sm:$0xff]
        %v1159 = vld [vmem:[%s1060 + $0xc8] sm:$0xff]
        %v1160 = vld [vmem:[%s1060 + $0xd0] sm:$0xff]
        %v1161 = vld [vmem:[%s1060 + $0xd8] sm:$0xff]
        %v1162 = vld [vmem:[%s1060 + $0xe0] sm:$0xff]
        %v1163 = vld [vmem:[%s1060 + $0xe8] sm:$0xff]
        %v1164 = vld [vmem:[%s1060 + $0xf0] sm:$0xff]
        %v1165 = vld [vmem:[%s1060 + $0xf8] sm:$0xff]
        %v1166 = vld [vmem:[%s1060 + $0x100] sm:$0xff]
        %v1167 = vld [vmem:[%s1060 + $0x108] sm:$0xff]
        %v1168 = vld [vmem:[%s1060 + $0x110] sm:$0xff]
        %v1169 = vld [vmem:[%s1060 + $0x118] sm:$0xff]
        %v1170 = vld [vmem:[%s1060 + $0x120] sm:$0xff]
        %v1171 = vld [vmem:[%s1060 + $0x128] sm:$0xff]
        %v1172 = vld [vmem:[%s1060 + $0x130] sm:$0xff]
        %v1173 = vld [vmem:[%s1060 + $0x138] sm:$0xff]
        %v1174 = vld [vmem:[%s1060 + $0x140] sm:$0xff]
        %v1175 = vld [vmem:[%s1060 + $0x148] sm:$0xff]
        %v1176 = vld [vmem:[%s1060 + $0x150] sm:$0xff]
        %v1177 = vld [vmem:[%s1060 + $0x158] sm:$0xff]
        %v1178 = vld [vmem:[%s1060 + $0x160] sm:$0xff]
        %v1179 = vld [vmem:[%s1060 + $0x168] sm:$0xff]
        %v1180 = vld [vmem:[%s1060 + $0x170] sm:$0xff]
        %v1181 = vld [vmem:[%s1060 + $0x178] sm:$0xff]
        %v1182 = vld [vmem:[%s1060 + $0x180] sm:$0xff]
        %v1183 = vld [vmem:[%s1060 + $0x188] sm:$0xff]
        %v1184 = vld [vmem:[%s1060 + $0x190] sm:$0xff]
        %v1185 = vld [vmem:[%s1060 + $0x198] sm:$0xff]
        %v1186 = vld [vmem:[%s1060 + $0x1a0] sm:$0xff]
        %v1187 = vld [vmem:[%s1060 + $0x1a8] sm:$0xff]
        %v1188 = vld [vmem:[%s1060 + $0x1b0] sm:$0xff]
        %v1189 = vld [vmem:[%s1060 + $0x1b8] sm:$0xff]
        %v1190 = vld [vmem:[%s1060 + $0x1c0] sm:$0xff]
        %v1191 = vld [vmem:[%s1060 + $0x1c8] sm:$0xff]
        %v1192 = vld [vmem:[%s1060 + $0x1d0] sm:$0xff]
        %v1193 = vld [vmem:[%s1060 + $0x1d8] sm:$0xff]
        %v1194 = vld [vmem:[%s1060 + $0x1e0] sm:$0xff]
        %v1195 = vld [vmem:[%s1060 + $0x1e8] sm:$0xff]
        %v1196 = vld [vmem:[%s1060 + $0x1f0] sm:$0xff]
        %v1197 = vld [vmem:[%s1060 + $0x1f8] sm:$0xff]
        %v1198 = vld [vmem:[%s1060 + $0x200] sm:$0xff]
        %v1199 = vld [vmem:[%s1060 + $0x208] sm:$0xff]
        %v1200 = vld [vmem:[%s1060 + $0x210] sm:$0xff]
        %v1201 = vld [vmem:[%s1060 + $0x218] sm:$0xff]
        %v1202 = vld [vmem:[%s1060 + $0x220] sm:$0xff]
        %v1203 = vld [vmem:[%s1060 + $0x228] sm:$0xff]
        %v1204 = vld [vmem:[%s1060 + $0x230] sm:$0xff]
        %v1205 = vld [vmem:[%s1060 + $0x238] sm:$0xff]
        %v1206 = vld [vmem:[%s1060 + $0x240] sm:$0xff]
        %v1207 = vld [vmem:[%s1060 + $0x248] sm:$0xff]
        %v1208 = vld [vmem:[%s1060 + $0x250] sm:$0xff]
        %v1209 = vld [vmem:[%s1060 + $0x258] sm:$0xff]
        %v1210 = vld [vmem:[%s1060 + $0x260] sm:$0xff]
        %v1211 = vld [vmem:[%s1060 + $0x268] sm:$0xff]
        %v1212 = vld [vmem:[%s1060 + $0x270] sm:$0xff]
        %v1213 = vld [vmem:[%s1060 + $0x278] sm:$0xff]
        %v1214 = vld [vmem:[%s1060 + $0x280] sm:$0xff]
        %v1215 = vld [vmem:[%s1060 + $0x288] sm:$0xff]
        %v1216 = vld [vmem:[%s1060 + $0x290] sm:$0xff]
        %v1217 = vld [vmem:[%s1060 + $0x298] sm:$0xff]
        %v1218 = vld [vmem:[%s1060 + $0x2a0] sm:$0xff]
        %v1219 = vld [vmem:[%s1060 + $0x2a8] sm:$0xff]
        %v1220 = vld [vmem:[%s1060 + $0x2b0] sm:$0xff]
        %v1221 = vld [vmem:[%s1060 + $0x2b8] sm:$0xff]
        %v1222 = vld [vmem:[%s1060 + $0x2c0] sm:$0xff]
        %v1223 = vld [vmem:[%s1060 + $0x2c8] sm:$0xff]
        %v1224 = vld [vmem:[%s1060 + $0x2d0] sm:$0xff]
        %v1225 = vld [vmem:[%s1060 + $0x2d8] sm:$0xff]
        %v1226 = vld [vmem:[%s1060 + $0x2e0] sm:$0xff]
        %v1227 = vld [vmem:[%s1060 + $0x2e8] sm:$0xff]
        %v1228 = vld [vmem:[%s1060 + $0x2f0] sm:$0xff]
        %v1229 = vld [vmem:[%s1060 + $0x2f8] sm:$0xff]
        %v1230 = vld [vmem:[%s1064] sm:$0xff]
        %v1231 = vld [vmem:[%s1064 + $0x8] sm:$0xf]
        %v1234 = vlaneseq
        %v1235 = vshrl.u32 %v1234, 7
        %v1236 = vsub.s32 0, %v1235
        %v1237 = vrot.slane %v1230, %v1236
        %v1238 = vlaneseq
        %v1239 = vshrl.u32 %v1238, 7
        %v1240 = vsub.s32 1, %v1239
        %v1241 = vrot.slane %v1230, %v1240
        %v1242 = vlaneseq
        %v1243 = vshrl.u32 %v1242, 7
        %v1244 = vsub.s32 2, %v1243
        %v1245 = vrot.slane %v1230, %v1244
        %v1246 = vlaneseq
        %v1247 = vshrl.u32 %v1246, 7
        %v1248 = vsub.s32 3, %v1247
        %v1249 = vrot.slane %v1230, %v1248
        %v1250 = vlaneseq
        %v1251 = vshrl.u32 %v1250, 7
        %v1252 = vsub.s32 4, %v1251
        %v1253 = vrot.slane %v1230, %v1252
        %v1254 = vlaneseq
        %v1255 = vshrl.u32 %v1254, 7
        %v1256 = vsub.s32 5, %v1255
        %v1257 = vrot.slane %v1230, %v1256
        %v1258 = vlaneseq
        %v1259 = vshrl.u32 %v1258, 7
        %v1260 = vsub.s32 6, %v1259
        %v1261 = vrot.slane %v1230, %v1260
        %v1262 = vlaneseq
        %v1263 = vshrl.u32 %v1262, 7
        %v1264 = vsub.s32 7, %v1263
        %v1265 = vrot.slane %v1230, %v1264
        %v1266 = vlaneseq
        %v1267 = vshrl.u32 %v1266, 7
        %v1268 = vsub.s32 0, %v1267
        %v1269 = vrot.slane %v1231, %v1268
        %v1270 = vlaneseq
        %v1271 = vshrl.u32 %v1270, 7
        %v1272 = vsub.s32 1, %v1271
        %v1273 = vrot.slane %v1231, %v1272
        %v1274 = vlaneseq
        %v1275 = vshrl.u32 %v1274, 7
        %v1276 = vsub.s32 2, %v1275
        %v1277 = vrot.slane %v1231, %v1276
        %v1278 = vlaneseq
        %v1279 = vshrl.u32 %v1278, 7
        %v1280 = vsub.s32 3, %v1279
        %v1281 = vrot.slane %v1231, %v1280
        %v1390 = vunpack.c.l.b16 %v1134
        %v1391 = vunpack.c.h.b16 %v1134
        %v1392 = vunpack.c.l.b16 %v1135
        %v1393 = vunpack.c.h.b16 %v1135
        %v1394 = vunpack.c.l.b16 %v1136
        %v1395 = vunpack.c.h.b16 %v1136
        %v1396 = vunpack.c.l.b16 %v1137
        %v1397 = vunpack.c.h.b16 %v1137
        %v1398 = vunpack.c.l.b16 %v1138
        %v1399 = vunpack.c.h.b16 %v1138
        %v1400 = vunpack.c.l.b16 %v1139
        %v1401 = vunpack.c.h.b16 %v1139
        %v1402 = vunpack.c.l.b16 %v1140
        %v1403 = vunpack.c.h.b16 %v1140
        %v1404 = vunpack.c.l.b16 %v1141
        %v1405 = vunpack.c.h.b16 %v1141
        %v1406 = vunpack.c.l.b16 %v1142
        %v1407 = vunpack.c.h.b16 %v1142
        %v1408 = vunpack.c.l.b16 %v1143
        %v1409 = vunpack.c.h.b16 %v1143
        %v1410 = vunpack.c.l.b16 %v1144
        %v1411 = vunpack.c.h.b16 %v1144
        %v1412 = vunpack.c.l.b16 %v1145
        %v1413 = vunpack.c.h.b16 %v1145
        %v1414 = vunpack.c.l.b16 %v1146
        %v1415 = vunpack.c.h.b16 %v1146
        %v1416 = vunpack.c.l.b16 %v1147
        %v1417 = vunpack.c.h.b16 %v1147
        %v1418 = vunpack.c.l.b16 %v1148
        %v1419 = vunpack.c.h.b16 %v1148
        %v1420 = vunpack.c.l.b16 %v1149
        %v1421 = vunpack.c.h.b16 %v1149
        %v1422 = vunpack.c.l.b16 %v1150
        %v1423 = vunpack.c.h.b16 %v1150
        %v1424 = vunpack.c.l.b16 %v1151
        %v1425 = vunpack.c.h.b16 %v1151
        %v1426 = vunpack.c.l.b16 %v1152
        %v1427 = vunpack.c.h.b16 %v1152
        %v1428 = vunpack.c.l.b16 %v1153
        %v1429 = vunpack.c.h.b16 %v1153
        %v1430 = vunpack.c.l.b16 %v1154
        %v1431 = vunpack.c.h.b16 %v1154
        %v1432 = vunpack.c.l.b16 %v1155
        %v1433 = vunpack.c.h.b16 %v1155
        %v1434 = vunpack.c.l.b16 %v1156
        %v1435 = vunpack.c.h.b16 %v1156
        %v1436 = vunpack.c.l.b16 %v1157
        %v1437 = vunpack.c.h.b16 %v1157
        %v1438 = vunpack.c.l.b16 %v1158
        %v1439 = vunpack.c.h.b16 %v1158
        %v1440 = vunpack.c.l.b16 %v1159
        %v1441 = vunpack.c.h.b16 %v1159
        %v1442 = vunpack.c.l.b16 %v1160
        %v1443 = vunpack.c.h.b16 %v1160
        %v1444 = vunpack.c.l.b16 %v1161
        %v1445 = vunpack.c.h.b16 %v1161
        %v1446 = vunpack.c.l.b16 %v1162
        %v1447 = vunpack.c.h.b16 %v1162
        %v1448 = vunpack.c.l.b16 %v1163
        %v1449 = vunpack.c.h.b16 %v1163
        %v1450 = vunpack.c.l.b16 %v1164
        %v1451 = vunpack.c.h.b16 %v1164
        %v1452 = vunpack.c.l.b16 %v1165
        %v1453 = vunpack.c.h.b16 %v1165
        %v1454 = vunpack.c.l.b16 %v1166
        %v1455 = vunpack.c.h.b16 %v1166
        %v1456 = vunpack.c.l.b16 %v1167
        %v1457 = vunpack.c.h.b16 %v1167
        %v1458 = vunpack.c.l.b16 %v1168
        %v1459 = vunpack.c.h.b16 %v1168
        %v1460 = vunpack.c.l.b16 %v1169
        %v1461 = vunpack.c.h.b16 %v1169
        %v1462 = vunpack.c.l.b16 %v1170
        %v1463 = vunpack.c.h.b16 %v1170
        %v1464 = vunpack.c.l.b16 %v1171
        %v1465 = vunpack.c.h.b16 %v1171
        %v1466 = vunpack.c.l.b16 %v1172
        %v1467 = vunpack.c.h.b16 %v1172
        %v1468 = vunpack.c.l.b16 %v1173
        %v1469 = vunpack.c.h.b16 %v1173
        %v1470 = vunpack.c.l.b16 %v1174
        %v1471 = vunpack.c.h.b16 %v1174
        %v1472 = vunpack.c.l.b16 %v1175
        %v1473 = vunpack.c.h.b16 %v1175
        %v1474 = vunpack.c.l.b16 %v1176
        %v1475 = vunpack.c.h.b16 %v1176
        %v1476 = vunpack.c.l.b16 %v1177
        %v1477 = vunpack.c.h.b16 %v1177
        %v1478 = vunpack.c.l.b16 %v1178
        %v1479 = vunpack.c.h.b16 %v1178
        %v1480 = vunpack.c.l.b16 %v1179
        %v1481 = vunpack.c.h.b16 %v1179
        %v1482 = vunpack.c.l.b16 %v1180
        %v1483 = vunpack.c.h.b16 %v1180
        %v1484 = vunpack.c.l.b16 %v1181
        %v1485 = vunpack.c.h.b16 %v1181
        %v1486 = vunpack.c.l.b16 %v1182
        %v1487 = vunpack.c.h.b16 %v1182
        %v1488 = vunpack.c.l.b16 %v1183
        %v1489 = vunpack.c.h.b16 %v1183
        %v1490 = vunpack.c.l.b16 %v1184
        %v1491 = vunpack.c.h.b16 %v1184
        %v1492 = vunpack.c.l.b16 %v1185
        %v1493 = vunpack.c.h.b16 %v1185
        %v1494 = vunpack.c.l.b16 %v1186
        %v1495 = vunpack.c.h.b16 %v1186
        %v1496 = vunpack.c.l.b16 %v1187
        %v1497 = vunpack.c.h.b16 %v1187
        %v1498 = vunpack.c.l.b16 %v1188
        %v1499 = vunpack.c.h.b16 %v1188
        %v1500 = vunpack.c.l.b16 %v1189
        %v1501 = vunpack.c.h.b16 %v1189
        %v1502 = vunpack.c.l.b16 %v1190
        %v1503 = vunpack.c.h.b16 %v1190
        %v1504 = vunpack.c.l.b16 %v1191
        %v1505 = vunpack.c.h.b16 %v1191
        %v1506 = vunpack.c.l.b16 %v1192
        %v1507 = vunpack.c.h.b16 %v1192
        %v1508 = vunpack.c.l.b16 %v1193
        %v1509 = vunpack.c.h.b16 %v1193
        %v1510 = vunpack.c.l.b16 %v1194
        %v1511 = vunpack.c.h.b16 %v1194
        %v1512 = vunpack.c.l.b16 %v1195
        %v1513 = vunpack.c.h.b16 %v1195
        %v1514 = vunpack.c.l.b16 %v1196
        %v1515 = vunpack.c.h.b16 %v1196
        %v1516 = vunpack.c.l.b16 %v1197
        %v1517 = vunpack.c.h.b16 %v1197
        %v1518 = vunpack.c.l.b16 %v1198
        %v1519 = vunpack.c.h.b16 %v1198
        %v1520 = vunpack.c.l.b16 %v1199
        %v1521 = vunpack.c.h.b16 %v1199
        %v1522 = vunpack.c.l.b16 %v1200
        %v1523 = vunpack.c.h.b16 %v1200
        %v1524 = vunpack.c.l.b16 %v1201
        %v1525 = vunpack.c.h.b16 %v1201
        %v1526 = vunpack.c.l.b16 %v1202
        %v1527 = vunpack.c.h.b16 %v1202
        %v1528 = vunpack.c.l.b16 %v1203
        %v1529 = vunpack.c.h.b16 %v1203
        %v1530 = vunpack.c.l.b16 %v1204
        %v1531 = vunpack.c.h.b16 %v1204
        %v1532 = vunpack.c.l.b16 %v1205
        %v1533 = vunpack.c.h.b16 %v1205
        %v1534 = vunpack.c.l.b16 %v1206
        %v1535 = vunpack.c.h.b16 %v1206
        %v1536 = vunpack.c.l.b16 %v1207
        %v1537 = vunpack.c.h.b16 %v1207
        %v1538 = vunpack.c.l.b16 %v1208
        %v1539 = vunpack.c.h.b16 %v1208
        %v1540 = vunpack.c.l.b16 %v1209
        %v1541 = vunpack.c.h.b16 %v1209
        %v1542 = vunpack.c.l.b16 %v1210
        %v1543 = vunpack.c.h.b16 %v1210
        %v1544 = vunpack.c.l.b16 %v1211
        %v1545 = vunpack.c.h.b16 %v1211
        %v1546 = vunpack.c.l.b16 %v1212
        %v1547 = vunpack.c.h.b16 %v1212
        %v1548 = vunpack.c.l.b16 %v1213
        %v1549 = vunpack.c.h.b16 %v1213
        %v1550 = vunpack.c.l.b16 %v1214
        %v1551 = vunpack.c.h.b16 %v1214
        %v1552 = vunpack.c.l.b16 %v1215
        %v1553 = vunpack.c.h.b16 %v1215
        %v1554 = vunpack.c.l.b16 %v1216
        %v1555 = vunpack.c.h.b16 %v1216
        %v1556 = vunpack.c.l.b16 %v1217
        %v1557 = vunpack.c.h.b16 %v1217
        %v1558 = vunpack.c.l.b16 %v1218
        %v1559 = vunpack.c.h.b16 %v1218
        %v1560 = vunpack.c.l.b16 %v1219
        %v1561 = vunpack.c.h.b16 %v1219
        %v1562 = vunpack.c.l.b16 %v1220
        %v1563 = vunpack.c.h.b16 %v1220
        %v1564 = vunpack.c.l.b16 %v1221
        %v1565 = vunpack.c.h.b16 %v1221
        %v1566 = vunpack.c.l.b16 %v1222
        %v1567 = vunpack.c.h.b16 %v1222
        %v1568 = vunpack.c.l.b16 %v1223
        %v1569 = vunpack.c.h.b16 %v1223
        %v1570 = vunpack.c.l.b16 %v1224
        %v1571 = vunpack.c.h.b16 %v1224
        %v1572 = vunpack.c.l.b16 %v1225
        %v1573 = vunpack.c.h.b16 %v1225
        %v1574 = vunpack.c.l.b16 %v1226
        %v1575 = vunpack.c.h.b16 %v1226
        %v1576 = vunpack.c.l.b16 %v1227
        %v1577 = vunpack.c.h.b16 %v1227
        %v1578 = vunpack.c.l.b16 %v1228
        %v1579 = vunpack.c.h.b16 %v1228
        %v1580 = vunpack.c.l.b16 %v1229
        %v1581 = vunpack.c.h.b16 %v1229
        %v1582 = vpack.c.b16 %v1402, %v1390
        %v1583 = vpack.c.b16 %v1403, %v1391
        %v1584 = vpack.c.b16 %v1404, %v1392
        %v1585 = vpack.c.b16 %v1405, %v1393
        %v1586 = vpack.c.b16 %v1406, %v1394
        %v1587 = vpack.c.b16 %v1407, %v1395
        %v1588 = vpack.c.b16 %v1408, %v1396
        %v1589 = vpack.c.b16 %v1409, %v1397
        %v1590 = vpack.c.b16 %v1410, %v1398
        %v1591 = vpack.c.b16 %v1411, %v1399
        %v1592 = vpack.c.b16 %v1412, %v1400
        %v1593 = vpack.c.b16 %v1413, %v1401
        %v1594 = vpack.c.b16 %v1426, %v1414
        %v1595 = vpack.c.b16 %v1427, %v1415
        %v1596 = vpack.c.b16 %v1428, %v1416
        %v1597 = vpack.c.b16 %v1429, %v1417
        %v1598 = vpack.c.b16 %v1430, %v1418
        %v1599 = vpack.c.b16 %v1431, %v1419
        %v1600 = vpack.c.b16 %v1432, %v1420
        %v1601 = vpack.c.b16 %v1433, %v1421
        %v1602 = vpack.c.b16 %v1434, %v1422
        %v1603 = vpack.c.b16 %v1435, %v1423
        %v1604 = vpack.c.b16 %v1436, %v1424
        %v1605 = vpack.c.b16 %v1437, %v1425
        %v1606 = vpack.c.b16 %v1450, %v1438
        %v1607 = vpack.c.b16 %v1451, %v1439
        %v1608 = vpack.c.b16 %v1452, %v1440
        %v1609 = vpack.c.b16 %v1453, %v1441
        %v1610 = vpack.c.b16 %v1454, %v1442
        %v1611 = vpack.c.b16 %v1455, %v1443
        %v1612 = vpack.c.b16 %v1456, %v1444
        %v1613 = vpack.c.b16 %v1457, %v1445
        %v1614 = vpack.c.b16 %v1458, %v1446
        %v1615 = vpack.c.b16 %v1459, %v1447
        %v1616 = vpack.c.b16 %v1460, %v1448
        %v1617 = vpack.c.b16 %v1461, %v1449
        %v1618 = vpack.c.b16 %v1474, %v1462
        %v1619 = vpack.c.b16 %v1475, %v1463
        %v1620 = vpack.c.b16 %v1476, %v1464
        %v1621 = vpack.c.b16 %v1477, %v1465
        %v1622 = vpack.c.b16 %v1478, %v1466
        %v1623 = vpack.c.b16 %v1479, %v1467
        %v1624 = vpack.c.b16 %v1480, %v1468
        %v1625 = vpack.c.b16 %v1481, %v1469
        %v1626 = vpack.c.b16 %v1482, %v1470
        %v1627 = vpack.c.b16 %v1483, %v1471
        %v1628 = vpack.c.b16 %v1484, %v1472
        %v1629 = vpack.c.b16 %v1485, %v1473
        %v1630 = vpack.c.b16 %v1498, %v1486
        %v1631 = vpack.c.b16 %v1499, %v1487
        %v1632 = vpack.c.b16 %v1500, %v1488
        %v1633 = vpack.c.b16 %v1501, %v1489
        %v1634 = vpack.c.b16 %v1502, %v1490
        %v1635 = vpack.c.b16 %v1503, %v1491
        %v1636 = vpack.c.b16 %v1504, %v1492
        %v1637 = vpack.c.b16 %v1505, %v1493
        %v1638 = vpack.c.b16 %v1506, %v1494
        %v1639 = vpack.c.b16 %v1507, %v1495
        %v1640 = vpack.c.b16 %v1508, %v1496
        %v1641 = vpack.c.b16 %v1509, %v1497
        %v1642 = vpack.c.b16 %v1522, %v1510
        %v1643 = vpack.c.b16 %v1523, %v1511
        %v1644 = vpack.c.b16 %v1524, %v1512
        %v1645 = vpack.c.b16 %v1525, %v1513
        %v1646 = vpack.c.b16 %v1526, %v1514
        %v1647 = vpack.c.b16 %v1527, %v1515
        %v1648 = vpack.c.b16 %v1528, %v1516
        %v1649 = vpack.c.b16 %v1529, %v1517
        %v1650 = vpack.c.b16 %v1530, %v1518
        %v1651 = vpack.c.b16 %v1531, %v1519
        %v1652 = vpack.c.b16 %v1532, %v1520
        %v1653 = vpack.c.b16 %v1533, %v1521
        %v1654 = vpack.c.b16 %v1546, %v1534
        %v1655 = vpack.c.b16 %v1547, %v1535
        %v1656 = vpack.c.b16 %v1548, %v1536
        %v1657 = vpack.c.b16 %v1549, %v1537
        %v1658 = vpack.c.b16 %v1550, %v1538
        %v1659 = vpack.c.b16 %v1551, %v1539
        %v1660 = vpack.c.b16 %v1552, %v1540
        %v1661 = vpack.c.b16 %v1553, %v1541
        %v1662 = vpack.c.b16 %v1554, %v1542
        %v1663 = vpack.c.b16 %v1555, %v1543
        %v1664 = vpack.c.b16 %v1556, %v1544
        %v1665 = vpack.c.b16 %v1557, %v1545
        %v1666 = vpack.c.b16 %v1570, %v1558
        %v1667 = vpack.c.b16 %v1571, %v1559
        %v1668 = vpack.c.b16 %v1572, %v1560
        %v1669 = vpack.c.b16 %v1573, %v1561
        %v1670 = vpack.c.b16 %v1574, %v1562
        %v1671 = vpack.c.b16 %v1575, %v1563
        %v1672 = vpack.c.b16 %v1576, %v1564
        %v1673 = vpack.c.b16 %v1577, %v1565
        %v1674 = vpack.c.b16 %v1578, %v1566
        %v1675 = vpack.c.b16 %v1579, %v1567
        %v1676 = vpack.c.b16 %v1580, %v1568
        %v1677 = vpack.c.b16 %v1581, %v1569
        %1774 = vmatprep.subr.bf16.mxu0 %v1583
        %1775 = vmatpush1.bf16.msra.mxu0 %v1582
        %1776 = vmatprep.subr.bf16.mxu0 %v1595
        %1777 = vmatpush1.bf16.msra.mxu0 %v1594
        %1778 = vmatprep.subr.bf16.mxu0 %v1607
        %1779 = vmatpush1.bf16.msra.mxu0 %v1606
        %1780 = vmatprep.subr.bf16.mxu0 %v1619
        %1781 = vmatpush1.bf16.msra.mxu0 %v1618
        %1782 = vmatprep.subr.bf16.mxu0 %v1631
        %1783 = vmatpush1.bf16.msra.mxu0 %v1630
        %1784 = vmatprep.subr.bf16.mxu0 %v1643
        %1785 = vmatpush1.bf16.msra.mxu0 %v1642
        %1786 = vmatprep.subr.bf16.mxu0 %v1655
        %1787 = vmatpush1.bf16.msra.mxu0 %v1654
        %1788 = vmatprep.subr.bf16.mxu0 %v1667
        %1789 = vmatpush1.bf16.msra.mxu0 %v1666
        %1790 = vmatprep.subr.bf16.mxu0 0
        %1791 = vmatpush1.bf16.msra.mxu0 0
        %1792 = vmatprep.subr.bf16.mxu0 0
        %1793 = vmatpush1.bf16.msra.mxu0 0
        %1794 = vmatprep.subr.bf16.mxu0 0
        %1795 = vmatpush1.bf16.msra.mxu0 0
        %1796 = vmatprep.subr.bf16.mxu0 0
        %1797 = vmatpush1.bf16.msra.mxu0 0
        %1798 = vmatprep.subr.bf16.mxu0 0
        %1799 = vmatpush1.bf16.msra.mxu0 0
        %1800 = vmatprep.subr.bf16.mxu0 0
        %1801 = vmatpush1.bf16.msra.mxu0 0
        %1802 = vmatprep.subr.bf16.mxu0 0
        %1803 = vmatpush1.bf16.msra.mxu0 0
        %1804 = vmatprep.subr.bf16.mxu0 0
        %1805 = vmatpush1.bf16.msra.mxu0 0
        %1806 = vmatprep.mubr.bf16.mxu0 0
        %1807 = vmatmul.mubr.bf16.gmra.mrb[0].mxu0 %v1133
        %v1808 = vpop.f32.mrb[0].mxu0
        %v1809 = vadd.f32 %v1237, %v1808
        %v1810 = vpop.f32.mrb[0].mxu0
        %v1811 = vadd.f32 %v1241, %v1810
        %v1812 = vpop.f32.mrb[0].mxu0
        %v1813 = vadd.f32 %v1237, %v1812
        %v1814 = vpop.f32.mrb[0].mxu0
        %v1815 = vadd.f32 %v1241, %v1814
        %1816 = vdwg.mxu0
        %1817 = vmatprep.subr.bf16.mxu0 %v1585
        %1818 = vmatpush1.bf16.msra.mxu0 %v1584
        %1819 = vmatprep.subr.bf16.mxu0 %v1597
        %1820 = vmatpush1.bf16.msra.mxu0 %v1596
        %1821 = vmatprep.subr.bf16.mxu0 %v1609
        %1822 = vmatpush1.bf16.msra.mxu0 %v1608
        %1823 = vmatprep.subr.bf16.mxu0 %v1621
        %1824 = vmatpush1.bf16.msra.mxu0 %v1620
        %1825 = vmatprep.subr.bf16.mxu0 %v1633
        %1826 = vmatpush1.bf16.msra.mxu0 %v1632
        %1827 = vmatprep.subr.bf16.mxu0 %v1645
        %1828 = vmatpush1.bf16.msra.mxu0 %v1644
        %1829 = vmatprep.subr.bf16.mxu0 %v1657
        %1830 = vmatpush1.bf16.msra.mxu0 %v1656
        %1831 = vmatprep.subr.bf16.mxu0 %v1669
        %1832 = vmatpush1.bf16.msra.mxu0 %v1668
        %1833 = vmatprep.subr.bf16.mxu0 0
        %1834 = vmatpush1.bf16.msra.mxu0 0
        %1835 = vmatprep.subr.bf16.mxu0 0
        %1836 = vmatpush1.bf16.msra.mxu0 0
        %1837 = vmatprep.subr.bf16.mxu0 0
        %1838 = vmatpush1.bf16.msra.mxu0 0
        %1839 = vmatprep.subr.bf16.mxu0 0
        %1840 = vmatpush1.bf16.msra.mxu0 0
        %1841 = vmatprep.subr.bf16.mxu0 0
        %1842 = vmatpush1.bf16.msra.mxu0 0
        %1843 = vmatprep.subr.bf16.mxu0 0
        %1844 = vmatpush1.bf16.msra.mxu0 0
        %1845 = vmatprep.subr.bf16.mxu0 0
        %1846 = vmatpush1.bf16.msra.mxu0 0
        %1847 = vmatprep.subr.bf16.mxu0 0
        %1848 = vmatpush1.bf16.msra.mxu0 0
        %1849 = vmatprep.mubr.bf16.mxu0 0
        %1850 = vmatmul.mubr.bf16.gmra.mrb[0].mxu0 %v1133
        %v1851 = vpop.f32.mrb[0].mxu0
        %v1852 = vadd.f32 %v1245, %v1851
        %v1853 = vpop.f32.mrb[0].mxu0
        %v1854 = vadd.f32 %v1249, %v1853
        %v1855 = vpop.f32.mrb[0].mxu0
        %v1856 = vadd.f32 %v1245, %v1855
        %v1857 = vpop.f32.mrb[0].mxu0
        %v1858 = vadd.f32 %v1249, %v1857
        %1859 = vdwg.mxu0
        %1860 = vmatprep.subr.bf16.mxu0 %v1587
        %1861 = vmatpush1.bf16.msra.mxu0 %v1586
        %1862 = vmatprep.subr.bf16.mxu0 %v1599
        %1863 = vmatpush1.bf16.msra.mxu0 %v1598
        %1864 = vmatprep.subr.bf16.mxu0 %v1611
        %1865 = vmatpush1.bf16.msra.mxu0 %v1610
        %1866 = vmatprep.subr.bf16.mxu0 %v1623
        %1867 = vmatpush1.bf16.msra.mxu0 %v1622
        %1868 = vmatprep.subr.bf16.mxu0 %v1635
        %1869 = vmatpush1.bf16.msra.mxu0 %v1634
        %1870 = vmatprep.subr.bf16.mxu0 %v1647
        %1871 = vmatpush1.bf16.msra.mxu0 %v1646
        %1872 = vmatprep.subr.bf16.mxu0 %v1659
        %1873 = vmatpush1.bf16.msra.mxu0 %v1658
        %1874 = vmatprep.subr.bf16.mxu0 %v1671
        %1875 = vmatpush1.bf16.msra.mxu0 %v1670
        %1876 = vmatprep.subr.bf16.mxu0 0
        %1877 = vmatpush1.bf16.msra.mxu0 0
        %1878 = vmatprep.subr.bf16.mxu0 0
        %1879 = vmatpush1.bf16.msra.mxu0 0
        %1880 = vmatprep.subr.bf16.mxu0 0
        %1881 = vmatpush1.bf16.msra.mxu0 0
        %1882 = vmatprep.subr.bf16.mxu0 0
        %1883 = vmatpush1.bf16.msra.mxu0 0
        %1884 = vmatprep.subr.bf16.mxu0 0
        %1885 = vmatpush1.bf16.msra.mxu0 0
        %1886 = vmatprep.subr.bf16.mxu0 0
        %1887 = vmatpush1.bf16.msra.mxu0 0
        %1888 = vmatprep.subr.bf16.mxu0 0
        %1889 = vmatpush1.bf16.msra.mxu0 0
        %1890 = vmatprep.subr.bf16.mxu0 0
        %1891 = vmatpush1.bf16.msra.mxu0 0
        %1892 = vmatprep.mubr.bf16.mxu0 0
        %1893 = vmatmul.mubr.bf16.gmra.mrb[0].mxu0 %v1133
        %v1894 = vpop.f32.mrb[0].mxu0
        %v1895 = vadd.f32 %v1253, %v1894
        %v1896 = vpop.f32.mrb[0].mxu0
        %v1897 = vadd.f32 %v1257, %v1896
        %v1898 = vpop.f32.mrb[0].mxu0
        %v1899 = vadd.f32 %v1253, %v1898
        %v1900 = vpop.f32.mrb[0].mxu0
        %v1901 = vadd.f32 %v1257, %v1900
        %1902 = vdwg.mxu0
        %1903 = vmatprep.subr.bf16.mxu0 %v1589
        %1904 = vmatpush1.bf16.msra.mxu0 %v1588
        %1905 = vmatprep.subr.bf16.mxu0 %v1601
        %1906 = vmatpush1.bf16.msra.mxu0 %v1600
        %1907 = vmatprep.subr.bf16.mxu0 %v1613
        %1908 = vmatpush1.bf16.msra.mxu0 %v1612
        %1909 = vmatprep.subr.bf16.mxu0 %v1625
        %1910 = vmatpush1.bf16.msra.mxu0 %v1624
        %1911 = vmatprep.subr.bf16.mxu0 %v1637
        %1912 = vmatpush1.bf16.msra.mxu0 %v1636
        %1913 = vmatprep.subr.bf16.mxu0 %v1649
        %1914 = vmatpush1.bf16.msra.mxu0 %v1648
        %1915 = vmatprep.subr.bf16.mxu0 %v1661
        %1916 = vmatpush1.bf16.msra.mxu0 %v1660
        %1917 = vmatprep.subr.bf16.mxu0 %v1673
        %1918 = vmatpush1.bf16.msra.mxu0 %v1672
        %1919 = vmatprep.subr.bf16.mxu0 0
        %1920 = vmatpush1.bf16.msra.mxu0 0
        %1921 = vmatprep.subr.bf16.mxu0 0
        %1922 = vmatpush1.bf16.msra.mxu0 0
        %1923 = vmatprep.subr.bf16.mxu0 0
        %1924 = vmatpush1.bf16.msra.mxu0 0
        %1925 = vmatprep.subr.bf16.mxu0 0
        %1926 = vmatpush1.bf16.msra.mxu0 0
        %1927 = vmatprep.subr.bf16.mxu0 0
        %1928 = vmatpush1.bf16.msra.mxu0 0
        %1929 = vmatprep.subr.bf16.mxu0 0
        %1930 = vmatpush1.bf16.msra.mxu0 0
        %1931 = vmatprep.subr.bf16.mxu0 0
        %1932 = vmatpush1.bf16.msra.mxu0 0
        %1933 = vmatprep.subr.bf16.mxu0 0
        %1934 = vmatpush1.bf16.msra.mxu0 0
        %1935 = vmatprep.mubr.bf16.mxu0 0
        %1936 = vmatmul.mubr.bf16.gmra.mrb[0].mxu0 %v1133
        %v1937 = vpop.f32.mrb[0].mxu0
        %v1938 = vadd.f32 %v1261, %v1937
        %v1939 = vpop.f32.mrb[0].mxu0
        %v1940 = vadd.f32 %v1265, %v1939
        %v1941 = vpop.f32.mrb[0].mxu0
        %v1942 = vadd.f32 %v1261, %v1941
        %v1943 = vpop.f32.mrb[0].mxu0
        %v1944 = vadd.f32 %v1265, %v1943
        %1945 = vdwg.mxu0
        %1946 = vmatprep.subr.bf16.mxu0 %v1591
        %1947 = vmatpush1.bf16.msra.mxu0 %v1590
        %1948 = vmatprep.subr.bf16.mxu0 %v1603
        %1949 = vmatpush1.bf16.msra.mxu0 %v1602
        %1950 = vmatprep.subr.bf16.mxu0 %v1615
        %1951 = vmatpush1.bf16.msra.mxu0 %v1614
        %1952 = vmatprep.subr.bf16.mxu0 %v1627
        %1953 = vmatpush1.bf16.msra.mxu0 %v1626
        %1954 = vmatprep.subr.bf16.mxu0 %v1639
        %1955 = vmatpush1.bf16.msra.mxu0 %v1638
        %1956 = vmatprep.subr.bf16.mxu0 %v1651
        %1957 = vmatpush1.bf16.msra.mxu0 %v1650
        %1958 = vmatprep.subr.bf16.mxu0 %v1663
        %1959 = vmatpush1.bf16.msra.mxu0 %v1662
        %1960 = vmatprep.subr.bf16.mxu0 %v1675
        %1961 = vmatpush1.bf16.msra.mxu0 %v1674
        %1962 = vmatprep.subr.bf16.mxu0 0
        %1963 = vmatpush1.bf16.msra.mxu0 0
        %1964 = vmatprep.subr.bf16.mxu0 0
        %1965 = vmatpush1.bf16.msra.mxu0 0
        %1966 = vmatprep.subr.bf16.mxu0 0
        %1967 = vmatpush1.bf16.msra.mxu0 0
        %1968 = vmatprep.subr.bf16.mxu0 0
        %1969 = vmatpush1.bf16.msra.mxu0 0
        %1970 = vmatprep.subr.bf16.mxu0 0
        %1971 = vmatpush1.bf16.msra.mxu0 0
        %1972 = vmatprep.subr.bf16.mxu0 0
        %1973 = vmatpush1.bf16.msra.mxu0 0
        %1974 = vmatprep.subr.bf16.mxu0 0
        %1975 = vmatpush1.bf16.msra.mxu0 0
        %1976 = vmatprep.subr.bf16.mxu0 0
        %1977 = vmatpush1.bf16.msra.mxu0 0
        %1978 = vmatprep.mubr.bf16.mxu0 0
        %1979 = vmatmul.mubr.bf16.gmra.mrb[0].mxu0 %v1133
        %v1980 = vpop.f32.mrb[0].mxu0
        %v1981 = vadd.f32 %v1269, %v1980
        %v1982 = vpop.f32.mrb[0].mxu0
        %v1983 = vadd.f32 %v1273, %v1982
        %v1984 = vpop.f32.mrb[0].mxu0
        %v1985 = vadd.f32 %v1269, %v1984
        %v1986 = vpop.f32.mrb[0].mxu0
        %v1987 = vadd.f32 %v1273, %v1986
        %1988 = vdwg.mxu0
        %1989 = vmatprep.subr.bf16.mxu0 %v1593
        %1990 = vmatpush1.bf16.msra.mxu0 %v1592
        %1991 = vmatprep.subr.bf16.mxu0 %v1605
        %1992 = vmatpush1.bf16.msra.mxu0 %v1604
        %1993 = vmatprep.subr.bf16.mxu0 %v1617
        %1994 = vmatpush1.bf16.msra.mxu0 %v1616
        %1995 = vmatprep.subr.bf16.mxu0 %v1629
        %1996 = vmatpush1.bf16.msra.mxu0 %v1628
        %1997 = vmatprep.subr.bf16.mxu0 %v1641
        %1998 = vmatpush1.bf16.msra.mxu0 %v1640
        %1999 = vmatprep.subr.bf16.mxu0 %v1653
        %2000 = vmatpush1.bf16.msra.mxu0 %v1652
        %2001 = vmatprep.subr.bf16.mxu0 %v1665
        %2002 = vmatpush1.bf16.msra.mxu0 %v1664
        %2003 = vmatprep.subr.bf16.mxu0 %v1677
        %2004 = vmatpush1.bf16.msra.mxu0 %v1676
        %2005 = vmatprep.subr.bf16.mxu0 0
        %2006 = vmatpush1.bf16.msra.mxu0 0
        %2007 = vmatprep.subr.bf16.mxu0 0
        %2008 = vmatpush1.bf16.msra.mxu0 0
        %2009 = vmatprep.subr.bf16.mxu0 0
        %2010 = vmatpush1.bf16.msra.mxu0 0
        %2011 = vmatprep.subr.bf16.mxu0 0
        %2012 = vmatpush1.bf16.msra.mxu0 0
        %2013 = vmatprep.subr.bf16.mxu0 0
        %2014 = vmatpush1.bf16.msra.mxu0 0
        %2015 = vmatprep.subr.bf16.mxu0 0
        %2016 = vmatpush1.bf16.msra.mxu0 0
        %2017 = vmatprep.subr.bf16.mxu0 0
        %2018 = vmatpush1.bf16.msra.mxu0 0
        %2019 = vmatprep.subr.bf16.mxu0 0
        %2020 = vmatpush1.bf16.msra.mxu0 0
        %2021 = vmatprep.mubr.bf16.mxu0 0
        %2022 = vmatmul.mubr.bf16.gmra.mrb[0].mxu0 %v1133
        %v2023 = vpop.f32.mrb[0].mxu0
        %v2024 = vadd.f32 %v1277, %v2023
        %v2025 = vpop.f32.mrb[0].mxu0
        %v2026 = vadd.f32 %v1281, %v2025
        %v2027 = vpop.f32.mrb[0].mxu0
        %v2028 = vadd.f32 %v1277, %v2027
        %v2029 = vpop.f32.mrb[0].mxu0
        %v2030 = vadd.f32 %v1281, %v2029
        %2031 = vdwg.mxu0
        %v2032 = vpack.c.bf16 %v1809, %v1809
        %v2033 = vpack.c.bf16 %v1811, %v1811
        %v2034 = vpack.c.bf16 %v1852, %v1852
        %v2035 = vpack.c.bf16 %v1854, %v1854
        %v2036 = vpack.c.bf16 %v1813, %v1813
        %v2037 = vpack.c.bf16 %v1815, %v1815
        %v2038 = vpack.c.bf16 %v1856, %v1856
        %v2039 = vpack.c.bf16 %v1858, %v1858
        %v2040 = vpack.c.bf16 %v1895, %v1895
        %v2041 = vpack.c.bf16 %v1897, %v1897
        %v2042 = vpack.c.bf16 %v1938, %v1938
        %v2043 = vpack.c.bf16 %v1940, %v1940
        %v2044 = vpack.c.bf16 %v1899, %v1899
        %v2045 = vpack.c.bf16 %v1901, %v1901
        %v2046 = vpack.c.bf16 %v1942, %v1942
        %v2047 = vpack.c.bf16 %v1944, %v1944
        %v2048 = vpack.c.bf16 %v1981, %v1981
        %v2049 = vpack.c.bf16 %v1983, %v1983
        %v2050 = vpack.c.bf16 %v2024, %v2024
        %v2051 = vpack.c.bf16 %v2026, %v2026
        %v2052 = vpack.c.bf16 %v1985, %v1985
        %v2053 = vpack.c.bf16 %v1987, %v1987
        %v2054 = vpack.c.bf16 %v2028, %v2028
        %v2055 = vpack.c.bf16 %v2030, %v2030
        %2056 = vmatprep.subr.bf16.mxu0 0
        %2057 = vmatpush1.bf16.xpose.msra.mxu0 %v2040
        %2058 = vmatprep.subr.bf16.mxu0 0
        %2059 = vmatpush1.bf16.xpose.msra.mxu0 0
        %2060 = vmatprep.subr.bf16.mxu0 0
        %2061 = vmatpush1.bf16.xpose.msra.mxu0 0
        %2062 = vmatprep.subr.bf16.mxu0 0
        %2063 = vmatpush1.bf16.xpose.msra.mxu0 0
        %2064 = vmatprep.subr.bf16.mxu0 0
        %2065 = vmatpush1.bf16.xpose.msra.mxu0 0
        %2066 = vmatprep.subr.bf16.mxu0 0
        %2067 = vmatpush1.bf16.xpose.msra.mxu0 0
        %2068 = vmatprep.subr.bf16.mxu0 0
        %2069 = vmatpush1.bf16.xpose.msra.mxu0 0
        %2070 = vmatprep.subr.bf16.mxu0 0
        %2071 = vmatpush1.bf16.xpose.msra.mxu0 0
        %2072 = vmatprep.subr.bf16.mxu0 0
        %2073 = vmatpush1.bf16.xpose.msra.mxu0 0
        %2074 = vmatprep.subr.bf16.mxu0 0
        %2075 = vmatpush1.bf16.xpose.msra.mxu0 0
        %2076 = vmatprep.subr.bf16.mxu0 0
        %2077 = vmatpush1.bf16.xpose.msra.mxu0 0
        %2078 = vmatprep.subr.bf16.mxu0 0
        %2079 = vmatpush1.bf16.xpose.msra.mxu0 0
        %2080 = vmatprep.subr.bf16.mxu0 0
        %2081 = vmatpush1.bf16.xpose.msra.mxu0 0
        %2082 = vmatprep.subr.bf16.mxu0 0
        %2083 = vmatpush1.bf16.xpose.msra.mxu0 0
        %2084 = vmatprep.subr.bf16.mxu0 0
        %2085 = vmatpush1.bf16.xpose.msra.mxu0 0
        %2086 = vmatprep.subr.bf16.mxu0 0
        %2087 = vmatpush1.bf16.xpose.msra.mxu0 0
        %2088 = vmatprep.mubr.bf16.mxu0 0
        %2089 = vmatmul.mubr.bf16.gmra.mrb[0].mxu0 %v2032
        %v2090 = vpop.f32.mrb[0].mxu0
        %v2091 = vadd.f32 %v1132, %v2090
        %v2092 = vpop.f32.mrb[0].mxu0
        %v2093 = vpop.f32.mrb[0].mxu0
        %v2094 = vpop.f32.mrb[0].mxu0
        %2095 = vdwg.mxu0
        %2096 = vmatprep.subr.bf16.mxu0 0
        %2097 = vmatpush1.bf16.xpose.msra.mxu0 %v2044
        %2098 = vmatprep.subr.bf16.mxu0 0
        %2099 = vmatpush1.bf16.xpose.msra.mxu0 0
        %2100 = vmatprep.subr.bf16.mxu0 0
        %2101 = vmatpush1.bf16.xpose.msra.mxu0 0
        %2102 = vmatprep.subr.bf16.mxu0 0
        %2103 = vmatpush1.bf16.xpose.msra.mxu0 0
        %2104 = vmatprep.subr.bf16.mxu0 0
        %2105 = vmatpush1.bf16.xpose.msra.mxu0 0
        %2106 = vmatprep.subr.bf16.mxu0 0
        %2107 = vmatpush1.bf16.xpose.msra.mxu0 0
        %2108 = vmatprep.subr.bf16.mxu0 0
        %2109 = vmatpush1.bf16.xpose.msra.mxu0 0
        %2110 = vmatprep.subr.bf16.mxu0 0
        %2111 = vmatpush1.bf16.xpose.msra.mxu0 0
        %2112 = vmatprep.subr.bf16.mxu0 0
        %2113 = vmatpush1.bf16.xpose.msra.mxu0 0
        %2114 = vmatprep.subr.bf16.mxu0 0
        %2115 = vmatpush1.bf16.xpose.msra.mxu0 0
        %2116 = vmatprep.subr.bf16.mxu0 0
        %2117 = vmatpush1.bf16.xpose.msra.mxu0 0
        %2118 = vmatprep.subr.bf16.mxu0 0
        %2119 = vmatpush1.bf16.xpose.msra.mxu0 0
        %2120 = vmatprep.subr.bf16.mxu0 0
        %2121 = vmatpush1.bf16.xpose.msra.mxu0 0
        %2122 = vmatprep.subr.bf16.mxu0 0
        %2123 = vmatpush1.bf16.xpose.msra.mxu0 0
        %2124 = vmatprep.subr.bf16.mxu0 0
        %2125 = vmatpush1.bf16.xpose.msra.mxu0 0
        %2126 = vmatprep.subr.bf16.mxu0 0
        %2127 = vmatpush1.bf16.xpose.msra.mxu0 0
        %2128 = vmatprep.mubr.bf16.mxu0 0
        %2129 = vmatmul.mubr.bf16.gmra.mrb[0].mxu0 %v2036
        %v2130 = vpop.f32.mrb[0].mxu0
        %v2131 = vadd.f32 %v1132, %v2130
        %v2132 = vpop.f32.mrb[0].mxu0
        %v2133 = vpop.f32.mrb[0].mxu0
        %v2134 = vpop.f32.mrb[0].mxu0
        %2135 = vdwg.mxu0
        %vm2136 = vcmask 64512
        %v2137 = vsel %vm2136, %v2091, -inf
        %2138 = vmax.xlane.f32.xlu0 %v2137
        %v2139 = vpop.xlane.xlu0 %2138
        %v2140 = vsel %vm2136, %v2131, -inf
        %2141 = vmax.xlane.f32.xlu0 %v2140
        %v2142 = vpop.xlane.xlu0 %2141
        %v2143 = vsub.f32 %v2091, %v2139
        %v2144 = vsub.f32 %v2131, %v2142
        %v2145 = vmul.f32 %v2143, 1.442695
        %v2146 = vpow.pop %v2145
        %v2147 = vmul.f32 %v2144, 1.442695
        %v2148 = vpow.pop %v2147
        %v2149 = vsel %vm2136, %v2146, 0.0
        %2150 = vadd.xlane.f32.xlu0 %v2149
        %v2151 = vpop.xlane.xlu0 %2150
        %v2152 = vsel %vm2136, %v2148, 0.0
        %2153 = vadd.xlane.f32.xlu0 %v2152
        %v2154 = vpop.xlane.xlu0 %2153
        %v2155 = vrcp.pop %v2151
        %v2156 = vrcp.pop %v2154
        %v2157 = vmul.f32 %v2146, %v2155
        %v2158 = vmul.f32 %v2148, %v2156
        %v2159 = vpack.c.bf16 %v2157, %v2157
        %v2160 = vpack.c.bf16 %v2158, %v2158
        %v2162 = vsel %vm2136, %v2159, 0
        %vm2164 = vcmask 1043456
        %v2166 = vsel %vm2164, %v2048, 0
        %2168 = vmatprep.subr.bf16.mxu0 0
        %2169 = vmatpush1.bf16.msra.mxu0 %v2166
        %2170 = vmatprep.subr.bf16.mxu0 0
        %2171 = vmatpush1.bf16.msra.mxu0 0
        %2172 = vmatprep.subr.bf16.mxu0 0
        %2173 = vmatpush1.bf16.msra.mxu0 0
        %2174 = vmatprep.subr.bf16.mxu0 0
        %2175 = vmatpush1.bf16.msra.mxu0 0
        %2176 = vmatprep.subr.bf16.mxu0 0
        %2177 = vmatpush1.bf16.msra.mxu0 0
        %2178 = vmatprep.subr.bf16.mxu0 0
        %2179 = vmatpush1.bf16.msra.mxu0 0
        %2180 = vmatprep.subr.bf16.mxu0 0
        %2181 = vmatpush1.bf16.msra.mxu0 0
        %2182 = vmatprep.subr.bf16.mxu0 0
        %2183 = vmatpush1.bf16.msra.mxu0 0
        %2184 = vmatprep.subr.bf16.mxu0 0
        %2185 = vmatpush1.bf16.msra.mxu0 0
        %2186 = vmatprep.subr.bf16.mxu0 0
        %2187 = vmatpush1.bf16.msra.mxu0 0
        %2188 = vmatprep.subr.bf16.mxu0 0
        %2189 = vmatpush1.bf16.msra.mxu0 0
        %2190 = vmatprep.subr.bf16.mxu0 0
        %2191 = vmatpush1.bf16.msra.mxu0 0
        %2192 = vmatprep.subr.bf16.mxu0 0
        %2193 = vmatpush1.bf16.msra.mxu0 0
        %2194 = vmatprep.subr.bf16.mxu0 0
        %2195 = vmatpush1.bf16.msra.mxu0 0
        %2196 = vmatprep.subr.bf16.mxu0 0
        %2197 = vmatpush1.bf16.msra.mxu0 0
        %2198 = vmatprep.subr.bf16.mxu0 0
        %2199 = vmatpush1.bf16.msra.mxu0 0
        %2200 = vmatprep.mubr.bf16.mxu0 0
        %2201 = vmatmul.mubr.bf16.gmra.mrb[0].mxu0 %v2162
        %v2202 = vpop.f32.mrb[0].mxu0
        %v2203 = vadd.f32 0.0, %v2202
        %v2204 = vpop.f32.mrb[0].mxu0
        %v2205 = vpop.f32.mrb[0].mxu0
        %v2206 = vpop.f32.mrb[0].mxu0
        %2207 = vdwg.mxu0
        %v2209 = vsel %vm2136, %v2160, 0
        %v2212 = vsel %vm2164, %v2052, 0
        %2214 = vmatprep.subr.bf16.mxu0 0
        %2215 = vmatpush1.bf16.msra.mxu0 %v2212
        %2216 = vmatprep.subr.bf16.mxu0 0
        %2217 = vmatpush1.bf16.msra.mxu0 0
        %2218 = vmatprep.subr.bf16.mxu0 0
        %2219 = vmatpush1.bf16.msra.mxu0 0
        %2220 = vmatprep.subr.bf16.mxu0 0
        %2221 = vmatpush1.bf16.msra.mxu0 0
        %2222 = vmatprep.subr.bf16.mxu0 0
        %2223 = vmatpush1.bf16.msra.mxu0 0
        %2224 = vmatprep.subr.bf16.mxu0 0
        %2225 = vmatpush1.bf16.msra.mxu0 0
        %2226 = vmatprep.subr.bf16.mxu0 0
        %2227 = vmatpush1.bf16.msra.mxu0 0
        %2228 = vmatprep.subr.bf16.mxu0 0
        %2229 = vmatpush1.bf16.msra.mxu0 0
        %2230 = vmatprep.subr.bf16.mxu0 0
        %2231 = vmatpush1.bf16.msra.mxu0 0
        %2232 = vmatprep.subr.bf16.mxu0 0
        %2233 = vmatpush1.bf16.msra.mxu0 0
        %2234 = vmatprep.subr.bf16.mxu0 0
        %2235 = vmatpush1.bf16.msra.mxu0 0
        %2236 = vmatprep.subr.bf16.mxu0 0
        %2237 = vmatpush1.bf16.msra.mxu0 0
        %2238 = vmatprep.subr.bf16.mxu0 0
        %2239 = vmatpush1.bf16.msra.mxu0 0
        %2240 = vmatprep.subr.bf16.mxu0 0
        %2241 = vmatpush1.bf16.msra.mxu0 0
        %2242 = vmatprep.subr.bf16.mxu0 0
        %2243 = vmatpush1.bf16.msra.mxu0 0
        %2244 = vmatprep.subr.bf16.mxu0 0
        %2245 = vmatpush1.bf16.msra.mxu0 0
        %2246 = vmatprep.mubr.bf16.mxu0 0
        %2247 = vmatmul.mubr.bf16.gmra.mrb[0].mxu0 %v2209
        %v2248 = vpop.f32.mrb[0].mxu0
        %v2249 = vadd.f32 0.0, %v2248
        %v2250 = vpop.f32.mrb[0].mxu0
        %v2251 = vpop.f32.mrb[0].mxu0
        %v2252 = vpop.f32.mrb[0].mxu0
        %2253 = vdwg.mxu0
        %2254 = vmatprep.subr.bf16.mxu0 0
        %2255 = vmatpush1.bf16.xpose.msra.mxu0 %v2041
        %2256 = vmatprep.subr.bf16.mxu0 0
        %2257 = vmatpush1.bf16.xpose.msra.mxu0 0
        %2258 = vmatprep.subr.bf16.mxu0 0
        %2259 = vmatpush1.bf16.xpose.msra.mxu0 0
        %2260 = vmatprep.subr.bf16.mxu0 0
        %2261 = vmatpush1.bf16.xpose.msra.mxu0 0
        %2262 = vmatprep.subr.bf16.mxu0 0
        %2263 = vmatpush1.bf16.xpose.msra.mxu0 0
        %2264 = vmatprep.subr.bf16.mxu0 0
        %2265 = vmatpush1.bf16.xpose.msra.mxu0 0
        %2266 = vmatprep.subr.bf16.mxu0 0
        %2267 = vmatpush1.bf16.xpose.msra.mxu0 0
        %2268 = vmatprep.subr.bf16.mxu0 0
        %2269 = vmatpush1.bf16.xpose.msra.mxu0 0
        %2270 = vmatprep.subr.bf16.mxu0 0
        %2271 = vmatpush1.bf16.xpose.msra.mxu0 0
        %2272 = vmatprep.subr.bf16.mxu0 0
        %2273 = vmatpush1.bf16.xpose.msra.mxu0 0
        %2274 = vmatprep.subr.bf16.mxu0 0
        %2275 = vmatpush1.bf16.xpose.msra.mxu0 0
        %2276 = vmatprep.subr.bf16.mxu0 0
        %2277 = vmatpush1.bf16.xpose.msra.mxu0 0
        %2278 = vmatprep.subr.bf16.mxu0 0
        %2279 = vmatpush1.bf16.xpose.msra.mxu0 0
        %2280 = vmatprep.subr.bf16.mxu0 0
        %2281 = vmatpush1.bf16.xpose.msra.mxu0 0
        %2282 = vmatprep.subr.bf16.mxu0 0
        %2283 = vmatpush1.bf16.xpose.msra.mxu0 0
        %2284 = vmatprep.subr.bf16.mxu0 0
        %2285 = vmatpush1.bf16.xpose.msra.mxu0 0
        %2286 = vmatprep.mubr.bf16.mxu0 0
        %2287 = vmatmul.mubr.bf16.gmra.mrb[0].mxu0 %v2033
        %v2288 = vpop.f32.mrb[0].mxu0
        %v2289 = vadd.f32 %v1132, %v2288
        %v2290 = vpop.f32.mrb[0].mxu0
        %v2291 = vpop.f32.mrb[0].mxu0
        %v2292 = vpop.f32.mrb[0].mxu0
        %2293 = vdwg.mxu0
        %2294 = vmatprep.subr.bf16.mxu0 0
        %2295 = vmatpush1.bf16.xpose.msra.mxu0 %v2045
        %2296 = vmatprep.subr.bf16.mxu0 0
        %2297 = vmatpush1.bf16.xpose.msra.mxu0 0
        %2298 = vmatprep.subr.bf16.mxu0 0
        %2299 = vmatpush1.bf16.xpose.msra.mxu0 0
        %2300 = vmatprep.subr.bf16.mxu0 0
        %2301 = vmatpush1.bf16.xpose.msra.mxu0 0
        %2302 = vmatprep.subr.bf16.mxu0 0
        %2303 = vmatpush1.bf16.xpose.msra.mxu0 0
        %2304 = vmatprep.subr.bf16.mxu0 0
        %2305 = vmatpush1.bf16.xpose.msra.mxu0 0
        %2306 = vmatprep.subr.bf16.mxu0 0
        %2307 = vmatpush1.bf16.xpose.msra.mxu0 0
        %2308 = vmatprep.subr.bf16.mxu0 0
        %2309 = vmatpush1.bf16.xpose.msra.mxu0 0
        %2310 = vmatprep.subr.bf16.mxu0 0
        %2311 = vmatpush1.bf16.xpose.msra.mxu0 0
        %2312 = vmatprep.subr.bf16.mxu0 0
        %2313 = vmatpush1.bf16.xpose.msra.mxu0 0
        %2314 = vmatprep.subr.bf16.mxu0 0
        %2315 = vmatpush1.bf16.xpose.msra.mxu0 0
        %2316 = vmatprep.subr.bf16.mxu0 0
        %2317 = vmatpush1.bf16.xpose.msra.mxu0 0
        %2318 = vmatprep.subr.bf16.mxu0 0
        %2319 = vmatpush1.bf16.xpose.msra.mxu0 0
        %2320 = vmatprep.subr.bf16.mxu0 0
        %2321 = vmatpush1.bf16.xpose.msra.mxu0 0
        %2322 = vmatprep.subr.bf16.mxu0 0
        %2323 = vmatpush1.bf16.xpose.msra.mxu0 0
        %2324 = vmatprep.subr.bf16.mxu0 0
        %2325 = vmatpush1.bf16.xpose.msra.mxu0 0
        %2326 = vmatprep.mubr.bf16.mxu0 0
        %2327 = vmatmul.mubr.bf16.gmra.mrb[0].mxu0 %v2037
        %v2328 = vpop.f32.mrb[0].mxu0
        %v2329 = vadd.f32 %v1132, %v2328
        %v2330 = vpop.f32.mrb[0].mxu0
        %v2331 = vpop.f32.mrb[0].mxu0
        %v2332 = vpop.f32.mrb[0].mxu0
        %2333 = vdwg.mxu0
        %v2334 = vsel %vm2136, %v2289, -inf
        %2335 = vmax.xlane.f32.xlu0 %v2334
        %v2336 = vpop.xlane.xlu0 %2335
        %v2337 = vsel %vm2136, %v2329, -inf
        %2338 = vmax.xlane.f32.xlu0 %v2337
        %v2339 = vpop.xlane.xlu0 %2338
        %v2340 = vsub.f32 %v2289, %v2336
        %v2341 = vsub.f32 %v2329, %v2339
        %v2342 = vmul.f32 %v2340, 1.442695
        %v2343 = vpow.pop %v2342
        %v2344 = vmul.f32 %v2341, 1.442695
        %v2345 = vpow.pop %v2344
        %v2346 = vsel %vm2136, %v2343, 0.0
        %2347 = vadd.xlane.f32.xlu0 %v2346
        %v2348 = vpop.xlane.xlu0 %2347
        %v2349 = vsel %vm2136, %v2345, 0.0
        %2350 = vadd.xlane.f32.xlu0 %v2349
        %v2351 = vpop.xlane.xlu0 %2350
        %v2352 = vrcp.pop %v2348
        %v2353 = vrcp.pop %v2351
        %v2354 = vmul.f32 %v2343, %v2352
        %v2355 = vmul.f32 %v2345, %v2353
        %v2356 = vpack.c.bf16 %v2354, %v2354
        %v2357 = vpack.c.bf16 %v2355, %v2355
        %v2359 = vsel %vm2136, %v2356, 0
        %v2362 = vsel %vm2164, %v2049, 0
        %2364 = vmatprep.subr.bf16.mxu0 0
        %2365 = vmatpush1.bf16.msra.mxu0 %v2362
        %2366 = vmatprep.subr.bf16.mxu0 0
        %2367 = vmatpush1.bf16.msra.mxu0 0
        %2368 = vmatprep.subr.bf16.mxu0 0
        %2369 = vmatpush1.bf16.msra.mxu0 0
        %2370 = vmatprep.subr.bf16.mxu0 0
        %2371 = vmatpush1.bf16.msra.mxu0 0
        %2372 = vmatprep.subr.bf16.mxu0 0
        %2373 = vmatpush1.bf16.msra.mxu0 0
        %2374 = vmatprep.subr.bf16.mxu0 0
        %2375 = vmatpush1.bf16.msra.mxu0 0
        %2376 = vmatprep.subr.bf16.mxu0 0
        %2377 = vmatpush1.bf16.msra.mxu0 0
        %2378 = vmatprep.subr.bf16.mxu0 0
        %2379 = vmatpush1.bf16.msra.mxu0 0
        %2380 = vmatprep.subr.bf16.mxu0 0
        %2381 = vmatpush1.bf16.msra.mxu0 0
        %2382 = vmatprep.subr.bf16.mxu0 0
        %2383 = vmatpush1.bf16.msra.mxu0 0
        %2384 = vmatprep.subr.bf16.mxu0 0
        %2385 = vmatpush1.bf16.msra.mxu0 0
        %2386 = vmatprep.subr.bf16.mxu0 0
        %2387 = vmatpush1.bf16.msra.mxu0 0
        %2388 = vmatprep.subr.bf16.mxu0 0
        %2389 = vmatpush1.bf16.msra.mxu0 0
        %2390 = vmatprep.subr.bf16.mxu0 0
        %2391 = vmatpush1.bf16.msra.mxu0 0
        %2392 = vmatprep.subr.bf16.mxu0 0
        %2393 = vmatpush1.bf16.msra.mxu0 0
        %2394 = vmatprep.subr.bf16.mxu0 0
        %2395 = vmatpush1.bf16.msra.mxu0 0
        %2396 = vmatprep.mubr.bf16.mxu0 0
        %2397 = vmatmul.mubr.bf16.gmra.mrb[0].mxu0 %v2359
        %v2398 = vpop.f32.mrb[0].mxu0
        %v2399 = vadd.f32 0.0, %v2398
        %v2400 = vpop.f32.mrb[0].mxu0
        %v2401 = vpop.f32.mrb[0].mxu0
        %v2402 = vpop.f32.mrb[0].mxu0
        %2403 = vdwg.mxu0
        %v2405 = vsel %vm2136, %v2357, 0
        %v2408 = vsel %vm2164, %v2053, 0
        %2410 = vmatprep.subr.bf16.mxu0 0
        %2411 = vmatpush1.bf16.msra.mxu0 %v2408
        %2412 = vmatprep.subr.bf16.mxu0 0
        %2413 = vmatpush1.bf16.msra.mxu0 0
        %2414 = vmatprep.subr.bf16.mxu0 0
        %2415 = vmatpush1.bf16.msra.mxu0 0
        %2416 = vmatprep.subr.bf16.mxu0 0
        %2417 = vmatpush1.bf16.msra.mxu0 0
        %2418 = vmatprep.subr.bf16.mxu0 0
        %2419 = vmatpush1.bf16.msra.mxu0 0
        %2420 = vmatprep.subr.bf16.mxu0 0
        %2421 = vmatpush1.bf16.msra.mxu0 0
        %2422 = vmatprep.subr.bf16.mxu0 0
        %2423 = vmatpush1.bf16.msra.mxu0 0
        %2424 = vmatprep.subr.bf16.mxu0 0
        %2425 = vmatpush1.bf16.msra.mxu0 0
        %2426 = vmatprep.subr.bf16.mxu0 0
        %2427 = vmatpush1.bf16.msra.mxu0 0
        %2428 = vmatprep.subr.bf16.mxu0 0
        %2429 = vmatpush1.bf16.msra.mxu0 0
        %2430 = vmatprep.subr.bf16.mxu0 0
        %2431 = vmatpush1.bf16.msra.mxu0 0
        %2432 = vmatprep.subr.bf16.mxu0 0
        %2433 = vmatpush1.bf16.msra.mxu0 0
        %2434 = vmatprep.subr.bf16.mxu0 0
        %2435 = vmatpush1.bf16.msra.mxu0 0
        %2436 = vmatprep.subr.bf16.mxu0 0
        %2437 = vmatpush1.bf16.msra.mxu0 0
        %2438 = vmatprep.subr.bf16.mxu0 0
        %2439 = vmatpush1.bf16.msra.mxu0 0
        %2440 = vmatprep.subr.bf16.mxu0 0
        %2441 = vmatpush1.bf16.msra.mxu0 0
        %2442 = vmatprep.mubr.bf16.mxu0 0
        %2443 = vmatmul.mubr.bf16.gmra.mrb[0].mxu0 %v2405
        %v2444 = vpop.f32.mrb[0].mxu0
        %v2445 = vadd.f32 0.0, %v2444
        %v2446 = vpop.f32.mrb[0].mxu0
        %v2447 = vpop.f32.mrb[0].mxu0
        %v2448 = vpop.f32.mrb[0].mxu0
        %2449 = vdwg.mxu0
        %2450 = vmatprep.subr.bf16.mxu0 0
        %2451 = vmatpush1.bf16.xpose.msra.mxu0 %v2042
        %2452 = vmatprep.subr.bf16.mxu0 0
        %2453 = vmatpush1.bf16.xpose.msra.mxu0 0
        %2454 = vmatprep.subr.bf16.mxu0 0
        %2455 = vmatpush1.bf16.xpose.msra.mxu0 0
        %2456 = vmatprep.subr.bf16.mxu0 0
        %2457 = vmatpush1.bf16.xpose.msra.mxu0 0
        %2458 = vmatprep.subr.bf16.mxu0 0
        %2459 = vmatpush1.bf16.xpose.msra.mxu0 0
        %2460 = vmatprep.subr.bf16.mxu0 0
        %2461 = vmatpush1.bf16.xpose.msra.mxu0 0
        %2462 = vmatprep.subr.bf16.mxu0 0
        %2463 = vmatpush1.bf16.xpose.msra.mxu0 0
        %2464 = vmatprep.subr.bf16.mxu0 0
        %2465 = vmatpush1.bf16.xpose.msra.mxu0 0
        %2466 = vmatprep.subr.bf16.mxu0 0
        %2467 = vmatpush1.bf16.xpose.msra.mxu0 0
        %2468 = vmatprep.subr.bf16.mxu0 0
        %2469 = vmatpush1.bf16.xpose.msra.mxu0 0
        %2470 = vmatprep.subr.bf16.mxu0 0
        %2471 = vmatpush1.bf16.xpose.msra.mxu0 0
        %2472 = vmatprep.subr.bf16.mxu0 0
        %2473 = vmatpush1.bf16.xpose.msra.mxu0 0
        %2474 = vmatprep.subr.bf16.mxu0 0
        %2475 = vmatpush1.bf16.xpose.msra.mxu0 0
        %2476 = vmatprep.subr.bf16.mxu0 0
        %2477 = vmatpush1.bf16.xpose.msra.mxu0 0
        %2478 = vmatprep.subr.bf16.mxu0 0
        %2479 = vmatpush1.bf16.xpose.msra.mxu0 0
        %2480 = vmatprep.subr.bf16.mxu0 0
        %2481 = vmatpush1.bf16.xpose.msra.mxu0 0
        %2482 = vmatprep.mubr.bf16.mxu0 0
        %2483 = vmatmul.mubr.bf16.gmra.mrb[0].mxu0 %v2034
        %v2484 = vpop.f32.mrb[0].mxu0
        %v2485 = vadd.f32 %v1132, %v2484
        %v2486 = vpop.f32.mrb[0].mxu0
        %v2487 = vpop.f32.mrb[0].mxu0
        %v2488 = vpop.f32.mrb[0].mxu0
        %2489 = vdwg.mxu0
        %2490 = vmatprep.subr.bf16.mxu0 0
        %2491 = vmatpush1.bf16.xpose.msra.mxu0 %v2046
        %2492 = vmatprep.subr.bf16.mxu0 0
        %2493 = vmatpush1.bf16.xpose.msra.mxu0 0
        %2494 = vmatprep.subr.bf16.mxu0 0
        %2495 = vmatpush1.bf16.xpose.msra.mxu0 0
        %2496 = vmatprep.subr.bf16.mxu0 0
        %2497 = vmatpush1.bf16.xpose.msra.mxu0 0
        %2498 = vmatprep.subr.bf16.mxu0 0
        %2499 = vmatpush1.bf16.xpose.msra.mxu0 0
        %2500 = vmatprep.subr.bf16.mxu0 0
        %2501 = vmatpush1.bf16.xpose.msra.mxu0 0
        %2502 = vmatprep.subr.bf16.mxu0 0
        %2503 = vmatpush1.bf16.xpose.msra.mxu0 0
        %2504 = vmatprep.subr.bf16.mxu0 0
        %2505 = vmatpush1.bf16.xpose.msra.mxu0 0
        %2506 = vmatprep.subr.bf16.mxu0 0
        %2507 = vmatpush1.bf16.xpose.msra.mxu0 0
        %2508 = vmatprep.subr.bf16.mxu0 0
        %2509 = vmatpush1.bf16.xpose.msra.mxu0 0
        %2510 = vmatprep.subr.bf16.mxu0 0
        %2511 = vmatpush1.bf16.xpose.msra.mxu0 0
        %2512 = vmatprep.subr.bf16.mxu0 0
        %2513 = vmatpush1.bf16.xpose.msra.mxu0 0
        %2514 = vmatprep.subr.bf16.mxu0 0
        %2515 = vmatpush1.bf16.xpose.msra.mxu0 0
        %2516 = vmatprep.subr.bf16.mxu0 0
        %2517 = vmatpush1.bf16.xpose.msra.mxu0 0
        %2518 = vmatprep.subr.bf16.mxu0 0
        %2519 = vmatpush1.bf16.xpose.msra.mxu0 0
        %2520 = vmatprep.subr.bf16.mxu0 0
        %2521 = vmatpush1.bf16.xpose.msra.mxu0 0
        %2522 = vmatprep.mubr.bf16.mxu0 0
        %2523 = vmatmul.mubr.bf16.gmra.mrb[0].mxu0 %v2038
        %v2524 = vpop.f32.mrb[0].mxu0
        %v2525 = vadd.f32 %v1132, %v2524
        %v2526 = vpop.f32.mrb[0].mxu0
        %v2527 = vpop.f32.mrb[0].mxu0
        %v2528 = vpop.f32.mrb[0].mxu0
        %2529 = vdwg.mxu0
        %v2530 = vsel %vm2136, %v2485, -inf
        %2531 = vmax.xlane.f32.xlu0 %v2530
        %v2532 = vpop.xlane.xlu0 %2531
        %v2533 = vsel %vm2136, %v2525, -inf
        %2534 = vmax.xlane.f32.xlu0 %v2533
        %v2535 = vpop.xlane.xlu0 %2534
        %v2536 = vsub.f32 %v2485, %v2532
        %v2537 = vsub.f32 %v2525, %v2535
        %v2538 = vmul.f32 %v2536, 1.442695
        %v2539 = vpow.pop %v2538
        %v2540 = vmul.f32 %v2537, 1.442695
        %v2541 = vpow.pop %v2540
        %v2542 = vsel %vm2136, %v2539, 0.0
        %2543 = vadd.xlane.f32.xlu0 %v2542
        %v2544 = vpop.xlane.xlu0 %2543
        %v2545 = vsel %vm2136, %v2541, 0.0
        %2546 = vadd.xlane.f32.xlu0 %v2545
        %v2547 = vpop.xlane.xlu0 %2546
        %v2548 = vrcp.pop %v2544
        %v2549 = vrcp.pop %v2547
        %v2550 = vmul.f32 %v2539, %v2548
        %v2551 = vmul.f32 %v2541, %v2549
        %v2552 = vpack.c.bf16 %v2550, %v2550
        %v2553 = vpack.c.bf16 %v2551, %v2551
        %v2555 = vsel %vm2136, %v2552, 0
        %v2558 = vsel %vm2164, %v2050, 0
        %2560 = vmatprep.subr.bf16.mxu0 0
        %2561 = vmatpush1.bf16.msra.mxu0 %v2558
        %2562 = vmatprep.subr.bf16.mxu0 0
        %2563 = vmatpush1.bf16.msra.mxu0 0
        %2564 = vmatprep.subr.bf16.mxu0 0
        %2565 = vmatpush1.bf16.msra.mxu0 0
        %2566 = vmatprep.subr.bf16.mxu0 0
        %2567 = vmatpush1.bf16.msra.mxu0 0
        %2568 = vmatprep.subr.bf16.mxu0 0
        %2569 = vmatpush1.bf16.msra.mxu0 0
        %2570 = vmatprep.subr.bf16.mxu0 0
        %2571 = vmatpush1.bf16.msra.mxu0 0
        %2572 = vmatprep.subr.bf16.mxu0 0
        %2573 = vmatpush1.bf16.msra.mxu0 0
        %2574 = vmatprep.subr.bf16.mxu0 0
        %2575 = vmatpush1.bf16.msra.mxu0 0
        %2576 = vmatprep.subr.bf16.mxu0 0
        %2577 = vmatpush1.bf16.msra.mxu0 0
        %2578 = vmatprep.subr.bf16.mxu0 0
        %2579 = vmatpush1.bf16.msra.mxu0 0
        %2580 = vmatprep.subr.bf16.mxu0 0
        %2581 = vmatpush1.bf16.msra.mxu0 0
        %2582 = vmatprep.subr.bf16.mxu0 0
        %2583 = vmatpush1.bf16.msra.mxu0 0
        %2584 = vmatprep.subr.bf16.mxu0 0
        %2585 = vmatpush1.bf16.msra.mxu0 0
        %2586 = vmatprep.subr.bf16.mxu0 0
        %2587 = vmatpush1.bf16.msra.mxu0 0
        %2588 = vmatprep.subr.bf16.mxu0 0
        %2589 = vmatpush1.bf16.msra.mxu0 0
        %2590 = vmatprep.subr.bf16.mxu0 0
        %2591 = vmatpush1.bf16.msra.mxu0 0
        %2592 = vmatprep.mubr.bf16.mxu0 0
        %2593 = vmatmul.mubr.bf16.gmra.mrb[0].mxu0 %v2555
        %v2594 = vpop.f32.mrb[0].mxu0
        %v2595 = vadd.f32 0.0, %v2594
        %v2596 = vpop.f32.mrb[0].mxu0
        %v2597 = vpop.f32.mrb[0].mxu0
        %v2598 = vpop.f32.mrb[0].mxu0
        %2599 = vdwg.mxu0
        %v2601 = vsel %vm2136, %v2553, 0
        %v2604 = vsel %vm2164, %v2054, 0
        %2606 = vmatprep.subr.bf16.mxu0 0
        %2607 = vmatpush1.bf16.msra.mxu0 %v2604
        %2608 = vmatprep.subr.bf16.mxu0 0
        %2609 = vmatpush1.bf16.msra.mxu0 0
        %2610 = vmatprep.subr.bf16.mxu0 0
        %2611 = vmatpush1.bf16.msra.mxu0 0
        %2612 = vmatprep.subr.bf16.mxu0 0
        %2613 = vmatpush1.bf16.msra.mxu0 0
        %2614 = vmatprep.subr.bf16.mxu0 0
        %2615 = vmatpush1.bf16.msra.mxu0 0
        %2616 = vmatprep.subr.bf16.mxu0 0
        %2617 = vmatpush1.bf16.msra.mxu0 0
        %2618 = vmatprep.subr.bf16.mxu0 0
        %2619 = vmatpush1.bf16.msra.mxu0 0
        %2620 = vmatprep.subr.bf16.mxu0 0
        %2621 = vmatpush1.bf16.msra.mxu0 0
        %2622 = vmatprep.subr.bf16.mxu0 0
        %2623 = vmatpush1.bf16.msra.mxu0 0
        %2624 = vmatprep.subr.bf16.mxu0 0
        %2625 = vmatpush1.bf16.msra.mxu0 0
        %2626 = vmatprep.subr.bf16.mxu0 0
        %2627 = vmatpush1.bf16.msra.mxu0 0
        %2628 = vmatprep.subr.bf16.mxu0 0
        %2629 = vmatpush1.bf16.msra.mxu0 0
        %2630 = vmatprep.subr.bf16.mxu0 0
        %2631 = vmatpush1.bf16.msra.mxu0 0
        %2632 = vmatprep.subr.bf16.mxu0 0
        %2633 = vmatpush1.bf16.msra.mxu0 0
        %2634 = vmatprep.subr.bf16.mxu0 0
        %2635 = vmatpush1.bf16.msra.mxu0 0
        %2636 = vmatprep.subr.bf16.mxu0 0
        %2637 = vmatpush1.bf16.msra.mxu0 0
        %2638 = vmatprep.mubr.bf16.mxu0 0
        %2639 = vmatmul.mubr.bf16.gmra.mrb[0].mxu0 %v2601
        %v2640 = vpop.f32.mrb[0].mxu0
        %v2641 = vadd.f32 0.0, %v2640
        %v2642 = vpop.f32.mrb[0].mxu0
        %v2643 = vpop.f32.mrb[0].mxu0
        %v2644 = vpop.f32.mrb[0].mxu0
        %2645 = vdwg.mxu0
        %2646 = vmatprep.subr.bf16.mxu0 0
        %2647 = vmatpush1.bf16.xpose.msra.mxu0 %v2043
        %2648 = vmatprep.subr.bf16.mxu0 0
        %2649 = vmatpush1.bf16.xpose.msra.mxu0 0
        %2650 = vmatprep.subr.bf16.mxu0 0
        %2651 = vmatpush1.bf16.xpose.msra.mxu0 0
        %2652 = vmatprep.subr.bf16.mxu0 0
        %2653 = vmatpush1.bf16.xpose.msra.mxu0 0
        %2654 = vmatprep.subr.bf16.mxu0 0
        %2655 = vmatpush1.bf16.xpose.msra.mxu0 0
        %2656 = vmatprep.subr.bf16.mxu0 0
        %2657 = vmatpush1.bf16.xpose.msra.mxu0 0
        %2658 = vmatprep.subr.bf16.mxu0 0
        %2659 = vmatpush1.bf16.xpose.msra.mxu0 0
        %2660 = vmatprep.subr.bf16.mxu0 0
        %2661 = vmatpush1.bf16.xpose.msra.mxu0 0
        %2662 = vmatprep.subr.bf16.mxu0 0
        %2663 = vmatpush1.bf16.xpose.msra.mxu0 0
        %2664 = vmatprep.subr.bf16.mxu0 0
        %2665 = vmatpush1.bf16.xpose.msra.mxu0 0
        %2666 = vmatprep.subr.bf16.mxu0 0
        %2667 = vmatpush1.bf16.xpose.msra.mxu0 0
        %2668 = vmatprep.subr.bf16.mxu0 0
        %2669 = vmatpush1.bf16.xpose.msra.mxu0 0
        %2670 = vmatprep.subr.bf16.mxu0 0
        %2671 = vmatpush1.bf16.xpose.msra.mxu0 0
        %2672 = vmatprep.subr.bf16.mxu0 0
        %2673 = vmatpush1.bf16.xpose.msra.mxu0 0
        %2674 = vmatprep.subr.bf16.mxu0 0
        %2675 = vmatpush1.bf16.xpose.msra.mxu0 0
        %2676 = vmatprep.subr.bf16.mxu0 0
        %2677 = vmatpush1.bf16.xpose.msra.mxu0 0
        %2678 = vmatprep.mubr.bf16.mxu0 0
        %2679 = vmatmul.mubr.bf16.gmra.mrb[0].mxu0 %v2035
        %v2680 = vpop.f32.mrb[0].mxu0
        %v2681 = vadd.f32 %v1132, %v2680
        %v2682 = vpop.f32.mrb[0].mxu0
        %v2683 = vpop.f32.mrb[0].mxu0
        %v2684 = vpop.f32.mrb[0].mxu0
        %2685 = vdwg.mxu0
        %2686 = vmatprep.subr.bf16.mxu0 0
        %2687 = vmatpush1.bf16.xpose.msra.mxu0 %v2047
        %2688 = vmatprep.subr.bf16.mxu0 0
        %2689 = vmatpush1.bf16.xpose.msra.mxu0 0
        %2690 = vmatprep.subr.bf16.mxu0 0
        %2691 = vmatpush1.bf16.xpose.msra.mxu0 0
        %2692 = vmatprep.subr.bf16.mxu0 0
        %2693 = vmatpush1.bf16.xpose.msra.mxu0 0
        %2694 = vmatprep.subr.bf16.mxu0 0
        %2695 = vmatpush1.bf16.xpose.msra.mxu0 0
        %2696 = vmatprep.subr.bf16.mxu0 0
        %2697 = vmatpush1.bf16.xpose.msra.mxu0 0
        %2698 = vmatprep.subr.bf16.mxu0 0
        %2699 = vmatpush1.bf16.xpose.msra.mxu0 0
        %2700 = vmatprep.subr.bf16.mxu0 0
        %2701 = vmatpush1.bf16.xpose.msra.mxu0 0
        %2702 = vmatprep.subr.bf16.mxu0 0
        %2703 = vmatpush1.bf16.xpose.msra.mxu0 0
        %2704 = vmatprep.subr.bf16.mxu0 0
        %2705 = vmatpush1.bf16.xpose.msra.mxu0 0
        %2706 = vmatprep.subr.bf16.mxu0 0
        %2707 = vmatpush1.bf16.xpose.msra.mxu0 0
        %2708 = vmatprep.subr.bf16.mxu0 0
        %2709 = vmatpush1.bf16.xpose.msra.mxu0 0
        %2710 = vmatprep.subr.bf16.mxu0 0
        %2711 = vmatpush1.bf16.xpose.msra.mxu0 0
        %2712 = vmatprep.subr.bf16.mxu0 0
        %2713 = vmatpush1.bf16.xpose.msra.mxu0 0
        %2714 = vmatprep.subr.bf16.mxu0 0
        %2715 = vmatpush1.bf16.xpose.msra.mxu0 0
        %2716 = vmatprep.subr.bf16.mxu0 0
        %2717 = vmatpush1.bf16.xpose.msra.mxu0 0
        %2718 = vmatprep.mubr.bf16.mxu0 0
        %2719 = vmatmul.mubr.bf16.gmra.mrb[0].mxu0 %v2039
        %v2720 = vpop.f32.mrb[0].mxu0
        %v2721 = vadd.f32 %v1132, %v2720
        %v2722 = vpop.f32.mrb[0].mxu0
        %v2723 = vpop.f32.mrb[0].mxu0
        %v2724 = vpop.f32.mrb[0].mxu0
        %2725 = vdwg.mxu0
        %v2726 = vsel %vm2136, %v2681, -inf
        %2727 = vmax.xlane.f32.xlu0 %v2726
        %v2728 = vpop.xlane.xlu0 %2727
        %v2729 = vsel %vm2136, %v2721, -inf
        %2730 = vmax.xlane.f32.xlu0 %v2729
        %v2731 = vpop.xlane.xlu0 %2730
        %v2732 = vsub.f32 %v2681, %v2728
        %v2733 = vsub.f32 %v2721, %v2731
        %v2734 = vmul.f32 %v2732, 1.442695
        %v2735 = vpow.pop %v2734
        %v2736 = vmul.f32 %v2733, 1.442695
        %v2737 = vpow.pop %v2736
        %v2738 = vsel %vm2136, %v2735, 0.0
        %2739 = vadd.xlane.f32.xlu0 %v2738
        %v2740 = vpop.xlane.xlu0 %2739
        %v2741 = vsel %vm2136, %v2737, 0.0
        %2742 = vadd.xlane.f32.xlu0 %v2741
        %v2743 = vpop.xlane.xlu0 %2742
        %v2744 = vrcp.pop %v2740
        %v2745 = vrcp.pop %v2743
        %v2746 = vmul.f32 %v2735, %v2744
        %v2747 = vmul.f32 %v2737, %v2745
        %v2748 = vpack.c.bf16 %v2746, %v2746
        %v2749 = vpack.c.bf16 %v2747, %v2747
        %v2751 = vsel %vm2136, %v2748, 0
        %v2754 = vsel %vm2164, %v2051, 0
        %2756 = vmatprep.subr.bf16.mxu0 0
        %2757 = vmatpush1.bf16.msra.mxu0 %v2754
        %2758 = vmatprep.subr.bf16.mxu0 0
        %2759 = vmatpush1.bf16.msra.mxu0 0
        %2760 = vmatprep.subr.bf16.mxu0 0
        %2761 = vmatpush1.bf16.msra.mxu0 0
        %2762 = vmatprep.subr.bf16.mxu0 0
        %2763 = vmatpush1.bf16.msra.mxu0 0
        %2764 = vmatprep.subr.bf16.mxu0 0
        %2765 = vmatpush1.bf16.msra.mxu0 0
        %2766 = vmatprep.subr.bf16.mxu0 0
        %2767 = vmatpush1.bf16.msra.mxu0 0
        %2768 = vmatprep.subr.bf16.mxu0 0
        %2769 = vmatpush1.bf16.msra.mxu0 0
        %2770 = vmatprep.subr.bf16.mxu0 0
        %2771 = vmatpush1.bf16.msra.mxu0 0
        %2772 = vmatprep.subr.bf16.mxu0 0
        %2773 = vmatpush1.bf16.msra.mxu0 0
        %2774 = vmatprep.subr.bf16.mxu0 0
        %2775 = vmatpush1.bf16.msra.mxu0 0
        %2776 = vmatprep.subr.bf16.mxu0 0
        %2777 = vmatpush1.bf16.msra.mxu0 0
        %2778 = vmatprep.subr.bf16.mxu0 0
        %2779 = vmatpush1.bf16.msra.mxu0 0
        %2780 = vmatprep.subr.bf16.mxu0 0
        %2781 = vmatpush1.bf16.msra.mxu0 0
        %2782 = vmatprep.subr.bf16.mxu0 0
        %2783 = vmatpush1.bf16.msra.mxu0 0
        %2784 = vmatprep.subr.bf16.mxu0 0
        %2785 = vmatpush1.bf16.msra.mxu0 0
        %2786 = vmatprep.subr.bf16.mxu0 0
        %2787 = vmatpush1.bf16.msra.mxu0 0
        %2788 = vmatprep.mubr.bf16.mxu0 0
        %2789 = vmatmul.mubr.bf16.gmra.mrb[0].mxu0 %v2751
        %v2790 = vpop.f32.mrb[0].mxu0
        %v2791 = vadd.f32 0.0, %v2790
        %v2792 = vpop.f32.mrb[0].mxu0
        %v2793 = vpop.f32.mrb[0].mxu0
        %v2794 = vpop.f32.mrb[0].mxu0
        %2795 = vdwg.mxu0
        %v2797 = vsel %vm2136, %v2749, 0
        %v2800 = vsel %vm2164, %v2055, 0
        %2802 = vmatprep.subr.bf16.mxu0 0
        %2803 = vmatpush1.bf16.msra.mxu0 %v2800
        %2804 = vmatprep.subr.bf16.mxu0 0
        %2805 = vmatpush1.bf16.msra.mxu0 0
        %2806 = vmatprep.subr.bf16.mxu0 0
        %2807 = vmatpush1.bf16.msra.mxu0 0
        %2808 = vmatprep.subr.bf16.mxu0 0
        %2809 = vmatpush1.bf16.msra.mxu0 0
        %2810 = vmatprep.subr.bf16.mxu0 0
        %2811 = vmatpush1.bf16.msra.mxu0 0
        %2812 = vmatprep.subr.bf16.mxu0 0
        %2813 = vmatpush1.bf16.msra.mxu0 0
        %2814 = vmatprep.subr.bf16.mxu0 0
        %2815 = vmatpush1.bf16.msra.mxu0 0
        %2816 = vmatprep.subr.bf16.mxu0 0
        %2817 = vmatpush1.bf16.msra.mxu0 0
        %2818 = vmatprep.subr.bf16.mxu0 0
        %2819 = vmatpush1.bf16.msra.mxu0 0
        %2820 = vmatprep.subr.bf16.mxu0 0
        %2821 = vmatpush1.bf16.msra.mxu0 0
        %2822 = vmatprep.subr.bf16.mxu0 0
        %2823 = vmatpush1.bf16.msra.mxu0 0
        %2824 = vmatprep.subr.bf16.mxu0 0
        %2825 = vmatpush1.bf16.msra.mxu0 0
        %2826 = vmatprep.subr.bf16.mxu0 0
        %2827 = vmatpush1.bf16.msra.mxu0 0
        %2828 = vmatprep.subr.bf16.mxu0 0
        %2829 = vmatpush1.bf16.msra.mxu0 0
        %2830 = vmatprep.subr.bf16.mxu0 0
        %2831 = vmatpush1.bf16.msra.mxu0 0
        %2832 = vmatprep.subr.bf16.mxu0 0
        %2833 = vmatpush1.bf16.msra.mxu0 0
        %2834 = vmatprep.mubr.bf16.mxu0 0
        %2835 = vmatmul.mubr.bf16.gmra.mrb[0].mxu0 %v2797
        %v2836 = vpop.f32.mrb[0].mxu0
        %v2837 = vadd.f32 0.0, %v2836
        %v2838 = vpop.f32.mrb[0].mxu0
        %v2839 = vpop.f32.mrb[0].mxu0
        %v2840 = vpop.f32.mrb[0].mxu0
        %2841 = vdwg.mxu0
        %v2842 = vpack.c.bf16 %v2249, %v2203
        %v2843 = vpack.c.bf16 %v2445, %v2399
        %v2844 = vpack.c.bf16 %v2641, %v2595
        %v2845 = vpack.c.bf16 %v2837, %v2791
        %v2846 = vld [vmem:[%s1069] sm:$0xf]
        %v2847 = vld [vmem:[%s1069 + $0x4] sm:$0xf]
        %v2848 = vld [vmem:[%s1069 + $0x8] sm:$0xf]
        %v2849 = vld [vmem:[%s1069 + $0xc] sm:$0xf]
        %v2850 = vld [vmem:[%s1069 + $0x10] sm:$0xf]
        %v2851 = vld [vmem:[%s1069 + $0x14] sm:$0xf]
        %v2852 = vld [vmem:[%s1069 + $0x18] sm:$0xf]
        %v2853 = vld [vmem:[%s1069 + $0x1c] sm:$0xf]
        %v2854 = vld [vmem:[%s1069 + $0x20] sm:$0xf]
        %v2855 = vld [vmem:[%s1069 + $0x24] sm:$0xf]
        %v2856 = vld [vmem:[%s1069 + $0x28] sm:$0xf]
        %v2857 = vld [vmem:[%s1069 + $0x2c] sm:$0xf]
        %v2858 = vld [vmem:[%s1069 + $0x30] sm:$0xf]
        %v2859 = vld [vmem:[%s1069 + $0x34] sm:$0xf]
        %v2860 = vld [vmem:[%s1069 + $0x38] sm:$0xf]
        %v2861 = vld [vmem:[%s1069 + $0x3c] sm:$0xf]
        %v2862 = vld [vmem:[%s1069 + $0x40] sm:$0xf]
        %v2863 = vld [vmem:[%s1069 + $0x44] sm:$0xf]
        %v2864 = vld [vmem:[%s1069 + $0x48] sm:$0xf]
        %v2865 = vld [vmem:[%s1069 + $0x4c] sm:$0xf]
        %v2866 = vld [vmem:[%s1069 + $0x50] sm:$0xf]
        %v2867 = vld [vmem:[%s1069 + $0x54] sm:$0xf]
        %v2868 = vld [vmem:[%s1069 + $0x58] sm:$0xf]
        %v2869 = vld [vmem:[%s1069 + $0x5c] sm:$0xf]
        %v2870 = vld [vmem:[%s1069 + $0x60] sm:$0xf]
        %v2871 = vld [vmem:[%s1069 + $0x64] sm:$0xf]
        %v2872 = vld [vmem:[%s1069 + $0x68] sm:$0xf]
        %v2873 = vld [vmem:[%s1069 + $0x6c] sm:$0xf]
        %v2874 = vld [vmem:[%s1069 + $0x70] sm:$0xf]
        %v2875 = vld [vmem:[%s1069 + $0x74] sm:$0xf]
        %v2876 = vld [vmem:[%s1069 + $0x78] sm:$0xf]
        %v2877 = vld [vmem:[%s1069 + $0x7c] sm:$0xf]
        %v2878 = vld [vmem:[%s1069 + $0x80] sm:$0xf]
        %v2879 = vld [vmem:[%s1069 + $0x84] sm:$0xf]
        %v2880 = vld [vmem:[%s1069 + $0x88] sm:$0xf]
        %v2881 = vld [vmem:[%s1069 + $0x8c] sm:$0xf]
        %v2882 = vld [vmem:[%s1069 + $0x90] sm:$0xf]
        %v2883 = vld [vmem:[%s1069 + $0x94] sm:$0xf]
        %v2884 = vld [vmem:[%s1069 + $0x98] sm:$0xf]
        %v2885 = vld [vmem:[%s1069 + $0x9c] sm:$0xf]
        %v2886 = vld [vmem:[%s1069 + $0xa0] sm:$0xf]
        %v2887 = vld [vmem:[%s1069 + $0xa4] sm:$0xf]
        %v2888 = vld [vmem:[%s1069 + $0xa8] sm:$0xf]
        %v2889 = vld [vmem:[%s1069 + $0xac] sm:$0xf]
        %v2890 = vld [vmem:[%s1069 + $0xb0] sm:$0xf]
        %v2891 = vld [vmem:[%s1069 + $0xb4] sm:$0xf]
        %v2892 = vld [vmem:[%s1069 + $0xb8] sm:$0xf]
        %v2893 = vld [vmem:[%s1069 + $0xbc] sm:$0xf]
        %v2894 = vld [vmem:[%s1069 + $0xc0] sm:$0xf]
        %v2895 = vld [vmem:[%s1069 + $0xc4] sm:$0xf]
        %v2896 = vld [vmem:[%s1069 + $0xc8] sm:$0xf]
        %v2897 = vld [vmem:[%s1069 + $0xcc] sm:$0xf]
        %v2898 = vld [vmem:[%s1069 + $0xd0] sm:$0xf]
        %v2899 = vld [vmem:[%s1069 + $0xd4] sm:$0xf]
        %v2900 = vld [vmem:[%s1069 + $0xd8] sm:$0xf]
        %v2901 = vld [vmem:[%s1069 + $0xdc] sm:$0xf]
        %v2902 = vld [vmem:[%s1069 + $0xe0] sm:$0xf]
        %v2903 = vld [vmem:[%s1069 + $0xe4] sm:$0xf]
        %v2904 = vld [vmem:[%s1069 + $0xe8] sm:$0xf]
        %v2905 = vld [vmem:[%s1069 + $0xec] sm:$0xf]
        %v2906 = vld [vmem:[%s1069 + $0xf0] sm:$0xf]
        %v2907 = vld [vmem:[%s1069 + $0xf4] sm:$0xf]
        %v2908 = vld [vmem:[%s1069 + $0xf8] sm:$0xf]
        %v2909 = vld [vmem:[%s1069 + $0xfc] sm:$0xf]
        %v2910 = vld [vmem:[%s1072] sm:$0x1]
        %v2912 = vlaneseq
        %v2913 = vshrl.u32 %v2912, 7
        %v2914 = vsub.s32 0, %v2913
        %v2915 = vrot.slane %v2910, %v2914
        %v2981 = vunpack.c.l.b16 %v2846
        %v2982 = vunpack.c.l.b16 %v2847
        %v2983 = vunpack.c.l.b16 %v2848
        %v2984 = vunpack.c.l.b16 %v2849
        %v2985 = vunpack.c.l.b16 %v2850
        %v2986 = vunpack.c.l.b16 %v2851
        %v2987 = vunpack.c.l.b16 %v2852
        %v2988 = vunpack.c.l.b16 %v2853
        %v2989 = vunpack.c.l.b16 %v2854
        %v2990 = vunpack.c.l.b16 %v2855
        %v2991 = vunpack.c.l.b16 %v2856
        %v2992 = vunpack.c.l.b16 %v2857
        %v2993 = vunpack.c.l.b16 %v2858
        %v2994 = vunpack.c.l.b16 %v2859
        %v2995 = vunpack.c.l.b16 %v2860
        %v2996 = vunpack.c.l.b16 %v2861
        %v2997 = vunpack.c.l.b16 %v2862
        %v2998 = vunpack.c.l.b16 %v2863
        %v2999 = vunpack.c.l.b16 %v2864
        %v3000 = vunpack.c.l.b16 %v2865
        %v3001 = vunpack.c.l.b16 %v2866
        %v3002 = vunpack.c.l.b16 %v2867
        %v3003 = vunpack.c.l.b16 %v2868
        %v3004 = vunpack.c.l.b16 %v2869
        %v3005 = vunpack.c.l.b16 %v2870
        %v3006 = vunpack.c.l.b16 %v2871
        %v3007 = vunpack.c.l.b16 %v2872
        %v3008 = vunpack.c.l.b16 %v2873
        %v3009 = vunpack.c.l.b16 %v2874
        %v3010 = vunpack.c.l.b16 %v2875
        %v3011 = vunpack.c.l.b16 %v2876
        %v3012 = vunpack.c.l.b16 %v2877
        %v3013 = vunpack.c.l.b16 %v2878
        %v3014 = vunpack.c.l.b16 %v2879
        %v3015 = vunpack.c.l.b16 %v2880
        %v3016 = vunpack.c.l.b16 %v2881
        %v3017 = vunpack.c.l.b16 %v2882
        %v3018 = vunpack.c.l.b16 %v2883
        %v3019 = vunpack.c.l.b16 %v2884
        %v3020 = vunpack.c.l.b16 %v2885
        %v3021 = vunpack.c.l.b16 %v2886
        %v3022 = vunpack.c.l.b16 %v2887
        %v3023 = vunpack.c.l.b16 %v2888
        %v3024 = vunpack.c.l.b16 %v2889
        %v3025 = vunpack.c.l.b16 %v2890
        %v3026 = vunpack.c.l.b16 %v2891
        %v3027 = vunpack.c.l.b16 %v2892
        %v3028 = vunpack.c.l.b16 %v2893
        %v3029 = vunpack.c.l.b16 %v2894
        %v3030 = vunpack.c.l.b16 %v2895
        %v3031 = vunpack.c.l.b16 %v2896
        %v3032 = vunpack.c.l.b16 %v2897
        %v3033 = vunpack.c.l.b16 %v2898
        %v3034 = vunpack.c.l.b16 %v2899
        %v3035 = vunpack.c.l.b16 %v2900
        %v3036 = vunpack.c.l.b16 %v2901
        %v3037 = vunpack.c.l.b16 %v2902
        %v3038 = vunpack.c.l.b16 %v2903
        %v3039 = vunpack.c.l.b16 %v2904
        %v3040 = vunpack.c.l.b16 %v2905
        %v3041 = vunpack.c.l.b16 %v2906
        %v3042 = vunpack.c.l.b16 %v2907
        %v3043 = vunpack.c.l.b16 %v2908
        %v3044 = vunpack.c.l.b16 %v2909
        %v3045 = vpack.c.b16 %v2982, %v2981
        %v3046 = vpack.c.b16 %v2984, %v2983
        %v3047 = vpack.c.b16 %v2986, %v2985
        %v3048 = vpack.c.b16 %v2988, %v2987
        %v3049 = vpack.c.b16 %v2990, %v2989
        %v3050 = vpack.c.b16 %v2992, %v2991
        %v3051 = vpack.c.b16 %v2994, %v2993
        %v3052 = vpack.c.b16 %v2996, %v2995
        %v3053 = vpack.c.b16 %v2998, %v2997
        %v3054 = vpack.c.b16 %v3000, %v2999
        %v3055 = vpack.c.b16 %v3002, %v3001
        %v3056 = vpack.c.b16 %v3004, %v3003
        %v3057 = vpack.c.b16 %v3006, %v3005
        %v3058 = vpack.c.b16 %v3008, %v3007
        %v3059 = vpack.c.b16 %v3010, %v3009
        %v3060 = vpack.c.b16 %v3012, %v3011
        %v3061 = vpack.c.b16 %v3014, %v3013
        %v3062 = vpack.c.b16 %v3016, %v3015
        %v3063 = vpack.c.b16 %v3018, %v3017
        %v3064 = vpack.c.b16 %v3020, %v3019
        %v3065 = vpack.c.b16 %v3022, %v3021
        %v3066 = vpack.c.b16 %v3024, %v3023
        %v3067 = vpack.c.b16 %v3026, %v3025
        %v3068 = vpack.c.b16 %v3028, %v3027
        %v3069 = vpack.c.b16 %v3030, %v3029
        %v3070 = vpack.c.b16 %v3032, %v3031
        %v3071 = vpack.c.b16 %v3034, %v3033
        %v3072 = vpack.c.b16 %v3036, %v3035
        %v3073 = vpack.c.b16 %v3038, %v3037
        %v3074 = vpack.c.b16 %v3040, %v3039
        %v3075 = vpack.c.b16 %v3042, %v3041
        %v3076 = vpack.c.b16 %v3044, %v3043
        %3109 = vmatprep.subr.bf16.mxu0 0
        %3110 = vmatpush1.bf16.msra.mxu0 %v3045
        %3111 = vmatprep.subr.bf16.mxu0 0
        %3112 = vmatpush1.bf16.msra.mxu0 %v3046
        %3113 = vmatprep.subr.bf16.mxu0 0
        %3114 = vmatpush1.bf16.msra.mxu0 %v3047
        %3115 = vmatprep.subr.bf16.mxu0 0
        %3116 = vmatpush1.bf16.msra.mxu0 %v3048
        %3117 = vmatprep.subr.bf16.mxu0 0
        %3118 = vmatpush1.bf16.msra.mxu0 %v3049
        %3119 = vmatprep.subr.bf16.mxu0 0
        %3120 = vmatpush1.bf16.msra.mxu0 %v3050
        %3121 = vmatprep.subr.bf16.mxu0 0
        %3122 = vmatpush1.bf16.msra.mxu0 %v3051
        %3123 = vmatprep.subr.bf16.mxu0 0
        %3124 = vmatpush1.bf16.msra.mxu0 %v3052
        %3125 = vmatprep.subr.bf16.mxu0 0
        %3126 = vmatpush1.bf16.msra.mxu0 %v3053
        %3127 = vmatprep.subr.bf16.mxu0 0
        %3128 = vmatpush1.bf16.msra.mxu0 %v3054
        %3129 = vmatprep.subr.bf16.mxu0 0
        %3130 = vmatpush1.bf16.msra.mxu0 %v3055
        %3131 = vmatprep.subr.bf16.mxu0 0
        %3132 = vmatpush1.bf16.msra.mxu0 %v3056
        %3133 = vmatprep.subr.bf16.mxu0 0
        %3134 = vmatpush1.bf16.msra.mxu0 %v3057
        %3135 = vmatprep.subr.bf16.mxu0 0
        %3136 = vmatpush1.bf16.msra.mxu0 %v3058
        %3137 = vmatprep.subr.bf16.mxu0 0
        %3138 = vmatpush1.bf16.msra.mxu0 %v3059
        %3139 = vmatprep.subr.bf16.mxu0 0
        %3140 = vmatpush1.bf16.msra.mxu0 %v3060
        %3141 = vmatprep.mubr.bf16.mxu0 %v2843
        %3142 = vmatmul.mubr.bf16.gmra.mrb[0].mxu0 %v2842
        %v3143 = vpop.f32.mrb[0].mxu0
        %v3144 = vadd.f32 %v2915, %v3143
        %v3145 = vpop.f32.mrb[0].mxu0
        %v3146 = vpop.f32.mrb[0].mxu0
        %v3147 = vadd.f32 %v2915, %v3146
        %v3148 = vpop.f32.mrb[0].mxu0
        %3149 = vdwg.mxu0
        %3150 = vmatprep.subr.bf16.mxu0 0
        %3151 = vmatpush1.bf16.msra.mxu0 %v3061
        %3152 = vmatprep.subr.bf16.mxu0 0
        %3153 = vmatpush1.bf16.msra.mxu0 %v3062
        %3154 = vmatprep.subr.bf16.mxu0 0
        %3155 = vmatpush1.bf16.msra.mxu0 %v3063
        %3156 = vmatprep.subr.bf16.mxu0 0
        %3157 = vmatpush1.bf16.msra.mxu0 %v3064
        %3158 = vmatprep.subr.bf16.mxu0 0
        %3159 = vmatpush1.bf16.msra.mxu0 %v3065
        %3160 = vmatprep.subr.bf16.mxu0 0
        %3161 = vmatpush1.bf16.msra.mxu0 %v3066
        %3162 = vmatprep.subr.bf16.mxu0 0
        %3163 = vmatpush1.bf16.msra.mxu0 %v3067
        %3164 = vmatprep.subr.bf16.mxu0 0
        %3165 = vmatpush1.bf16.msra.mxu0 %v3068
        %3166 = vmatprep.subr.bf16.mxu0 0
        %3167 = vmatpush1.bf16.msra.mxu0 %v3069
        %3168 = vmatprep.subr.bf16.mxu0 0
        %3169 = vmatpush1.bf16.msra.mxu0 %v3070
        %3170 = vmatprep.subr.bf16.mxu0 0
        %3171 = vmatpush1.bf16.msra.mxu0 %v3071
        %3172 = vmatprep.subr.bf16.mxu0 0
        %3173 = vmatpush1.bf16.msra.mxu0 %v3072
        %3174 = vmatprep.subr.bf16.mxu0 0
        %3175 = vmatpush1.bf16.msra.mxu0 %v3073
        %3176 = vmatprep.subr.bf16.mxu0 0
        %3177 = vmatpush1.bf16.msra.mxu0 %v3074
        %3178 = vmatprep.subr.bf16.mxu0 0
        %3179 = vmatpush1.bf16.msra.mxu0 %v3075
        %3180 = vmatprep.subr.bf16.mxu0 0
        %3181 = vmatpush1.bf16.msra.mxu0 %v3076
        %3182 = vmatprep.mubr.bf16.mxu0 %v2845
        %3183 = vmatmul.mubr.bf16.gmra.mrb[0].mxu0 %v2844
        %v3184 = vpop.f32.mrb[0].mxu0
        %v3185 = vadd.f32 %v3144, %v3184
        %v3186 = vpop.f32.mrb[0].mxu0
        %v3187 = vpop.f32.mrb[0].mxu0
        %v3188 = vadd.f32 %v3147, %v3187
        %v3189 = vpop.f32.mrb[0].mxu0
        %3190 = vdwg.mxu0
        %v3191 = vadd.f32 %v1123, %v3185
        %v3192 = vadd.f32 %v1124, %v3188
        %v3193 = vld [vmem:[%s1075] sm:$0x1]
        %v3194 = vld [vmem:[%s1078] sm:$0x1]
        %3195 = vadd.xlane.f32.xlu0 %v3191
        %v3196 = vpop.xlane.xlu0 %3195
        %3197 = vadd.xlane.f32.xlu0 %v3192
        %v3198 = vpop.xlane.xlu0 %3197
        %v3199 = vrcp.pop 128.0
        %v3200 = vmul.f32 %v3196, %v3199
        %v3201 = vmul.f32 %v3198, %v3199
        %v3202 = vsub.f32 %v3191, %v3200
        %v3203 = vsub.f32 %v3192, %v3201
        %v3204 = vmul.f32 %v3202, %v3202
        %v3205 = vmul.f32 %v3203, %v3203
        %3206 = vadd.xlane.f32.xlu0 %v3204
        %v3207 = vpop.xlane.xlu0 %3206
        %3208 = vadd.xlane.f32.xlu0 %v3205
        %v3209 = vpop.xlane.xlu0 %3208
        %v3210 = vmul.f32 %v3207, %v3199
        %v3211 = vmul.f32 %v3209, %v3199
        %v3212 = vadd.f32 %v3210, 1e-05
        %v3213 = vadd.f32 %v3211, 1e-05
        %v3214 = vrsqrt.pop %v3212
        %v3215 = vrsqrt.pop %v3213
        %v3216 = vmul.f32 %v3202, %v3214
        %v3217 = vmul.f32 %v3203, %v3215
        %v3219 = vlaneseq
        %v3220 = vshrl.u32 %v3219, 7
        %v3221 = vsub.s32 0, %v3220
        %v3222 = vrot.slane %v3193, %v3221
        %v3224 = vmul.f32 %v3216, %v3222
        %v3225 = vmul.f32 %v3217, %v3222
        %v3227 = vlaneseq
        %v3228 = vshrl.u32 %v3227, 7
        %v3229 = vsub.s32 0, %v3228
        %v3230 = vrot.slane %v3194, %v3229
        %v3232 = vadd.f32 %v3224, %v3230
        %v3233 = vadd.f32 %v3225, %v3230
        %v3234 = vpack.c.bf16 %v3188, %v3185
        %v3235 = vld [vmem:[%s896] sm:$0xff]
        %v3236 = vld [vmem:[%s896 + $0x8] sm:$0xff]
        %v3237 = vld [vmem:[%s896 + $0x10] sm:$0xff]
        %v3238 = vld [vmem:[%s896 + $0x18] sm:$0xff]
        %v3239 = vld [vmem:[%s896 + $0x20] sm:$0xff]
        %v3240 = vld [vmem:[%s896 + $0x28] sm:$0xff]
        %v3241 = vld [vmem:[%s896 + $0x30] sm:$0xff]
        %v3242 = vld [vmem:[%s896 + $0x38] sm:$0xff]
        %v3243 = vld [vmem:[%s896 + $0x40] sm:$0xff]
        %v3244 = vld [vmem:[%s896 + $0x48] sm:$0xff]
        %v3245 = vld [vmem:[%s896 + $0x50] sm:$0xff]
        %v3246 = vld [vmem:[%s896 + $0x58] sm:$0xff]
        %v3247 = vld [vmem:[%s896 + $0x60] sm:$0xff]
        %v3248 = vld [vmem:[%s896 + $0x68] sm:$0xff]
        %v3249 = vld [vmem:[%s896 + $0x70] sm:$0xff]
        %v3250 = vld [vmem:[%s896 + $0x78] sm:$0xff]
        %v3251 = vld [vmem:[%s896 + $0x80] sm:$0xff]
        %v3252 = vld [vmem:[%s896 + $0x88] sm:$0xff]
        %v3253 = vld [vmem:[%s896 + $0x90] sm:$0xff]
        %v3254 = vld [vmem:[%s896 + $0x98] sm:$0xff]
        %v3255 = vld [vmem:[%s896 + $0xa0] sm:$0xff]
        %v3256 = vld [vmem:[%s896 + $0xa8] sm:$0xff]
        %v3257 = vld [vmem:[%s896 + $0xb0] sm:$0xff]
        %v3258 = vld [vmem:[%s896 + $0xb8] sm:$0xff]
        %v3259 = vld [vmem:[%s896 + $0xc0] sm:$0xff]
        %v3260 = vld [vmem:[%s896 + $0xc8] sm:$0xff]
        %v3261 = vld [vmem:[%s896 + $0xd0] sm:$0xff]
        %v3262 = vld [vmem:[%s896 + $0xd8] sm:$0xff]
        %v3263 = vld [vmem:[%s896 + $0xe0] sm:$0xff]
        %v3264 = vld [vmem:[%s896 + $0xe8] sm:$0xff]
        %v3265 = vld [vmem:[%s896 + $0xf0] sm:$0xff]
        %v3266 = vld [vmem:[%s896 + $0xf8] sm:$0xff]
        %v3267 = vld [vmem:[%s1082] sm:$0xf]
        %v3269 = vlaneseq
        %v3270 = vshrl.u32 %v3269, 7
        %v3271 = vsub.s32 0, %v3270
        %v3272 = vrot.slane %v3267, %v3271
        %v3273 = vlaneseq
        %v3274 = vshrl.u32 %v3273, 7
        %v3275 = vsub.s32 1, %v3274
        %v3276 = vrot.slane %v3267, %v3275
        %v3277 = vlaneseq
        %v3278 = vshrl.u32 %v3277, 7
        %v3279 = vsub.s32 2, %v3278
        %v3280 = vrot.slane %v3267, %v3279
        %v3281 = vlaneseq
        %v3282 = vshrl.u32 %v3281, 7
        %v3283 = vsub.s32 3, %v3282
        %v3284 = vrot.slane %v3267, %v3283
        %v3321 = vunpack.c.l.b16 %v3235
        %v3322 = vunpack.c.h.b16 %v3235
        %v3323 = vunpack.c.l.b16 %v3236
        %v3324 = vunpack.c.h.b16 %v3236
        %v3325 = vunpack.c.l.b16 %v3237
        %v3326 = vunpack.c.h.b16 %v3237
        %v3327 = vunpack.c.l.b16 %v3238
        %v3328 = vunpack.c.h.b16 %v3238
        %v3329 = vunpack.c.l.b16 %v3239
        %v3330 = vunpack.c.h.b16 %v3239
        %v3331 = vunpack.c.l.b16 %v3240
        %v3332 = vunpack.c.h.b16 %v3240
        %v3333 = vunpack.c.l.b16 %v3241
        %v3334 = vunpack.c.h.b16 %v3241
        %v3335 = vunpack.c.l.b16 %v3242
        %v3336 = vunpack.c.h.b16 %v3242
        %v3337 = vunpack.c.l.b16 %v3243
        %v3338 = vunpack.c.h.b16 %v3243
        %v3339 = vunpack.c.l.b16 %v3244
        %v3340 = vunpack.c.h.b16 %v3244
        %v3341 = vunpack.c.l.b16 %v3245
        %v3342 = vunpack.c.h.b16 %v3245
        %v3343 = vunpack.c.l.b16 %v3246
        %v3344 = vunpack.c.h.b16 %v3246
        %v3345 = vunpack.c.l.b16 %v3247
        %v3346 = vunpack.c.h.b16 %v3247
        %v3347 = vunpack.c.l.b16 %v3248
        %v3348 = vunpack.c.h.b16 %v3248
        %v3349 = vunpack.c.l.b16 %v3249
        %v3350 = vunpack.c.h.b16 %v3249
        %v3351 = vunpack.c.l.b16 %v3250
        %v3352 = vunpack.c.h.b16 %v3250
        %v3353 = vunpack.c.l.b16 %v3251
        %v3354 = vunpack.c.h.b16 %v3251
        %v3355 = vunpack.c.l.b16 %v3252
        %v3356 = vunpack.c.h.b16 %v3252
        %v3357 = vunpack.c.l.b16 %v3253
        %v3358 = vunpack.c.h.b16 %v3253
        %v3359 = vunpack.c.l.b16 %v3254
        %v3360 = vunpack.c.h.b16 %v3254
        %v3361 = vunpack.c.l.b16 %v3255
        %v3362 = vunpack.c.h.b16 %v3255
        %v3363 = vunpack.c.l.b16 %v3256
        %v3364 = vunpack.c.h.b16 %v3256
        %v3365 = vunpack.c.l.b16 %v3257
        %v3366 = vunpack.c.h.b16 %v3257
        %v3367 = vunpack.c.l.b16 %v3258
        %v3368 = vunpack.c.h.b16 %v3258
        %v3369 = vunpack.c.l.b16 %v3259
        %v3370 = vunpack.c.h.b16 %v3259
        %v3371 = vunpack.c.l.b16 %v3260
        %v3372 = vunpack.c.h.b16 %v3260
        %v3373 = vunpack.c.l.b16 %v3261
        %v3374 = vunpack.c.h.b16 %v3261
        %v3375 = vunpack.c.l.b16 %v3262
        %v3376 = vunpack.c.h.b16 %v3262
        %v3377 = vunpack.c.l.b16 %v3263
        %v3378 = vunpack.c.h.b16 %v3263
        %v3379 = vunpack.c.l.b16 %v3264
        %v3380 = vunpack.c.h.b16 %v3264
        %v3381 = vunpack.c.l.b16 %v3265
        %v3382 = vunpack.c.h.b16 %v3265
        %v3383 = vunpack.c.l.b16 %v3266
        %v3384 = vunpack.c.h.b16 %v3266
        %v3385 = vpack.c.b16 %v3325, %v3321
        %v3386 = vpack.c.b16 %v3326, %v3322
        %v3387 = vpack.c.b16 %v3327, %v3323
        %v3388 = vpack.c.b16 %v3328, %v3324
        %v3389 = vpack.c.b16 %v3333, %v3329
        %v3390 = vpack.c.b16 %v3334, %v3330
        %v3391 = vpack.c.b16 %v3335, %v3331
        %v3392 = vpack.c.b16 %v3336, %v3332
        %v3393 = vpack.c.b16 %v3341, %v3337
        %v3394 = vpack.c.b16 %v3342, %v3338
        %v3395 = vpack.c.b16 %v3343, %v3339
        %v3396 = vpack.c.b16 %v3344, %v3340
        %v3397 = vpack.c.b16 %v3349, %v3345
        %v3398 = vpack.c.b16 %v3350, %v3346
        %v3399 = vpack.c.b16 %v3351, %v3347
        %v3400 = vpack.c.b16 %v3352, %v3348
        %v3401 = vpack.c.b16 %v3357, %v3353
        %v3402 = vpack.c.b16 %v3358, %v3354
        %v3403 = vpack.c.b16 %v3359, %v3355
        %v3404 = vpack.c.b16 %v3360, %v3356
        %v3405 = vpack.c.b16 %v3365, %v3361
        %v3406 = vpack.c.b16 %v3366, %v3362
        %v3407 = vpack.c.b16 %v3367, %v3363
        %v3408 = vpack.c.b16 %v3368, %v3364
        %v3409 = vpack.c.b16 %v3373, %v3369
        %v3410 = vpack.c.b16 %v3374, %v3370
        %v3411 = vpack.c.b16 %v3375, %v3371
        %v3412 = vpack.c.b16 %v3376, %v3372
        %v3413 = vpack.c.b16 %v3381, %v3377
        %v3414 = vpack.c.b16 %v3382, %v3378
        %v3415 = vpack.c.b16 %v3383, %v3379
        %v3416 = vpack.c.b16 %v3384, %v3380
        %3449 = vmatprep.subr.bf16.mxu0 %v3386
        %3450 = vmatpush1.bf16.msra.mxu0 %v3385
        %3451 = vmatprep.subr.bf16.mxu0 %v3390
        %3452 = vmatpush1.bf16.msra.mxu0 %v3389
        %3453 = vmatprep.subr.bf16.mxu0 %v3394
        %3454 = vmatpush1.bf16.msra.mxu0 %v3393
        %3455 = vmatprep.subr.bf16.mxu0 %v3398
        %3456 = vmatpush1.bf16.msra.mxu0 %v3397
        %3457 = vmatprep.subr.bf16.mxu0 %v3402
        %3458 = vmatpush1.bf16.msra.mxu0 %v3401
        %3459 = vmatprep.subr.bf16.mxu0 %v3406
        %3460 = vmatpush1.bf16.msra.mxu0 %v3405
        %3461 = vmatprep.subr.bf16.mxu0 %v3410
        %3462 = vmatpush1.bf16.msra.mxu0 %v3409
        %3463 = vmatprep.subr.bf16.mxu0 %v3414
        %3464 = vmatpush1.bf16.msra.mxu0 %v3413
        %3465 = vmatprep.subr.bf16.mxu0 0
        %3466 = vmatpush1.bf16.msra.mxu0 0
        %3467 = vmatprep.subr.bf16.mxu0 0
        %3468 = vmatpush1.bf16.msra.mxu0 0
        %3469 = vmatprep.subr.bf16.mxu0 0
        %3470 = vmatpush1.bf16.msra.mxu0 0
        %3471 = vmatprep.subr.bf16.mxu0 0
        %3472 = vmatpush1.bf16.msra.mxu0 0
        %3473 = vmatprep.subr.bf16.mxu0 0
        %3474 = vmatpush1.bf16.msra.mxu0 0
        %3475 = vmatprep.subr.bf16.mxu0 0
        %3476 = vmatpush1.bf16.msra.mxu0 0
        %3477 = vmatprep.subr.bf16.mxu0 0
        %3478 = vmatpush1.bf16.msra.mxu0 0
        %3479 = vmatprep.subr.bf16.mxu0 0
        %3480 = vmatpush1.bf16.msra.mxu0 0
        %3481 = vmatprep.mubr.bf16.mxu0 0
        %3482 = vmatmul.mubr.bf16.gmra.mrb[0].mxu0 %v3234
        %v3483 = vpop.f32.mrb[0].mxu0
        %v3484 = vadd.f32 %v3272, %v3483
        %v3485 = vpop.f32.mrb[0].mxu0
        %v3486 = vadd.f32 %v3276, %v3485
        %v3487 = vpop.f32.mrb[0].mxu0
        %v3488 = vadd.f32 %v3272, %v3487
        %v3489 = vpop.f32.mrb[0].mxu0
        %v3490 = vadd.f32 %v3276, %v3489
        %3491 = vdwg.mxu0
        %3492 = vmatprep.subr.bf16.mxu0 %v3388
        %3493 = vmatpush1.bf16.msra.mxu0 %v3387
        %3494 = vmatprep.subr.bf16.mxu0 %v3392
        %3495 = vmatpush1.bf16.msra.mxu0 %v3391
        %3496 = vmatprep.subr.bf16.mxu0 %v3396
        %3497 = vmatpush1.bf16.msra.mxu0 %v3395
        %3498 = vmatprep.subr.bf16.mxu0 %v3400
        %3499 = vmatpush1.bf16.msra.mxu0 %v3399
        %3500 = vmatprep.subr.bf16.mxu0 %v3404
        %3501 = vmatpush1.bf16.msra.mxu0 %v3403
        %3502 = vmatprep.subr.bf16.mxu0 %v3408
        %3503 = vmatpush1.bf16.msra.mxu0 %v3407
        %3504 = vmatprep.subr.bf16.mxu0 %v3412
        %3505 = vmatpush1.bf16.msra.mxu0 %v3411
        %3506 = vmatprep.subr.bf16.mxu0 %v3416
        %3507 = vmatpush1.bf16.msra.mxu0 %v3415
        %3508 = vmatprep.subr.bf16.mxu0 0
        %3509 = vmatpush1.bf16.msra.mxu0 0
        %3510 = vmatprep.subr.bf16.mxu0 0
        %3511 = vmatpush1.bf16.msra.mxu0 0
        %3512 = vmatprep.subr.bf16.mxu0 0
        %3513 = vmatpush1.bf16.msra.mxu0 0
        %3514 = vmatprep.subr.bf16.mxu0 0
        %3515 = vmatpush1.bf16.msra.mxu0 0
        %3516 = vmatprep.subr.bf16.mxu0 0
        %3517 = vmatpush1.bf16.msra.mxu0 0
        %3518 = vmatprep.subr.bf16.mxu0 0
        %3519 = vmatpush1.bf16.msra.mxu0 0
        %3520 = vmatprep.subr.bf16.mxu0 0
        %3521 = vmatpush1.bf16.msra.mxu0 0
        %3522 = vmatprep.subr.bf16.mxu0 0
        %3523 = vmatpush1.bf16.msra.mxu0 0
        %3524 = vmatprep.mubr.bf16.mxu0 0
        %3525 = vmatmul.mubr.bf16.gmra.mrb[0].mxu0 %v3234
        %v3526 = vpop.f32.mrb[0].mxu0
        %v3527 = vadd.f32 %v3280, %v3526
        %v3528 = vpop.f32.mrb[0].mxu0
        %v3529 = vadd.f32 %v3284, %v3528
        %v3530 = vpop.f32.mrb[0].mxu0
        %v3531 = vadd.f32 %v3280, %v3530
        %v3532 = vpop.f32.mrb[0].mxu0
        %v3533 = vadd.f32 %v3284, %v3532
        %3534 = vdwg.mxu0
        %v3535 = vpack.c.bf16 %v1126, %v1125
        %v3536 = vld [vmem:[%s1087] sm:$0xff]
        %v3537 = vld [vmem:[%s1087 + $0x8] sm:$0xff]
        %v3538 = vld [vmem:[%s1087 + $0x10] sm:$0xff]
        %v3539 = vld [vmem:[%s1087 + $0x18] sm:$0xff]
        %v3540 = vld [vmem:[%s1087 + $0x20] sm:$0xff]
        %v3541 = vld [vmem:[%s1087 + $0x28] sm:$0xff]
        %v3542 = vld [vmem:[%s1087 + $0x30] sm:$0xff]
        %v3543 = vld [vmem:[%s1087 + $0x38] sm:$0xff]
        %v3544 = vld [vmem:[%s1087 + $0x40] sm:$0xff]
        %v3545 = vld [vmem:[%s1087 + $0x48] sm:$0xff]
        %v3546 = vld [vmem:[%s1087 + $0x50] sm:$0xff]
        %v3547 = vld [vmem:[%s1087 + $0x58] sm:$0xff]
        %v3548 = vld [vmem:[%s1087 + $0x60] sm:$0xff]
        %v3549 = vld [vmem:[%s1087 + $0x68] sm:$0xff]
        %v3550 = vld [vmem:[%s1087 + $0x70] sm:$0xff]
        %v3551 = vld [vmem:[%s1087 + $0x78] sm:$0xff]
        %v3552 = vld [vmem:[%s1087 + $0x80] sm:$0xff]
        %v3553 = vld [vmem:[%s1087 + $0x88] sm:$0xff]
        %v3554 = vld [vmem:[%s1087 + $0x90] sm:$0xff]
        %v3555 = vld [vmem:[%s1087 + $0x98] sm:$0xff]
        %v3556 = vld [vmem:[%s1087 + $0xa0] sm:$0xff]
        %v3557 = vld [vmem:[%s1087 + $0xa8] sm:$0xff]
        %v3558 = vld [vmem:[%s1087 + $0xb0] sm:$0xff]
        %v3559 = vld [vmem:[%s1087 + $0xb8] sm:$0xff]
        %v3560 = vld [vmem:[%s1087 + $0xc0] sm:$0xff]
        %v3561 = vld [vmem:[%s1087 + $0xc8] sm:$0xff]
        %v3562 = vld [vmem:[%s1087 + $0xd0] sm:$0xff]
        %v3563 = vld [vmem:[%s1087 + $0xd8] sm:$0xff]
        %v3564 = vld [vmem:[%s1087 + $0xe0] sm:$0xff]
        %v3565 = vld [vmem:[%s1087 + $0xe8] sm:$0xff]
        %v3566 = vld [vmem:[%s1087 + $0xf0] sm:$0xff]
        %v3567 = vld [vmem:[%s1087 + $0xf8] sm:$0xff]
        %v3568 = vld [vmem:[%s1087 + $0x100] sm:$0xff]
        %v3569 = vld [vmem:[%s1087 + $0x108] sm:$0xff]
        %v3570 = vld [vmem:[%s1087 + $0x110] sm:$0xff]
        %v3571 = vld [vmem:[%s1087 + $0x118] sm:$0xff]
        %v3572 = vld [vmem:[%s1087 + $0x120] sm:$0xff]
        %v3573 = vld [vmem:[%s1087 + $0x128] sm:$0xff]
        %v3574 = vld [vmem:[%s1087 + $0x130] sm:$0xff]
        %v3575 = vld [vmem:[%s1087 + $0x138] sm:$0xff]
        %v3576 = vld [vmem:[%s1087 + $0x140] sm:$0xff]
        %v3577 = vld [vmem:[%s1087 + $0x148] sm:$0xff]
        %v3578 = vld [vmem:[%s1087 + $0x150] sm:$0xff]
        %v3579 = vld [vmem:[%s1087 + $0x158] sm:$0xff]
        %v3580 = vld [vmem:[%s1087 + $0x160] sm:$0xff]
        %v3581 = vld [vmem:[%s1087 + $0x168] sm:$0xff]
        %v3582 = vld [vmem:[%s1087 + $0x170] sm:$0xff]
        %v3583 = vld [vmem:[%s1087 + $0x178] sm:$0xff]
        %v3584 = vld [vmem:[%s1087 + $0x180] sm:$0xff]
        %v3585 = vld [vmem:[%s1087 + $0x188] sm:$0xff]
        %v3586 = vld [vmem:[%s1087 + $0x190] sm:$0xff]
        %v3587 = vld [vmem:[%s1087 + $0x198] sm:$0xff]
        %v3588 = vld [vmem:[%s1087 + $0x1a0] sm:$0xff]
        %v3589 = vld [vmem:[%s1087 + $0x1a8] sm:$0xff]
        %v3590 = vld [vmem:[%s1087 + $0x1b0] sm:$0xff]
        %v3591 = vld [vmem:[%s1087 + $0x1b8] sm:$0xff]
        %v3592 = vld [vmem:[%s1087 + $0x1c0] sm:$0xff]
        %v3593 = vld [vmem:[%s1087 + $0x1c8] sm:$0xff]
        %v3594 = vld [vmem:[%s1087 + $0x1d0] sm:$0xff]
        %v3595 = vld [vmem:[%s1087 + $0x1d8] sm:$0xff]
        %v3596 = vld [vmem:[%s1087 + $0x1e0] sm:$0xff]
        %v3597 = vld [vmem:[%s1087 + $0x1e8] sm:$0xff]
        %v3598 = vld [vmem:[%s1087 + $0x1f0] sm:$0xff]
        %v3599 = vld [vmem:[%s1087 + $0x1f8] sm:$0xff]
        %v3600 = vld [vmem:[%s1091] sm:$0xff]
        %v3602 = vlaneseq
        %v3603 = vshrl.u32 %v3602, 7
        %v3604 = vsub.s32 0, %v3603
        %v3605 = vrot.slane %v3600, %v3604
        %v3606 = vlaneseq
        %v3607 = vshrl.u32 %v3606, 7
        %v3608 = vsub.s32 1, %v3607
        %v3609 = vrot.slane %v3600, %v3608
        %v3610 = vlaneseq
        %v3611 = vshrl.u32 %v3610, 7
        %v3612 = vsub.s32 2, %v3611
        %v3613 = vrot.slane %v3600, %v3612
        %v3614 = vlaneseq
        %v3615 = vshrl.u32 %v3614, 7
        %v3616 = vsub.s32 3, %v3615
        %v3617 = vrot.slane %v3600, %v3616
        %v3618 = vlaneseq
        %v3619 = vshrl.u32 %v3618, 7
        %v3620 = vsub.s32 4, %v3619
        %v3621 = vrot.slane %v3600, %v3620
        %v3622 = vlaneseq
        %v3623 = vshrl.u32 %v3622, 7
        %v3624 = vsub.s32 5, %v3623
        %v3625 = vrot.slane %v3600, %v3624
        %v3626 = vlaneseq
        %v3627 = vshrl.u32 %v3626, 7
        %v3628 = vsub.s32 6, %v3627
        %v3629 = vrot.slane %v3600, %v3628
        %v3630 = vlaneseq
        %v3631 = vshrl.u32 %v3630, 7
        %v3632 = vsub.s32 7, %v3631
        %v3633 = vrot.slane %v3600, %v3632
        %v3706 = vunpack.c.l.b16 %v3536
        %v3707 = vunpack.c.h.b16 %v3536
        %v3708 = vunpack.c.l.b16 %v3537
        %v3709 = vunpack.c.h.b16 %v3537
        %v3710 = vunpack.c.l.b16 %v3538
        %v3711 = vunpack.c.h.b16 %v3538
        %v3712 = vunpack.c.l.b16 %v3539
        %v3713 = vunpack.c.h.b16 %v3539
        %v3714 = vunpack.c.l.b16 %v3540
        %v3715 = vunpack.c.h.b16 %v3540
        %v3716 = vunpack.c.l.b16 %v3541
        %v3717 = vunpack.c.h.b16 %v3541
        %v3718 = vunpack.c.l.b16 %v3542
        %v3719 = vunpack.c.h.b16 %v3542
        %v3720 = vunpack.c.l.b16 %v3543
        %v3721 = vunpack.c.h.b16 %v3543
        %v3722 = vunpack.c.l.b16 %v3544
        %v3723 = vunpack.c.h.b16 %v3544
        %v3724 = vunpack.c.l.b16 %v3545
        %v3725 = vunpack.c.h.b16 %v3545
        %v3726 = vunpack.c.l.b16 %v3546
        %v3727 = vunpack.c.h.b16 %v3546
        %v3728 = vunpack.c.l.b16 %v3547
        %v3729 = vunpack.c.h.b16 %v3547
        %v3730 = vunpack.c.l.b16 %v3548
        %v3731 = vunpack.c.h.b16 %v3548
        %v3732 = vunpack.c.l.b16 %v3549
        %v3733 = vunpack.c.h.b16 %v3549
        %v3734 = vunpack.c.l.b16 %v3550
        %v3735 = vunpack.c.h.b16 %v3550
        %v3736 = vunpack.c.l.b16 %v3551
        %v3737 = vunpack.c.h.b16 %v3551
        %v3738 = vunpack.c.l.b16 %v3552
        %v3739 = vunpack.c.h.b16 %v3552
        %v3740 = vunpack.c.l.b16 %v3553
        %v3741 = vunpack.c.h.b16 %v3553
        %v3742 = vunpack.c.l.b16 %v3554
        %v3743 = vunpack.c.h.b16 %v3554
        %v3744 = vunpack.c.l.b16 %v3555
        %v3745 = vunpack.c.h.b16 %v3555
        %v3746 = vunpack.c.l.b16 %v3556
        %v3747 = vunpack.c.h.b16 %v3556
        %v3748 = vunpack.c.l.b16 %v3557
        %v3749 = vunpack.c.h.b16 %v3557
        %v3750 = vunpack.c.l.b16 %v3558
        %v3751 = vunpack.c.h.b16 %v3558
        %v3752 = vunpack.c.l.b16 %v3559
        %v3753 = vunpack.c.h.b16 %v3559
        %v3754 = vunpack.c.l.b16 %v3560
        %v3755 = vunpack.c.h.b16 %v3560
        %v3756 = vunpack.c.l.b16 %v3561
        %v3757 = vunpack.c.h.b16 %v3561
        %v3758 = vunpack.c.l.b16 %v3562
        %v3759 = vunpack.c.h.b16 %v3562
        %v3760 = vunpack.c.l.b16 %v3563
        %v3761 = vunpack.c.h.b16 %v3563
        %v3762 = vunpack.c.l.b16 %v3564
        %v3763 = vunpack.c.h.b16 %v3564
        %v3764 = vunpack.c.l.b16 %v3565
        %v3765 = vunpack.c.h.b16 %v3565
        %v3766 = vunpack.c.l.b16 %v3566
        %v3767 = vunpack.c.h.b16 %v3566
        %v3768 = vunpack.c.l.b16 %v3567
        %v3769 = vunpack.c.h.b16 %v3567
        %v3770 = vunpack.c.l.b16 %v3568
        %v3771 = vunpack.c.h.b16 %v3568
        %v3772 = vunpack.c.l.b16 %v3569
        %v3773 = vunpack.c.h.b16 %v3569
        %v3774 = vunpack.c.l.b16 %v3570
        %v3775 = vunpack.c.h.b16 %v3570
        %v3776 = vunpack.c.l.b16 %v3571
        %v3777 = vunpack.c.h.b16 %v3571
        %v3778 = vunpack.c.l.b16 %v3572
        %v3779 = vunpack.c.h.b16 %v3572
        %v3780 = vunpack.c.l.b16 %v3573
        %v3781 = vunpack.c.h.b16 %v3573
        %v3782 = vunpack.c.l.b16 %v3574
        %v3783 = vunpack.c.h.b16 %v3574
        %v3784 = vunpack.c.l.b16 %v3575
        %v3785 = vunpack.c.h.b16 %v3575
        %v3786 = vunpack.c.l.b16 %v3576
        %v3787 = vunpack.c.h.b16 %v3576
        %v3788 = vunpack.c.l.b16 %v3577
        %v3789 = vunpack.c.h.b16 %v3577
        %v3790 = vunpack.c.l.b16 %v3578
        %v3791 = vunpack.c.h.b16 %v3578
        %v3792 = vunpack.c.l.b16 %v3579
        %v3793 = vunpack.c.h.b16 %v3579
        %v3794 = vunpack.c.l.b16 %v3580
        %v3795 = vunpack.c.h.b16 %v3580
        %v3796 = vunpack.c.l.b16 %v3581
        %v3797 = vunpack.c.h.b16 %v3581
        %v3798 = vunpack.c.l.b16 %v3582
        %v3799 = vunpack.c.h.b16 %v3582
        %v3800 = vunpack.c.l.b16 %v3583
        %v3801 = vunpack.c.h.b16 %v3583
        %v3802 = vunpack.c.l.b16 %v3584
        %v3803 = vunpack.c.h.b16 %v3584
        %v3804 = vunpack.c.l.b16 %v3585
        %v3805 = vunpack.c.h.b16 %v3585
        %v3806 = vunpack.c.l.b16 %v3586
        %v3807 = vunpack.c.h.b16 %v3586
        %v3808 = vunpack.c.l.b16 %v3587
        %v3809 = vunpack.c.h.b16 %v3587
        %v3810 = vunpack.c.l.b16 %v3588
        %v3811 = vunpack.c.h.b16 %v3588
        %v3812 = vunpack.c.l.b16 %v3589
        %v3813 = vunpack.c.h.b16 %v3589
        %v3814 = vunpack.c.l.b16 %v3590
        %v3815 = vunpack.c.h.b16 %v3590
        %v3816 = vunpack.c.l.b16 %v3591
        %v3817 = vunpack.c.h.b16 %v3591
        %v3818 = vunpack.c.l.b16 %v3592
        %v3819 = vunpack.c.h.b16 %v3592
        %v3820 = vunpack.c.l.b16 %v3593
        %v3821 = vunpack.c.h.b16 %v3593
        %v3822 = vunpack.c.l.b16 %v3594
        %v3823 = vunpack.c.h.b16 %v3594
        %v3824 = vunpack.c.l.b16 %v3595
        %v3825 = vunpack.c.h.b16 %v3595
        %v3826 = vunpack.c.l.b16 %v3596
        %v3827 = vunpack.c.h.b16 %v3596
        %v3828 = vunpack.c.l.b16 %v3597
        %v3829 = vunpack.c.h.b16 %v3597
        %v3830 = vunpack.c.l.b16 %v3598
        %v3831 = vunpack.c.h.b16 %v3598
        %v3832 = vunpack.c.l.b16 %v3599
        %v3833 = vunpack.c.h.b16 %v3599
        %v3834 = vpack.c.b16 %v3714, %v3706
        %v3835 = vpack.c.b16 %v3715, %v3707
        %v3836 = vpack.c.b16 %v3716, %v3708
        %v3837 = vpack.c.b16 %v3717, %v3709
        %v3838 = vpack.c.b16 %v3718, %v3710
        %v3839 = vpack.c.b16 %v3719, %v3711
        %v3840 = vpack.c.b16 %v3720, %v3712
        %v3841 = vpack.c.b16 %v3721, %v3713
        %v3842 = vpack.c.b16 %v3730, %v3722
        %v3843 = vpack.c.b16 %v3731, %v3723
        %v3844 = vpack.c.b16 %v3732, %v3724
        %v3845 = vpack.c.b16 %v3733, %v3725
        %v3846 = vpack.c.b16 %v3734, %v3726
        %v3847 = vpack.c.b16 %v3735, %v3727
        %v3848 = vpack.c.b16 %v3736, %v3728
        %v3849 = vpack.c.b16 %v3737, %v3729
        %v3850 = vpack.c.b16 %v3746, %v3738
        %v3851 = vpack.c.b16 %v3747, %v3739
        %v3852 = vpack.c.b16 %v3748, %v3740
        %v3853 = vpack.c.b16 %v3749, %v3741
        %v3854 = vpack.c.b16 %v3750, %v3742
        %v3855 = vpack.c.b16 %v3751, %v3743
        %v3856 = vpack.c.b16 %v3752, %v3744
        %v3857 = vpack.c.b16 %v3753, %v3745
        %v3858 = vpack.c.b16 %v3762, %v3754
        %v3859 = vpack.c.b16 %v3763, %v3755
        %v3860 = vpack.c.b16 %v3764, %v3756
        %v3861 = vpack.c.b16 %v3765, %v3757
        %v3862 = vpack.c.b16 %v3766, %v3758
        %v3863 = vpack.c.b16 %v3767, %v3759
        %v3864 = vpack.c.b16 %v3768, %v3760
        %v3865 = vpack.c.b16 %v3769, %v3761
        %v3866 = vpack.c.b16 %v3778, %v3770
        %v3867 = vpack.c.b16 %v3779, %v3771
        %v3868 = vpack.c.b16 %v3780, %v3772
        %v3869 = vpack.c.b16 %v3781, %v3773
        %v3870 = vpack.c.b16 %v3782, %v3774
        %v3871 = vpack.c.b16 %v3783, %v3775
        %v3872 = vpack.c.b16 %v3784, %v3776
        %v3873 = vpack.c.b16 %v3785, %v3777
        %v3874 = vpack.c.b16 %v3794, %v3786
        %v3875 = vpack.c.b16 %v3795, %v3787
        %v3876 = vpack.c.b16 %v3796, %v3788
        %v3877 = vpack.c.b16 %v3797, %v3789
        %v3878 = vpack.c.b16 %v3798, %v3790
        %v3879 = vpack.c.b16 %v3799, %v3791
        %v3880 = vpack.c.b16 %v3800, %v3792
        %v3881 = vpack.c.b16 %v3801, %v3793
        %v3882 = vpack.c.b16 %v3810, %v3802
        %v3883 = vpack.c.b16 %v3811, %v3803
        %v3884 = vpack.c.b16 %v3812, %v3804
        %v3885 = vpack.c.b16 %v3813, %v3805
        %v3886 = vpack.c.b16 %v3814, %v3806
        %v3887 = vpack.c.b16 %v3815, %v3807
        %v3888 = vpack.c.b16 %v3816, %v3808
        %v3889 = vpack.c.b16 %v3817, %v3809
        %v3890 = vpack.c.b16 %v3826, %v3818
        %v3891 = vpack.c.b16 %v3827, %v3819
        %v3892 = vpack.c.b16 %v3828, %v3820
        %v3893 = vpack.c.b16 %v3829, %v3821
        %v3894 = vpack.c.b16 %v3830, %v3822
        %v3895 = vpack.c.b16 %v3831, %v3823
        %v3896 = vpack.c.b16 %v3832, %v3824
        %v3897 = vpack.c.b16 %v3833, %v3825
        %3962 = vmatprep.subr.bf16.mxu0 %v3835
        %3963 = vmatpush1.bf16.msra.mxu0 %v3834
        %3964 = vmatprep.subr.bf16.mxu0 %v3843
        %3965 = vmatpush1.bf16.msra.mxu0 %v3842
        %3966 = vmatprep.subr.bf16.mxu0 %v3851
        %3967 = vmatpush1.bf16.msra.mxu0 %v3850
        %3968 = vmatprep.subr.bf16.mxu0 %v3859
        %3969 = vmatpush1.bf16.msra.mxu0 %v3858
        %3970 = vmatprep.subr.bf16.mxu0 %v3867
        %3971 = vmatpush1.bf16.msra.mxu0 %v3866
        %3972 = vmatprep.subr.bf16.mxu0 %v3875
        %3973 = vmatpush1.bf16.msra.mxu0 %v3874
        %3974 = vmatprep.subr.bf16.mxu0 %v3883
        %3975 = vmatpush1.bf16.msra.mxu0 %v3882
        %3976 = vmatprep.subr.bf16.mxu0 %v3891
        %3977 = vmatpush1.bf16.msra.mxu0 %v3890
        %3978 = vmatprep.subr.bf16.mxu0 0
        %3979 = vmatpush1.bf16.msra.mxu0 0
        %3980 = vmatprep.subr.bf16.mxu0 0
        %3981 = vmatpush1.bf16.msra.mxu0 0
        %3982 = vmatprep.subr.bf16.mxu0 0
        %3983 = vmatpush1.bf16.msra.mxu0 0
        %3984 = vmatprep.subr.bf16.mxu0 0
        %3985 = vmatpush1.bf16.msra.mxu0 0
        %3986 = vmatprep.subr.bf16.mxu0 0
        %3987 = vmatpush1.bf16.msra.mxu0 0
        %3988 = vmatprep.subr.bf16.mxu0 0
        %3989 = vmatpush1.bf16.msra.mxu0 0
        %3990 = vmatprep.subr.bf16.mxu0 0
        %3991 = vmatpush1.bf16.msra.mxu0 0
        %3992 = vmatprep.subr.bf16.mxu0 0
        %3993 = vmatpush1.bf16.msra.mxu0 0
        %3994 = vmatprep.mubr.bf16.mxu0 0
        %3995 = vmatmul.mubr.bf16.gmra.mrb[0].mxu0 %v3535
        %v3996 = vpop.f32.mrb[0].mxu0
        %v3997 = vadd.f32 %v3605, %v3996
        %v3998 = vpop.f32.mrb[0].mxu0
        %v3999 = vadd.f32 %v3609, %v3998
        %v4000 = vpop.f32.mrb[0].mxu0
        %v4001 = vadd.f32 %v3605, %v4000
        %v4002 = vpop.f32.mrb[0].mxu0
        %v4003 = vadd.f32 %v3609, %v4002
        %4004 = vdwg.mxu0
        %4005 = vmatprep.subr.bf16.mxu0 %v3837
        %4006 = vmatpush1.bf16.msra.mxu0 %v3836
        %4007 = vmatprep.subr.bf16.mxu0 %v3845
        %4008 = vmatpush1.bf16.msra.mxu0 %v3844
        %4009 = vmatprep.subr.bf16.mxu0 %v3853
        %4010 = vmatpush1.bf16.msra.mxu0 %v3852
        %4011 = vmatprep.subr.bf16.mxu0 %v3861
        %4012 = vmatpush1.bf16.msra.mxu0 %v3860
        %4013 = vmatprep.subr.bf16.mxu0 %v3869
        %4014 = vmatpush1.bf16.msra.mxu0 %v3868
        %4015 = vmatprep.subr.bf16.mxu0 %v3877
        %4016 = vmatpush1.bf16.msra.mxu0 %v3876
        %4017 = vmatprep.subr.bf16.mxu0 %v3885
        %4018 = vmatpush1.bf16.msra.mxu0 %v3884
        %4019 = vmatprep.subr.bf16.mxu0 %v3893
        %4020 = vmatpush1.bf16.msra.mxu0 %v3892
        %4021 = vmatprep.subr.bf16.mxu0 0
        %4022 = vmatpush1.bf16.msra.mxu0 0
        %4023 = vmatprep.subr.bf16.mxu0 0
        %4024 = vmatpush1.bf16.msra.mxu0 0
        %4025 = vmatprep.subr.bf16.mxu0 0
        %4026 = vmatpush1.bf16.msra.mxu0 0
        %4027 = vmatprep.subr.bf16.mxu0 0
        %4028 = vmatpush1.bf16.msra.mxu0 0
        %4029 = vmatprep.subr.bf16.mxu0 0
        %4030 = vmatpush1.bf16.msra.mxu0 0
        %4031 = vmatprep.subr.bf16.mxu0 0
        %4032 = vmatpush1.bf16.msra.mxu0 0
        %4033 = vmatprep.subr.bf16.mxu0 0
        %4034 = vmatpush1.bf16.msra.mxu0 0
        %4035 = vmatprep.subr.bf16.mxu0 0
        %4036 = vmatpush1.bf16.msra.mxu0 0
        %4037 = vmatprep.mubr.bf16.mxu0 0
        %4038 = vmatmul.mubr.bf16.gmra.mrb[0].mxu0 %v3535
        %v4039 = vpop.f32.mrb[0].mxu0
        %v4040 = vadd.f32 %v3613, %v4039
        %v4041 = vpop.f32.mrb[0].mxu0
        %v4042 = vadd.f32 %v3617, %v4041
        %v4043 = vpop.f32.mrb[0].mxu0
        %v4044 = vadd.f32 %v3613, %v4043
        %v4045 = vpop.f32.mrb[0].mxu0
        %v4046 = vadd.f32 %v3617, %v4045
        %4047 = vdwg.mxu0
        %4048 = vmatprep.subr.bf16.mxu0 %v3839
        %4049 = vmatpush1.bf16.msra.mxu0 %v3838
        %4050 = vmatprep.subr.bf16.mxu0 %v3847
        %4051 = vmatpush1.bf16.msra.mxu0 %v3846
        %4052 = vmatprep.subr.bf16.mxu0 %v3855
        %4053 = vmatpush1.bf16.msra.mxu0 %v3854
        %4054 = vmatprep.subr.bf16.mxu0 %v3863
        %4055 = vmatpush1.bf16.msra.mxu0 %v3862
        %4056 = vmatprep.subr.bf16.mxu0 %v3871
        %4057 = vmatpush1.bf16.msra.mxu0 %v3870
        %4058 = vmatprep.subr.bf16.mxu0 %v3879
        %4059 = vmatpush1.bf16.msra.mxu0 %v3878
        %4060 = vmatprep.subr.bf16.mxu0 %v3887
        %4061 = vmatpush1.bf16.msra.mxu0 %v3886
        %4062 = vmatprep.subr.bf16.mxu0 %v3895
        %4063 = vmatpush1.bf16.msra.mxu0 %v3894
        %4064 = vmatprep.subr.bf16.mxu0 0
        %4065 = vmatpush1.bf16.msra.mxu0 0
        %4066 = vmatprep.subr.bf16.mxu0 0
        %4067 = vmatpush1.bf16.msra.mxu0 0
        %4068 = vmatprep.subr.bf16.mxu0 0
        %4069 = vmatpush1.bf16.msra.mxu0 0
        %4070 = vmatprep.subr.bf16.mxu0 0
        %4071 = vmatpush1.bf16.msra.mxu0 0
        %4072 = vmatprep.subr.bf16.mxu0 0
        %4073 = vmatpush1.bf16.msra.mxu0 0
        %4074 = vmatprep.subr.bf16.mxu0 0
        %4075 = vmatpush1.bf16.msra.mxu0 0
        %4076 = vmatprep.subr.bf16.mxu0 0
        %4077 = vmatpush1.bf16.msra.mxu0 0
        %4078 = vmatprep.subr.bf16.mxu0 0
        %4079 = vmatpush1.bf16.msra.mxu0 0
        %4080 = vmatprep.mubr.bf16.mxu0 0
        %4081 = vmatmul.mubr.bf16.gmra.mrb[0].mxu0 %v3535
        %v4082 = vpop.f32.mrb[0].mxu0
        %v4083 = vadd.f32 %v3621, %v4082
        %v4084 = vpop.f32.mrb[0].mxu0
        %v4085 = vadd.f32 %v3625, %v4084
        %v4086 = vpop.f32.mrb[0].mxu0
        %v4087 = vadd.f32 %v3621, %v4086
        %v4088 = vpop.f32.mrb[0].mxu0
        %v4089 = vadd.f32 %v3625, %v4088
        %4090 = vdwg.mxu0
        %4091 = vmatprep.subr.bf16.mxu0 %v3841
        %4092 = vmatpush1.bf16.msra.mxu0 %v3840
        %4093 = vmatprep.subr.bf16.mxu0 %v3849
        %4094 = vmatpush1.bf16.msra.mxu0 %v3848
        %4095 = vmatprep.subr.bf16.mxu0 %v3857
        %4096 = vmatpush1.bf16.msra.mxu0 %v3856
        %4097 = vmatprep.subr.bf16.mxu0 %v3865
        %4098 = vmatpush1.bf16.msra.mxu0 %v3864
        %4099 = vmatprep.subr.bf16.mxu0 %v3873
        %4100 = vmatpush1.bf16.msra.mxu0 %v3872
        %4101 = vmatprep.subr.bf16.mxu0 %v3881
        %4102 = vmatpush1.bf16.msra.mxu0 %v3880
        %4103 = vmatprep.subr.bf16.mxu0 %v3889
        %4104 = vmatpush1.bf16.msra.mxu0 %v3888
        %4105 = vmatprep.subr.bf16.mxu0 %v3897
        %4106 = vmatpush1.bf16.msra.mxu0 %v3896
        %4107 = vmatprep.subr.bf16.mxu0 0
        %4108 = vmatpush1.bf16.msra.mxu0 0
        %4109 = vmatprep.subr.bf16.mxu0 0
        %4110 = vmatpush1.bf16.msra.mxu0 0
        %4111 = vmatprep.subr.bf16.mxu0 0
        %4112 = vmatpush1.bf16.msra.mxu0 0
        %4113 = vmatprep.subr.bf16.mxu0 0
        %4114 = vmatpush1.bf16.msra.mxu0 0
        %4115 = vmatprep.subr.bf16.mxu0 0
        %4116 = vmatpush1.bf16.msra.mxu0 0
        %4117 = vmatprep.subr.bf16.mxu0 0
        %4118 = vmatpush1.bf16.msra.mxu0 0
        %4119 = vmatprep.subr.bf16.mxu0 0
        %4120 = vmatpush1.bf16.msra.mxu0 0
        %4121 = vmatprep.subr.bf16.mxu0 0
        %4122 = vmatpush1.bf16.msra.mxu0 0
        %4123 = vmatprep.mubr.bf16.mxu0 0
        %4124 = vmatmul.mubr.bf16.gmra.mrb[0].mxu0 %v3535
        %v4125 = vpop.f32.mrb[0].mxu0
        %v4126 = vadd.f32 %v3629, %v4125
        %v4127 = vpop.f32.mrb[0].mxu0
        %v4128 = vadd.f32 %v3633, %v4127
        %v4129 = vpop.f32.mrb[0].mxu0
        %v4130 = vadd.f32 %v3629, %v4129
        %v4131 = vpop.f32.mrb[0].mxu0
        %v4132 = vadd.f32 %v3633, %v4131
        %4133 = vdwg.mxu0
        %v4134 = vpack.c.bf16 %v3484, %v3484
        %v4135 = vpack.c.bf16 %v3486, %v3486
        %v4136 = vpack.c.bf16 %v3527, %v3527
        %v4137 = vpack.c.bf16 %v3529, %v3529
        %v4138 = vpack.c.bf16 %v3488, %v3488
        %v4139 = vpack.c.bf16 %v3490, %v3490
        %v4140 = vpack.c.bf16 %v3531, %v3531
        %v4141 = vpack.c.bf16 %v3533, %v3533
        %v4142 = vpack.c.bf16 %v3997, %v3997
        %v4143 = vpack.c.bf16 %v3999, %v3999
        %v4144 = vpack.c.bf16 %v4040, %v4040
        %v4145 = vpack.c.bf16 %v4042, %v4042
        %v4146 = vpack.c.bf16 %v4001, %v4001
        %v4147 = vpack.c.bf16 %v4003, %v4003
        %v4148 = vpack.c.bf16 %v4044, %v4044
        %v4149 = vpack.c.bf16 %v4046, %v4046
        %v4150 = vpack.c.bf16 %v4083, %v4083
        %v4151 = vpack.c.bf16 %v4085, %v4085
        %v4152 = vpack.c.bf16 %v4126, %v4126
        %v4153 = vpack.c.bf16 %v4128, %v4128
        %v4154 = vpack.c.bf16 %v4087, %v4087
        %v4155 = vpack.c.bf16 %v4089, %v4089
        %v4156 = vpack.c.bf16 %v4130, %v4130
        %v4157 = vpack.c.bf16 %v4132, %v4132
        %4158 = vmatprep.subr.bf16.mxu0 0
        %4159 = vmatpush1.bf16.xpose.msra.mxu0 %v4142
        %4160 = vmatprep.subr.bf16.mxu0 0
        %4161 = vmatpush1.bf16.xpose.msra.mxu0 0
        %4162 = vmatprep.subr.bf16.mxu0 0
        %4163 = vmatpush1.bf16.xpose.msra.mxu0 0
        %4164 = vmatprep.subr.bf16.mxu0 0
        %4165 = vmatpush1.bf16.xpose.msra.mxu0 0
        %4166 = vmatprep.subr.bf16.mxu0 0
        %4167 = vmatpush1.bf16.xpose.msra.mxu0 0
        %4168 = vmatprep.subr.bf16.mxu0 0
        %4169 = vmatpush1.bf16.xpose.msra.mxu0 0
        %4170 = vmatprep.subr.bf16.mxu0 0
        %4171 = vmatpush1.bf16.xpose.msra.mxu0 0
        %4172 = vmatprep.subr.bf16.mxu0 0
        %4173 = vmatpush1.bf16.xpose.msra.mxu0 0
        %4174 = vmatprep.subr.bf16.mxu0 0
        %4175 = vmatpush1.bf16.xpose.msra.mxu0 0
        %4176 = vmatprep.subr.bf16.mxu0 0
        %4177 = vmatpush1.bf16.xpose.msra.mxu0 0
        %4178 = vmatprep.subr.bf16.mxu0 0
        %4179 = vmatpush1.bf16.xpose.msra.mxu0 0
        %4180 = vmatprep.subr.bf16.mxu0 0
        %4181 = vmatpush1.bf16.xpose.msra.mxu0 0
        %4182 = vmatprep.subr.bf16.mxu0 0
        %4183 = vmatpush1.bf16.xpose.msra.mxu0 0
        %4184 = vmatprep.subr.bf16.mxu0 0
        %4185 = vmatpush1.bf16.xpose.msra.mxu0 0
        %4186 = vmatprep.subr.bf16.mxu0 0
        %4187 = vmatpush1.bf16.xpose.msra.mxu0 0
        %4188 = vmatprep.subr.bf16.mxu0 0
        %4189 = vmatpush1.bf16.xpose.msra.mxu0 0
        %4190 = vmatprep.mubr.bf16.mxu0 0
        %4191 = vmatmul.mubr.bf16.gmra.mrb[0].mxu0 %v4134
        %v4192 = vpop.f32.mrb[0].mxu0
        %v4193 = vadd.f32 0.0, %v4192
        %v4194 = vpop.f32.mrb[0].mxu0
        %v4195 = vpop.f32.mrb[0].mxu0
        %v4196 = vpop.f32.mrb[0].mxu0
        %4197 = vdwg.mxu0
        %4198 = vmatprep.subr.bf16.mxu0 0
        %4199 = vmatpush1.bf16.xpose.msra.mxu0 %v4146
        %4200 = vmatprep.subr.bf16.mxu0 0
        %4201 = vmatpush1.bf16.xpose.msra.mxu0 0
        %4202 = vmatprep.subr.bf16.mxu0 0
        %4203 = vmatpush1.bf16.xpose.msra.mxu0 0
        %4204 = vmatprep.subr.bf16.mxu0 0
        %4205 = vmatpush1.bf16.xpose.msra.mxu0 0
        %4206 = vmatprep.subr.bf16.mxu0 0
        %4207 = vmatpush1.bf16.xpose.msra.mxu0 0
        %4208 = vmatprep.subr.bf16.mxu0 0
        %4209 = vmatpush1.bf16.xpose.msra.mxu0 0
        %4210 = vmatprep.subr.bf16.mxu0 0
        %4211 = vmatpush1.bf16.xpose.msra.mxu0 0
        %4212 = vmatprep.subr.bf16.mxu0 0
        %4213 = vmatpush1.bf16.xpose.msra.mxu0 0
        %4214 = vmatprep.subr.bf16.mxu0 0
        %4215 = vmatpush1.bf16.xpose.msra.mxu0 0
        %4216 = vmatprep.subr.bf16.mxu0 0
        %4217 = vmatpush1.bf16.xpose.msra.mxu0 0
        %4218 = vmatprep.subr.bf16.mxu0 0
        %4219 = vmatpush1.bf16.xpose.msra.mxu0 0
        %4220 = vmatprep.subr.bf16.mxu0 0
        %4221 = vmatpush1.bf16.xpose.msra.mxu0 0
        %4222 = vmatprep.subr.bf16.mxu0 0
        %4223 = vmatpush1.bf16.xpose.msra.mxu0 0
        %4224 = vmatprep.subr.bf16.mxu0 0
        %4225 = vmatpush1.bf16.xpose.msra.mxu0 0
        %4226 = vmatprep.subr.bf16.mxu0 0
        %4227 = vmatpush1.bf16.xpose.msra.mxu0 0
        %4228 = vmatprep.subr.bf16.mxu0 0
        %4229 = vmatpush1.bf16.xpose.msra.mxu0 0
        %4230 = vmatprep.mubr.bf16.mxu0 0
        %4231 = vmatmul.mubr.bf16.gmra.mrb[0].mxu0 %v4138
        %v4232 = vpop.f32.mrb[0].mxu0
        %v4233 = vadd.f32 0.0, %v4232
        %v4234 = vpop.f32.mrb[0].mxu0
        %v4235 = vpop.f32.mrb[0].mxu0
        %v4236 = vpop.f32.mrb[0].mxu0
        %4237 = vdwg.mxu0
        %v4238 = vsel %vm2136, %v4193, -inf
        %4239 = vmax.xlane.f32.xlu0 %v4238
        %v4240 = vpop.xlane.xlu0 %4239
        %v4241 = vsel %vm2136, %v4233, -inf
        %4242 = vmax.xlane.f32.xlu0 %v4241
        %v4243 = vpop.xlane.xlu0 %4242
        %v4244 = vsub.f32 %v4193, %v4240
        %v4245 = vsub.f32 %v4233, %v4243
        %v4246 = vmul.f32 %v4244, 1.442695
        %v4247 = vpow.pop %v4246
        %v4248 = vmul.f32 %v4245, 1.442695
        %v4249 = vpow.pop %v4248
        %v4250 = vsel %vm2136, %v4247, 0.0
        %4251 = vadd.xlane.f32.xlu0 %v4250
        %v4252 = vpop.xlane.xlu0 %4251
        %v4253 = vsel %vm2136, %v4249, 0.0
        %4254 = vadd.xlane.f32.xlu0 %v4253
        %v4255 = vpop.xlane.xlu0 %4254
        %v4256 = vrcp.pop %v4252
        %v4257 = vrcp.pop %v4255
        %v4258 = vmul.f32 %v4247, %v4256
        %v4259 = vmul.f32 %v4249, %v4257
        %v4260 = vpack.c.bf16 %v4258, %v4258
        %v4261 = vpack.c.bf16 %v4259, %v4259
        %v4263 = vsel %vm2136, %v4260, 0
        %v4266 = vsel %vm2164, %v4150, 0
        %4268 = vmatprep.subr.bf16.mxu0 0
        %4269 = vmatpush1.bf16.msra.mxu0 %v4266
        %4270 = vmatprep.subr.bf16.mxu0 0
        %4271 = vmatpush1.bf16.msra.mxu0 0
        %4272 = vmatprep.subr.bf16.mxu0 0
        %4273 = vmatpush1.bf16.msra.mxu0 0
        %4274 = vmatprep.subr.bf16.mxu0 0
        %4275 = vmatpush1.bf16.msra.mxu0 0
        %4276 = vmatprep.subr.bf16.mxu0 0
        %4277 = vmatpush1.bf16.msra.mxu0 0
        %4278 = vmatprep.subr.bf16.mxu0 0
        %4279 = vmatpush1.bf16.msra.mxu0 0
        %4280 = vmatprep.subr.bf16.mxu0 0
        %4281 = vmatpush1.bf16.msra.mxu0 0
        %4282 = vmatprep.subr.bf16.mxu0 0
        %4283 = vmatpush1.bf16.msra.mxu0 0
        %4284 = vmatprep.subr.bf16.mxu0 0
        %4285 = vmatpush1.bf16.msra.mxu0 0
        %4286 = vmatprep.subr.bf16.mxu0 0
        %4287 = vmatpush1.bf16.msra.mxu0 0
        %4288 = vmatprep.subr.bf16.mxu0 0
        %4289 = vmatpush1.bf16.msra.mxu0 0
        %4290 = vmatprep.subr.bf16.mxu0 0
        %4291 = vmatpush1.bf16.msra.mxu0 0
        %4292 = vmatprep.subr.bf16.mxu0 0
        %4293 = vmatpush1.bf16.msra.mxu0 0
        %4294 = vmatprep.subr.bf16.mxu0 0
        %4295 = vmatpush1.bf16.msra.mxu0 0
        %4296 = vmatprep.subr.bf16.mxu0 0
        %4297 = vmatpush1.bf16.msra.mxu0 0
        %4298 = vmatprep.subr.bf16.mxu0 0
        %4299 = vmatpush1.bf16.msra.mxu0 0
        %4300 = vmatprep.mubr.bf16.mxu0 0
        %4301 = vmatmul.mubr.bf16.gmra.mrb[0].mxu0 %v4263
        %v4302 = vpop.f32.mrb[0].mxu0
        %v4303 = vadd.f32 0.0, %v4302
        %v4304 = vpop.f32.mrb[0].mxu0
        %v4305 = vpop.f32.mrb[0].mxu0
        %v4306 = vpop.f32.mrb[0].mxu0
        %4307 = vdwg.mxu0
        %v4309 = vsel %vm2136, %v4261, 0
        %v4312 = vsel %vm2164, %v4154, 0
        %4314 = vmatprep.subr.bf16.mxu0 0
        %4315 = vmatpush1.bf16.msra.mxu0 %v4312
        %4316 = vmatprep.subr.bf16.mxu0 0
        %4317 = vmatpush1.bf16.msra.mxu0 0
        %4318 = vmatprep.subr.bf16.mxu0 0
        %4319 = vmatpush1.bf16.msra.mxu0 0
        %4320 = vmatprep.subr.bf16.mxu0 0
        %4321 = vmatpush1.bf16.msra.mxu0 0
        %4322 = vmatprep.subr.bf16.mxu0 0
        %4323 = vmatpush1.bf16.msra.mxu0 0
        %4324 = vmatprep.subr.bf16.mxu0 0
        %4325 = vmatpush1.bf16.msra.mxu0 0
        %4326 = vmatprep.subr.bf16.mxu0 0
        %4327 = vmatpush1.bf16.msra.mxu0 0
        %4328 = vmatprep.subr.bf16.mxu0 0
        %4329 = vmatpush1.bf16.msra.mxu0 0
        %4330 = vmatprep.subr.bf16.mxu0 0
        %4331 = vmatpush1.bf16.msra.mxu0 0
        %4332 = vmatprep.subr.bf16.mxu0 0
        %4333 = vmatpush1.bf16.msra.mxu0 0
        %4334 = vmatprep.subr.bf16.mxu0 0
        %4335 = vmatpush1.bf16.msra.mxu0 0
        %4336 = vmatprep.subr.bf16.mxu0 0
        %4337 = vmatpush1.bf16.msra.mxu0 0
        %4338 = vmatprep.subr.bf16.mxu0 0
        %4339 = vmatpush1.bf16.msra.mxu0 0
        %4340 = vmatprep.subr.bf16.mxu0 0
        %4341 = vmatpush1.bf16.msra.mxu0 0
        %4342 = vmatprep.subr.bf16.mxu0 0
        %4343 = vmatpush1.bf16.msra.mxu0 0
        %4344 = vmatprep.subr.bf16.mxu0 0
        %4345 = vmatpush1.bf16.msra.mxu0 0
        %4346 = vmatprep.mubr.bf16.mxu0 0
        %4347 = vmatmul.mubr.bf16.gmra.mrb[0].mxu0 %v4309
        %v4348 = vpop.f32.mrb[0].mxu0
        %v4349 = vadd.f32 0.0, %v4348
        %v4350 = vpop.f32.mrb[0].mxu0
        %v4351 = vpop.f32.mrb[0].mxu0
        %v4352 = vpop.f32.mrb[0].mxu0
        %4353 = vdwg.mxu0
        %4354 = vmatprep.subr.bf16.mxu0 0
        %4355 = vmatpush1.bf16.xpose.msra.mxu0 %v4143
        %4356 = vmatprep.subr.bf16.mxu0 0
        %4357 = vmatpush1.bf16.xpose.msra.mxu0 0
        %4358 = vmatprep.subr.bf16.mxu0 0
        %4359 = vmatpush1.bf16.xpose.msra.mxu0 0
        %4360 = vmatprep.subr.bf16.mxu0 0
        %4361 = vmatpush1.bf16.xpose.msra.mxu0 0
        %4362 = vmatprep.subr.bf16.mxu0 0
        %4363 = vmatpush1.bf16.xpose.msra.mxu0 0
        %4364 = vmatprep.subr.bf16.mxu0 0
        %4365 = vmatpush1.bf16.xpose.msra.mxu0 0
        %4366 = vmatprep.subr.bf16.mxu0 0
        %4367 = vmatpush1.bf16.xpose.msra.mxu0 0
        %4368 = vmatprep.subr.bf16.mxu0 0
        %4369 = vmatpush1.bf16.xpose.msra.mxu0 0
        %4370 = vmatprep.subr.bf16.mxu0 0
        %4371 = vmatpush1.bf16.xpose.msra.mxu0 0
        %4372 = vmatprep.subr.bf16.mxu0 0
        %4373 = vmatpush1.bf16.xpose.msra.mxu0 0
        %4374 = vmatprep.subr.bf16.mxu0 0
        %4375 = vmatpush1.bf16.xpose.msra.mxu0 0
        %4376 = vmatprep.subr.bf16.mxu0 0
        %4377 = vmatpush1.bf16.xpose.msra.mxu0 0
        %4378 = vmatprep.subr.bf16.mxu0 0
        %4379 = vmatpush1.bf16.xpose.msra.mxu0 0
        %4380 = vmatprep.subr.bf16.mxu0 0
        %4381 = vmatpush1.bf16.xpose.msra.mxu0 0
        %4382 = vmatprep.subr.bf16.mxu0 0
        %4383 = vmatpush1.bf16.xpose.msra.mxu0 0
        %4384 = vmatprep.subr.bf16.mxu0 0
        %4385 = vmatpush1.bf16.xpose.msra.mxu0 0
        %4386 = vmatprep.mubr.bf16.mxu0 0
        %4387 = vmatmul.mubr.bf16.gmra.mrb[0].mxu0 %v4135
        %v4388 = vpop.f32.mrb[0].mxu0
        %v4389 = vadd.f32 0.0, %v4388
        %v4390 = vpop.f32.mrb[0].mxu0
        %v4391 = vpop.f32.mrb[0].mxu0
        %v4392 = vpop.f32.mrb[0].mxu0
        %4393 = vdwg.mxu0
        %4394 = vmatprep.subr.bf16.mxu0 0
        %4395 = vmatpush1.bf16.xpose.msra.mxu0 %v4147
        %4396 = vmatprep.subr.bf16.mxu0 0
        %4397 = vmatpush1.bf16.xpose.msra.mxu0 0
        %4398 = vmatprep.subr.bf16.mxu0 0
        %4399 = vmatpush1.bf16.xpose.msra.mxu0 0
        %4400 = vmatprep.subr.bf16.mxu0 0
        %4401 = vmatpush1.bf16.xpose.msra.mxu0 0
        %4402 = vmatprep.subr.bf16.mxu0 0
        %4403 = vmatpush1.bf16.xpose.msra.mxu0 0
        %4404 = vmatprep.subr.bf16.mxu0 0
        %4405 = vmatpush1.bf16.xpose.msra.mxu0 0
        %4406 = vmatprep.subr.bf16.mxu0 0
        %4407 = vmatpush1.bf16.xpose.msra.mxu0 0
        %4408 = vmatprep.subr.bf16.mxu0 0
        %4409 = vmatpush1.bf16.xpose.msra.mxu0 0
        %4410 = vmatprep.subr.bf16.mxu0 0
        %4411 = vmatpush1.bf16.xpose.msra.mxu0 0
        %4412 = vmatprep.subr.bf16.mxu0 0
        %4413 = vmatpush1.bf16.xpose.msra.mxu0 0
        %4414 = vmatprep.subr.bf16.mxu0 0
        %4415 = vmatpush1.bf16.xpose.msra.mxu0 0
        %4416 = vmatprep.subr.bf16.mxu0 0
        %4417 = vmatpush1.bf16.xpose.msra.mxu0 0
        %4418 = vmatprep.subr.bf16.mxu0 0
        %4419 = vmatpush1.bf16.xpose.msra.mxu0 0
        %4420 = vmatprep.subr.bf16.mxu0 0
        %4421 = vmatpush1.bf16.xpose.msra.mxu0 0
        %4422 = vmatprep.subr.bf16.mxu0 0
        %4423 = vmatpush1.bf16.xpose.msra.mxu0 0
        %4424 = vmatprep.subr.bf16.mxu0 0
        %4425 = vmatpush1.bf16.xpose.msra.mxu0 0
        %4426 = vmatprep.mubr.bf16.mxu0 0
        %4427 = vmatmul.mubr.bf16.gmra.mrb[0].mxu0 %v4139
        %v4428 = vpop.f32.mrb[0].mxu0
        %v4429 = vadd.f32 0.0, %v4428
        %v4430 = vpop.f32.mrb[0].mxu0
        %v4431 = vpop.f32.mrb[0].mxu0
        %v4432 = vpop.f32.mrb[0].mxu0
        %4433 = vdwg.mxu0
        %v4434 = vsel %vm2136, %v4389, -inf
        %4435 = vmax.xlane.f32.xlu0 %v4434
        %v4436 = vpop.xlane.xlu0 %4435
        %v4437 = vsel %vm2136, %v4429, -inf
        %4438 = vmax.xlane.f32.xlu0 %v4437
        %v4439 = vpop.xlane.xlu0 %4438
        %v4440 = vsub.f32 %v4389, %v4436
        %v4441 = vsub.f32 %v4429, %v4439
        %v4442 = vmul.f32 %v4440, 1.442695
        %v4443 = vpow.pop %v4442
        %v4444 = vmul.f32 %v4441, 1.442695
        %v4445 = vpow.pop %v4444
        %v4446 = vsel %vm2136, %v4443, 0.0
        %4447 = vadd.xlane.f32.xlu0 %v4446
        %v4448 = vpop.xlane.xlu0 %4447
        %v4449 = vsel %vm2136, %v4445, 0.0
        %4450 = vadd.xlane.f32.xlu0 %v4449
        %v4451 = vpop.xlane.xlu0 %4450
        %v4452 = vrcp.pop %v4448
        %v4453 = vrcp.pop %v4451
        %v4454 = vmul.f32 %v4443, %v4452
        %v4455 = vmul.f32 %v4445, %v4453
        %v4456 = vpack.c.bf16 %v4454, %v4454
        %v4457 = vpack.c.bf16 %v4455, %v4455
        %v4459 = vsel %vm2136, %v4456, 0
        %v4462 = vsel %vm2164, %v4151, 0
        %4464 = vmatprep.subr.bf16.mxu0 0
        %4465 = vmatpush1.bf16.msra.mxu0 %v4462
        %4466 = vmatprep.subr.bf16.mxu0 0
        %4467 = vmatpush1.bf16.msra.mxu0 0
        %4468 = vmatprep.subr.bf16.mxu0 0
        %4469 = vmatpush1.bf16.msra.mxu0 0
        %4470 = vmatprep.subr.bf16.mxu0 0
        %4471 = vmatpush1.bf16.msra.mxu0 0
        %4472 = vmatprep.subr.bf16.mxu0 0
        %4473 = vmatpush1.bf16.msra.mxu0 0
        %4474 = vmatprep.subr.bf16.mxu0 0
        %4475 = vmatpush1.bf16.msra.mxu0 0
        %4476 = vmatprep.subr.bf16.mxu0 0
        %4477 = vmatpush1.bf16.msra.mxu0 0
        %4478 = vmatprep.subr.bf16.mxu0 0
        %4479 = vmatpush1.bf16.msra.mxu0 0
        %4480 = vmatprep.subr.bf16.mxu0 0
        %4481 = vmatpush1.bf16.msra.mxu0 0
        %4482 = vmatprep.subr.bf16.mxu0 0
        %4483 = vmatpush1.bf16.msra.mxu0 0
        %4484 = vmatprep.subr.bf16.mxu0 0
        %4485 = vmatpush1.bf16.msra.mxu0 0
        %4486 = vmatprep.subr.bf16.mxu0 0
        %4487 = vmatpush1.bf16.msra.mxu0 0
        %4488 = vmatprep.subr.bf16.mxu0 0
        %4489 = vmatpush1.bf16.msra.mxu0 0
        %4490 = vmatprep.subr.bf16.mxu0 0
        %4491 = vmatpush1.bf16.msra.mxu0 0
        %4492 = vmatprep.subr.bf16.mxu0 0
        %4493 = vmatpush1.bf16.msra.mxu0 0
        %4494 = vmatprep.subr.bf16.mxu0 0
        %4495 = vmatpush1.bf16.msra.mxu0 0
        %4496 = vmatprep.mubr.bf16.mxu0 0
        %4497 = vmatmul.mubr.bf16.gmra.mrb[0].mxu0 %v4459
        %v4498 = vpop.f32.mrb[0].mxu0
        %v4499 = vadd.f32 0.0, %v4498
        %v4500 = vpop.f32.mrb[0].mxu0
        %v4501 = vpop.f32.mrb[0].mxu0
        %v4502 = vpop.f32.mrb[0].mxu0
        %4503 = vdwg.mxu0
        %v4505 = vsel %vm2136, %v4457, 0
        %v4508 = vsel %vm2164, %v4155, 0
        %4510 = vmatprep.subr.bf16.mxu0 0
        %4511 = vmatpush1.bf16.msra.mxu0 %v4508
        %4512 = vmatprep.subr.bf16.mxu0 0
        %4513 = vmatpush1.bf16.msra.mxu0 0
        %4514 = vmatprep.subr.bf16.mxu0 0
        %4515 = vmatpush1.bf16.msra.mxu0 0
        %4516 = vmatprep.subr.bf16.mxu0 0
        %4517 = vmatpush1.bf16.msra.mxu0 0
        %4518 = vmatprep.subr.bf16.mxu0 0
        %4519 = vmatpush1.bf16.msra.mxu0 0
        %4520 = vmatprep.subr.bf16.mxu0 0
        %4521 = vmatpush1.bf16.msra.mxu0 0
        %4522 = vmatprep.subr.bf16.mxu0 0
        %4523 = vmatpush1.bf16.msra.mxu0 0
        %4524 = vmatprep.subr.bf16.mxu0 0
        %4525 = vmatpush1.bf16.msra.mxu0 0
        %4526 = vmatprep.subr.bf16.mxu0 0
        %4527 = vmatpush1.bf16.msra.mxu0 0
        %4528 = vmatprep.subr.bf16.mxu0 0
        %4529 = vmatpush1.bf16.msra.mxu0 0
        %4530 = vmatprep.subr.bf16.mxu0 0
        %4531 = vmatpush1.bf16.msra.mxu0 0
        %4532 = vmatprep.subr.bf16.mxu0 0
        %4533 = vmatpush1.bf16.msra.mxu0 0
        %4534 = vmatprep.subr.bf16.mxu0 0
        %4535 = vmatpush1.bf16.msra.mxu0 0
        %4536 = vmatprep.subr.bf16.mxu0 0
        %4537 = vmatpush1.bf16.msra.mxu0 0
        %4538 = vmatprep.subr.bf16.mxu0 0
        %4539 = vmatpush1.bf16.msra.mxu0 0
        %4540 = vmatprep.subr.bf16.mxu0 0
        %4541 = vmatpush1.bf16.msra.mxu0 0
        %4542 = vmatprep.mubr.bf16.mxu0 0
        %4543 = vmatmul.mubr.bf16.gmra.mrb[0].mxu0 %v4505
        %v4544 = vpop.f32.mrb[0].mxu0
        %v4545 = vadd.f32 0.0, %v4544
        %v4546 = vpop.f32.mrb[0].mxu0
        %v4547 = vpop.f32.mrb[0].mxu0
        %v4548 = vpop.f32.mrb[0].mxu0
        %4549 = vdwg.mxu0
        %4550 = vmatprep.subr.bf16.mxu0 0
        %4551 = vmatpush1.bf16.xpose.msra.mxu0 %v4144
        %4552 = vmatprep.subr.bf16.mxu0 0
        %4553 = vmatpush1.bf16.xpose.msra.mxu0 0
        %4554 = vmatprep.subr.bf16.mxu0 0
        %4555 = vmatpush1.bf16.xpose.msra.mxu0 0
        %4556 = vmatprep.subr.bf16.mxu0 0
        %4557 = vmatpush1.bf16.xpose.msra.mxu0 0
        %4558 = vmatprep.subr.bf16.mxu0 0
        %4559 = vmatpush1.bf16.xpose.msra.mxu0 0
        %4560 = vmatprep.subr.bf16.mxu0 0
        %4561 = vmatpush1.bf16.xpose.msra.mxu0 0
        %4562 = vmatprep.subr.bf16.mxu0 0
        %4563 = vmatpush1.bf16.xpose.msra.mxu0 0
        %4564 = vmatprep.subr.bf16.mxu0 0
        %4565 = vmatpush1.bf16.xpose.msra.mxu0 0
        %4566 = vmatprep.subr.bf16.mxu0 0
        %4567 = vmatpush1.bf16.xpose.msra.mxu0 0
        %4568 = vmatprep.subr.bf16.mxu0 0
        %4569 = vmatpush1.bf16.xpose.msra.mxu0 0
        %4570 = vmatprep.subr.bf16.mxu0 0
        %4571 = vmatpush1.bf16.xpose.msra.mxu0 0
        %4572 = vmatprep.subr.bf16.mxu0 0
        %4573 = vmatpush1.bf16.xpose.msra.mxu0 0
        %4574 = vmatprep.subr.bf16.mxu0 0
        %4575 = vmatpush1.bf16.xpose.msra.mxu0 0
        %4576 = vmatprep.subr.bf16.mxu0 0
        %4577 = vmatpush1.bf16.xpose.msra.mxu0 0
        %4578 = vmatprep.subr.bf16.mxu0 0
        %4579 = vmatpush1.bf16.xpose.msra.mxu0 0
        %4580 = vmatprep.subr.bf16.mxu0 0
        %4581 = vmatpush1.bf16.xpose.msra.mxu0 0
        %4582 = vmatprep.mubr.bf16.mxu0 0
        %4583 = vmatmul.mubr.bf16.gmra.mrb[0].mxu0 %v4136
        %v4584 = vpop.f32.mrb[0].mxu0
        %v4585 = vadd.f32 0.0, %v4584
        %v4586 = vpop.f32.mrb[0].mxu0
        %v4587 = vpop.f32.mrb[0].mxu0
        %v4588 = vpop.f32.mrb[0].mxu0
        %4589 = vdwg.mxu0
        %4590 = vmatprep.subr.bf16.mxu0 0
        %4591 = vmatpush1.bf16.xpose.msra.mxu0 %v4148
        %4592 = vmatprep.subr.bf16.mxu0 0
        %4593 = vmatpush1.bf16.xpose.msra.mxu0 0
        %4594 = vmatprep.subr.bf16.mxu0 0
        %4595 = vmatpush1.bf16.xpose.msra.mxu0 0
        %4596 = vmatprep.subr.bf16.mxu0 0
        %4597 = vmatpush1.bf16.xpose.msra.mxu0 0
        %4598 = vmatprep.subr.bf16.mxu0 0
        %4599 = vmatpush1.bf16.xpose.msra.mxu0 0
        %4600 = vmatprep.subr.bf16.mxu0 0
        %4601 = vmatpush1.bf16.xpose.msra.mxu0 0
        %4602 = vmatprep.subr.bf16.mxu0 0
        %4603 = vmatpush1.bf16.xpose.msra.mxu0 0
        %4604 = vmatprep.subr.bf16.mxu0 0
        %4605 = vmatpush1.bf16.xpose.msra.mxu0 0
        %4606 = vmatprep.subr.bf16.mxu0 0
        %4607 = vmatpush1.bf16.xpose.msra.mxu0 0
        %4608 = vmatprep.subr.bf16.mxu0 0
        %4609 = vmatpush1.bf16.xpose.msra.mxu0 0
        %4610 = vmatprep.subr.bf16.mxu0 0
        %4611 = vmatpush1.bf16.xpose.msra.mxu0 0
        %4612 = vmatprep.subr.bf16.mxu0 0
        %4613 = vmatpush1.bf16.xpose.msra.mxu0 0
        %4614 = vmatprep.subr.bf16.mxu0 0
        %4615 = vmatpush1.bf16.xpose.msra.mxu0 0
        %4616 = vmatprep.subr.bf16.mxu0 0
        %4617 = vmatpush1.bf16.xpose.msra.mxu0 0
        %4618 = vmatprep.subr.bf16.mxu0 0
        %4619 = vmatpush1.bf16.xpose.msra.mxu0 0
        %4620 = vmatprep.subr.bf16.mxu0 0
        %4621 = vmatpush1.bf16.xpose.msra.mxu0 0
        %4622 = vmatprep.mubr.bf16.mxu0 0
        %4623 = vmatmul.mubr.bf16.gmra.mrb[0].mxu0 %v4140
        %v4624 = vpop.f32.mrb[0].mxu0
        %v4625 = vadd.f32 0.0, %v4624
        %v4626 = vpop.f32.mrb[0].mxu0
        %v4627 = vpop.f32.mrb[0].mxu0
        %v4628 = vpop.f32.mrb[0].mxu0
        %4629 = vdwg.mxu0
        %v4630 = vsel %vm2136, %v4585, -inf
        %4631 = vmax.xlane.f32.xlu0 %v4630
        %v4632 = vpop.xlane.xlu0 %4631
        %v4633 = vsel %vm2136, %v4625, -inf
        %4634 = vmax.xlane.f32.xlu0 %v4633
        %v4635 = vpop.xlane.xlu0 %4634
        %v4636 = vsub.f32 %v4585, %v4632
        %v4637 = vsub.f32 %v4625, %v4635
        %v4638 = vmul.f32 %v4636, 1.442695
        %v4639 = vpow.pop %v4638
        %v4640 = vmul.f32 %v4637, 1.442695
        %v4641 = vpow.pop %v4640
        %v4642 = vsel %vm2136, %v4639, 0.0
        %4643 = vadd.xlane.f32.xlu0 %v4642
        %v4644 = vpop.xlane.xlu0 %4643
        %v4645 = vsel %vm2136, %v4641, 0.0
        %4646 = vadd.xlane.f32.xlu0 %v4645
        %v4647 = vpop.xlane.xlu0 %4646
        %v4648 = vrcp.pop %v4644
        %v4649 = vrcp.pop %v4647
        %v4650 = vmul.f32 %v4639, %v4648
        %v4651 = vmul.f32 %v4641, %v4649
        %v4652 = vpack.c.bf16 %v4650, %v4650
        %v4653 = vpack.c.bf16 %v4651, %v4651
        %v4655 = vsel %vm2136, %v4652, 0
        %v4658 = vsel %vm2164, %v4152, 0
        %4660 = vmatprep.subr.bf16.mxu0 0
        %4661 = vmatpush1.bf16.msra.mxu0 %v4658
        %4662 = vmatprep.subr.bf16.mxu0 0
        %4663 = vmatpush1.bf16.msra.mxu0 0
        %4664 = vmatprep.subr.bf16.mxu0 0
        %4665 = vmatpush1.bf16.msra.mxu0 0
        %4666 = vmatprep.subr.bf16.mxu0 0
        %4667 = vmatpush1.bf16.msra.mxu0 0
        %4668 = vmatprep.subr.bf16.mxu0 0
        %4669 = vmatpush1.bf16.msra.mxu0 0
        %4670 = vmatprep.subr.bf16.mxu0 0
        %4671 = vmatpush1.bf16.msra.mxu0 0
        %4672 = vmatprep.subr.bf16.mxu0 0
        %4673 = vmatpush1.bf16.msra.mxu0 0
        %4674 = vmatprep.subr.bf16.mxu0 0
        %4675 = vmatpush1.bf16.msra.mxu0 0
        %4676 = vmatprep.subr.bf16.mxu0 0
        %4677 = vmatpush1.bf16.msra.mxu0 0
        %4678 = vmatprep.subr.bf16.mxu0 0
        %4679 = vmatpush1.bf16.msra.mxu0 0
        %4680 = vmatprep.subr.bf16.mxu0 0
        %4681 = vmatpush1.bf16.msra.mxu0 0
        %4682 = vmatprep.subr.bf16.mxu0 0
        %4683 = vmatpush1.bf16.msra.mxu0 0
        %4684 = vmatprep.subr.bf16.mxu0 0
        %4685 = vmatpush1.bf16.msra.mxu0 0
        %4686 = vmatprep.subr.bf16.mxu0 0
        %4687 = vmatpush1.bf16.msra.mxu0 0
        %4688 = vmatprep.subr.bf16.mxu0 0
        %4689 = vmatpush1.bf16.msra.mxu0 0
        %4690 = vmatprep.subr.bf16.mxu0 0
        %4691 = vmatpush1.bf16.msra.mxu0 0
        %4692 = vmatprep.mubr.bf16.mxu0 0
        %4693 = vmatmul.mubr.bf16.gmra.mrb[0].mxu0 %v4655
        %v4694 = vpop.f32.mrb[0].mxu0
        %v4695 = vadd.f32 0.0, %v4694
        %v4696 = vpop.f32.mrb[0].mxu0
        %v4697 = vpop.f32.mrb[0].mxu0
        %v4698 = vpop.f32.mrb[0].mxu0
        %4699 = vdwg.mxu0
        %v4701 = vsel %vm2136, %v4653, 0
        %v4704 = vsel %vm2164, %v4156, 0
        %4706 = vmatprep.subr.bf16.mxu0 0
        %4707 = vmatpush1.bf16.msra.mxu0 %v4704
        %4708 = vmatprep.subr.bf16.mxu0 0
        %4709 = vmatpush1.bf16.msra.mxu0 0
        %4710 = vmatprep.subr.bf16.mxu0 0
        %4711 = vmatpush1.bf16.msra.mxu0 0
        %4712 = vmatprep.subr.bf16.mxu0 0
        %4713 = vmatpush1.bf16.msra.mxu0 0
        %4714 = vmatprep.subr.bf16.mxu0 0
        %4715 = vmatpush1.bf16.msra.mxu0 0
        %4716 = vmatprep.subr.bf16.mxu0 0
        %4717 = vmatpush1.bf16.msra.mxu0 0
        %4718 = vmatprep.subr.bf16.mxu0 0
        %4719 = vmatpush1.bf16.msra.mxu0 0
        %4720 = vmatprep.subr.bf16.mxu0 0
        %4721 = vmatpush1.bf16.msra.mxu0 0
        %4722 = vmatprep.subr.bf16.mxu0 0
        %4723 = vmatpush1.bf16.msra.mxu0 0
        %4724 = vmatprep.subr.bf16.mxu0 0
        %4725 = vmatpush1.bf16.msra.mxu0 0
        %4726 = vmatprep.subr.bf16.mxu0 0
        %4727 = vmatpush1.bf16.msra.mxu0 0
        %4728 = vmatprep.subr.bf16.mxu0 0
        %4729 = vmatpush1.bf16.msra.mxu0 0
        %4730 = vmatprep.subr.bf16.mxu0 0
        %4731 = vmatpush1.bf16.msra.mxu0 0
        %4732 = vmatprep.subr.bf16.mxu0 0
        %4733 = vmatpush1.bf16.msra.mxu0 0
        %4734 = vmatprep.subr.bf16.mxu0 0
        %4735 = vmatpush1.bf16.msra.mxu0 0
        %4736 = vmatprep.subr.bf16.mxu0 0
        %4737 = vmatpush1.bf16.msra.mxu0 0
        %4738 = vmatprep.mubr.bf16.mxu0 0
        %4739 = vmatmul.mubr.bf16.gmra.mrb[0].mxu0 %v4701
        %v4740 = vpop.f32.mrb[0].mxu0
        %v4741 = vadd.f32 0.0, %v4740
        %v4742 = vpop.f32.mrb[0].mxu0
        %v4743 = vpop.f32.mrb[0].mxu0
        %v4744 = vpop.f32.mrb[0].mxu0
        %4745 = vdwg.mxu0
        %4746 = vmatprep.subr.bf16.mxu0 0
        %4747 = vmatpush1.bf16.xpose.msra.mxu0 %v4145
        %4748 = vmatprep.subr.bf16.mxu0 0
        %4749 = vmatpush1.bf16.xpose.msra.mxu0 0
        %4750 = vmatprep.subr.bf16.mxu0 0
        %4751 = vmatpush1.bf16.xpose.msra.mxu0 0
        %4752 = vmatprep.subr.bf16.mxu0 0
        %4753 = vmatpush1.bf16.xpose.msra.mxu0 0
        %4754 = vmatprep.subr.bf16.mxu0 0
        %4755 = vmatpush1.bf16.xpose.msra.mxu0 0
        %4756 = vmatprep.subr.bf16.mxu0 0
        %4757 = vmatpush1.bf16.xpose.msra.mxu0 0
        %4758 = vmatprep.subr.bf16.mxu0 0
        %4759 = vmatpush1.bf16.xpose.msra.mxu0 0
        %4760 = vmatprep.subr.bf16.mxu0 0
        %4761 = vmatpush1.bf16.xpose.msra.mxu0 0
        %4762 = vmatprep.subr.bf16.mxu0 0
        %4763 = vmatpush1.bf16.xpose.msra.mxu0 0
        %4764 = vmatprep.subr.bf16.mxu0 0
        %4765 = vmatpush1.bf16.xpose.msra.mxu0 0
        %4766 = vmatprep.subr.bf16.mxu0 0
        %4767 = vmatpush1.bf16.xpose.msra.mxu0 0
        %4768 = vmatprep.subr.bf16.mxu0 0
        %4769 = vmatpush1.bf16.xpose.msra.mxu0 0
        %4770 = vmatprep.subr.bf16.mxu0 0
        %4771 = vmatpush1.bf16.xpose.msra.mxu0 0
        %4772 = vmatprep.subr.bf16.mxu0 0
        %4773 = vmatpush1.bf16.xpose.msra.mxu0 0
        %4774 = vmatprep.subr.bf16.mxu0 0
        %4775 = vmatpush1.bf16.xpose.msra.mxu0 0
        %4776 = vmatprep.subr.bf16.mxu0 0
        %4777 = vmatpush1.bf16.xpose.msra.mxu0 0
        %4778 = vmatprep.mubr.bf16.mxu0 0
        %4779 = vmatmul.mubr.bf16.gmra.mrb[0].mxu0 %v4137
        %v4780 = vpop.f32.mrb[0].mxu0
        %v4781 = vadd.f32 0.0, %v4780
        %v4782 = vpop.f32.mrb[0].mxu0
        %v4783 = vpop.f32.mrb[0].mxu0
        %v4784 = vpop.f32.mrb[0].mxu0
        %4785 = vdwg.mxu0
        %4786 = vmatprep.subr.bf16.mxu0 0
        %4787 = vmatpush1.bf16.xpose.msra.mxu0 %v4149
        %4788 = vmatprep.subr.bf16.mxu0 0
        %4789 = vmatpush1.bf16.xpose.msra.mxu0 0
        %4790 = vmatprep.subr.bf16.mxu0 0
        %4791 = vmatpush1.bf16.xpose.msra.mxu0 0
        %4792 = vmatprep.subr.bf16.mxu0 0
        %4793 = vmatpush1.bf16.xpose.msra.mxu0 0
        %4794 = vmatprep.subr.bf16.mxu0 0
        %4795 = vmatpush1.bf16.xpose.msra.mxu0 0
        %4796 = vmatprep.subr.bf16.mxu0 0
        %4797 = vmatpush1.bf16.xpose.msra.mxu0 0
        %4798 = vmatprep.subr.bf16.mxu0 0
        %4799 = vmatpush1.bf16.xpose.msra.mxu0 0
        %4800 = vmatprep.subr.bf16.mxu0 0
        %4801 = vmatpush1.bf16.xpose.msra.mxu0 0
        %4802 = vmatprep.subr.bf16.mxu0 0
        %4803 = vmatpush1.bf16.xpose.msra.mxu0 0
        %4804 = vmatprep.subr.bf16.mxu0 0
        %4805 = vmatpush1.bf16.xpose.msra.mxu0 0
        %4806 = vmatprep.subr.bf16.mxu0 0
        %4807 = vmatpush1.bf16.xpose.msra.mxu0 0
        %4808 = vmatprep.subr.bf16.mxu0 0
        %4809 = vmatpush1.bf16.xpose.msra.mxu0 0
        %4810 = vmatprep.subr.bf16.mxu0 0
        %4811 = vmatpush1.bf16.xpose.msra.mxu0 0
        %4812 = vmatprep.subr.bf16.mxu0 0
        %4813 = vmatpush1.bf16.xpose.msra.mxu0 0
        %4814 = vmatprep.subr.bf16.mxu0 0
        %4815 = vmatpush1.bf16.xpose.msra.mxu0 0
        %4816 = vmatprep.subr.bf16.mxu0 0
        %4817 = vmatpush1.bf16.xpose.msra.mxu0 0
        %4818 = vmatprep.mubr.bf16.mxu0 0
        %4819 = vmatmul.mubr.bf16.gmra.mrb[0].mxu0 %v4141
        %v4820 = vpop.f32.mrb[0].mxu0
        %v4821 = vadd.f32 0.0, %v4820
        %v4822 = vpop.f32.mrb[0].mxu0
        %v4823 = vpop.f32.mrb[0].mxu0
        %v4824 = vpop.f32.mrb[0].mxu0
        %4825 = vdwg.mxu0
        %v4826 = vsel %vm2136, %v4781, -inf
        %4827 = vmax.xlane.f32.xlu0 %v4826
        %v4828 = vpop.xlane.xlu0 %4827
        %v4829 = vsel %vm2136, %v4821, -inf
        %4830 = vmax.xlane.f32.xlu0 %v4829
        %v4831 = vpop.xlane.xlu0 %4830
        %v4832 = vsub.f32 %v4781, %v4828
        %v4833 = vsub.f32 %v4821, %v4831
        %v4834 = vmul.f32 %v4832, 1.442695
        %v4835 = vpow.pop %v4834
        %v4836 = vmul.f32 %v4833, 1.442695
        %v4837 = vpow.pop %v4836
        %v4838 = vsel %vm2136, %v4835, 0.0
        %4839 = vadd.xlane.f32.xlu0 %v4838
        %v4840 = vpop.xlane.xlu0 %4839
        %v4841 = vsel %vm2136, %v4837, 0.0
        %4842 = vadd.xlane.f32.xlu0 %v4841
        %v4843 = vpop.xlane.xlu0 %4842
        %v4844 = vrcp.pop %v4840
        %v4845 = vrcp.pop %v4843
        %v4846 = vmul.f32 %v4835, %v4844
        %v4847 = vmul.f32 %v4837, %v4845
        %v4848 = vpack.c.bf16 %v4846, %v4846
        %v4849 = vpack.c.bf16 %v4847, %v4847
        %v4851 = vsel %vm2136, %v4848, 0
        %v4854 = vsel %vm2164, %v4153, 0
        %4856 = vmatprep.subr.bf16.mxu0 0
        %4857 = vmatpush1.bf16.msra.mxu0 %v4854
        %4858 = vmatprep.subr.bf16.mxu0 0
        %4859 = vmatpush1.bf16.msra.mxu0 0
        %4860 = vmatprep.subr.bf16.mxu0 0
        %4861 = vmatpush1.bf16.msra.mxu0 0
        %4862 = vmatprep.subr.bf16.mxu0 0
        %4863 = vmatpush1.bf16.msra.mxu0 0
        %4864 = vmatprep.subr.bf16.mxu0 0
        %4865 = vmatpush1.bf16.msra.mxu0 0
        %4866 = vmatprep.subr.bf16.mxu0 0
        %4867 = vmatpush1.bf16.msra.mxu0 0
        %4868 = vmatprep.subr.bf16.mxu0 0
        %4869 = vmatpush1.bf16.msra.mxu0 0
        %4870 = vmatprep.subr.bf16.mxu0 0
        %4871 = vmatpush1.bf16.msra.mxu0 0
        %4872 = vmatprep.subr.bf16.mxu0 0
        %4873 = vmatpush1.bf16.msra.mxu0 0
        %4874 = vmatprep.subr.bf16.mxu0 0
        %4875 = vmatpush1.bf16.msra.mxu0 0
        %4876 = vmatprep.subr.bf16.mxu0 0
        %4877 = vmatpush1.bf16.msra.mxu0 0
        %4878 = vmatprep.subr.bf16.mxu0 0
        %4879 = vmatpush1.bf16.msra.mxu0 0
        %4880 = vmatprep.subr.bf16.mxu0 0
        %4881 = vmatpush1.bf16.msra.mxu0 0
        %4882 = vmatprep.subr.bf16.mxu0 0
        %4883 = vmatpush1.bf16.msra.mxu0 0
        %4884 = vmatprep.subr.bf16.mxu0 0
        %4885 = vmatpush1.bf16.msra.mxu0 0
        %4886 = vmatprep.subr.bf16.mxu0 0
        %4887 = vmatpush1.bf16.msra.mxu0 0
        %4888 = vmatprep.mubr.bf16.mxu0 0
        %4889 = vmatmul.mubr.bf16.gmra.mrb[0].mxu0 %v4851
        %v4890 = vpop.f32.mrb[0].mxu0
        %v4891 = vadd.f32 0.0, %v4890
        %v4892 = vpop.f32.mrb[0].mxu0
        %v4893 = vpop.f32.mrb[0].mxu0
        %v4894 = vpop.f32.mrb[0].mxu0
        %4895 = vdwg.mxu0
        %v4897 = vsel %vm2136, %v4849, 0
        %v4900 = vsel %vm2164, %v4157, 0
        %4902 = vmatprep.subr.bf16.mxu0 0
        %4903 = vmatpush1.bf16.msra.mxu0 %v4900
        %4904 = vmatprep.subr.bf16.mxu0 0
        %4905 = vmatpush1.bf16.msra.mxu0 0
        %4906 = vmatprep.subr.bf16.mxu0 0
        %4907 = vmatpush1.bf16.msra.mxu0 0
        %4908 = vmatprep.subr.bf16.mxu0 0
        %4909 = vmatpush1.bf16.msra.mxu0 0
        %4910 = vmatprep.subr.bf16.mxu0 0
        %4911 = vmatpush1.bf16.msra.mxu0 0
        %4912 = vmatprep.subr.bf16.mxu0 0
        %4913 = vmatpush1.bf16.msra.mxu0 0
        %4914 = vmatprep.subr.bf16.mxu0 0
        %4915 = vmatpush1.bf16.msra.mxu0 0
        %4916 = vmatprep.subr.bf16.mxu0 0
        %4917 = vmatpush1.bf16.msra.mxu0 0
        %4918 = vmatprep.subr.bf16.mxu0 0
        %4919 = vmatpush1.bf16.msra.mxu0 0
        %4920 = vmatprep.subr.bf16.mxu0 0
        %4921 = vmatpush1.bf16.msra.mxu0 0
        %4922 = vmatprep.subr.bf16.mxu0 0
        %4923 = vmatpush1.bf16.msra.mxu0 0
        %4924 = vmatprep.subr.bf16.mxu0 0
        %4925 = vmatpush1.bf16.msra.mxu0 0
        %4926 = vmatprep.subr.bf16.mxu0 0
        %4927 = vmatpush1.bf16.msra.mxu0 0
        %4928 = vmatprep.subr.bf16.mxu0 0
        %4929 = vmatpush1.bf16.msra.mxu0 0
        %4930 = vmatprep.subr.bf16.mxu0 0
        %4931 = vmatpush1.bf16.msra.mxu0 0
        %4932 = vmatprep.subr.bf16.mxu0 0
        %4933 = vmatpush1.bf16.msra.mxu0 0
        %4934 = vmatprep.mubr.bf16.mxu0 0
        %4935 = vmatmul.mubr.bf16.gmra.mrb[0].mxu0 %v4897
        %v4936 = vpop.f32.mrb[0].mxu0
        %v4937 = vadd.f32 0.0, %v4936
        %v4938 = vpop.f32.mrb[0].mxu0
        %v4939 = vpop.f32.mrb[0].mxu0
        %v4940 = vpop.f32.mrb[0].mxu0
        %4941 = vdwg.mxu0
        %v4942 = vpack.c.bf16 %v4349, %v4303
        %v4943 = vpack.c.bf16 %v4545, %v4499
        %v4944 = vpack.c.bf16 %v4741, %v4695
        %v4945 = vpack.c.bf16 %v4937, %v4891
        %v4946 = vld [vmem:[%s905] sm:$0xf]
        %v4947 = vld [vmem:[%s905 + $0x4] sm:$0xf]
        %v4948 = vld [vmem:[%s905 + $0x8] sm:$0xf]
        %v4949 = vld [vmem:[%s905 + $0xc] sm:$0xf]
        %v4950 = vld [vmem:[%s905 + $0x10] sm:$0xf]
        %v4951 = vld [vmem:[%s905 + $0x14] sm:$0xf]
        %v4952 = vld [vmem:[%s905 + $0x18] sm:$0xf]
        %v4953 = vld [vmem:[%s905 + $0x1c] sm:$0xf]
        %v4954 = vld [vmem:[%s905 + $0x20] sm:$0xf]
        %v4955 = vld [vmem:[%s905 + $0x24] sm:$0xf]
        %v4956 = vld [vmem:[%s905 + $0x28] sm:$0xf]
        %v4957 = vld [vmem:[%s905 + $0x2c] sm:$0xf]
        %v4958 = vld [vmem:[%s905 + $0x30] sm:$0xf]
        %v4959 = vld [vmem:[%s905 + $0x34] sm:$0xf]
        %v4960 = vld [vmem:[%s905 + $0x38] sm:$0xf]
        %v4961 = vld [vmem:[%s905 + $0x3c] sm:$0xf]
        %v4962 = vld [vmem:[%s905 + $0x40] sm:$0xf]
        %v4963 = vld [vmem:[%s905 + $0x44] sm:$0xf]
        %v4964 = vld [vmem:[%s905 + $0x48] sm:$0xf]
        %v4965 = vld [vmem:[%s905 + $0x4c] sm:$0xf]
        %v4966 = vld [vmem:[%s905 + $0x50] sm:$0xf]
        %v4967 = vld [vmem:[%s905 + $0x54] sm:$0xf]
        %v4968 = vld [vmem:[%s905 + $0x58] sm:$0xf]
        %v4969 = vld [vmem:[%s905 + $0x5c] sm:$0xf]
        %v4970 = vld [vmem:[%s905 + $0x60] sm:$0xf]
        %v4971 = vld [vmem:[%s905 + $0x64] sm:$0xf]
        %v4972 = vld [vmem:[%s905 + $0x68] sm:$0xf]
        %v4973 = vld [vmem:[%s905 + $0x6c] sm:$0xf]
        %v4974 = vld [vmem:[%s905 + $0x70] sm:$0xf]
        %v4975 = vld [vmem:[%s905 + $0x74] sm:$0xf]
        %v4976 = vld [vmem:[%s905 + $0x78] sm:$0xf]
        %v4977 = vld [vmem:[%s905 + $0x7c] sm:$0xf]
        %v4978 = vld [vmem:[%s905 + $0x80] sm:$0xf]
        %v4979 = vld [vmem:[%s905 + $0x84] sm:$0xf]
        %v4980 = vld [vmem:[%s905 + $0x88] sm:$0xf]
        %v4981 = vld [vmem:[%s905 + $0x8c] sm:$0xf]
        %v4982 = vld [vmem:[%s905 + $0x90] sm:$0xf]
        %v4983 = vld [vmem:[%s905 + $0x94] sm:$0xf]
        %v4984 = vld [vmem:[%s905 + $0x98] sm:$0xf]
        %v4985 = vld [vmem:[%s905 + $0x9c] sm:$0xf]
        %v4986 = vld [vmem:[%s905 + $0xa0] sm:$0xf]
        %v4987 = vld [vmem:[%s905 + $0xa4] sm:$0xf]
        %v4988 = vld [vmem:[%s905 + $0xa8] sm:$0xf]
        %v4989 = vld [vmem:[%s905 + $0xac] sm:$0xf]
        %v4990 = vld [vmem:[%s905 + $0xb0] sm:$0xf]
        %v4991 = vld [vmem:[%s905 + $0xb4] sm:$0xf]
        %v4992 = vld [vmem:[%s905 + $0xb8] sm:$0xf]
        %v4993 = vld [vmem:[%s905 + $0xbc] sm:$0xf]
        %v4994 = vld [vmem:[%s905 + $0xc0] sm:$0xf]
        %v4995 = vld [vmem:[%s905 + $0xc4] sm:$0xf]
        %v4996 = vld [vmem:[%s905 + $0xc8] sm:$0xf]
        %v4997 = vld [vmem:[%s905 + $0xcc] sm:$0xf]
        %v4998 = vld [vmem:[%s905 + $0xd0] sm:$0xf]
        %v4999 = vld [vmem:[%s905 + $0xd4] sm:$0xf]
        %v5000 = vld [vmem:[%s905 + $0xd8] sm:$0xf]
        %v5001 = vld [vmem:[%s905 + $0xdc] sm:$0xf]
        %v5002 = vld [vmem:[%s905 + $0xe0] sm:$0xf]
        %v5003 = vld [vmem:[%s905 + $0xe4] sm:$0xf]
        %v5004 = vld [vmem:[%s905 + $0xe8] sm:$0xf]
        %v5005 = vld [vmem:[%s905 + $0xec] sm:$0xf]
        %v5006 = vld [vmem:[%s905 + $0xf0] sm:$0xf]
        %v5007 = vld [vmem:[%s905 + $0xf4] sm:$0xf]
        %v5008 = vld [vmem:[%s905 + $0xf8] sm:$0xf]
        %v5009 = vld [vmem:[%s905 + $0xfc] sm:$0xf]
        %v5010 = vld [vmem:[%s1094] sm:$0x1]
        %v5012 = vlaneseq
        %v5013 = vshrl.u32 %v5012, 7
        %v5014 = vsub.s32 0, %v5013
        %v5015 = vrot.slane %v5010, %v5014
        %v5081 = vunpack.c.l.b16 %v4946
        %v5082 = vunpack.c.l.b16 %v4947
        %v5083 = vunpack.c.l.b16 %v4948
        %v5084 = vunpack.c.l.b16 %v4949
        %v5085 = vunpack.c.l.b16 %v4950
        %v5086 = vunpack.c.l.b16 %v4951
        %v5087 = vunpack.c.l.b16 %v4952
        %v5088 = vunpack.c.l.b16 %v4953
        %v5089 = vunpack.c.l.b16 %v4954
        %v5090 = vunpack.c.l.b16 %v4955
        %v5091 = vunpack.c.l.b16 %v4956
        %v5092 = vunpack.c.l.b16 %v4957
        %v5093 = vunpack.c.l.b16 %v4958
        %v5094 = vunpack.c.l.b16 %v4959
        %v5095 = vunpack.c.l.b16 %v4960
        %v5096 = vunpack.c.l.b16 %v4961
        %v5097 = vunpack.c.l.b16 %v4962
        %v5098 = vunpack.c.l.b16 %v4963
        %v5099 = vunpack.c.l.b16 %v4964
        %v5100 = vunpack.c.l.b16 %v4965
        %v5101 = vunpack.c.l.b16 %v4966
        %v5102 = vunpack.c.l.b16 %v4967
        %v5103 = vunpack.c.l.b16 %v4968
        %v5104 = vunpack.c.l.b16 %v4969
        %v5105 = vunpack.c.l.b16 %v4970
        %v5106 = vunpack.c.l.b16 %v4971
        %v5107 = vunpack.c.l.b16 %v4972
        %v5108 = vunpack.c.l.b16 %v4973
        %v5109 = vunpack.c.l.b16 %v4974
        %v5110 = vunpack.c.l.b16 %v4975
        %v5111 = vunpack.c.l.b16 %v4976
        %v5112 = vunpack.c.l.b16 %v4977
        %v5113 = vunpack.c.l.b16 %v4978
        %v5114 = vunpack.c.l.b16 %v4979
        %v5115 = vunpack.c.l.b16 %v4980
        %v5116 = vunpack.c.l.b16 %v4981
        %v5117 = vunpack.c.l.b16 %v4982
        %v5118 = vunpack.c.l.b16 %v4983
        %v5119 = vunpack.c.l.b16 %v4984
        %v5120 = vunpack.c.l.b16 %v4985
        %v5121 = vunpack.c.l.b16 %v4986
        %v5122 = vunpack.c.l.b16 %v4987
        %v5123 = vunpack.c.l.b16 %v4988
        %v5124 = vunpack.c.l.b16 %v4989
        %v5125 = vunpack.c.l.b16 %v4990
        %v5126 = vunpack.c.l.b16 %v4991
        %v5127 = vunpack.c.l.b16 %v4992
        %v5128 = vunpack.c.l.b16 %v4993
        %v5129 = vunpack.c.l.b16 %v4994
        %v5130 = vunpack.c.l.b16 %v4995
        %v5131 = vunpack.c.l.b16 %v4996
        %v5132 = vunpack.c.l.b16 %v4997
        %v5133 = vunpack.c.l.b16 %v4998
        %v5134 = vunpack.c.l.b16 %v4999
        %v5135 = vunpack.c.l.b16 %v5000
        %v5136 = vunpack.c.l.b16 %v5001
        %v5137 = vunpack.c.l.b16 %v5002
        %v5138 = vunpack.c.l.b16 %v5003
        %v5139 = vunpack.c.l.b16 %v5004
        %v5140 = vunpack.c.l.b16 %v5005
        %v5141 = vunpack.c.l.b16 %v5006
        %v5142 = vunpack.c.l.b16 %v5007
        %v5143 = vunpack.c.l.b16 %v5008
        %v5144 = vunpack.c.l.b16 %v5009
        %v5145 = vpack.c.b16 %v5082, %v5081
        %v5146 = vpack.c.b16 %v5084, %v5083
        %v5147 = vpack.c.b16 %v5086, %v5085
        %v5148 = vpack.c.b16 %v5088, %v5087
        %v5149 = vpack.c.b16 %v5090, %v5089
        %v5150 = vpack.c.b16 %v5092, %v5091
        %v5151 = vpack.c.b16 %v5094, %v5093
        %v5152 = vpack.c.b16 %v5096, %v5095
        %v5153 = vpack.c.b16 %v5098, %v5097
        %v5154 = vpack.c.b16 %v5100, %v5099
        %v5155 = vpack.c.b16 %v5102, %v5101
        %v5156 = vpack.c.b16 %v5104, %v5103
        %v5157 = vpack.c.b16 %v5106, %v5105
        %v5158 = vpack.c.b16 %v5108, %v5107
        %v5159 = vpack.c.b16 %v5110, %v5109
        %v5160 = vpack.c.b16 %v5112, %v5111
        %v5161 = vpack.c.b16 %v5114, %v5113
        %v5162 = vpack.c.b16 %v5116, %v5115
        %v5163 = vpack.c.b16 %v5118, %v5117
        %v5164 = vpack.c.b16 %v5120, %v5119
        %v5165 = vpack.c.b16 %v5122, %v5121
        %v5166 = vpack.c.b16 %v5124, %v5123
        %v5167 = vpack.c.b16 %v5126, %v5125
        %v5168 = vpack.c.b16 %v5128, %v5127
        %v5169 = vpack.c.b16 %v5130, %v5129
        %v5170 = vpack.c.b16 %v5132, %v5131
        %v5171 = vpack.c.b16 %v5134, %v5133
        %v5172 = vpack.c.b16 %v5136, %v5135
        %v5173 = vpack.c.b16 %v5138, %v5137
        %v5174 = vpack.c.b16 %v5140, %v5139
        %v5175 = vpack.c.b16 %v5142, %v5141
        %v5176 = vpack.c.b16 %v5144, %v5143
        %5209 = vmatprep.subr.bf16.mxu0 0
        %5210 = vmatpush1.bf16.msra.mxu0 %v5145
        %5211 = vmatprep.subr.bf16.mxu0 0
        %5212 = vmatpush1.bf16.msra.mxu0 %v5146
        %5213 = vmatprep.subr.bf16.mxu0 0
        %5214 = vmatpush1.bf16.msra.mxu0 %v5147
        %5215 = vmatprep.subr.bf16.mxu0 0
        %5216 = vmatpush1.bf16.msra.mxu0 %v5148
        %5217 = vmatprep.subr.bf16.mxu0 0
        %5218 = vmatpush1.bf16.msra.mxu0 %v5149
        %5219 = vmatprep.subr.bf16.mxu0 0
        %5220 = vmatpush1.bf16.msra.mxu0 %v5150
        %5221 = vmatprep.subr.bf16.mxu0 0
        %5222 = vmatpush1.bf16.msra.mxu0 %v5151
        %5223 = vmatprep.subr.bf16.mxu0 0
        %5224 = vmatpush1.bf16.msra.mxu0 %v5152
        %5225 = vmatprep.subr.bf16.mxu0 0
        %5226 = vmatpush1.bf16.msra.mxu0 %v5153
        %5227 = vmatprep.subr.bf16.mxu0 0
        %5228 = vmatpush1.bf16.msra.mxu0 %v5154
        %5229 = vmatprep.subr.bf16.mxu0 0
        %5230 = vmatpush1.bf16.msra.mxu0 %v5155
        %5231 = vmatprep.subr.bf16.mxu0 0
        %5232 = vmatpush1.bf16.msra.mxu0 %v5156
        %5233 = vmatprep.subr.bf16.mxu0 0
        %5234 = vmatpush1.bf16.msra.mxu0 %v5157
        %5235 = vmatprep.subr.bf16.mxu0 0
        %5236 = vmatpush1.bf16.msra.mxu0 %v5158
        %5237 = vmatprep.subr.bf16.mxu0 0
        %5238 = vmatpush1.bf16.msra.mxu0 %v5159
        %5239 = vmatprep.subr.bf16.mxu0 0
        %5240 = vmatpush1.bf16.msra.mxu0 %v5160
        %5241 = vmatprep.mubr.bf16.mxu0 %v4943
        %5242 = vmatmul.mubr.bf16.gmra.mrb[0].mxu0 %v4942
        %v5243 = vpop.f32.mrb[0].mxu0
        %v5244 = vadd.f32 %v5015, %v5243
        %v5245 = vpop.f32.mrb[0].mxu0
        %v5246 = vpop.f32.mrb[0].mxu0
        %v5247 = vadd.f32 %v5015, %v5246
        %v5248 = vpop.f32.mrb[0].mxu0
        %5249 = vdwg.mxu0
        %5250 = vmatprep.subr.bf16.mxu0 0
        %5251 = vmatpush1.bf16.msra.mxu0 %v5161
        %5252 = vmatprep.subr.bf16.mxu0 0
        %5253 = vmatpush1.bf16.msra.mxu0 %v5162
        %5254 = vmatprep.subr.bf16.mxu0 0
        %5255 = vmatpush1.bf16.msra.mxu0 %v5163
        %5256 = vmatprep.subr.bf16.mxu0 0
        %5257 = vmatpush1.bf16.msra.mxu0 %v5164
        %5258 = vmatprep.subr.bf16.mxu0 0
        %5259 = vmatpush1.bf16.msra.mxu0 %v5165
        %5260 = vmatprep.subr.bf16.mxu0 0
        %5261 = vmatpush1.bf16.msra.mxu0 %v5166
        %5262 = vmatprep.subr.bf16.mxu0 0
        %5263 = vmatpush1.bf16.msra.mxu0 %v5167
        %5264 = vmatprep.subr.bf16.mxu0 0
        %5265 = vmatpush1.bf16.msra.mxu0 %v5168
        %5266 = vmatprep.subr.bf16.mxu0 0
        %5267 = vmatpush1.bf16.msra.mxu0 %v5169
        %5268 = vmatprep.subr.bf16.mxu0 0
        %5269 = vmatpush1.bf16.msra.mxu0 %v5170
        %5270 = vmatprep.subr.bf16.mxu0 0
        %5271 = vmatpush1.bf16.msra.mxu0 %v5171
        %5272 = vmatprep.subr.bf16.mxu0 0
        %5273 = vmatpush1.bf16.msra.mxu0 %v5172
        %5274 = vmatprep.subr.bf16.mxu0 0
        %5275 = vmatpush1.bf16.msra.mxu0 %v5173
        %5276 = vmatprep.subr.bf16.mxu0 0
        %5277 = vmatpush1.bf16.msra.mxu0 %v5174
        %5278 = vmatprep.subr.bf16.mxu0 0
        %5279 = vmatpush1.bf16.msra.mxu0 %v5175
        %5280 = vmatprep.subr.bf16.mxu0 0
        %5281 = vmatpush1.bf16.msra.mxu0 %v5176
        %5282 = vmatprep.mubr.bf16.mxu0 %v4945
        %5283 = vmatmul.mubr.bf16.gmra.mrb[0].mxu0 %v4944
        %v5284 = vpop.f32.mrb[0].mxu0
        %v5285 = vadd.f32 %v5244, %v5284
        %v5286 = vpop.f32.mrb[0].mxu0
        %v5287 = vpop.f32.mrb[0].mxu0
        %v5288 = vadd.f32 %v5247, %v5287
        %v5289 = vpop.f32.mrb[0].mxu0
        %5290 = vdwg.mxu0
        %v5291 = vadd.f32 %v3232, %v5285
        %v5292 = vadd.f32 %v3233, %v5288
        %v5293 = vld [vmem:[%s1097] sm:$0x1]
        %v5294 = vld [vmem:[%s1100] sm:$0x1]
        %5295 = vadd.xlane.f32.xlu0 %v5291
        %v5296 = vpop.xlane.xlu0 %5295
        %5297 = vadd.xlane.f32.xlu0 %v5292
        %v5298 = vpop.xlane.xlu0 %5297
        %v5299 = vmul.f32 %v5296, %v3199
        %v5300 = vmul.f32 %v5298, %v3199
        %v5301 = vsub.f32 %v5291, %v5299
        %v5302 = vsub.f32 %v5292, %v5300
        %v5303 = vmul.f32 %v5301, %v5301
        %v5304 = vmul.f32 %v5302, %v5302
        %5305 = vadd.xlane.f32.xlu0 %v5303
        %v5306 = vpop.xlane.xlu0 %5305
        %5307 = vadd.xlane.f32.xlu0 %v5304
        %v5308 = vpop.xlane.xlu0 %5307
        %v5309 = vmul.f32 %v5306, %v3199
        %v5310 = vmul.f32 %v5308, %v3199
        %v5311 = vadd.f32 %v5309, 1e-05
        %v5312 = vadd.f32 %v5310, 1e-05
        %v5313 = vrsqrt.pop %v5311
        %v5314 = vrsqrt.pop %v5312
        %v5315 = vmul.f32 %v5301, %v5313
        %v5316 = vmul.f32 %v5302, %v5314
        %v5318 = vlaneseq
        %v5319 = vshrl.u32 %v5318, 7
        %v5320 = vsub.s32 0, %v5319
        %v5321 = vrot.slane %v5293, %v5320
        %v5323 = vmul.f32 %v5315, %v5321
        %v5324 = vmul.f32 %v5316, %v5321
        %v5326 = vlaneseq
        %v5327 = vshrl.u32 %v5326, 7
        %v5328 = vsub.s32 0, %v5327
        %v5329 = vrot.slane %v5294, %v5328
        %v5331 = vadd.f32 %v5323, %v5329
        %v5332 = vadd.f32 %v5324, %v5329
        %v5333 = vpack.c.bf16 %v5332, %v5331
        %v5334 = vld [vmem:[%s914] sm:$0xff]
        %v5335 = vld [vmem:[%s914 + $0x8] sm:$0xff]
        %v5336 = vld [vmem:[%s914 + $0x10] sm:$0xff]
        %v5337 = vld [vmem:[%s914 + $0x18] sm:$0xff]
        %v5338 = vld [vmem:[%s914 + $0x20] sm:$0xff]
        %v5339 = vld [vmem:[%s914 + $0x28] sm:$0xff]
        %v5340 = vld [vmem:[%s914 + $0x30] sm:$0xff]
        %v5341 = vld [vmem:[%s914 + $0x38] sm:$0xff]
        %v5342 = vld [vmem:[%s914 + $0x40] sm:$0xff]
        %v5343 = vld [vmem:[%s914 + $0x48] sm:$0xff]
        %v5344 = vld [vmem:[%s914 + $0x50] sm:$0xff]
        %v5345 = vld [vmem:[%s914 + $0x58] sm:$0xff]
        %v5346 = vld [vmem:[%s914 + $0x60] sm:$0xff]
        %v5347 = vld [vmem:[%s914 + $0x68] sm:$0xff]
        %v5348 = vld [vmem:[%s914 + $0x70] sm:$0xff]
        %v5349 = vld [vmem:[%s914 + $0x78] sm:$0xff]
        %v5350 = vld [vmem:[%s914 + $0x80] sm:$0xff]
        %v5351 = vld [vmem:[%s914 + $0x88] sm:$0xff]
        %v5352 = vld [vmem:[%s914 + $0x90] sm:$0xff]
        %v5353 = vld [vmem:[%s914 + $0x98] sm:$0xff]
        %v5354 = vld [vmem:[%s914 + $0xa0] sm:$0xff]
        %v5355 = vld [vmem:[%s914 + $0xa8] sm:$0xff]
        %v5356 = vld [vmem:[%s914 + $0xb0] sm:$0xff]
        %v5357 = vld [vmem:[%s914 + $0xb8] sm:$0xff]
        %v5358 = vld [vmem:[%s914 + $0xc0] sm:$0xff]
        %v5359 = vld [vmem:[%s914 + $0xc8] sm:$0xff]
        %v5360 = vld [vmem:[%s914 + $0xd0] sm:$0xff]
        %v5361 = vld [vmem:[%s914 + $0xd8] sm:$0xff]
        %v5362 = vld [vmem:[%s914 + $0xe0] sm:$0xff]
        %v5363 = vld [vmem:[%s914 + $0xe8] sm:$0xff]
        %v5364 = vld [vmem:[%s914 + $0xf0] sm:$0xff]
        %v5365 = vld [vmem:[%s914 + $0xf8] sm:$0xff]
        %v5366 = vld [vmem:[%s1104] sm:$0xf]
        %v5368 = vlaneseq
        %v5369 = vshrl.u32 %v5368, 7
        %v5370 = vsub.s32 0, %v5369
        %v5371 = vrot.slane %v5366, %v5370
        %v5372 = vlaneseq
        %v5373 = vshrl.u32 %v5372, 7
        %v5374 = vsub.s32 1, %v5373
        %v5375 = vrot.slane %v5366, %v5374
        %v5376 = vlaneseq
        %v5377 = vshrl.u32 %v5376, 7
        %v5378 = vsub.s32 2, %v5377
        %v5379 = vrot.slane %v5366, %v5378
        %v5380 = vlaneseq
        %v5381 = vshrl.u32 %v5380, 7
        %v5382 = vsub.s32 3, %v5381
        %v5383 = vrot.slane %v5366, %v5382
        %v5420 = vunpack.c.l.b16 %v5334
        %v5421 = vunpack.c.h.b16 %v5334
        %v5422 = vunpack.c.l.b16 %v5335
        %v5423 = vunpack.c.h.b16 %v5335
        %v5424 = vunpack.c.l.b16 %v5336
        %v5425 = vunpack.c.h.b16 %v5336
        %v5426 = vunpack.c.l.b16 %v5337
        %v5427 = vunpack.c.h.b16 %v5337
        %v5428 = vunpack.c.l.b16 %v5338
        %v5429 = vunpack.c.h.b16 %v5338
        %v5430 = vunpack.c.l.b16 %v5339
        %v5431 = vunpack.c.h.b16 %v5339
        %v5432 = vunpack.c.l.b16 %v5340
        %v5433 = vunpack.c.h.b16 %v5340
        %v5434 = vunpack.c.l.b16 %v5341
        %v5435 = vunpack.c.h.b16 %v5341
        %v5436 = vunpack.c.l.b16 %v5342
        %v5437 = vunpack.c.h.b16 %v5342
        %v5438 = vunpack.c.l.b16 %v5343
        %v5439 = vunpack.c.h.b16 %v5343
        %v5440 = vunpack.c.l.b16 %v5344
        %v5441 = vunpack.c.h.b16 %v5344
        %v5442 = vunpack.c.l.b16 %v5345
        %v5443 = vunpack.c.h.b16 %v5345
        %v5444 = vunpack.c.l.b16 %v5346
        %v5445 = vunpack.c.h.b16 %v5346
        %v5446 = vunpack.c.l.b16 %v5347
        %v5447 = vunpack.c.h.b16 %v5347
        %v5448 = vunpack.c.l.b16 %v5348
        %v5449 = vunpack.c.h.b16 %v5348
        %v5450 = vunpack.c.l.b16 %v5349
        %v5451 = vunpack.c.h.b16 %v5349
        %v5452 = vunpack.c.l.b16 %v5350
        %v5453 = vunpack.c.h.b16 %v5350
        %v5454 = vunpack.c.l.b16 %v5351
        %v5455 = vunpack.c.h.b16 %v5351
        %v5456 = vunpack.c.l.b16 %v5352
        %v5457 = vunpack.c.h.b16 %v5352
        %v5458 = vunpack.c.l.b16 %v5353
        %v5459 = vunpack.c.h.b16 %v5353
        %v5460 = vunpack.c.l.b16 %v5354
        %v5461 = vunpack.c.h.b16 %v5354
        %v5462 = vunpack.c.l.b16 %v5355
        %v5463 = vunpack.c.h.b16 %v5355
        %v5464 = vunpack.c.l.b16 %v5356
        %v5465 = vunpack.c.h.b16 %v5356
        %v5466 = vunpack.c.l.b16 %v5357
        %v5467 = vunpack.c.h.b16 %v5357
        %v5468 = vunpack.c.l.b16 %v5358
        %v5469 = vunpack.c.h.b16 %v5358
        %v5470 = vunpack.c.l.b16 %v5359
        %v5471 = vunpack.c.h.b16 %v5359
        %v5472 = vunpack.c.l.b16 %v5360
        %v5473 = vunpack.c.h.b16 %v5360
        %v5474 = vunpack.c.l.b16 %v5361
        %v5475 = vunpack.c.h.b16 %v5361
        %v5476 = vunpack.c.l.b16 %v5362
        %v5477 = vunpack.c.h.b16 %v5362
        %v5478 = vunpack.c.l.b16 %v5363
        %v5479 = vunpack.c.h.b16 %v5363
        %v5480 = vunpack.c.l.b16 %v5364
        %v5481 = vunpack.c.h.b16 %v5364
        %v5482 = vunpack.c.l.b16 %v5365
        %v5483 = vunpack.c.h.b16 %v5365
        %v5484 = vpack.c.b16 %v5424, %v5420
        %v5485 = vpack.c.b16 %v5425, %v5421
        %v5486 = vpack.c.b16 %v5426, %v5422
        %v5487 = vpack.c.b16 %v5427, %v5423
        %v5488 = vpack.c.b16 %v5432, %v5428
        %v5489 = vpack.c.b16 %v5433, %v5429
        %v5490 = vpack.c.b16 %v5434, %v5430
        %v5491 = vpack.c.b16 %v5435, %v5431
        %v5492 = vpack.c.b16 %v5440, %v5436
        %v5493 = vpack.c.b16 %v5441, %v5437
        %v5494 = vpack.c.b16 %v5442, %v5438
        %v5495 = vpack.c.b16 %v5443, %v5439
        %v5496 = vpack.c.b16 %v5448, %v5444
        %v5497 = vpack.c.b16 %v5449, %v5445
        %v5498 = vpack.c.b16 %v5450, %v5446
        %v5499 = vpack.c.b16 %v5451, %v5447
        %v5500 = vpack.c.b16 %v5456, %v5452
        %v5501 = vpack.c.b16 %v5457, %v5453
        %v5502 = vpack.c.b16 %v5458, %v5454
        %v5503 = vpack.c.b16 %v5459, %v5455
        %v5504 = vpack.c.b16 %v5464, %v5460
        %v5505 = vpack.c.b16 %v5465, %v5461
        %v5506 = vpack.c.b16 %v5466, %v5462
        %v5507 = vpack.c.b16 %v5467, %v5463
        %v5508 = vpack.c.b16 %v5472, %v5468
        %v5509 = vpack.c.b16 %v5473, %v5469
        %v5510 = vpack.c.b16 %v5474, %v5470
        %v5511 = vpack.c.b16 %v5475, %v5471
        %v5512 = vpack.c.b16 %v5480, %v5476
        %v5513 = vpack.c.b16 %v5481, %v5477
        %v5514 = vpack.c.b16 %v5482, %v5478
        %v5515 = vpack.c.b16 %v5483, %v5479
        %5548 = vmatprep.subr.bf16.mxu0 %v5485
        %5549 = vmatpush1.bf16.msra.mxu0 %v5484
        %5550 = vmatprep.subr.bf16.mxu0 %v5489
        %5551 = vmatpush1.bf16.msra.mxu0 %v5488
        %5552 = vmatprep.subr.bf16.mxu0 %v5493
        %5553 = vmatpush1.bf16.msra.mxu0 %v5492
        %5554 = vmatprep.subr.bf16.mxu0 %v5497
        %5555 = vmatpush1.bf16.msra.mxu0 %v5496
        %5556 = vmatprep.subr.bf16.mxu0 %v5501
        %5557 = vmatpush1.bf16.msra.mxu0 %v5500
        %5558 = vmatprep.subr.bf16.mxu0 %v5505
        %5559 = vmatpush1.bf16.msra.mxu0 %v5504
        %5560 = vmatprep.subr.bf16.mxu0 %v5509
        %5561 = vmatpush1.bf16.msra.mxu0 %v5508
        %5562 = vmatprep.subr.bf16.mxu0 %v5513
        %5563 = vmatpush1.bf16.msra.mxu0 %v5512
        %5564 = vmatprep.subr.bf16.mxu0 0
        %5565 = vmatpush1.bf16.msra.mxu0 0
        %5566 = vmatprep.subr.bf16.mxu0 0
        %5567 = vmatpush1.bf16.msra.mxu0 0
        %5568 = vmatprep.subr.bf16.mxu0 0
        %5569 = vmatpush1.bf16.msra.mxu0 0
        %5570 = vmatprep.subr.bf16.mxu0 0
        %5571 = vmatpush1.bf16.msra.mxu0 0
        %5572 = vmatprep.subr.bf16.mxu0 0
        %5573 = vmatpush1.bf16.msra.mxu0 0
        %5574 = vmatprep.subr.bf16.mxu0 0
        %5575 = vmatpush1.bf16.msra.mxu0 0
        %5576 = vmatprep.subr.bf16.mxu0 0
        %5577 = vmatpush1.bf16.msra.mxu0 0
        %5578 = vmatprep.subr.bf16.mxu0 0
        %5579 = vmatpush1.bf16.msra.mxu0 0
        %5580 = vmatprep.mubr.bf16.mxu0 0
        %5581 = vmatmul.mubr.bf16.gmra.mrb[0].mxu0 %v5333
        %v5582 = vpop.f32.mrb[0].mxu0
        %v5583 = vadd.f32 %v5371, %v5582
        %v5584 = vpop.f32.mrb[0].mxu0
        %v5585 = vadd.f32 %v5375, %v5584
        %v5586 = vpop.f32.mrb[0].mxu0
        %v5587 = vadd.f32 %v5371, %v5586
        %v5588 = vpop.f32.mrb[0].mxu0
        %v5589 = vadd.f32 %v5375, %v5588
        %5590 = vdwg.mxu0
        %5591 = vmatprep.subr.bf16.mxu0 %v5487
        %5592 = vmatpush1.bf16.msra.mxu0 %v5486
        %5593 = vmatprep.subr.bf16.mxu0 %v5491
        %5594 = vmatpush1.bf16.msra.mxu0 %v5490
        %5595 = vmatprep.subr.bf16.mxu0 %v5495
        %5596 = vmatpush1.bf16.msra.mxu0 %v5494
        %5597 = vmatprep.subr.bf16.mxu0 %v5499
        %5598 = vmatpush1.bf16.msra.mxu0 %v5498
        %5599 = vmatprep.subr.bf16.mxu0 %v5503
        %5600 = vmatpush1.bf16.msra.mxu0 %v5502
        %5601 = vmatprep.subr.bf16.mxu0 %v5507
        %5602 = vmatpush1.bf16.msra.mxu0 %v5506
        %5603 = vmatprep.subr.bf16.mxu0 %v5511
        %5604 = vmatpush1.bf16.msra.mxu0 %v5510
        %5605 = vmatprep.subr.bf16.mxu0 %v5515
        %5606 = vmatpush1.bf16.msra.mxu0 %v5514
        %5607 = vmatprep.subr.bf16.mxu0 0
        %5608 = vmatpush1.bf16.msra.mxu0 0
        %5609 = vmatprep.subr.bf16.mxu0 0
        %5610 = vmatpush1.bf16.msra.mxu0 0
        %5611 = vmatprep.subr.bf16.mxu0 0
        %5612 = vmatpush1.bf16.msra.mxu0 0
        %5613 = vmatprep.subr.bf16.mxu0 0
        %5614 = vmatpush1.bf16.msra.mxu0 0
        %5615 = vmatprep.subr.bf16.mxu0 0
        %5616 = vmatpush1.bf16.msra.mxu0 0
        %5617 = vmatprep.subr.bf16.mxu0 0
        %5618 = vmatpush1.bf16.msra.mxu0 0
        %5619 = vmatprep.subr.bf16.mxu0 0
        %5620 = vmatpush1.bf16.msra.mxu0 0
        %5621 = vmatprep.subr.bf16.mxu0 0
        %5622 = vmatpush1.bf16.msra.mxu0 0
        %5623 = vmatprep.mubr.bf16.mxu0 0
        %5624 = vmatmul.mubr.bf16.gmra.mrb[0].mxu0 %v5333
        %v5625 = vpop.f32.mrb[0].mxu0
        %v5626 = vadd.f32 %v5379, %v5625
        %v5627 = vpop.f32.mrb[0].mxu0
        %v5628 = vadd.f32 %v5383, %v5627
        %v5629 = vpop.f32.mrb[0].mxu0
        %v5630 = vadd.f32 %v5379, %v5629
        %v5631 = vpop.f32.mrb[0].mxu0
        %v5632 = vadd.f32 %v5383, %v5631
        %5633 = vdwg.mxu0
        %v5634 = vmax.f32 %v5583, 0.0
        %v5635 = vmax.f32 %v5585, 0.0
        %v5636 = vmax.f32 %v5626, 0.0
        %v5637 = vmax.f32 %v5628, 0.0
        %v5638 = vmax.f32 %v5587, 0.0
        %v5639 = vmax.f32 %v5589, 0.0
        %v5640 = vmax.f32 %v5630, 0.0
        %v5641 = vmax.f32 %v5632, 0.0
        %v5642 = vpack.c.bf16 %v5638, %v5634
        %v5643 = vpack.c.bf16 %v5639, %v5635
        %v5644 = vpack.c.bf16 %v5640, %v5636
        %v5645 = vpack.c.bf16 %v5641, %v5637
        %v5646 = vld [vmem:[%s923] sm:$0xf]
        %v5647 = vld [vmem:[%s923 + $0x4] sm:$0xf]
        %v5648 = vld [vmem:[%s923 + $0x8] sm:$0xf]
        %v5649 = vld [vmem:[%s923 + $0xc] sm:$0xf]
        %v5650 = vld [vmem:[%s923 + $0x10] sm:$0xf]
        %v5651 = vld [vmem:[%s923 + $0x14] sm:$0xf]
        %v5652 = vld [vmem:[%s923 + $0x18] sm:$0xf]
        %v5653 = vld [vmem:[%s923 + $0x1c] sm:$0xf]
        %v5654 = vld [vmem:[%s923 + $0x20] sm:$0xf]
        %v5655 = vld [vmem:[%s923 + $0x24] sm:$0xf]
        %v5656 = vld [vmem:[%s923 + $0x28] sm:$0xf]
        %v5657 = vld [vmem:[%s923 + $0x2c] sm:$0xf]
        %v5658 = vld [vmem:[%s923 + $0x30] sm:$0xf]
        %v5659 = vld [vmem:[%s923 + $0x34] sm:$0xf]
        %v5660 = vld [vmem:[%s923 + $0x38] sm:$0xf]
        %v5661 = vld [vmem:[%s923 + $0x3c] sm:$0xf]
        %v5662 = vld [vmem:[%s923 + $0x40] sm:$0xf]
        %v5663 = vld [vmem:[%s923 + $0x44] sm:$0xf]
        %v5664 = vld [vmem:[%s923 + $0x48] sm:$0xf]
        %v5665 = vld [vmem:[%s923 + $0x4c] sm:$0xf]
        %v5666 = vld [vmem:[%s923 + $0x50] sm:$0xf]
        %v5667 = vld [vmem:[%s923 + $0x54] sm:$0xf]
        %v5668 = vld [vmem:[%s923 + $0x58] sm:$0xf]
        %v5669 = vld [vmem:[%s923 + $0x5c] sm:$0xf]
        %v5670 = vld [vmem:[%s923 + $0x60] sm:$0xf]
        %v5671 = vld [vmem:[%s923 + $0x64] sm:$0xf]
        %v5672 = vld [vmem:[%s923 + $0x68] sm:$0xf]
        %v5673 = vld [vmem:[%s923 + $0x6c] sm:$0xf]
        %v5674 = vld [vmem:[%s923 + $0x70] sm:$0xf]
        %v5675 = vld [vmem:[%s923 + $0x74] sm:$0xf]
        %v5676 = vld [vmem:[%s923 + $0x78] sm:$0xf]
        %v5677 = vld [vmem:[%s923 + $0x7c] sm:$0xf]
        %v5678 = vld [vmem:[%s923 + $0x80] sm:$0xf]
        %v5679 = vld [vmem:[%s923 + $0x84] sm:$0xf]
        %v5680 = vld [vmem:[%s923 + $0x88] sm:$0xf]
        %v5681 = vld [vmem:[%s923 + $0x8c] sm:$0xf]
        %v5682 = vld [vmem:[%s923 + $0x90] sm:$0xf]
        %v5683 = vld [vmem:[%s923 + $0x94] sm:$0xf]
        %v5684 = vld [vmem:[%s923 + $0x98] sm:$0xf]
        %v5685 = vld [vmem:[%s923 + $0x9c] sm:$0xf]
        %v5686 = vld [vmem:[%s923 + $0xa0] sm:$0xf]
        %v5687 = vld [vmem:[%s923 + $0xa4] sm:$0xf]
        %v5688 = vld [vmem:[%s923 + $0xa8] sm:$0xf]
        %v5689 = vld [vmem:[%s923 + $0xac] sm:$0xf]
        %v5690 = vld [vmem:[%s923 + $0xb0] sm:$0xf]
        %v5691 = vld [vmem:[%s923 + $0xb4] sm:$0xf]
        %v5692 = vld [vmem:[%s923 + $0xb8] sm:$0xf]
        %v5693 = vld [vmem:[%s923 + $0xbc] sm:$0xf]
        %v5694 = vld [vmem:[%s923 + $0xc0] sm:$0xf]
        %v5695 = vld [vmem:[%s923 + $0xc4] sm:$0xf]
        %v5696 = vld [vmem:[%s923 + $0xc8] sm:$0xf]
        %v5697 = vld [vmem:[%s923 + $0xcc] sm:$0xf]
        %v5698 = vld [vmem:[%s923 + $0xd0] sm:$0xf]
        %v5699 = vld [vmem:[%s923 + $0xd4] sm:$0xf]
        %v5700 = vld [vmem:[%s923 + $0xd8] sm:$0xf]
        %v5701 = vld [vmem:[%s923 + $0xdc] sm:$0xf]
        %v5702 = vld [vmem:[%s923 + $0xe0] sm:$0xf]
        %v5703 = vld [vmem:[%s923 + $0xe4] sm:$0xf]
        %v5704 = vld [vmem:[%s923 + $0xe8] sm:$0xf]
        %v5705 = vld [vmem:[%s923 + $0xec] sm:$0xf]
        %v5706 = vld [vmem:[%s923 + $0xf0] sm:$0xf]
        %v5707 = vld [vmem:[%s923 + $0xf4] sm:$0xf]
        %v5708 = vld [vmem:[%s923 + $0xf8] sm:$0xf]
        %v5709 = vld [vmem:[%s923 + $0xfc] sm:$0xf]
        %v5710 = vld [vmem:[%s1107] sm:$0x1]
        %v5712 = vlaneseq
        %v5713 = vshrl.u32 %v5712, 7
        %v5714 = vsub.s32 0, %v5713
        %v5715 = vrot.slane %v5710, %v5714
        %v5781 = vunpack.c.l.b16 %v5646
        %v5782 = vunpack.c.l.b16 %v5647
        %v5783 = vunpack.c.l.b16 %v5648
        %v5784 = vunpack.c.l.b16 %v5649
        %v5785 = vunpack.c.l.b16 %v5650
        %v5786 = vunpack.c.l.b16 %v5651
        %v5787 = vunpack.c.l.b16 %v5652
        %v5788 = vunpack.c.l.b16 %v5653
        %v5789 = vunpack.c.l.b16 %v5654
        %v5790 = vunpack.c.l.b16 %v5655
        %v5791 = vunpack.c.l.b16 %v5656
        %v5792 = vunpack.c.l.b16 %v5657
        %v5793 = vunpack.c.l.b16 %v5658
        %v5794 = vunpack.c.l.b16 %v5659
        %v5795 = vunpack.c.l.b16 %v5660
        %v5796 = vunpack.c.l.b16 %v5661
        %v5797 = vunpack.c.l.b16 %v5662
        %v5798 = vunpack.c.l.b16 %v5663
        %v5799 = vunpack.c.l.b16 %v5664
        %v5800 = vunpack.c.l.b16 %v5665
        %v5801 = vunpack.c.l.b16 %v5666
        %v5802 = vunpack.c.l.b16 %v5667
        %v5803 = vunpack.c.l.b16 %v5668
        %v5804 = vunpack.c.l.b16 %v5669
        %v5805 = vunpack.c.l.b16 %v5670
        %v5806 = vunpack.c.l.b16 %v5671
        %v5807 = vunpack.c.l.b16 %v5672
        %v5808 = vunpack.c.l.b16 %v5673
        %v5809 = vunpack.c.l.b16 %v5674
        %v5810 = vunpack.c.l.b16 %v5675
        %v5811 = vunpack.c.l.b16 %v5676
        %v5812 = vunpack.c.l.b16 %v5677
        %v5813 = vunpack.c.l.b16 %v5678
        %v5814 = vunpack.c.l.b16 %v5679
        %v5815 = vunpack.c.l.b16 %v5680
        %v5816 = vunpack.c.l.b16 %v5681
        %v5817 = vunpack.c.l.b16 %v5682
        %v5818 = vunpack.c.l.b16 %v5683
        %v5819 = vunpack.c.l.b16 %v5684
        %v5820 = vunpack.c.l.b16 %v5685
        %v5821 = vunpack.c.l.b16 %v5686
        %v5822 = vunpack.c.l.b16 %v5687
        %v5823 = vunpack.c.l.b16 %v5688
        %v5824 = vunpack.c.l.b16 %v5689
        %v5825 = vunpack.c.l.b16 %v5690
        %v5826 = vunpack.c.l.b16 %v5691
        %v5827 = vunpack.c.l.b16 %v5692
        %v5828 = vunpack.c.l.b16 %v5693
        %v5829 = vunpack.c.l.b16 %v5694
        %v5830 = vunpack.c.l.b16 %v5695
        %v5831 = vunpack.c.l.b16 %v5696
        %v5832 = vunpack.c.l.b16 %v5697
        %v5833 = vunpack.c.l.b16 %v5698
        %v5834 = vunpack.c.l.b16 %v5699
        %v5835 = vunpack.c.l.b16 %v5700
        %v5836 = vunpack.c.l.b16 %v5701
        %v5837 = vunpack.c.l.b16 %v5702
        %v5838 = vunpack.c.l.b16 %v5703
        %v5839 = vunpack.c.l.b16 %v5704
        %v5840 = vunpack.c.l.b16 %v5705
        %v5841 = vunpack.c.l.b16 %v5706
        %v5842 = vunpack.c.l.b16 %v5707
        %v5843 = vunpack.c.l.b16 %v5708
        %v5844 = vunpack.c.l.b16 %v5709
        %v5845 = vpack.c.b16 %v5782, %v5781
        %v5846 = vpack.c.b16 %v5784, %v5783
        %v5847 = vpack.c.b16 %v5786, %v5785
        %v5848 = vpack.c.b16 %v5788, %v5787
        %v5849 = vpack.c.b16 %v5790, %v5789
        %v5850 = vpack.c.b16 %v5792, %v5791
        %v5851 = vpack.c.b16 %v5794, %v5793
        %v5852 = vpack.c.b16 %v5796, %v5795
        %v5853 = vpack.c.b16 %v5798, %v5797
        %v5854 = vpack.c.b16 %v5800, %v5799
        %v5855 = vpack.c.b16 %v5802, %v5801
        %v5856 = vpack.c.b16 %v5804, %v5803
        %v5857 = vpack.c.b16 %v5806, %v5805
        %v5858 = vpack.c.b16 %v5808, %v5807
        %v5859 = vpack.c.b16 %v5810, %v5809
        %v5860 = vpack.c.b16 %v5812, %v5811
        %v5861 = vpack.c.b16 %v5814, %v5813
        %v5862 = vpack.c.b16 %v5816, %v5815
        %v5863 = vpack.c.b16 %v5818, %v5817
        %v5864 = vpack.c.b16 %v5820, %v5819
        %v5865 = vpack.c.b16 %v5822, %v5821
        %v5866 = vpack.c.b16 %v5824, %v5823
        %v5867 = vpack.c.b16 %v5826, %v5825
        %v5868 = vpack.c.b16 %v5828, %v5827
        %v5869 = vpack.c.b16 %v5830, %v5829
        %v5870 = vpack.c.b16 %v5832, %v5831
        %v5871 = vpack.c.b16 %v5834, %v5833
        %v5872 = vpack.c.b16 %v5836, %v5835
        %v5873 = vpack.c.b16 %v5838, %v5837
        %v5874 = vpack.c.b16 %v5840, %v5839
        %v5875 = vpack.c.b16 %v5842, %v5841
        %v5876 = vpack.c.b16 %v5844, %v5843
        %5909 = vmatprep.subr.bf16.mxu0 0
        %5910 = vmatpush1.bf16.msra.mxu0 %v5845
        %5911 = vmatprep.subr.bf16.mxu0 0
        %5912 = vmatpush1.bf16.msra.mxu0 %v5846
        %5913 = vmatprep.subr.bf16.mxu0 0
        %5914 = vmatpush1.bf16.msra.mxu0 %v5847
        %5915 = vmatprep.subr.bf16.mxu0 0
        %5916 = vmatpush1.bf16.msra.mxu0 %v5848
        %5917 = vmatprep.subr.bf16.mxu0 0
        %5918 = vmatpush1.bf16.msra.mxu0 %v5849
        %5919 = vmatprep.subr.bf16.mxu0 0
        %5920 = vmatpush1.bf16.msra.mxu0 %v5850
        %5921 = vmatprep.subr.bf16.mxu0 0
        %5922 = vmatpush1.bf16.msra.mxu0 %v5851
        %5923 = vmatprep.subr.bf16.mxu0 0
        %5924 = vmatpush1.bf16.msra.mxu0 %v5852
        %5925 = vmatprep.subr.bf16.mxu0 0
        %5926 = vmatpush1.bf16.msra.mxu0 %v5853
        %5927 = vmatprep.subr.bf16.mxu0 0
        %5928 = vmatpush1.bf16.msra.mxu0 %v5854
        %5929 = vmatprep.subr.bf16.mxu0 0
        %5930 = vmatpush1.bf16.msra.mxu0 %v5855
        %5931 = vmatprep.subr.bf16.mxu0 0
        %5932 = vmatpush1.bf16.msra.mxu0 %v5856
        %5933 = vmatprep.subr.bf16.mxu0 0
        %5934 = vmatpush1.bf16.msra.mxu0 %v5857
        %5935 = vmatprep.subr.bf16.mxu0 0
        %5936 = vmatpush1.bf16.msra.mxu0 %v5858
        %5937 = vmatprep.subr.bf16.mxu0 0
        %5938 = vmatpush1.bf16.msra.mxu0 %v5859
        %5939 = vmatprep.subr.bf16.mxu0 0
        %5940 = vmatpush1.bf16.msra.mxu0 %v5860
        %5941 = vmatprep.mubr.bf16.mxu0 %v5643
        %5942 = vmatmul.mubr.bf16.gmra.mrb[0].mxu0 %v5642
        %v5943 = vpop.f32.mrb[0].mxu0
        %v5944 = vadd.f32 %v5715, %v5943
        %v5945 = vpop.f32.mrb[0].mxu0
        %v5946 = vpop.f32.mrb[0].mxu0
        %v5947 = vadd.f32 %v5715, %v5946
        %v5948 = vpop.f32.mrb[0].mxu0
        %5949 = vdwg.mxu0
        %5950 = vmatprep.subr.bf16.mxu0 0
        %5951 = vmatpush1.bf16.msra.mxu0 %v5861
        %5952 = vmatprep.subr.bf16.mxu0 0
        %5953 = vmatpush1.bf16.msra.mxu0 %v5862
        %5954 = vmatprep.subr.bf16.mxu0 0
        %5955 = vmatpush1.bf16.msra.mxu0 %v5863
        %5956 = vmatprep.subr.bf16.mxu0 0
        %5957 = vmatpush1.bf16.msra.mxu0 %v5864
        %5958 = vmatprep.subr.bf16.mxu0 0
        %5959 = vmatpush1.bf16.msra.mxu0 %v5865
        %5960 = vmatprep.subr.bf16.mxu0 0
        %5961 = vmatpush1.bf16.msra.mxu0 %v5866
        %5962 = vmatprep.subr.bf16.mxu0 0
        %5963 = vmatpush1.bf16.msra.mxu0 %v5867
        %5964 = vmatprep.subr.bf16.mxu0 0
        %5965 = vmatpush1.bf16.msra.mxu0 %v5868
        %5966 = vmatprep.subr.bf16.mxu0 0
        %5967 = vmatpush1.bf16.msra.mxu0 %v5869
        %5968 = vmatprep.subr.bf16.mxu0 0
        %5969 = vmatpush1.bf16.msra.mxu0 %v5870
        %5970 = vmatprep.subr.bf16.mxu0 0
        %5971 = vmatpush1.bf16.msra.mxu0 %v5871
        %5972 = vmatprep.subr.bf16.mxu0 0
        %5973 = vmatpush1.bf16.msra.mxu0 %v5872
        %5974 = vmatprep.subr.bf16.mxu0 0
        %5975 = vmatpush1.bf16.msra.mxu0 %v5873
        %5976 = vmatprep.subr.bf16.mxu0 0
        %5977 = vmatpush1.bf16.msra.mxu0 %v5874
        %5978 = vmatprep.subr.bf16.mxu0 0
        %5979 = vmatpush1.bf16.msra.mxu0 %v5875
        %5980 = vmatprep.subr.bf16.mxu0 0
        %5981 = vmatpush1.bf16.msra.mxu0 %v5876
        %5982 = vmatprep.mubr.bf16.mxu0 %v5645
        %5983 = vmatmul.mubr.bf16.gmra.mrb[0].mxu0 %v5644
        %v5984 = vpop.f32.mrb[0].mxu0
        %v5985 = vadd.f32 %v5944, %v5984
        %v5986 = vpop.f32.mrb[0].mxu0
        %v5987 = vpop.f32.mrb[0].mxu0
        %v5988 = vadd.f32 %v5947, %v5987
        %v5989 = vpop.f32.mrb[0].mxu0
        %5990 = vdwg.mxu0
        %v5991 = vadd.f32 %v5331, %v5985
        %v5992 = vadd.f32 %v5332, %v5988
        %v5993 = vld [vmem:[%s1110] sm:$0x1]
        %v5994 = vld [vmem:[%s1113] sm:$0x1]
        %5995 = vadd.xlane.f32.xlu0 %v5991
        %v5996 = vpop.xlane.xlu0 %5995
        %5997 = vadd.xlane.f32.xlu0 %v5992
        %v5998 = vpop.xlane.xlu0 %5997
        %v5999 = vmul.f32 %v5996, %v3199
        %v6000 = vmul.f32 %v5998, %v3199
        %v6001 = vsub.f32 %v5991, %v5999
        %v6002 = vsub.f32 %v5992, %v6000
        %v6003 = vmul.f32 %v6001, %v6001
        %v6004 = vmul.f32 %v6002, %v6002
        %6005 = vadd.xlane.f32.xlu0 %v6003
        %v6006 = vpop.xlane.xlu0 %6005
        %6007 = vadd.xlane.f32.xlu0 %v6004
        %v6008 = vpop.xlane.xlu0 %6007
        %v6009 = vmul.f32 %v6006, %v3199
        %v6010 = vmul.f32 %v6008, %v3199
        %v6011 = vadd.f32 %v6009, 1e-05
        %v6012 = vadd.f32 %v6010, 1e-05
        %v6013 = vrsqrt.pop %v6011
        %v6014 = vrsqrt.pop %v6012
        %v6015 = vmul.f32 %v6001, %v6013
        %v6016 = vmul.f32 %v6002, %v6014
        %v6018 = vlaneseq
        %v6019 = vshrl.u32 %v6018, 7
        %v6020 = vsub.s32 0, %v6019
        %v6021 = vrot.slane %v5993, %v6020
        %v6023 = vmul.f32 %v6015, %v6021
        %v6024 = vmul.f32 %v6016, %v6021
        %v6026 = vlaneseq
        %v6027 = vshrl.u32 %v6026, 7
        %v6028 = vsub.s32 0, %v6027
        %v6029 = vrot.slane %v5994, %v6028
        %v6031 = vadd.f32 %v6023, %v6029
        %v6032 = vadd.f32 %v6024, %v6029
        %6033 = vst [vmem:[#allocation2] sm:$0xff] %v6031
        %6034 = vst [vmem:[#allocation2 + $0x8] sm:$0xff] %v6032
        %p6035 = scmp.eq.s32.totalorder %s44, 5
        // Predicated region
        $region137: #{transformer_forward.3} parent=115 // pred_check
          %p6036 = pneg %p6035
        $region138: #{transformer_forward.3} parent=115 // pred_check_branch
          %6038 = sbr.rel (%p6036) target = $region140
        $region139: #{transformer_forward.3} parent=115 // pred_region
          %v6039 = vpack.c.bf16 %v6032, %v6031
          %v6040 = vld [vmem:[%s22] sm:$0xf]
          %v6041 = vld [vmem:[%s22 + $0x4] sm:$0xf]
          %v6042 = vld [vmem:[%s22 + $0x8] sm:$0xf]
          %v6043 = vld [vmem:[%s22 + $0xc] sm:$0xf]
          %v6044 = vld [vmem:[%s22 + $0x10] sm:$0xf]
          %v6045 = vld [vmem:[%s22 + $0x14] sm:$0xf]
          %v6046 = vld [vmem:[%s22 + $0x18] sm:$0xf]
          %v6047 = vld [vmem:[%s22 + $0x1c] sm:$0xf]
          %v6048 = vld [vmem:[%s22 + $0x20] sm:$0xf]
          %v6049 = vld [vmem:[%s22 + $0x24] sm:$0xf]
          %v6050 = vld [vmem:[%s22 + $0x28] sm:$0xf]
          %v6051 = vld [vmem:[%s22 + $0x2c] sm:$0xf]
          %v6052 = vld [vmem:[%s22 + $0x30] sm:$0xf]
          %v6053 = vld [vmem:[%s22 + $0x34] sm:$0xf]
          %v6054 = vld [vmem:[%s22 + $0x38] sm:$0xf]
          %v6055 = vld [vmem:[%s22 + $0x3c] sm:$0xf]
          %v6056 = vld [vmem:[%s23] sm:$0x1]
          %v6058 = vlaneseq
          %v6059 = vshrl.u32 %v6058, 7
          %v6060 = vsub.s32 0, %v6059
          %v6061 = vrot.slane %v6056, %v6060
          %v6079 = vunpack.c.l.b16 %v6040
          %v6080 = vunpack.c.l.b16 %v6041
          %v6081 = vunpack.c.l.b16 %v6042
          %v6082 = vunpack.c.l.b16 %v6043
          %v6083 = vunpack.c.l.b16 %v6044
          %v6084 = vunpack.c.l.b16 %v6045
          %v6085 = vunpack.c.l.b16 %v6046
          %v6086 = vunpack.c.l.b16 %v6047
          %v6087 = vunpack.c.l.b16 %v6048
          %v6088 = vunpack.c.l.b16 %v6049
          %v6089 = vunpack.c.l.b16 %v6050
          %v6090 = vunpack.c.l.b16 %v6051
          %v6091 = vunpack.c.l.b16 %v6052
          %v6092 = vunpack.c.l.b16 %v6053
          %v6093 = vunpack.c.l.b16 %v6054
          %v6094 = vunpack.c.l.b16 %v6055
          %v6095 = vpack.c.b16 %v6080, %v6079
          %v6096 = vpack.c.b16 %v6082, %v6081
          %v6097 = vpack.c.b16 %v6084, %v6083
          %v6098 = vpack.c.b16 %v6086, %v6085
          %v6099 = vpack.c.b16 %v6088, %v6087
          %v6100 = vpack.c.b16 %v6090, %v6089
          %v6101 = vpack.c.b16 %v6092, %v6091
          %v6102 = vpack.c.b16 %v6094, %v6093
          %6111 = vmatprep.subr.bf16.mxu0 0
          %6112 = vmatpush1.bf16.msra.mxu0 %v6095
          %6113 = vmatprep.subr.bf16.mxu0 0
          %6114 = vmatpush1.bf16.msra.mxu0 %v6096
          %6115 = vmatprep.subr.bf16.mxu0 0
          %6116 = vmatpush1.bf16.msra.mxu0 %v6097
          %6117 = vmatprep.subr.bf16.mxu0 0
          %6118 = vmatpush1.bf16.msra.mxu0 %v6098
          %6119 = vmatprep.subr.bf16.mxu0 0
          %6120 = vmatpush1.bf16.msra.mxu0 %v6099
          %6121 = vmatprep.subr.bf16.mxu0 0
          %6122 = vmatpush1.bf16.msra.mxu0 %v6100
          %6123 = vmatprep.subr.bf16.mxu0 0
          %6124 = vmatpush1.bf16.msra.mxu0 %v6101
          %6125 = vmatprep.subr.bf16.mxu0 0
          %6126 = vmatpush1.bf16.msra.mxu0 %v6102
          %6127 = vmatprep.subr.bf16.mxu0 0
          %6128 = vmatpush1.bf16.msra.mxu0 0
          %6129 = vmatprep.subr.bf16.mxu0 0
          %6130 = vmatpush1.bf16.msra.mxu0 0
          %6131 = vmatprep.subr.bf16.mxu0 0
          %6132 = vmatpush1.bf16.msra.mxu0 0
          %6133 = vmatprep.subr.bf16.mxu0 0
          %6134 = vmatpush1.bf16.msra.mxu0 0
          %6135 = vmatprep.subr.bf16.mxu0 0
          %6136 = vmatpush1.bf16.msra.mxu0 0
          %6137 = vmatprep.subr.bf16.mxu0 0
          %6138 = vmatpush1.bf16.msra.mxu0 0
          %6139 = vmatprep.subr.bf16.mxu0 0
          %6140 = vmatpush1.bf16.msra.mxu0 0
          %6141 = vmatprep.subr.bf16.mxu0 0
          %6142 = vmatpush1.bf16.msra.mxu0 0
          %6143 = vmatprep.mubr.bf16.mxu0 0
          %6144 = vmatmul.mubr.bf16.gmra.mrb[0].mxu0 %v6039
          %v6145 = vpop.f32.mrb[0].mxu0
          %v6146 = vadd.f32 %v6061, %v6145
          %v6147 = vpop.f32.mrb[0].mxu0
          %v6148 = vpop.f32.mrb[0].mxu0
          %v6149 = vadd.f32 %v6061, %v6148
          %v6150 = vpop.f32.mrb[0].mxu0
          %6151 = vdwg.mxu0
          %6152 = vst [vmem:[%s24] sm:$0xff] %v6146
          %6153 = vst [vmem:[%s24 + $0x8] sm:$0xff] %v6149
        $region140: #{transformer_forward.3} parent=115 // pred_fallthru
          _
        // Predicated region
        $region141: #{transformer_forward.3} parent=115 // pred_check
          %p6154 = pneg %p661
        $region142: #{transformer_forward.3} parent=115 // pred_check_branch
          %6156 = sbr.rel (%p6154) target = $region144
        $region143: #{transformer_forward.3} parent=115 // pred_region
          _
        $region144: #{transformer_forward.3} parent=115 // pred_fallthru
          _
        // Predicated region
        $region145: #{transformer_forward.3} parent=115 // pred_check
          %p6157 = pneg %p661
        $region146: #{transformer_forward.3} parent=115 // pred_check_branch
          %6159 = sbr.rel (%p6157) target = $region148
        $region147: #{transformer_forward.3} parent=115 // pred_region
          _
        $region148: #{transformer_forward.3} parent=115 // pred_fallthru
          _
      $region116: #{transformer_forward.3} parent=5 // pred_fallthru
        _
      %p6160 = scmp.le.s32.totalorder 2, %s39
      // Predicated region
      $region149: #{transformer_forward.3} parent=5 // pred_check
        %p6161 = pneg %p6160
      $region150: #{transformer_forward.3} parent=5 // pred_check_branch
        %6163 = sbr.rel (%p6161) target = $region152
      $region151: #{transformer_forward.3} parent=5 // pred_region
        %s6164 = ssub.s32 %s39, 2
      $region152: #{transformer_forward.3} parent=5 // pred_fallthru
        _
    $region6: #{transformer_forward.3} parent=1 // loop_footer
      %s43 = sadd.s32 1, %s39
    $region7: #{transformer_forward.3} parent=1 // loop_footer_branch
      %38 = sbr.rel target = $region3
    $region8: #{transformer_forward.3} parent=1 // loop_exit
      _
    %6165 = vsyncpa [#allocation4], 1
    %s6166 = scalar_lea.sflag [#allocation4], 1
    %6167 = vsyncpa %s6166, 1
    %6168 = vsyncpa [#allocation6], 1
    %s6169 = scalar_lea.sflag [#allocation6], 1
    %6170 = vsyncpa %s6169, 1
    %6171 = vsyncpa [#allocation9], 1
    %s6172 = scalar_lea.sflag [#allocation9], 1
    %6173 = vsyncpa %s6172, 1

</llo_original>
